<compile_context>
chip_gen: v7x
topology: tpu7x:2x2x1
jax: 0.10.0
libtpu: 0.0.40
codegen_flags: <defaults>
</compile_context>

<pallas_src>
import numpy as np
import jax
import jax.numpy as jnp
from jax import lax
from jax.experimental import pallas as pl
from jax.experimental.pallas import tpu as pltpu


def _bilstm_crf_decode_kernel(
    x_ref,        # (T*B, E)     f32   time-major rows: row t*B + b == x[t, b]
    wih_f_ref,    # (4, E, Hd)   f32   per-gate input weights, forward dir (i,f,g,o)
    whh_f_ref,    # (4, Hd, Hd)  f32   per-gate recurrent weights, forward dir
    bias_f_ref,   # (4, 1, Hd)   f32   per-gate b_ih + b_hh, forward dir
    wih_b_ref,    # (4, E, Hd)   f32   reverse direction
    whh_b_ref,    # (4, Hd, Hd)  f32
    bias_b_ref,   # (4, 1, Hd)   f32
    wtag_f_ref,   # (Hd, K)      f32   hidden2tag columns acting on the fwd half
    wtag_b_ref,   # (Hd, K)      f32   hidden2tag columns acting on the bwd half
    btag_ref,     # (1, K)       f32
    start_ref,    # (1, K)       f32   CRF start transitions
    end_ref,      # (1, K)       f32   CRF end transitions
    trans_ref,    # (K, K)       f32   CRF transitions[from, to]
    out_ref,      # (B, T)       i32   decoded tags
    gin_f_ref,    # scratch (4, T*B, Hd) f32  hoisted input-gate pre-activations (fwd)
    gin_b_ref,    # scratch (4, T*B, Hd) f32  hoisted input-gate pre-activations (bwd)
    hf_ref,       # scratch (T*B, Hd)    f32  forward hidden states
    hb_ref,       # scratch (T*B, Hd)    f32  reverse hidden states
):
    B, T = out_ref.shape
    Hd = hf_ref.shape[1]
    K = trans_ref.shape[0]
    f32 = jnp.float32
    sig = jax.nn.sigmoid

    # ---- 1) Hoisted input projections: one matmul per gate/direction over all
    #         T*B rows (time-parallel work moved off the serial recurrence). ----
    x2d = x_ref[...]                                   # (T*B, E)
    bias_f = bias_f_ref[...]
    bias_b = bias_b_ref[...]
    for g in range(4):
        gin_f_ref[g] = (jnp.dot(x2d, wih_f_ref[g], preferred_element_type=f32)
                        + bias_f[g])
        gin_b_ref[g] = (jnp.dot(x2d, wih_b_ref[g], preferred_element_type=f32)
                        + bias_b[g])

    # Per-gate recurrent weights kept resident in vregs (no lane slicing per step).
    whf = [whh_f_ref[g] for g in range(4)]
    whb = [whh_b_ref[g] for g in range(4)]

    # ---- 2) Fused forward+reverse LSTM recurrence (PyTorch gate order i,f,g,o).
    #         Independent carries -> serial critical path of T steps; the two
    #         directions' MXU/EUP/VPU work interleaves within each step. --------
    h_f = c_f = h_b = c_b = jnp.zeros((B, Hd), f32)
    for t in range(T):
        rf = t * B                 # row block of timestep t       (forward)
        rb = (T - 1 - t) * B       # row block of timestep T-1-t   (reverse)

        a_i = gin_f_ref[0, rf:rf + B, :] + jnp.dot(h_f, whf[0], preferred_element_type=f32)
        a_f = gin_f_ref[1, rf:rf + B, :] + jnp.dot(h_f, whf[1], preferred_element_type=f32)
        a_g = gin_f_ref[2, rf:rf + B, :] + jnp.dot(h_f, whf[2], preferred_element_type=f32)
        a_o = gin_f_ref[3, rf:rf + B, :] + jnp.dot(h_f, whf[3], preferred_element_type=f32)

        b_i = gin_b_ref[0, rb:rb + B, :] + jnp.dot(h_b, whb[0], preferred_element_type=f32)
        b_f = gin_b_ref[1, rb:rb + B, :] + jnp.dot(h_b, whb[1], preferred_element_type=f32)
        b_g = gin_b_ref[2, rb:rb + B, :] + jnp.dot(h_b, whb[2], preferred_element_type=f32)
        b_o = gin_b_ref[3, rb:rb + B, :] + jnp.dot(h_b, whb[3], preferred_element_type=f32)

        c_f = sig(a_f) * c_f + sig(a_i) * jnp.tanh(a_g)
        h_f = sig(a_o) * jnp.tanh(c_f)
        c_b = sig(b_f) * c_b + sig(b_i) * jnp.tanh(b_g)
        h_b = sig(b_o) * jnp.tanh(c_b)

        hf_ref[rf:rf + B, :] = h_f
        hb_ref[rb:rb + B, :] = h_b

    # ---- 3) hidden2tag emissions for all timesteps with one batched matmul. ---
    em = (jnp.dot(hf_ref[...], wtag_f_ref[...], preferred_element_type=f32)
          + jnp.dot(hb_ref[...], wtag_b_ref[...], preferred_element_type=f32)
          + btag_ref[...])                             # (T*B, K)

    # ---- 4) CRF Viterbi forward pass (torchcrf._viterbi_decode semantics). ----
    trans = trans_ref[...]                             # (K, K) [from, to]
    from_ids = lax.broadcasted_iota(jnp.int32, (B, K, K), 1)

    score = start_ref[...] + em[0:B]                   # (B, K)
    hist = []                                          # hist[t-1]: backptrs of step t
    for t in range(1, T):
        # Candidate scores (batch, from_tag, to_tag).  Emissions do not affect
        # the max/argmax over the "from" axis, so they are added afterwards.
        cand = score[:, :, None] + trans[None, :, :]   # (B, K, K)
        best = jnp.max(cand, axis=1)                   # (B, K)
        idx = jnp.min(jnp.where(cand == best[:, None, :], from_ids, K), axis=1)
        hist.append(idx)                               # first-argmax tie-break (torch)
        score = best + em[t * B:(t + 1) * B]
    score = score + end_ref[...]

    # ---- 5) Backtrack; accumulate path in registers, one lane-dense store. ----
    lane_k = lax.broadcasted_iota(jnp.int32, (B, K), 1)
    smax = jnp.max(score, axis=1, keepdims=True)
    cur = jnp.min(jnp.where(score == smax, lane_k, K), axis=1, keepdims=True)  # (B, 1)

    col = lax.broadcasted_iota(jnp.int32, (B, T), 1)
    path = jnp.where(col == T - 1, cur, 0)             # (B, T)
    for t in range(T - 2, -1, -1):
        bp = hist[t]                                   # (B, K) backptrs of step t+1
        cur = jnp.sum(jnp.where(lane_k == cur, bp, 0), axis=1, keepdims=True)
        path = jnp.where(col == t, cur, path)
    out_ref[...] = path


def init_params(key, embedding_dim, hidden_dim, num_tags):
    """Deterministic synthetic parameters matching the PyTorch module's shapes."""
    Hd = hidden_dim // 2
    ks = jax.random.split(key, 14)
    s_lstm = 1.0 / float(np.sqrt(Hd))
    s_lin = 1.0 / float(np.sqrt(hidden_dim))

    def u(k, shape, scale):
        return jax.random.uniform(k, shape, jnp.float32, -scale, scale)

    return {
        # nn.LSTM(embedding_dim, Hd, bidirectional=True)
        "w_ih_f": u(ks[0], (4 * Hd, embedding_dim), s_lstm),
        "w_hh_f": u(ks[1], (4 * Hd, Hd), s_lstm),
        "b_ih_f": u(ks[2], (4 * Hd,), s_lstm),
        "b_hh_f": u(ks[3], (4 * Hd,), s_lstm),
        "w_ih_b": u(ks[4], (4 * Hd, embedding_dim), s_lstm),
        "w_hh_b": u(ks[5], (4 * Hd, Hd), s_lstm),
        "b_ih_b": u(ks[6], (4 * Hd,), s_lstm),
        "b_hh_b": u(ks[7], (4 * Hd,), s_lstm),
        # nn.Linear(hidden_dim, num_tags)
        "w_tag": u(ks[8], (num_tags, hidden_dim), s_lin),
        "b_tag": u(ks[9], (num_tags,), s_lin),
        # CRF(num_tags): uniform(-0.1, 0.1) as in torchcrf.reset_parameters
        "start": u(ks[10], (num_tags,), 0.1),
        "end": u(ks[11], (num_tags,), 0.1),
        "trans": u(ks[12], (num_tags, num_tags), 0.1),
    }


def bilstm_crf_decode(x, p):
    """x: (T, B, E) float32  ->  decoded tags (B, T) int32."""
    T, B, E = x.shape
    Hd = p["w_hh_f"].shape[1]
    K = p["trans"].shape[0]

    # Host-side glue: pre-transpose / split weights per gate and fold biases
    # (mathematically identical to the PyTorch parameterization).
    def gate_split(w):                       # (4*Hd, In) -> (4, In, Hd)
        wt = w.T                             # (In, 4*Hd), gate order i, f, g, o
        return jnp.stack([wt[:, g * Hd:(g + 1) * Hd] for g in range(4)], axis=0)

    wih_f = gate_split(p["w_ih_f"])          # (4, E, Hd)
    whh_f = gate_split(p["w_hh_f"])          # (4, Hd, Hd)
    bias_f = (p["b_ih_f"] + p["b_hh_f"]).reshape(4, 1, Hd)
    wih_b = gate_split(p["w_ih_b"])
    whh_b = gate_split(p["w_hh_b"])
    bias_b = (p["b_ih_b"] + p["b_hh_b"]).reshape(4, 1, Hd)

    wtag = p["w_tag"].T                      # (H, K), H = 2*Hd
    wtag_f = wtag[:Hd, :]                    # acts on the forward half of the concat
    wtag_b = wtag[Hd:, :]                    # acts on the reverse half
    btag = p["b_tag"].reshape(1, K)
    start = p["start"].reshape(1, K)
    end = p["end"].reshape(1, K)
    trans = p["trans"]

    x2d = x.reshape(T * B, E)                # time-major rows (t, b)

    vmem = pl.BlockSpec(memory_space=pltpu.MemorySpace.VMEM)
    out = pl.pallas_call(
        _bilstm_crf_decode_kernel,
        out_shape=jax.ShapeDtypeStruct((B, T), jnp.int32),
        in_specs=[vmem] * 13,
        out_specs=vmem,
        scratch_shapes=[
            pltpu.VMEM((4, T * B, Hd), jnp.float32),   # gin_f
            pltpu.VMEM((4, T * B, Hd), jnp.float32),   # gin_b
            pltpu.VMEM((T * B, Hd), jnp.float32),      # forward hidden states
            pltpu.VMEM((T * B, Hd), jnp.float32),      # reverse hidden states
        ],
    )(x2d, wih_f, whh_f, bias_f, wih_b, whh_b, bias_b,
      wtag_f, wtag_b, btag, start, end, trans)
    return out                               # (B, T) int32


if __name__ == "__main__":
    embedding_dim = 16
    hidden_dim = 32
    num_tags = 5
    seq_len = 8
    batch = 2

    key = jax.random.PRNGKey(0)
    pkey, xkey = jax.random.split(key)
    params = init_params(pkey, embedding_dim, hidden_dim, num_tags)
    x = jax.random.normal(xkey, (seq_len, batch, embedding_dim), jnp.float32)

    tags = jax.jit(bilstm_crf_decode)(x, params)
    jax.block_until_ready(tags)
    assert tags.shape == (batch, seq_len) and tags.dtype == jnp.int32
    print("KERNEL_OK")
</pallas_src>

<mosaic_0001>
module attributes {stable_mosaic.version = 11 : i64} {
  func.func @_bilstm_crf_decode_kernel(%arg0: memref<16x16xf32, #tpu.memory_space<vmem>>, %arg1: memref<4x16x16xf32, #tpu.memory_space<vmem>>, %arg2: memref<4x16x16xf32, #tpu.memory_space<vmem>>, %arg3: memref<4x1x16xf32, #tpu.memory_space<vmem>>, %arg4: memref<4x16x16xf32, #tpu.memory_space<vmem>>, %arg5: memref<4x16x16xf32, #tpu.memory_space<vmem>>, %arg6: memref<4x1x16xf32, #tpu.memory_space<vmem>>, %arg7: memref<16x5xf32, #tpu.memory_space<vmem>>, %arg8: memref<16x5xf32, #tpu.memory_space<vmem>>, %arg9: memref<1x5xf32, #tpu.memory_space<vmem>>, %arg10: memref<1x5xf32, #tpu.memory_space<vmem>>, %arg11: memref<1x5xf32, #tpu.memory_space<vmem>>, %arg12: memref<5x5xf32, #tpu.memory_space<vmem>>, %arg13: memref<2x8xi32, #tpu.memory_space<vmem>>, %arg14: memref<4x16x16xf32, #tpu.memory_space<vmem>>, %arg15: memref<4x16x16xf32, #tpu.memory_space<vmem>>, %arg16: memref<16x16xf32, #tpu.memory_space<vmem>>, %arg17: memref<16x16xf32, #tpu.memory_space<vmem>>) attributes {dimension_semantics = [], scalar_prefetch = 0 : i64, scratch_operands = 4 : i64, tpu.core_type = #tpu.core_type<tc>} {
    %c0 = arith.constant 0 : index
    %c0_0 = arith.constant 0 : index
    %0 = vector.load %arg0[%c0, %c0_0] : memref<16x16xf32, #tpu.memory_space<vmem>>, vector<16x16xf32>
    %c0_1 = arith.constant 0 : index
    %c0_2 = arith.constant 0 : index
    %c0_3 = arith.constant 0 : index
    %1 = vector.load %arg3[%c0_1, %c0_2, %c0_3] : memref<4x1x16xf32, #tpu.memory_space<vmem>>, vector<4x1x16xf32>
    %c0_4 = arith.constant 0 : index
    %c0_5 = arith.constant 0 : index
    %c0_6 = arith.constant 0 : index
    %2 = vector.load %arg6[%c0_4, %c0_5, %c0_6] : memref<4x1x16xf32, #tpu.memory_space<vmem>>, vector<4x1x16xf32>
    %c0_7 = arith.constant 0 : index
    %c0_8 = arith.constant 0 : index
    %c0_9 = arith.constant 0 : index
    %3 = vector.load %arg1[%c0_7, %c0_8, %c0_9] : memref<4x16x16xf32, #tpu.memory_space<vmem>>, vector<1x16x16xf32>
    %4 = vector.shape_cast %3 : vector<1x16x16xf32> to vector<16x16xf32>
    %cst = arith.constant dense<0.000000e+00> : vector<16x16xf32>
    %5 = tpu.matmul %0, %4, %cst {dimension_numbers = #tpu.dot_dimension_numbers<[1], [0], [0], [1], [0, 0, 1, 1], [], []>} : vector<16x16xf32>, vector<16x16xf32>, vector<16x16xf32> -> vector<16x16xf32>
    %6 = vector.extract_strided_slice %1 {offsets = [0, 0, 0], sizes = [1, 1, 16], strides = [1, 1, 1]} : vector<4x1x16xf32> to vector<1x1x16xf32>
    %7 = vector.shape_cast %6 : vector<1x1x16xf32> to vector<1x16xf32>
    %8 = vector.broadcast %7 : vector<1x16xf32> to vector<16x16xf32>
    %9 = arith.addf %5, %8 : vector<16x16xf32>
    %c0_10 = arith.constant 0 : index
    %c0_11 = arith.constant 0 : index
    %c0_12 = arith.constant 0 : index
    %10 = vector.load %arg14[%c0_10, %c0_11, %c0_12] : memref<4x16x16xf32, #tpu.memory_space<vmem>>, vector<1x16x16xf32>
    %11 = vector.shape_cast %10 : vector<1x16x16xf32> to vector<16x16xf32>
    %12 = vector.shape_cast %9 : vector<16x16xf32> to vector<1x16x16xf32>
    tpu.vector_store %arg14[%c0_10, %c0_11, %c0_12], %12 {strides = array<i32>} : memref<4x16x16xf32, #tpu.memory_space<vmem>>, vector<1x16x16xf32>,
    %c0_13 = arith.constant 0 : index
    %c0_14 = arith.constant 0 : index
    %c0_15 = arith.constant 0 : index
    %13 = vector.load %arg4[%c0_13, %c0_14, %c0_15] : memref<4x16x16xf32, #tpu.memory_space<vmem>>, vector<1x16x16xf32>
    %14 = vector.shape_cast %13 : vector<1x16x16xf32> to vector<16x16xf32>
    %cst_16 = arith.constant dense<0.000000e+00> : vector<16x16xf32>
    %15 = tpu.matmul %0, %14, %cst_16 {dimension_numbers = #tpu.dot_dimension_numbers<[1], [0], [0], [1], [0, 0, 1, 1], [], []>} : vector<16x16xf32>, vector<16x16xf32>, vector<16x16xf32> -> vector<16x16xf32>
    %16 = vector.extract_strided_slice %2 {offsets = [0, 0, 0], sizes = [1, 1, 16], strides = [1, 1, 1]} : vector<4x1x16xf32> to vector<1x1x16xf32>
    %17 = vector.shape_cast %16 : vector<1x1x16xf32> to vector<1x16xf32>
    %18 = vector.broadcast %17 : vector<1x16xf32> to vector<16x16xf32>
    %19 = arith.addf %15, %18 : vector<16x16xf32>
    %c0_17 = arith.constant 0 : index
    %c0_18 = arith.constant 0 : index
    %c0_19 = arith.constant 0 : index
    %20 = vector.load %arg15[%c0_17, %c0_18, %c0_19] : memref<4x16x16xf32, #tpu.memory_space<vmem>>, vector<1x16x16xf32>
    %21 = vector.shape_cast %20 : vector<1x16x16xf32> to vector<16x16xf32>
    %22 = vector.shape_cast %19 : vector<16x16xf32> to vector<1x16x16xf32>
    tpu.vector_store %arg15[%c0_17, %c0_18, %c0_19], %22 {strides = array<i32>} : memref<4x16x16xf32, #tpu.memory_space<vmem>>, vector<1x16x16xf32>,
    %c1 = arith.constant 1 : index
    %c0_20 = arith.constant 0 : index
    %c0_21 = arith.constant 0 : index
    %23 = vector.load %arg1[%c1, %c0_20, %c0_21] : memref<4x16x16xf32, #tpu.memory_space<vmem>>, vector<1x16x16xf32>
    %24 = vector.shape_cast %23 : vector<1x16x16xf32> to vector<16x16xf32>
    %cst_22 = arith.constant dense<0.000000e+00> : vector<16x16xf32>
    %25 = tpu.matmul %0, %24, %cst_22 {dimension_numbers = #tpu.dot_dimension_numbers<[1], [0], [0], [1], [0, 0, 1, 1], [], []>} : vector<16x16xf32>, vector<16x16xf32>, vector<16x16xf32> -> vector<16x16xf32>
    %26 = vector.extract_strided_slice %1 {offsets = [1, 0, 0], sizes = [1, 1, 16], strides = [1, 1, 1]} : vector<4x1x16xf32> to vector<1x1x16xf32>
    %27 = vector.shape_cast %26 : vector<1x1x16xf32> to vector<1x16xf32>
    %28 = vector.broadcast %27 : vector<1x16xf32> to vector<16x16xf32>
    %29 = arith.addf %25, %28 : vector<16x16xf32>
    %c1_23 = arith.constant 1 : index
    %c0_24 = arith.constant 0 : index
    %c0_25 = arith.constant 0 : index
    %30 = vector.load %arg14[%c1_23, %c0_24, %c0_25] : memref<4x16x16xf32, #tpu.memory_space<vmem>>, vector<1x16x16xf32>
    %31 = vector.shape_cast %30 : vector<1x16x16xf32> to vector<16x16xf32>
    %32 = vector.shape_cast %29 : vector<16x16xf32> to vector<1x16x16xf32>
    tpu.vector_store %arg14[%c1_23, %c0_24, %c0_25], %32 {strides = array<i32>} : memref<4x16x16xf32, #tpu.memory_space<vmem>>, vector<1x16x16xf32>,
    %c1_26 = arith.constant 1 : index
    %c0_27 = arith.constant 0 : index
    %c0_28 = arith.constant 0 : index
    %33 = vector.load %arg4[%c1_26, %c0_27, %c0_28] : memref<4x16x16xf32, #tpu.memory_space<vmem>>, vector<1x16x16xf32>
    %34 = vector.shape_cast %33 : vector<1x16x16xf32> to vector<16x16xf32>
    %cst_29 = arith.constant dense<0.000000e+00> : vector<16x16xf32>
    %35 = tpu.matmul %0, %34, %cst_29 {dimension_numbers = #tpu.dot_dimension_numbers<[1], [0], [0], [1], [0, 0, 1, 1], [], []>} : vector<16x16xf32>, vector<16x16xf32>, vector<16x16xf32> -> vector<16x16xf32>
    %36 = vector.extract_strided_slice %2 {offsets = [1, 0, 0], sizes = [1, 1, 16], strides = [1, 1, 1]} : vector<4x1x16xf32> to vector<1x1x16xf32>
    %37 = vector.shape_cast %36 : vector<1x1x16xf32> to vector<1x16xf32>
    %38 = vector.broadcast %37 : vector<1x16xf32> to vector<16x16xf32>
    %39 = arith.addf %35, %38 : vector<16x16xf32>
    %c1_30 = arith.constant 1 : index
    %c0_31 = arith.constant 0 : index
    %c0_32 = arith.constant 0 : index
    %40 = vector.load %arg15[%c1_30, %c0_31, %c0_32] : memref<4x16x16xf32, #tpu.memory_space<vmem>>, vector<1x16x16xf32>
    %41 = vector.shape_cast %40 : vector<1x16x16xf32> to vector<16x16xf32>
    %42 = vector.shape_cast %39 : vector<16x16xf32> to vector<1x16x16xf32>
    tpu.vector_store %arg15[%c1_30, %c0_31, %c0_32], %42 {strides = array<i32>} : memref<4x16x16xf32, #tpu.memory_space<vmem>>, vector<1x16x16xf32>,
    %c2 = arith.constant 2 : index
    %c0_33 = arith.constant 0 : index
    %c0_34 = arith.constant 0 : index
    %43 = vector.load %arg1[%c2, %c0_33, %c0_34] : memref<4x16x16xf32, #tpu.memory_space<vmem>>, vector<1x16x16xf32>
    %44 = vector.shape_cast %43 : vector<1x16x16xf32> to vector<16x16xf32>
    %cst_35 = arith.constant dense<0.000000e+00> : vector<16x16xf32>
    %45 = tpu.matmul %0, %44, %cst_35 {dimension_numbers = #tpu.dot_dimension_numbers<[1], [0], [0], [1], [0, 0, 1, 1], [], []>} : vector<16x16xf32>, vector<16x16xf32>, vector<16x16xf32> -> vector<16x16xf32>
    %46 = vector.extract_strided_slice %1 {offsets = [2, 0, 0], sizes = [1, 1, 16], strides = [1, 1, 1]} : vector<4x1x16xf32> to vector<1x1x16xf32>
    %47 = vector.shape_cast %46 : vector<1x1x16xf32> to vector<1x16xf32>
    %48 = vector.broadcast %47 : vector<1x16xf32> to vector<16x16xf32>
    %49 = arith.addf %45, %48 : vector<16x16xf32>
    %c2_36 = arith.constant 2 : index
    %c0_37 = arith.constant 0 : index
    %c0_38 = arith.constant 0 : index
    %50 = vector.load %arg14[%c2_36, %c0_37, %c0_38] : memref<4x16x16xf32, #tpu.memory_space<vmem>>, vector<1x16x16xf32>
    %51 = vector.shape_cast %50 : vector<1x16x16xf32> to vector<16x16xf32>
    %52 = vector.shape_cast %49 : vector<16x16xf32> to vector<1x16x16xf32>
    tpu.vector_store %arg14[%c2_36, %c0_37, %c0_38], %52 {strides = array<i32>} : memref<4x16x16xf32, #tpu.memory_space<vmem>>, vector<1x16x16xf32>,
    %c2_39 = arith.constant 2 : index
    %c0_40 = arith.constant 0 : index
    %c0_41 = arith.constant 0 : index
    %53 = vector.load %arg4[%c2_39, %c0_40, %c0_41] : memref<4x16x16xf32, #tpu.memory_space<vmem>>, vector<1x16x16xf32>
    %54 = vector.shape_cast %53 : vector<1x16x16xf32> to vector<16x16xf32>
    %cst_42 = arith.constant dense<0.000000e+00> : vector<16x16xf32>
    %55 = tpu.matmul %0, %54, %cst_42 {dimension_numbers = #tpu.dot_dimension_numbers<[1], [0], [0], [1], [0, 0, 1, 1], [], []>} : vector<16x16xf32>, vector<16x16xf32>, vector<16x16xf32> -> vector<16x16xf32>
    %56 = vector.extract_strided_slice %2 {offsets = [2, 0, 0], sizes = [1, 1, 16], strides = [1, 1, 1]} : vector<4x1x16xf32> to vector<1x1x16xf32>
    %57 = vector.shape_cast %56 : vector<1x1x16xf32> to vector<1x16xf32>
    %58 = vector.broadcast %57 : vector<1x16xf32> to vector<16x16xf32>
    %59 = arith.addf %55, %58 : vector<16x16xf32>
    %c2_43 = arith.constant 2 : index
    %c0_44 = arith.constant 0 : index
    %c0_45 = arith.constant 0 : index
    %60 = vector.load %arg15[%c2_43, %c0_44, %c0_45] : memref<4x16x16xf32, #tpu.memory_space<vmem>>, vector<1x16x16xf32>
    %61 = vector.shape_cast %60 : vector<1x16x16xf32> to vector<16x16xf32>
    %62 = vector.shape_cast %59 : vector<16x16xf32> to vector<1x16x16xf32>
    tpu.vector_store %arg15[%c2_43, %c0_44, %c0_45], %62 {strides = array<i32>} : memref<4x16x16xf32, #tpu.memory_space<vmem>>, vector<1x16x16xf32>,
    %c3 = arith.constant 3 : index
    %c0_46 = arith.constant 0 : index
    %c0_47 = arith.constant 0 : index
    %63 = vector.load %arg1[%c3, %c0_46, %c0_47] : memref<4x16x16xf32, #tpu.memory_space<vmem>>, vector<1x16x16xf32>
    %64 = vector.shape_cast %63 : vector<1x16x16xf32> to vector<16x16xf32>
    %cst_48 = arith.constant dense<0.000000e+00> : vector<16x16xf32>
    %65 = tpu.matmul %0, %64, %cst_48 {dimension_numbers = #tpu.dot_dimension_numbers<[1], [0], [0], [1], [0, 0, 1, 1], [], []>} : vector<16x16xf32>, vector<16x16xf32>, vector<16x16xf32> -> vector<16x16xf32>
    %66 = vector.extract_strided_slice %1 {offsets = [3, 0, 0], sizes = [1, 1, 16], strides = [1, 1, 1]} : vector<4x1x16xf32> to vector<1x1x16xf32>
    %67 = vector.shape_cast %66 : vector<1x1x16xf32> to vector<1x16xf32>
    %68 = vector.broadcast %67 : vector<1x16xf32> to vector<16x16xf32>
    %69 = arith.addf %65, %68 : vector<16x16xf32>
    %c3_49 = arith.constant 3 : index
    %c0_50 = arith.constant 0 : index
    %c0_51 = arith.constant 0 : index
    %70 = vector.load %arg14[%c3_49, %c0_50, %c0_51] : memref<4x16x16xf32, #tpu.memory_space<vmem>>, vector<1x16x16xf32>
    %71 = vector.shape_cast %70 : vector<1x16x16xf32> to vector<16x16xf32>
    %72 = vector.shape_cast %69 : vector<16x16xf32> to vector<1x16x16xf32>
    tpu.vector_store %arg14[%c3_49, %c0_50, %c0_51], %72 {strides = array<i32>} : memref<4x16x16xf32, #tpu.memory_space<vmem>>, vector<1x16x16xf32>,
    %c3_52 = arith.constant 3 : index
    %c0_53 = arith.constant 0 : index
    %c0_54 = arith.constant 0 : index
    %73 = vector.load %arg4[%c3_52, %c0_53, %c0_54] : memref<4x16x16xf32, #tpu.memory_space<vmem>>, vector<1x16x16xf32>
    %74 = vector.shape_cast %73 : vector<1x16x16xf32> to vector<16x16xf32>
    %cst_55 = arith.constant dense<0.000000e+00> : vector<16x16xf32>
    %75 = tpu.matmul %0, %74, %cst_55 {dimension_numbers = #tpu.dot_dimension_numbers<[1], [0], [0], [1], [0, 0, 1, 1], [], []>} : vector<16x16xf32>, vector<16x16xf32>, vector<16x16xf32> -> vector<16x16xf32>
    %76 = vector.extract_strided_slice %2 {offsets = [3, 0, 0], sizes = [1, 1, 16], strides = [1, 1, 1]} : vector<4x1x16xf32> to vector<1x1x16xf32>
    %77 = vector.shape_cast %76 : vector<1x1x16xf32> to vector<1x16xf32>
    %78 = vector.broadcast %77 : vector<1x16xf32> to vector<16x16xf32>
    %79 = arith.addf %75, %78 : vector<16x16xf32>
    %c3_56 = arith.constant 3 : index
    %c0_57 = arith.constant 0 : index
    %c0_58 = arith.constant 0 : index
    %80 = vector.load %arg15[%c3_56, %c0_57, %c0_58] : memref<4x16x16xf32, #tpu.memory_space<vmem>>, vector<1x16x16xf32>
    %81 = vector.shape_cast %80 : vector<1x16x16xf32> to vector<16x16xf32>
    %82 = vector.shape_cast %79 : vector<16x16xf32> to vector<1x16x16xf32>
    tpu.vector_store %arg15[%c3_56, %c0_57, %c0_58], %82 {strides = array<i32>} : memref<4x16x16xf32, #tpu.memory_space<vmem>>, vector<1x16x16xf32>,
    %c0_59 = arith.constant 0 : index
    %c0_60 = arith.constant 0 : index
    %c0_61 = arith.constant 0 : index
    %83 = vector.load %arg2[%c0_59, %c0_60, %c0_61] : memref<4x16x16xf32, #tpu.memory_space<vmem>>, vector<1x16x16xf32>
    %84 = vector.shape_cast %83 : vector<1x16x16xf32> to vector<16x16xf32>
    %c1_62 = arith.constant 1 : index
    %c0_63 = arith.constant 0 : index
    %c0_64 = arith.constant 0 : index
    %85 = vector.load %arg2[%c1_62, %c0_63, %c0_64] : memref<4x16x16xf32, #tpu.memory_space<vmem>>, vector<1x16x16xf32>
    %86 = vector.shape_cast %85 : vector<1x16x16xf32> to vector<16x16xf32>
    %c2_65 = arith.constant 2 : index
    %c0_66 = arith.constant 0 : index
    %c0_67 = arith.constant 0 : index
    %87 = vector.load %arg2[%c2_65, %c0_66, %c0_67] : memref<4x16x16xf32, #tpu.memory_space<vmem>>, vector<1x16x16xf32>
    %88 = vector.shape_cast %87 : vector<1x16x16xf32> to vector<16x16xf32>
    %c3_68 = arith.constant 3 : index
    %c0_69 = arith.constant 0 : index
    %c0_70 = arith.constant 0 : index
    %89 = vector.load %arg2[%c3_68, %c0_69, %c0_70] : memref<4x16x16xf32, #tpu.memory_space<vmem>>, vector<1x16x16xf32>
    %90 = vector.shape_cast %89 : vector<1x16x16xf32> to vector<16x16xf32>
    %c0_71 = arith.constant 0 : index
    %c0_72 = arith.constant 0 : index
    %c0_73 = arith.constant 0 : index
    %91 = vector.load %arg5[%c0_71, %c0_72, %c0_73] : memref<4x16x16xf32, #tpu.memory_space<vmem>>, vector<1x16x16xf32>
    %92 = vector.shape_cast %91 : vector<1x16x16xf32> to vector<16x16xf32>
    %c1_74 = arith.constant 1 : index
    %c0_75 = arith.constant 0 : index
    %c0_76 = arith.constant 0 : index
    %93 = vector.load %arg5[%c1_74, %c0_75, %c0_76] : memref<4x16x16xf32, #tpu.memory_space<vmem>>, vector<1x16x16xf32>
    %94 = vector.shape_cast %93 : vector<1x16x16xf32> to vector<16x16xf32>
    %c2_77 = arith.constant 2 : index
    %c0_78 = arith.constant 0 : index
    %c0_79 = arith.constant 0 : index
    %95 = vector.load %arg5[%c2_77, %c0_78, %c0_79] : memref<4x16x16xf32, #tpu.memory_space<vmem>>, vector<1x16x16xf32>
    %96 = vector.shape_cast %95 : vector<1x16x16xf32> to vector<16x16xf32>
    %c3_80 = arith.constant 3 : index
    %c0_81 = arith.constant 0 : index
    %c0_82 = arith.constant 0 : index
    %97 = vector.load %arg5[%c3_80, %c0_81, %c0_82] : memref<4x16x16xf32, #tpu.memory_space<vmem>>, vector<1x16x16xf32>
    %98 = vector.shape_cast %97 : vector<1x16x16xf32> to vector<16x16xf32>
    %cst_83 = arith.constant 0.000000e+00 : f32
    %99 = vector.broadcast %cst_83 : f32 to vector<2x16xf32>
    %c0_84 = arith.constant 0 : index
    %c0_85 = arith.constant 0 : index
    %c0_86 = arith.constant 0 : index
    %100 = vector.load %arg14[%c0_84, %c0_85, %c0_86] : memref<4x16x16xf32, #tpu.memory_space<vmem>>, vector<1x2x16xf32>
    %101 = vector.shape_cast %100 : vector<1x2x16xf32> to vector<2x16xf32>
    %cst_87 = arith.constant dense<0.000000e+00> : vector<2x16xf32>
    %102 = tpu.matmul %99, %84, %cst_87 {dimension_numbers = #tpu.dot_dimension_numbers<[1], [0], [0], [1], [0, 0, 1, 1], [], []>} : vector<2x16xf32>, vector<16x16xf32>, vector<2x16xf32> -> vector<2x16xf32>
    %103 = arith.addf %101, %102 : vector<2x16xf32>
    %c1_88 = arith.constant 1 : index
    %c0_89 = arith.constant 0 : index
    %c0_90 = arith.constant 0 : index
    %104 = vector.load %arg14[%c1_88, %c0_89, %c0_90] : memref<4x16x16xf32, #tpu.memory_space<vmem>>, vector<1x2x16xf32>
    %105 = vector.shape_cast %104 : vector<1x2x16xf32> to vector<2x16xf32>
    %cst_91 = arith.constant dense<0.000000e+00> : vector<2x16xf32>
    %106 = tpu.matmul %99, %86, %cst_91 {dimension_numbers = #tpu.dot_dimension_numbers<[1], [0], [0], [1], [0, 0, 1, 1], [], []>} : vector<2x16xf32>, vector<16x16xf32>, vector<2x16xf32> -> vector<2x16xf32>
    %107 = arith.addf %105, %106 : vector<2x16xf32>
    %c2_92 = arith.constant 2 : index
    %c0_93 = arith.constant 0 : index
    %c0_94 = arith.constant 0 : index
    %108 = vector.load %arg14[%c2_92, %c0_93, %c0_94] : memref<4x16x16xf32, #tpu.memory_space<vmem>>, vector<1x2x16xf32>
    %109 = vector.shape_cast %108 : vector<1x2x16xf32> to vector<2x16xf32>
    %cst_95 = arith.constant dense<0.000000e+00> : vector<2x16xf32>
    %110 = tpu.matmul %99, %88, %cst_95 {dimension_numbers = #tpu.dot_dimension_numbers<[1], [0], [0], [1], [0, 0, 1, 1], [], []>} : vector<2x16xf32>, vector<16x16xf32>, vector<2x16xf32> -> vector<2x16xf32>
    %111 = arith.addf %109, %110 : vector<2x16xf32>
    %c3_96 = arith.constant 3 : index
    %c0_97 = arith.constant 0 : index
    %c0_98 = arith.constant 0 : index
    %112 = vector.load %arg14[%c3_96, %c0_97, %c0_98] : memref<4x16x16xf32, #tpu.memory_space<vmem>>, vector<1x2x16xf32>
    %113 = vector.shape_cast %112 : vector<1x2x16xf32> to vector<2x16xf32>
    %cst_99 = arith.constant dense<0.000000e+00> : vector<2x16xf32>
    %114 = tpu.matmul %99, %90, %cst_99 {dimension_numbers = #tpu.dot_dimension_numbers<[1], [0], [0], [1], [0, 0, 1, 1], [], []>} : vector<2x16xf32>, vector<16x16xf32>, vector<2x16xf32> -> vector<2x16xf32>
    %115 = arith.addf %113, %114 : vector<2x16xf32>
    %c0_100 = arith.constant 0 : index
    %c14 = arith.constant 14 : index
    %c0_101 = arith.constant 0 : index
    %116 = vector.load %arg15[%c0_100, %c14, %c0_101] : memref<4x16x16xf32, #tpu.memory_space<vmem>>, vector<1x2x16xf32>
    %117 = vector.shape_cast %116 : vector<1x2x16xf32> to vector<2x16xf32>
    %cst_102 = arith.constant dense<0.000000e+00> : vector<2x16xf32>
    %118 = tpu.matmul %99, %92, %cst_102 {dimension_numbers = #tpu.dot_dimension_numbers<[1], [0], [0], [1], [0, 0, 1, 1], [], []>} : vector<2x16xf32>, vector<16x16xf32>, vector<2x16xf32> -> vector<2x16xf32>
    %119 = arith.addf %117, %118 : vector<2x16xf32>
    %c1_103 = arith.constant 1 : index
    %c14_104 = arith.constant 14 : index
    %c0_105 = arith.constant 0 : index
    %120 = vector.load %arg15[%c1_103, %c14_104, %c0_105] : memref<4x16x16xf32, #tpu.memory_space<vmem>>, vector<1x2x16xf32>
    %121 = vector.shape_cast %120 : vector<1x2x16xf32> to vector<2x16xf32>
    %cst_106 = arith.constant dense<0.000000e+00> : vector<2x16xf32>
    %122 = tpu.matmul %99, %94, %cst_106 {dimension_numbers = #tpu.dot_dimension_numbers<[1], [0], [0], [1], [0, 0, 1, 1], [], []>} : vector<2x16xf32>, vector<16x16xf32>, vector<2x16xf32> -> vector<2x16xf32>
    %123 = arith.addf %121, %122 : vector<2x16xf32>
    %c2_107 = arith.constant 2 : index
    %c14_108 = arith.constant 14 : index
    %c0_109 = arith.constant 0 : index
    %124 = vector.load %arg15[%c2_107, %c14_108, %c0_109] : memref<4x16x16xf32, #tpu.memory_space<vmem>>, vector<1x2x16xf32>
    %125 = vector.shape_cast %124 : vector<1x2x16xf32> to vector<2x16xf32>
    %cst_110 = arith.constant dense<0.000000e+00> : vector<2x16xf32>
    %126 = tpu.matmul %99, %96, %cst_110 {dimension_numbers = #tpu.dot_dimension_numbers<[1], [0], [0], [1], [0, 0, 1, 1], [], []>} : vector<2x16xf32>, vector<16x16xf32>, vector<2x16xf32> -> vector<2x16xf32>
    %127 = arith.addf %125, %126 : vector<2x16xf32>
    %c3_111 = arith.constant 3 : index
    %c14_112 = arith.constant 14 : index
    %c0_113 = arith.constant 0 : index
    %128 = vector.load %arg15[%c3_111, %c14_112, %c0_113] : memref<4x16x16xf32, #tpu.memory_space<vmem>>, vector<1x2x16xf32>
    %129 = vector.shape_cast %128 : vector<1x2x16xf32> to vector<2x16xf32>
    %cst_114 = arith.constant dense<0.000000e+00> : vector<2x16xf32>
    %130 = tpu.matmul %99, %98, %cst_114 {dimension_numbers = #tpu.dot_dimension_numbers<[1], [0], [0], [1], [0, 0, 1, 1], [], []>} : vector<2x16xf32>, vector<16x16xf32>, vector<2x16xf32> -> vector<2x16xf32>
    %131 = arith.addf %129, %130 : vector<2x16xf32>
    %132 = arith.negf %107 : vector<2x16xf32>
    %133 = math.exp %132 : vector<2x16xf32>
    %cst_115 = arith.constant 1.000000e+00 : f32
    %134 = vector.broadcast %cst_115 : f32 to vector<2x16xf32>
    %135 = arith.addf %134, %133 : vector<2x16xf32>
    %136 = arith.divf %134, %135 : vector<2x16xf32>
    %137 = arith.mulf %136, %99 : vector<2x16xf32>
    %138 = arith.negf %103 : vector<2x16xf32>
    %139 = math.exp %138 : vector<2x16xf32>
    %cst_116 = arith.constant 1.000000e+00 : f32
    %140 = vector.broadcast %cst_116 : f32 to vector<2x16xf32>
    %141 = arith.addf %140, %139 : vector<2x16xf32>
    %142 = arith.divf %140, %141 : vector<2x16xf32>
    %143 = math.tanh %111 : vector<2x16xf32>
    %144 = arith.mulf %142, %143 : vector<2x16xf32>
    %145 = arith.addf %137, %144 : vector<2x16xf32>
    %146 = arith.negf %115 : vector<2x16xf32>
    %147 = math.exp %146 : vector<2x16xf32>
    %cst_117 = arith.constant 1.000000e+00 : f32
    %148 = vector.broadcast %cst_117 : f32 to vector<2x16xf32>
    %149 = arith.addf %148, %147 : vector<2x16xf32>
    %150 = arith.divf %148, %149 : vector<2x16xf32>
    %151 = math.tanh %145 : vector<2x16xf32>
    %152 = arith.mulf %150, %151 : vector<2x16xf32>
    %153 = arith.negf %123 : vector<2x16xf32>
    %154 = math.exp %153 : vector<2x16xf32>
    %cst_118 = arith.constant 1.000000e+00 : f32
    %155 = vector.broadcast %cst_118 : f32 to vector<2x16xf32>
    %156 = arith.addf %155, %154 : vector<2x16xf32>
    %157 = arith.divf %155, %156 : vector<2x16xf32>
    %158 = arith.mulf %157, %99 : vector<2x16xf32>
    %159 = arith.negf %119 : vector<2x16xf32>
    %160 = math.exp %159 : vector<2x16xf32>
    %cst_119 = arith.constant 1.000000e+00 : f32
    %161 = vector.broadcast %cst_119 : f32 to vector<2x16xf32>
    %162 = arith.addf %161, %160 : vector<2x16xf32>
    %163 = arith.divf %161, %162 : vector<2x16xf32>
    %164 = math.tanh %127 : vector<2x16xf32>
    %165 = arith.mulf %163, %164 : vector<2x16xf32>
    %166 = arith.addf %158, %165 : vector<2x16xf32>
    %167 = arith.negf %131 : vector<2x16xf32>
    %168 = math.exp %167 : vector<2x16xf32>
    %cst_120 = arith.constant 1.000000e+00 : f32
    %169 = vector.broadcast %cst_120 : f32 to vector<2x16xf32>
    %170 = arith.addf %169, %168 : vector<2x16xf32>
    %171 = arith.divf %169, %170 : vector<2x16xf32>
    %172 = math.tanh %166 : vector<2x16xf32>
    %173 = arith.mulf %171, %172 : vector<2x16xf32>
    %c0_121 = arith.constant 0 : index
    %c0_122 = arith.constant 0 : index
    %174 = vector.load %arg16[%c0_121, %c0_122] : memref<16x16xf32, #tpu.memory_space<vmem>>, vector<2x16xf32>
    tpu.vector_store %arg16[%c0_121, %c0_122], %152 {strides = array<i32>} : memref<16x16xf32, #tpu.memory_space<vmem>>, vector<2x16xf32>,
    %c14_123 = arith.constant 14 : index
    %c0_124 = arith.constant 0 : index
    %175 = vector.load %arg17[%c14_123, %c0_124] : memref<16x16xf32, #tpu.memory_space<vmem>>, vector<2x16xf32>
    tpu.vector_store %arg17[%c14_123, %c0_124], %173 {strides = array<i32>} : memref<16x16xf32, #tpu.memory_space<vmem>>, vector<2x16xf32>,
    %c0_125 = arith.constant 0 : index
    %c2_126 = arith.constant 2 : index
    %c0_127 = arith.constant 0 : index
    %176 = vector.load %arg14[%c0_125, %c2_126, %c0_127] : memref<4x16x16xf32, #tpu.memory_space<vmem>>, vector<1x2x16xf32>
    %177 = vector.shape_cast %176 : vector<1x2x16xf32> to vector<2x16xf32>
    %cst_128 = arith.constant dense<0.000000e+00> : vector<2x16xf32>
    %178 = tpu.matmul %152, %84, %cst_128 {dimension_numbers = #tpu.dot_dimension_numbers<[1], [0], [0], [1], [0, 0, 1, 1], [], []>} : vector<2x16xf32>, vector<16x16xf32>, vector<2x16xf32> -> vector<2x16xf32>
    %179 = arith.addf %177, %178 : vector<2x16xf32>
    %c1_129 = arith.constant 1 : index
    %c2_130 = arith.constant 2 : index
    %c0_131 = arith.constant 0 : index
    %180 = vector.load %arg14[%c1_129, %c2_130, %c0_131] : memref<4x16x16xf32, #tpu.memory_space<vmem>>, vector<1x2x16xf32>
    %181 = vector.shape_cast %180 : vector<1x2x16xf32> to vector<2x16xf32>
    %cst_132 = arith.constant dense<0.000000e+00> : vector<2x16xf32>
    %182 = tpu.matmul %152, %86, %cst_132 {dimension_numbers = #tpu.dot_dimension_numbers<[1], [0], [0], [1], [0, 0, 1, 1], [], []>} : vector<2x16xf32>, vector<16x16xf32>, vector<2x16xf32> -> vector<2x16xf32>
    %183 = arith.addf %181, %182 : vector<2x16xf32>
    %c2_133 = arith.constant 2 : index
    %c2_134 = arith.constant 2 : index
    %c0_135 = arith.constant 0 : index
    %184 = vector.load %arg14[%c2_133, %c2_134, %c0_135] : memref<4x16x16xf32, #tpu.memory_space<vmem>>, vector<1x2x16xf32>
    %185 = vector.shape_cast %184 : vector<1x2x16xf32> to vector<2x16xf32>
    %cst_136 = arith.constant dense<0.000000e+00> : vector<2x16xf32>
    %186 = tpu.matmul %152, %88, %cst_136 {dimension_numbers = #tpu.dot_dimension_numbers<[1], [0], [0], [1], [0, 0, 1, 1], [], []>} : vector<2x16xf32>, vector<16x16xf32>, vector<2x16xf32> -> vector<2x16xf32>
    %187 = arith.addf %185, %186 : vector<2x16xf32>
    %c3_137 = arith.constant 3 : index
    %c2_138 = arith.constant 2 : index
    %c0_139 = arith.constant 0 : index
    %188 = vector.load %arg14[%c3_137, %c2_138, %c0_139] : memref<4x16x16xf32, #tpu.memory_space<vmem>>, vector<1x2x16xf32>
    %189 = vector.shape_cast %188 : vector<1x2x16xf32> to vector<2x16xf32>
    %cst_140 = arith.constant dense<0.000000e+00> : vector<2x16xf32>
    %190 = tpu.matmul %152, %90, %cst_140 {dimension_numbers = #tpu.dot_dimension_numbers<[1], [0], [0], [1], [0, 0, 1, 1], [], []>} : vector<2x16xf32>, vector<16x16xf32>, vector<2x16xf32> -> vector<2x16xf32>
    %191 = arith.addf %189, %190 : vector<2x16xf32>
    %c0_141 = arith.constant 0 : index
    %c12 = arith.constant 12 : index
    %c0_142 = arith.constant 0 : index
    %192 = vector.load %arg15[%c0_141, %c12, %c0_142] : memref<4x16x16xf32, #tpu.memory_space<vmem>>, vector<1x2x16xf32>
    %193 = vector.shape_cast %192 : vector<1x2x16xf32> to vector<2x16xf32>
    %cst_143 = arith.constant dense<0.000000e+00> : vector<2x16xf32>
    %194 = tpu.matmul %173, %92, %cst_143 {dimension_numbers = #tpu.dot_dimension_numbers<[1], [0], [0], [1], [0, 0, 1, 1], [], []>} : vector<2x16xf32>, vector<16x16xf32>, vector<2x16xf32> -> vector<2x16xf32>
    %195 = arith.addf %193, %194 : vector<2x16xf32>
    %c1_144 = arith.constant 1 : index
    %c12_145 = arith.constant 12 : index
    %c0_146 = arith.constant 0 : index
    %196 = vector.load %arg15[%c1_144, %c12_145, %c0_146] : memref<4x16x16xf32, #tpu.memory_space<vmem>>, vector<1x2x16xf32>
    %197 = vector.shape_cast %196 : vector<1x2x16xf32> to vector<2x16xf32>
    %cst_147 = arith.constant dense<0.000000e+00> : vector<2x16xf32>
    %198 = tpu.matmul %173, %94, %cst_147 {dimension_numbers = #tpu.dot_dimension_numbers<[1], [0], [0], [1], [0, 0, 1, 1], [], []>} : vector<2x16xf32>, vector<16x16xf32>, vector<2x16xf32> -> vector<2x16xf32>
    %199 = arith.addf %197, %198 : vector<2x16xf32>
    %c2_148 = arith.constant 2 : index
    %c12_149 = arith.constant 12 : index
    %c0_150 = arith.constant 0 : index
    %200 = vector.load %arg15[%c2_148, %c12_149, %c0_150] : memref<4x16x16xf32, #tpu.memory_space<vmem>>, vector<1x2x16xf32>
    %201 = vector.shape_cast %200 : vector<1x2x16xf32> to vector<2x16xf32>
    %cst_151 = arith.constant dense<0.000000e+00> : vector<2x16xf32>
    %202 = tpu.matmul %173, %96, %cst_151 {dimension_numbers = #tpu.dot_dimension_numbers<[1], [0], [0], [1], [0, 0, 1, 1], [], []>} : vector<2x16xf32>, vector<16x16xf32>, vector<2x16xf32> -> vector<2x16xf32>
    %203 = arith.addf %201, %202 : vector<2x16xf32>
    %c3_152 = arith.constant 3 : index
    %c12_153 = arith.constant 12 : index
    %c0_154 = arith.constant 0 : index
    %204 = vector.load %arg15[%c3_152, %c12_153, %c0_154] : memref<4x16x16xf32, #tpu.memory_space<vmem>>, vector<1x2x16xf32>
    %205 = vector.shape_cast %204 : vector<1x2x16xf32> to vector<2x16xf32>
    %cst_155 = arith.constant dense<0.000000e+00> : vector<2x16xf32>
    %206 = tpu.matmul %173, %98, %cst_155 {dimension_numbers = #tpu.dot_dimension_numbers<[1], [0], [0], [1], [0, 0, 1, 1], [], []>} : vector<2x16xf32>, vector<16x16xf32>, vector<2x16xf32> -> vector<2x16xf32>
    %207 = arith.addf %205, %206 : vector<2x16xf32>
    %208 = arith.negf %183 : vector<2x16xf32>
    %209 = math.exp %208 : vector<2x16xf32>
    %cst_156 = arith.constant 1.000000e+00 : f32
    %210 = vector.broadcast %cst_156 : f32 to vector<2x16xf32>
    %211 = arith.addf %210, %209 : vector<2x16xf32>
    %212 = arith.divf %210, %211 : vector<2x16xf32>
    %213 = arith.mulf %212, %145 : vector<2x16xf32>
    %214 = arith.negf %179 : vector<2x16xf32>
    %215 = math.exp %214 : vector<2x16xf32>
    %cst_157 = arith.constant 1.000000e+00 : f32
    %216 = vector.broadcast %cst_157 : f32 to vector<2x16xf32>
    %217 = arith.addf %216, %215 : vector<2x16xf32>
    %218 = arith.divf %216, %217 : vector<2x16xf32>
    %219 = math.tanh %187 : vector<2x16xf32>
    %220 = arith.mulf %218, %219 : vector<2x16xf32>
    %221 = arith.addf %213, %220 : vector<2x16xf32>
    %222 = arith.negf %191 : vector<2x16xf32>
    %223 = math.exp %222 : vector<2x16xf32>
    %cst_158 = arith.constant 1.000000e+00 : f32
    %224 = vector.broadcast %cst_158 : f32 to vector<2x16xf32>
    %225 = arith.addf %224, %223 : vector<2x16xf32>
    %226 = arith.divf %224, %225 : vector<2x16xf32>
    %227 = math.tanh %221 : vector<2x16xf32>
    %228 = arith.mulf %226, %227 : vector<2x16xf32>
    %229 = arith.negf %199 : vector<2x16xf32>
    %230 = math.exp %229 : vector<2x16xf32>
    %cst_159 = arith.constant 1.000000e+00 : f32
    %231 = vector.broadcast %cst_159 : f32 to vector<2x16xf32>
    %232 = arith.addf %231, %230 : vector<2x16xf32>
    %233 = arith.divf %231, %232 : vector<2x16xf32>
    %234 = arith.mulf %233, %166 : vector<2x16xf32>
    %235 = arith.negf %195 : vector<2x16xf32>
    %236 = math.exp %235 : vector<2x16xf32>
    %cst_160 = arith.constant 1.000000e+00 : f32
    %237 = vector.broadcast %cst_160 : f32 to vector<2x16xf32>
    %238 = arith.addf %237, %236 : vector<2x16xf32>
    %239 = arith.divf %237, %238 : vector<2x16xf32>
    %240 = math.tanh %203 : vector<2x16xf32>
    %241 = arith.mulf %239, %240 : vector<2x16xf32>
    %242 = arith.addf %234, %241 : vector<2x16xf32>
    %243 = arith.negf %207 : vector<2x16xf32>
    %244 = math.exp %243 : vector<2x16xf32>
    %cst_161 = arith.constant 1.000000e+00 : f32
    %245 = vector.broadcast %cst_161 : f32 to vector<2x16xf32>
    %246 = arith.addf %245, %244 : vector<2x16xf32>
    %247 = arith.divf %245, %246 : vector<2x16xf32>
    %248 = math.tanh %242 : vector<2x16xf32>
    %249 = arith.mulf %247, %248 : vector<2x16xf32>
    %c2_162 = arith.constant 2 : index
    %c0_163 = arith.constant 0 : index
    %250 = vector.load %arg16[%c2_162, %c0_163] : memref<16x16xf32, #tpu.memory_space<vmem>>, vector<2x16xf32>
    tpu.vector_store %arg16[%c2_162, %c0_163], %228 {strides = array<i32>} : memref<16x16xf32, #tpu.memory_space<vmem>>, vector<2x16xf32>,
    %c12_164 = arith.constant 12 : index
    %c0_165 = arith.constant 0 : index
    %251 = vector.load %arg17[%c12_164, %c0_165] : memref<16x16xf32, #tpu.memory_space<vmem>>, vector<2x16xf32>
    tpu.vector_store %arg17[%c12_164, %c0_165], %249 {strides = array<i32>} : memref<16x16xf32, #tpu.memory_space<vmem>>, vector<2x16xf32>,
    %c0_166 = arith.constant 0 : index
    %c4 = arith.constant 4 : index
    %c0_167 = arith.constant 0 : index
    %252 = vector.load %arg14[%c0_166, %c4, %c0_167] : memref<4x16x16xf32, #tpu.memory_space<vmem>>, vector<1x2x16xf32>
    %253 = vector.shape_cast %252 : vector<1x2x16xf32> to vector<2x16xf32>
    %cst_168 = arith.constant dense<0.000000e+00> : vector<2x16xf32>
    %254 = tpu.matmul %228, %84, %cst_168 {dimension_numbers = #tpu.dot_dimension_numbers<[1], [0], [0], [1], [0, 0, 1, 1], [], []>} : vector<2x16xf32>, vector<16x16xf32>, vector<2x16xf32> -> vector<2x16xf32>
    %255 = arith.addf %253, %254 : vector<2x16xf32>
    %c1_169 = arith.constant 1 : index
    %c4_170 = arith.constant 4 : index
    %c0_171 = arith.constant 0 : index
    %256 = vector.load %arg14[%c1_169, %c4_170, %c0_171] : memref<4x16x16xf32, #tpu.memory_space<vmem>>, vector<1x2x16xf32>
    %257 = vector.shape_cast %256 : vector<1x2x16xf32> to vector<2x16xf32>
    %cst_172 = arith.constant dense<0.000000e+00> : vector<2x16xf32>
    %258 = tpu.matmul %228, %86, %cst_172 {dimension_numbers = #tpu.dot_dimension_numbers<[1], [0], [0], [1], [0, 0, 1, 1], [], []>} : vector<2x16xf32>, vector<16x16xf32>, vector<2x16xf32> -> vector<2x16xf32>
    %259 = arith.addf %257, %258 : vector<2x16xf32>
    %c2_173 = arith.constant 2 : index
    %c4_174 = arith.constant 4 : index
    %c0_175 = arith.constant 0 : index
    %260 = vector.load %arg14[%c2_173, %c4_174, %c0_175] : memref<4x16x16xf32, #tpu.memory_space<vmem>>, vector<1x2x16xf32>
    %261 = vector.shape_cast %260 : vector<1x2x16xf32> to vector<2x16xf32>
    %cst_176 = arith.constant dense<0.000000e+00> : vector<2x16xf32>
    %262 = tpu.matmul %228, %88, %cst_176 {dimension_numbers = #tpu.dot_dimension_numbers<[1], [0], [0], [1], [0, 0, 1, 1], [], []>} : vector<2x16xf32>, vector<16x16xf32>, vector<2x16xf32> -> vector<2x16xf32>
    %263 = arith.addf %261, %262 : vector<2x16xf32>
    %c3_177 = arith.constant 3 : index
    %c4_178 = arith.constant 4 : index
    %c0_179 = arith.constant 0 : index
    %264 = vector.load %arg14[%c3_177, %c4_178, %c0_179] : memref<4x16x16xf32, #tpu.memory_space<vmem>>, vector<1x2x16xf32>
    %265 = vector.shape_cast %264 : vector<1x2x16xf32> to vector<2x16xf32>
    %cst_180 = arith.constant dense<0.000000e+00> : vector<2x16xf32>
    %266 = tpu.matmul %228, %90, %cst_180 {dimension_numbers = #tpu.dot_dimension_numbers<[1], [0], [0], [1], [0, 0, 1, 1], [], []>} : vector<2x16xf32>, vector<16x16xf32>, vector<2x16xf32> -> vector<2x16xf32>
    %267 = arith.addf %265, %266 : vector<2x16xf32>
    %c0_181 = arith.constant 0 : index
    %c10 = arith.constant 10 : index
    %c0_182 = arith.constant 0 : index
    %268 = vector.load %arg15[%c0_181, %c10, %c0_182] : memref<4x16x16xf32, #tpu.memory_space<vmem>>, vector<1x2x16xf32>
    %269 = vector.shape_cast %268 : vector<1x2x16xf32> to vector<2x16xf32>
    %cst_183 = arith.constant dense<0.000000e+00> : vector<2x16xf32>
    %270 = tpu.matmul %249, %92, %cst_183 {dimension_numbers = #tpu.dot_dimension_numbers<[1], [0], [0], [1], [0, 0, 1, 1], [], []>} : vector<2x16xf32>, vector<16x16xf32>, vector<2x16xf32> -> vector<2x16xf32>
    %271 = arith.addf %269, %270 : vector<2x16xf32>
    %c1_184 = arith.constant 1 : index
    %c10_185 = arith.constant 10 : index
    %c0_186 = arith.constant 0 : index
    %272 = vector.load %arg15[%c1_184, %c10_185, %c0_186] : memref<4x16x16xf32, #tpu.memory_space<vmem>>, vector<1x2x16xf32>
    %273 = vector.shape_cast %272 : vector<1x2x16xf32> to vector<2x16xf32>
    %cst_187 = arith.constant dense<0.000000e+00> : vector<2x16xf32>
    %274 = tpu.matmul %249, %94, %cst_187 {dimension_numbers = #tpu.dot_dimension_numbers<[1], [0], [0], [1], [0, 0, 1, 1], [], []>} : vector<2x16xf32>, vector<16x16xf32>, vector<2x16xf32> -> vector<2x16xf32>
    %275 = arith.addf %273, %274 : vector<2x16xf32>
    %c2_188 = arith.constant 2 : index
    %c10_189 = arith.constant 10 : index
    %c0_190 = arith.constant 0 : index
    %276 = vector.load %arg15[%c2_188, %c10_189, %c0_190] : memref<4x16x16xf32, #tpu.memory_space<vmem>>, vector<1x2x16xf32>
    %277 = vector.shape_cast %276 : vector<1x2x16xf32> to vector<2x16xf32>
    %cst_191 = arith.constant dense<0.000000e+00> : vector<2x16xf32>
    %278 = tpu.matmul %249, %96, %cst_191 {dimension_numbers = #tpu.dot_dimension_numbers<[1], [0], [0], [1], [0, 0, 1, 1], [], []>} : vector<2x16xf32>, vector<16x16xf32>, vector<2x16xf32> -> vector<2x16xf32>
    %279 = arith.addf %277, %278 : vector<2x16xf32>
    %c3_192 = arith.constant 3 : index
    %c10_193 = arith.constant 10 : index
    %c0_194 = arith.constant 0 : index
    %280 = vector.load %arg15[%c3_192, %c10_193, %c0_194] : memref<4x16x16xf32, #tpu.memory_space<vmem>>, vector<1x2x16xf32>
    %281 = vector.shape_cast %280 : vector<1x2x16xf32> to vector<2x16xf32>
    %cst_195 = arith.constant dense<0.000000e+00> : vector<2x16xf32>
    %282 = tpu.matmul %249, %98, %cst_195 {dimension_numbers = #tpu.dot_dimension_numbers<[1], [0], [0], [1], [0, 0, 1, 1], [], []>} : vector<2x16xf32>, vector<16x16xf32>, vector<2x16xf32> -> vector<2x16xf32>
    %283 = arith.addf %281, %282 : vector<2x16xf32>
    %284 = arith.negf %259 : vector<2x16xf32>
    %285 = math.exp %284 : vector<2x16xf32>
    %cst_196 = arith.constant 1.000000e+00 : f32
    %286 = vector.broadcast %cst_196 : f32 to vector<2x16xf32>
    %287 = arith.addf %286, %285 : vector<2x16xf32>
    %288 = arith.divf %286, %287 : vector<2x16xf32>
    %289 = arith.mulf %288, %221 : vector<2x16xf32>
    %290 = arith.negf %255 : vector<2x16xf32>
    %291 = math.exp %290 : vector<2x16xf32>
    %cst_197 = arith.constant 1.000000e+00 : f32
    %292 = vector.broadcast %cst_197 : f32 to vector<2x16xf32>
    %293 = arith.addf %292, %291 : vector<2x16xf32>
    %294 = arith.divf %292, %293 : vector<2x16xf32>
    %295 = math.tanh %263 : vector<2x16xf32>
    %296 = arith.mulf %294, %295 : vector<2x16xf32>
    %297 = arith.addf %289, %296 : vector<2x16xf32>
    %298 = arith.negf %267 : vector<2x16xf32>
    %299 = math.exp %298 : vector<2x16xf32>
    %cst_198 = arith.constant 1.000000e+00 : f32
    %300 = vector.broadcast %cst_198 : f32 to vector<2x16xf32>
    %301 = arith.addf %300, %299 : vector<2x16xf32>
    %302 = arith.divf %300, %301 : vector<2x16xf32>
    %303 = math.tanh %297 : vector<2x16xf32>
    %304 = arith.mulf %302, %303 : vector<2x16xf32>
    %305 = arith.negf %275 : vector<2x16xf32>
    %306 = math.exp %305 : vector<2x16xf32>
    %cst_199 = arith.constant 1.000000e+00 : f32
    %307 = vector.broadcast %cst_199 : f32 to vector<2x16xf32>
    %308 = arith.addf %307, %306 : vector<2x16xf32>
    %309 = arith.divf %307, %308 : vector<2x16xf32>
    %310 = arith.mulf %309, %242 : vector<2x16xf32>
    %311 = arith.negf %271 : vector<2x16xf32>
    %312 = math.exp %311 : vector<2x16xf32>
    %cst_200 = arith.constant 1.000000e+00 : f32
    %313 = vector.broadcast %cst_200 : f32 to vector<2x16xf32>
    %314 = arith.addf %313, %312 : vector<2x16xf32>
    %315 = arith.divf %313, %314 : vector<2x16xf32>
    %316 = math.tanh %279 : vector<2x16xf32>
    %317 = arith.mulf %315, %316 : vector<2x16xf32>
    %318 = arith.addf %310, %317 : vector<2x16xf32>
    %319 = arith.negf %283 : vector<2x16xf32>
    %320 = math.exp %319 : vector<2x16xf32>
    %cst_201 = arith.constant 1.000000e+00 : f32
    %321 = vector.broadcast %cst_201 : f32 to vector<2x16xf32>
    %322 = arith.addf %321, %320 : vector<2x16xf32>
    %323 = arith.divf %321, %322 : vector<2x16xf32>
    %324 = math.tanh %318 : vector<2x16xf32>
    %325 = arith.mulf %323, %324 : vector<2x16xf32>
    %c4_202 = arith.constant 4 : index
    %c0_203 = arith.constant 0 : index
    %326 = vector.load %arg16[%c4_202, %c0_203] : memref<16x16xf32, #tpu.memory_space<vmem>>, vector<2x16xf32>
    tpu.vector_store %arg16[%c4_202, %c0_203], %304 {strides = array<i32>} : memref<16x16xf32, #tpu.memory_space<vmem>>, vector<2x16xf32>,
    %c10_204 = arith.constant 10 : index
    %c0_205 = arith.constant 0 : index
    %327 = vector.load %arg17[%c10_204, %c0_205] : memref<16x16xf32, #tpu.memory_space<vmem>>, vector<2x16xf32>
    tpu.vector_store %arg17[%c10_204, %c0_205], %325 {strides = array<i32>} : memref<16x16xf32, #tpu.memory_space<vmem>>, vector<2x16xf32>,
    %c0_206 = arith.constant 0 : index
    %c6 = arith.constant 6 : index
    %c0_207 = arith.constant 0 : index
    %328 = vector.load %arg14[%c0_206, %c6, %c0_207] : memref<4x16x16xf32, #tpu.memory_space<vmem>>, vector<1x2x16xf32>
    %329 = vector.shape_cast %328 : vector<1x2x16xf32> to vector<2x16xf32>
    %cst_208 = arith.constant dense<0.000000e+00> : vector<2x16xf32>
    %330 = tpu.matmul %304, %84, %cst_208 {dimension_numbers = #tpu.dot_dimension_numbers<[1], [0], [0], [1], [0, 0, 1, 1], [], []>} : vector<2x16xf32>, vector<16x16xf32>, vector<2x16xf32> -> vector<2x16xf32>
    %331 = arith.addf %329, %330 : vector<2x16xf32>
    %c1_209 = arith.constant 1 : index
    %c6_210 = arith.constant 6 : index
    %c0_211 = arith.constant 0 : index
    %332 = vector.load %arg14[%c1_209, %c6_210, %c0_211] : memref<4x16x16xf32, #tpu.memory_space<vmem>>, vector<1x2x16xf32>
    %333 = vector.shape_cast %332 : vector<1x2x16xf32> to vector<2x16xf32>
    %cst_212 = arith.constant dense<0.000000e+00> : vector<2x16xf32>
    %334 = tpu.matmul %304, %86, %cst_212 {dimension_numbers = #tpu.dot_dimension_numbers<[1], [0], [0], [1], [0, 0, 1, 1], [], []>} : vector<2x16xf32>, vector<16x16xf32>, vector<2x16xf32> -> vector<2x16xf32>
    %335 = arith.addf %333, %334 : vector<2x16xf32>
    %c2_213 = arith.constant 2 : index
    %c6_214 = arith.constant 6 : index
    %c0_215 = arith.constant 0 : index
    %336 = vector.load %arg14[%c2_213, %c6_214, %c0_215] : memref<4x16x16xf32, #tpu.memory_space<vmem>>, vector<1x2x16xf32>
    %337 = vector.shape_cast %336 : vector<1x2x16xf32> to vector<2x16xf32>
    %cst_216 = arith.constant dense<0.000000e+00> : vector<2x16xf32>
    %338 = tpu.matmul %304, %88, %cst_216 {dimension_numbers = #tpu.dot_dimension_numbers<[1], [0], [0], [1], [0, 0, 1, 1], [], []>} : vector<2x16xf32>, vector<16x16xf32>, vector<2x16xf32> -> vector<2x16xf32>
    %339 = arith.addf %337, %338 : vector<2x16xf32>
    %c3_217 = arith.constant 3 : index
    %c6_218 = arith.constant 6 : index
    %c0_219 = arith.constant 0 : index
    %340 = vector.load %arg14[%c3_217, %c6_218, %c0_219] : memref<4x16x16xf32, #tpu.memory_space<vmem>>, vector<1x2x16xf32>
    %341 = vector.shape_cast %340 : vector<1x2x16xf32> to vector<2x16xf32>
    %cst_220 = arith.constant dense<0.000000e+00> : vector<2x16xf32>
    %342 = tpu.matmul %304, %90, %cst_220 {dimension_numbers = #tpu.dot_dimension_numbers<[1], [0], [0], [1], [0, 0, 1, 1], [], []>} : vector<2x16xf32>, vector<16x16xf32>, vector<2x16xf32> -> vector<2x16xf32>
    %343 = arith.addf %341, %342 : vector<2x16xf32>
    %c0_221 = arith.constant 0 : index
    %c8 = arith.constant 8 : index
    %c0_222 = arith.constant 0 : index
    %344 = vector.load %arg15[%c0_221, %c8, %c0_222] : memref<4x16x16xf32, #tpu.memory_space<vmem>>, vector<1x2x16xf32>
    %345 = vector.shape_cast %344 : vector<1x2x16xf32> to vector<2x16xf32>
    %cst_223 = arith.constant dense<0.000000e+00> : vector<2x16xf32>
    %346 = tpu.matmul %325, %92, %cst_223 {dimension_numbers = #tpu.dot_dimension_numbers<[1], [0], [0], [1], [0, 0, 1, 1], [], []>} : vector<2x16xf32>, vector<16x16xf32>, vector<2x16xf32> -> vector<2x16xf32>
    %347 = arith.addf %345, %346 : vector<2x16xf32>
    %c1_224 = arith.constant 1 : index
    %c8_225 = arith.constant 8 : index
    %c0_226 = arith.constant 0 : index
    %348 = vector.load %arg15[%c1_224, %c8_225, %c0_226] : memref<4x16x16xf32, #tpu.memory_space<vmem>>, vector<1x2x16xf32>
    %349 = vector.shape_cast %348 : vector<1x2x16xf32> to vector<2x16xf32>
    %cst_227 = arith.constant dense<0.000000e+00> : vector<2x16xf32>
    %350 = tpu.matmul %325, %94, %cst_227 {dimension_numbers = #tpu.dot_dimension_numbers<[1], [0], [0], [1], [0, 0, 1, 1], [], []>} : vector<2x16xf32>, vector<16x16xf32>, vector<2x16xf32> -> vector<2x16xf32>
    %351 = arith.addf %349, %350 : vector<2x16xf32>
    %c2_228 = arith.constant 2 : index
    %c8_229 = arith.constant 8 : index
    %c0_230 = arith.constant 0 : index
    %352 = vector.load %arg15[%c2_228, %c8_229, %c0_230] : memref<4x16x16xf32, #tpu.memory_space<vmem>>, vector<1x2x16xf32>
    %353 = vector.shape_cast %352 : vector<1x2x16xf32> to vector<2x16xf32>
    %cst_231 = arith.constant dense<0.000000e+00> : vector<2x16xf32>
    %354 = tpu.matmul %325, %96, %cst_231 {dimension_numbers = #tpu.dot_dimension_numbers<[1], [0], [0], [1], [0, 0, 1, 1], [], []>} : vector<2x16xf32>, vector<16x16xf32>, vector<2x16xf32> -> vector<2x16xf32>
    %355 = arith.addf %353, %354 : vector<2x16xf32>
    %c3_232 = arith.constant 3 : index
    %c8_233 = arith.constant 8 : index
    %c0_234 = arith.constant 0 : index
    %356 = vector.load %arg15[%c3_232, %c8_233, %c0_234] : memref<4x16x16xf32, #tpu.memory_space<vmem>>, vector<1x2x16xf32>
    %357 = vector.shape_cast %356 : vector<1x2x16xf32> to vector<2x16xf32>
    %cst_235 = arith.constant dense<0.000000e+00> : vector<2x16xf32>
    %358 = tpu.matmul %325, %98, %cst_235 {dimension_numbers = #tpu.dot_dimension_numbers<[1], [0], [0], [1], [0, 0, 1, 1], [], []>} : vector<2x16xf32>, vector<16x16xf32>, vector<2x16xf32> -> vector<2x16xf32>
    %359 = arith.addf %357, %358 : vector<2x16xf32>
    %360 = arith.negf %335 : vector<2x16xf32>
    %361 = math.exp %360 : vector<2x16xf32>
    %cst_236 = arith.constant 1.000000e+00 : f32
    %362 = vector.broadcast %cst_236 : f32 to vector<2x16xf32>
    %363 = arith.addf %362, %361 : vector<2x16xf32>
    %364 = arith.divf %362, %363 : vector<2x16xf32>
    %365 = arith.mulf %364, %297 : vector<2x16xf32>
    %366 = arith.negf %331 : vector<2x16xf32>
    %367 = math.exp %366 : vector<2x16xf32>
    %cst_237 = arith.constant 1.000000e+00 : f32
    %368 = vector.broadcast %cst_237 : f32 to vector<2x16xf32>
    %369 = arith.addf %368, %367 : vector<2x16xf32>
    %370 = arith.divf %368, %369 : vector<2x16xf32>
    %371 = math.tanh %339 : vector<2x16xf32>
    %372 = arith.mulf %370, %371 : vector<2x16xf32>
    %373 = arith.addf %365, %372 : vector<2x16xf32>
    %374 = arith.negf %343 : vector<2x16xf32>
    %375 = math.exp %374 : vector<2x16xf32>
    %cst_238 = arith.constant 1.000000e+00 : f32
    %376 = vector.broadcast %cst_238 : f32 to vector<2x16xf32>
    %377 = arith.addf %376, %375 : vector<2x16xf32>
    %378 = arith.divf %376, %377 : vector<2x16xf32>
    %379 = math.tanh %373 : vector<2x16xf32>
    %380 = arith.mulf %378, %379 : vector<2x16xf32>
    %381 = arith.negf %351 : vector<2x16xf32>
    %382 = math.exp %381 : vector<2x16xf32>
    %cst_239 = arith.constant 1.000000e+00 : f32
    %383 = vector.broadcast %cst_239 : f32 to vector<2x16xf32>
    %384 = arith.addf %383, %382 : vector<2x16xf32>
    %385 = arith.divf %383, %384 : vector<2x16xf32>
    %386 = arith.mulf %385, %318 : vector<2x16xf32>
    %387 = arith.negf %347 : vector<2x16xf32>
    %388 = math.exp %387 : vector<2x16xf32>
    %cst_240 = arith.constant 1.000000e+00 : f32
    %389 = vector.broadcast %cst_240 : f32 to vector<2x16xf32>
    %390 = arith.addf %389, %388 : vector<2x16xf32>
    %391 = arith.divf %389, %390 : vector<2x16xf32>
    %392 = math.tanh %355 : vector<2x16xf32>
    %393 = arith.mulf %391, %392 : vector<2x16xf32>
    %394 = arith.addf %386, %393 : vector<2x16xf32>
    %395 = arith.negf %359 : vector<2x16xf32>
    %396 = math.exp %395 : vector<2x16xf32>
    %cst_241 = arith.constant 1.000000e+00 : f32
    %397 = vector.broadcast %cst_241 : f32 to vector<2x16xf32>
    %398 = arith.addf %397, %396 : vector<2x16xf32>
    %399 = arith.divf %397, %398 : vector<2x16xf32>
    %400 = math.tanh %394 : vector<2x16xf32>
    %401 = arith.mulf %399, %400 : vector<2x16xf32>
    %c6_242 = arith.constant 6 : index
    %c0_243 = arith.constant 0 : index
    %402 = vector.load %arg16[%c6_242, %c0_243] : memref<16x16xf32, #tpu.memory_space<vmem>>, vector<2x16xf32>
    tpu.vector_store %arg16[%c6_242, %c0_243], %380 {strides = array<i32>} : memref<16x16xf32, #tpu.memory_space<vmem>>, vector<2x16xf32>,
    %c8_244 = arith.constant 8 : index
    %c0_245 = arith.constant 0 : index
    %403 = vector.load %arg17[%c8_244, %c0_245] : memref<16x16xf32, #tpu.memory_space<vmem>>, vector<2x16xf32>
    tpu.vector_store %arg17[%c8_244, %c0_245], %401 {strides = array<i32>} : memref<16x16xf32, #tpu.memory_space<vmem>>, vector<2x16xf32>,
    %c0_246 = arith.constant 0 : index
    %c8_247 = arith.constant 8 : index
    %c0_248 = arith.constant 0 : index
    %404 = vector.load %arg14[%c0_246, %c8_247, %c0_248] : memref<4x16x16xf32, #tpu.memory_space<vmem>>, vector<1x2x16xf32>
    %405 = vector.shape_cast %404 : vector<1x2x16xf32> to vector<2x16xf32>
    %cst_249 = arith.constant dense<0.000000e+00> : vector<2x16xf32>
    %406 = tpu.matmul %380, %84, %cst_249 {dimension_numbers = #tpu.dot_dimension_numbers<[1], [0], [0], [1], [0, 0, 1, 1], [], []>} : vector<2x16xf32>, vector<16x16xf32>, vector<2x16xf32> -> vector<2x16xf32>
    %407 = arith.addf %405, %406 : vector<2x16xf32>
    %c1_250 = arith.constant 1 : index
    %c8_251 = arith.constant 8 : index
    %c0_252 = arith.constant 0 : index
    %408 = vector.load %arg14[%c1_250, %c8_251, %c0_252] : memref<4x16x16xf32, #tpu.memory_space<vmem>>, vector<1x2x16xf32>
    %409 = vector.shape_cast %408 : vector<1x2x16xf32> to vector<2x16xf32>
    %cst_253 = arith.constant dense<0.000000e+00> : vector<2x16xf32>
    %410 = tpu.matmul %380, %86, %cst_253 {dimension_numbers = #tpu.dot_dimension_numbers<[1], [0], [0], [1], [0, 0, 1, 1], [], []>} : vector<2x16xf32>, vector<16x16xf32>, vector<2x16xf32> -> vector<2x16xf32>
    %411 = arith.addf %409, %410 : vector<2x16xf32>
    %c2_254 = arith.constant 2 : index
    %c8_255 = arith.constant 8 : index
    %c0_256 = arith.constant 0 : index
    %412 = vector.load %arg14[%c2_254, %c8_255, %c0_256] : memref<4x16x16xf32, #tpu.memory_space<vmem>>, vector<1x2x16xf32>
    %413 = vector.shape_cast %412 : vector<1x2x16xf32> to vector<2x16xf32>
    %cst_257 = arith.constant dense<0.000000e+00> : vector<2x16xf32>
    %414 = tpu.matmul %380, %88, %cst_257 {dimension_numbers = #tpu.dot_dimension_numbers<[1], [0], [0], [1], [0, 0, 1, 1], [], []>} : vector<2x16xf32>, vector<16x16xf32>, vector<2x16xf32> -> vector<2x16xf32>
    %415 = arith.addf %413, %414 : vector<2x16xf32>
    %c3_258 = arith.constant 3 : index
    %c8_259 = arith.constant 8 : index
    %c0_260 = arith.constant 0 : index
    %416 = vector.load %arg14[%c3_258, %c8_259, %c0_260] : memref<4x16x16xf32, #tpu.memory_space<vmem>>, vector<1x2x16xf32>
    %417 = vector.shape_cast %416 : vector<1x2x16xf32> to vector<2x16xf32>
    %cst_261 = arith.constant dense<0.000000e+00> : vector<2x16xf32>
    %418 = tpu.matmul %380, %90, %cst_261 {dimension_numbers = #tpu.dot_dimension_numbers<[1], [0], [0], [1], [0, 0, 1, 1], [], []>} : vector<2x16xf32>, vector<16x16xf32>, vector<2x16xf32> -> vector<2x16xf32>
    %419 = arith.addf %417, %418 : vector<2x16xf32>
    %c0_262 = arith.constant 0 : index
    %c6_263 = arith.constant 6 : index
    %c0_264 = arith.constant 0 : index
    %420 = vector.load %arg15[%c0_262, %c6_263, %c0_264] : memref<4x16x16xf32, #tpu.memory_space<vmem>>, vector<1x2x16xf32>
    %421 = vector.shape_cast %420 : vector<1x2x16xf32> to vector<2x16xf32>
    %cst_265 = arith.constant dense<0.000000e+00> : vector<2x16xf32>
    %422 = tpu.matmul %401, %92, %cst_265 {dimension_numbers = #tpu.dot_dimension_numbers<[1], [0], [0], [1], [0, 0, 1, 1], [], []>} : vector<2x16xf32>, vector<16x16xf32>, vector<2x16xf32> -> vector<2x16xf32>
    %423 = arith.addf %421, %422 : vector<2x16xf32>
    %c1_266 = arith.constant 1 : index
    %c6_267 = arith.constant 6 : index
    %c0_268 = arith.constant 0 : index
    %424 = vector.load %arg15[%c1_266, %c6_267, %c0_268] : memref<4x16x16xf32, #tpu.memory_space<vmem>>, vector<1x2x16xf32>
    %425 = vector.shape_cast %424 : vector<1x2x16xf32> to vector<2x16xf32>
    %cst_269 = arith.constant dense<0.000000e+00> : vector<2x16xf32>
    %426 = tpu.matmul %401, %94, %cst_269 {dimension_numbers = #tpu.dot_dimension_numbers<[1], [0], [0], [1], [0, 0, 1, 1], [], []>} : vector<2x16xf32>, vector<16x16xf32>, vector<2x16xf32> -> vector<2x16xf32>
    %427 = arith.addf %425, %426 : vector<2x16xf32>
    %c2_270 = arith.constant 2 : index
    %c6_271 = arith.constant 6 : index
    %c0_272 = arith.constant 0 : index
    %428 = vector.load %arg15[%c2_270, %c6_271, %c0_272] : memref<4x16x16xf32, #tpu.memory_space<vmem>>, vector<1x2x16xf32>
    %429 = vector.shape_cast %428 : vector<1x2x16xf32> to vector<2x16xf32>
    %cst_273 = arith.constant dense<0.000000e+00> : vector<2x16xf32>
    %430 = tpu.matmul %401, %96, %cst_273 {dimension_numbers = #tpu.dot_dimension_numbers<[1], [0], [0], [1], [0, 0, 1, 1], [], []>} : vector<2x16xf32>, vector<16x16xf32>, vector<2x16xf32> -> vector<2x16xf32>
    %431 = arith.addf %429, %430 : vector<2x16xf32>
    %c3_274 = arith.constant 3 : index
    %c6_275 = arith.constant 6 : index
    %c0_276 = arith.constant 0 : index
    %432 = vector.load %arg15[%c3_274, %c6_275, %c0_276] : memref<4x16x16xf32, #tpu.memory_space<vmem>>, vector<1x2x16xf32>
    %433 = vector.shape_cast %432 : vector<1x2x16xf32> to vector<2x16xf32>
    %cst_277 = arith.constant dense<0.000000e+00> : vector<2x16xf32>
    %434 = tpu.matmul %401, %98, %cst_277 {dimension_numbers = #tpu.dot_dimension_numbers<[1], [0], [0], [1], [0, 0, 1, 1], [], []>} : vector<2x16xf32>, vector<16x16xf32>, vector<2x16xf32> -> vector<2x16xf32>
    %435 = arith.addf %433, %434 : vector<2x16xf32>
    %436 = arith.negf %411 : vector<2x16xf32>
    %437 = math.exp %436 : vector<2x16xf32>
    %cst_278 = arith.constant 1.000000e+00 : f32
    %438 = vector.broadcast %cst_278 : f32 to vector<2x16xf32>
    %439 = arith.addf %438, %437 : vector<2x16xf32>
    %440 = arith.divf %438, %439 : vector<2x16xf32>
    %441 = arith.mulf %440, %373 : vector<2x16xf32>
    %442 = arith.negf %407 : vector<2x16xf32>
    %443 = math.exp %442 : vector<2x16xf32>
    %cst_279 = arith.constant 1.000000e+00 : f32
    %444 = vector.broadcast %cst_279 : f32 to vector<2x16xf32>
    %445 = arith.addf %444, %443 : vector<2x16xf32>
    %446 = arith.divf %444, %445 : vector<2x16xf32>
    %447 = math.tanh %415 : vector<2x16xf32>
    %448 = arith.mulf %446, %447 : vector<2x16xf32>
    %449 = arith.addf %441, %448 : vector<2x16xf32>
    %450 = arith.negf %419 : vector<2x16xf32>
    %451 = math.exp %450 : vector<2x16xf32>
    %cst_280 = arith.constant 1.000000e+00 : f32
    %452 = vector.broadcast %cst_280 : f32 to vector<2x16xf32>
    %453 = arith.addf %452, %451 : vector<2x16xf32>
    %454 = arith.divf %452, %453 : vector<2x16xf32>
    %455 = math.tanh %449 : vector<2x16xf32>
    %456 = arith.mulf %454, %455 : vector<2x16xf32>
    %457 = arith.negf %427 : vector<2x16xf32>
    %458 = math.exp %457 : vector<2x16xf32>
    %cst_281 = arith.constant 1.000000e+00 : f32
    %459 = vector.broadcast %cst_281 : f32 to vector<2x16xf32>
    %460 = arith.addf %459, %458 : vector<2x16xf32>
    %461 = arith.divf %459, %460 : vector<2x16xf32>
    %462 = arith.mulf %461, %394 : vector<2x16xf32>
    %463 = arith.negf %423 : vector<2x16xf32>
    %464 = math.exp %463 : vector<2x16xf32>
    %cst_282 = arith.constant 1.000000e+00 : f32
    %465 = vector.broadcast %cst_282 : f32 to vector<2x16xf32>
    %466 = arith.addf %465, %464 : vector<2x16xf32>
    %467 = arith.divf %465, %466 : vector<2x16xf32>
    %468 = math.tanh %431 : vector<2x16xf32>
    %469 = arith.mulf %467, %468 : vector<2x16xf32>
    %470 = arith.addf %462, %469 : vector<2x16xf32>
    %471 = arith.negf %435 : vector<2x16xf32>
    %472 = math.exp %471 : vector<2x16xf32>
    %cst_283 = arith.constant 1.000000e+00 : f32
    %473 = vector.broadcast %cst_283 : f32 to vector<2x16xf32>
    %474 = arith.addf %473, %472 : vector<2x16xf32>
    %475 = arith.divf %473, %474 : vector<2x16xf32>
    %476 = math.tanh %470 : vector<2x16xf32>
    %477 = arith.mulf %475, %476 : vector<2x16xf32>
    %c8_284 = arith.constant 8 : index
    %c0_285 = arith.constant 0 : index
    %478 = vector.load %arg16[%c8_284, %c0_285] : memref<16x16xf32, #tpu.memory_space<vmem>>, vector<2x16xf32>
    tpu.vector_store %arg16[%c8_284, %c0_285], %456 {strides = array<i32>} : memref<16x16xf32, #tpu.memory_space<vmem>>, vector<2x16xf32>,
    %c6_286 = arith.constant 6 : index
    %c0_287 = arith.constant 0 : index
    %479 = vector.load %arg17[%c6_286, %c0_287] : memref<16x16xf32, #tpu.memory_space<vmem>>, vector<2x16xf32>
    tpu.vector_store %arg17[%c6_286, %c0_287], %477 {strides = array<i32>} : memref<16x16xf32, #tpu.memory_space<vmem>>, vector<2x16xf32>,
    %c0_288 = arith.constant 0 : index
    %c10_289 = arith.constant 10 : index
    %c0_290 = arith.constant 0 : index
    %480 = vector.load %arg14[%c0_288, %c10_289, %c0_290] : memref<4x16x16xf32, #tpu.memory_space<vmem>>, vector<1x2x16xf32>
    %481 = vector.shape_cast %480 : vector<1x2x16xf32> to vector<2x16xf32>
    %cst_291 = arith.constant dense<0.000000e+00> : vector<2x16xf32>
    %482 = tpu.matmul %456, %84, %cst_291 {dimension_numbers = #tpu.dot_dimension_numbers<[1], [0], [0], [1], [0, 0, 1, 1], [], []>} : vector<2x16xf32>, vector<16x16xf32>, vector<2x16xf32> -> vector<2x16xf32>
    %483 = arith.addf %481, %482 : vector<2x16xf32>
    %c1_292 = arith.constant 1 : index
    %c10_293 = arith.constant 10 : index
    %c0_294 = arith.constant 0 : index
    %484 = vector.load %arg14[%c1_292, %c10_293, %c0_294] : memref<4x16x16xf32, #tpu.memory_space<vmem>>, vector<1x2x16xf32>
    %485 = vector.shape_cast %484 : vector<1x2x16xf32> to vector<2x16xf32>
    %cst_295 = arith.constant dense<0.000000e+00> : vector<2x16xf32>
    %486 = tpu.matmul %456, %86, %cst_295 {dimension_numbers = #tpu.dot_dimension_numbers<[1], [0], [0], [1], [0, 0, 1, 1], [], []>} : vector<2x16xf32>, vector<16x16xf32>, vector<2x16xf32> -> vector<2x16xf32>
    %487 = arith.addf %485, %486 : vector<2x16xf32>
    %c2_296 = arith.constant 2 : index
    %c10_297 = arith.constant 10 : index
    %c0_298 = arith.constant 0 : index
    %488 = vector.load %arg14[%c2_296, %c10_297, %c0_298] : memref<4x16x16xf32, #tpu.memory_space<vmem>>, vector<1x2x16xf32>
    %489 = vector.shape_cast %488 : vector<1x2x16xf32> to vector<2x16xf32>
    %cst_299 = arith.constant dense<0.000000e+00> : vector<2x16xf32>
    %490 = tpu.matmul %456, %88, %cst_299 {dimension_numbers = #tpu.dot_dimension_numbers<[1], [0], [0], [1], [0, 0, 1, 1], [], []>} : vector<2x16xf32>, vector<16x16xf32>, vector<2x16xf32> -> vector<2x16xf32>
    %491 = arith.addf %489, %490 : vector<2x16xf32>
    %c3_300 = arith.constant 3 : index
    %c10_301 = arith.constant 10 : index
    %c0_302 = arith.constant 0 : index
    %492 = vector.load %arg14[%c3_300, %c10_301, %c0_302] : memref<4x16x16xf32, #tpu.memory_space<vmem>>, vector<1x2x16xf32>
    %493 = vector.shape_cast %492 : vector<1x2x16xf32> to vector<2x16xf32>
    %cst_303 = arith.constant dense<0.000000e+00> : vector<2x16xf32>
    %494 = tpu.matmul %456, %90, %cst_303 {dimension_numbers = #tpu.dot_dimension_numbers<[1], [0], [0], [1], [0, 0, 1, 1], [], []>} : vector<2x16xf32>, vector<16x16xf32>, vector<2x16xf32> -> vector<2x16xf32>
    %495 = arith.addf %493, %494 : vector<2x16xf32>
    %c0_304 = arith.constant 0 : index
    %c4_305 = arith.constant 4 : index
    %c0_306 = arith.constant 0 : index
    %496 = vector.load %arg15[%c0_304, %c4_305, %c0_306] : memref<4x16x16xf32, #tpu.memory_space<vmem>>, vector<1x2x16xf32>
    %497 = vector.shape_cast %496 : vector<1x2x16xf32> to vector<2x16xf32>
    %cst_307 = arith.constant dense<0.000000e+00> : vector<2x16xf32>
    %498 = tpu.matmul %477, %92, %cst_307 {dimension_numbers = #tpu.dot_dimension_numbers<[1], [0], [0], [1], [0, 0, 1, 1], [], []>} : vector<2x16xf32>, vector<16x16xf32>, vector<2x16xf32> -> vector<2x16xf32>
    %499 = arith.addf %497, %498 : vector<2x16xf32>
    %c1_308 = arith.constant 1 : index
    %c4_309 = arith.constant 4 : index
    %c0_310 = arith.constant 0 : index
    %500 = vector.load %arg15[%c1_308, %c4_309, %c0_310] : memref<4x16x16xf32, #tpu.memory_space<vmem>>, vector<1x2x16xf32>
    %501 = vector.shape_cast %500 : vector<1x2x16xf32> to vector<2x16xf32>
    %cst_311 = arith.constant dense<0.000000e+00> : vector<2x16xf32>
    %502 = tpu.matmul %477, %94, %cst_311 {dimension_numbers = #tpu.dot_dimension_numbers<[1], [0], [0], [1], [0, 0, 1, 1], [], []>} : vector<2x16xf32>, vector<16x16xf32>, vector<2x16xf32> -> vector<2x16xf32>
    %503 = arith.addf %501, %502 : vector<2x16xf32>
    %c2_312 = arith.constant 2 : index
    %c4_313 = arith.constant 4 : index
    %c0_314 = arith.constant 0 : index
    %504 = vector.load %arg15[%c2_312, %c4_313, %c0_314] : memref<4x16x16xf32, #tpu.memory_space<vmem>>, vector<1x2x16xf32>
    %505 = vector.shape_cast %504 : vector<1x2x16xf32> to vector<2x16xf32>
    %cst_315 = arith.constant dense<0.000000e+00> : vector<2x16xf32>
    %506 = tpu.matmul %477, %96, %cst_315 {dimension_numbers = #tpu.dot_dimension_numbers<[1], [0], [0], [1], [0, 0, 1, 1], [], []>} : vector<2x16xf32>, vector<16x16xf32>, vector<2x16xf32> -> vector<2x16xf32>
    %507 = arith.addf %505, %506 : vector<2x16xf32>
    %c3_316 = arith.constant 3 : index
    %c4_317 = arith.constant 4 : index
    %c0_318 = arith.constant 0 : index
    %508 = vector.load %arg15[%c3_316, %c4_317, %c0_318] : memref<4x16x16xf32, #tpu.memory_space<vmem>>, vector<1x2x16xf32>
    %509 = vector.shape_cast %508 : vector<1x2x16xf32> to vector<2x16xf32>
    %cst_319 = arith.constant dense<0.000000e+00> : vector<2x16xf32>
    %510 = tpu.matmul %477, %98, %cst_319 {dimension_numbers = #tpu.dot_dimension_numbers<[1], [0], [0], [1], [0, 0, 1, 1], [], []>} : vector<2x16xf32>, vector<16x16xf32>, vector<2x16xf32> -> vector<2x16xf32>
    %511 = arith.addf %509, %510 : vector<2x16xf32>
    %512 = arith.negf %487 : vector<2x16xf32>
    %513 = math.exp %512 : vector<2x16xf32>
    %cst_320 = arith.constant 1.000000e+00 : f32
    %514 = vector.broadcast %cst_320 : f32 to vector<2x16xf32>
    %515 = arith.addf %514, %513 : vector<2x16xf32>
    %516 = arith.divf %514, %515 : vector<2x16xf32>
    %517 = arith.mulf %516, %449 : vector<2x16xf32>
    %518 = arith.negf %483 : vector<2x16xf32>
    %519 = math.exp %518 : vector<2x16xf32>
    %cst_321 = arith.constant 1.000000e+00 : f32
    %520 = vector.broadcast %cst_321 : f32 to vector<2x16xf32>
    %521 = arith.addf %520, %519 : vector<2x16xf32>
    %522 = arith.divf %520, %521 : vector<2x16xf32>
    %523 = math.tanh %491 : vector<2x16xf32>
    %524 = arith.mulf %522, %523 : vector<2x16xf32>
    %525 = arith.addf %517, %524 : vector<2x16xf32>
    %526 = arith.negf %495 : vector<2x16xf32>
    %527 = math.exp %526 : vector<2x16xf32>
    %cst_322 = arith.constant 1.000000e+00 : f32
    %528 = vector.broadcast %cst_322 : f32 to vector<2x16xf32>
    %529 = arith.addf %528, %527 : vector<2x16xf32>
    %530 = arith.divf %528, %529 : vector<2x16xf32>
    %531 = math.tanh %525 : vector<2x16xf32>
    %532 = arith.mulf %530, %531 : vector<2x16xf32>
    %533 = arith.negf %503 : vector<2x16xf32>
    %534 = math.exp %533 : vector<2x16xf32>
    %cst_323 = arith.constant 1.000000e+00 : f32
    %535 = vector.broadcast %cst_323 : f32 to vector<2x16xf32>
    %536 = arith.addf %535, %534 : vector<2x16xf32>
    %537 = arith.divf %535, %536 : vector<2x16xf32>
    %538 = arith.mulf %537, %470 : vector<2x16xf32>
    %539 = arith.negf %499 : vector<2x16xf32>
    %540 = math.exp %539 : vector<2x16xf32>
    %cst_324 = arith.constant 1.000000e+00 : f32
    %541 = vector.broadcast %cst_324 : f32 to vector<2x16xf32>
    %542 = arith.addf %541, %540 : vector<2x16xf32>
    %543 = arith.divf %541, %542 : vector<2x16xf32>
    %544 = math.tanh %507 : vector<2x16xf32>
    %545 = arith.mulf %543, %544 : vector<2x16xf32>
    %546 = arith.addf %538, %545 : vector<2x16xf32>
    %547 = arith.negf %511 : vector<2x16xf32>
    %548 = math.exp %547 : vector<2x16xf32>
    %cst_325 = arith.constant 1.000000e+00 : f32
    %549 = vector.broadcast %cst_325 : f32 to vector<2x16xf32>
    %550 = arith.addf %549, %548 : vector<2x16xf32>
    %551 = arith.divf %549, %550 : vector<2x16xf32>
    %552 = math.tanh %546 : vector<2x16xf32>
    %553 = arith.mulf %551, %552 : vector<2x16xf32>
    %c10_326 = arith.constant 10 : index
    %c0_327 = arith.constant 0 : index
    %554 = vector.load %arg16[%c10_326, %c0_327] : memref<16x16xf32, #tpu.memory_space<vmem>>, vector<2x16xf32>
    tpu.vector_store %arg16[%c10_326, %c0_327], %532 {strides = array<i32>} : memref<16x16xf32, #tpu.memory_space<vmem>>, vector<2x16xf32>,
    %c4_328 = arith.constant 4 : index
    %c0_329 = arith.constant 0 : index
    %555 = vector.load %arg17[%c4_328, %c0_329] : memref<16x16xf32, #tpu.memory_space<vmem>>, vector<2x16xf32>
    tpu.vector_store %arg17[%c4_328, %c0_329], %553 {strides = array<i32>} : memref<16x16xf32, #tpu.memory_space<vmem>>, vector<2x16xf32>,
    %c0_330 = arith.constant 0 : index
    %c12_331 = arith.constant 12 : index
    %c0_332 = arith.constant 0 : index
    %556 = vector.load %arg14[%c0_330, %c12_331, %c0_332] : memref<4x16x16xf32, #tpu.memory_space<vmem>>, vector<1x2x16xf32>
    %557 = vector.shape_cast %556 : vector<1x2x16xf32> to vector<2x16xf32>
    %cst_333 = arith.constant dense<0.000000e+00> : vector<2x16xf32>
    %558 = tpu.matmul %532, %84, %cst_333 {dimension_numbers = #tpu.dot_dimension_numbers<[1], [0], [0], [1], [0, 0, 1, 1], [], []>} : vector<2x16xf32>, vector<16x16xf32>, vector<2x16xf32> -> vector<2x16xf32>
    %559 = arith.addf %557, %558 : vector<2x16xf32>
    %c1_334 = arith.constant 1 : index
    %c12_335 = arith.constant 12 : index
    %c0_336 = arith.constant 0 : index
    %560 = vector.load %arg14[%c1_334, %c12_335, %c0_336] : memref<4x16x16xf32, #tpu.memory_space<vmem>>, vector<1x2x16xf32>
    %561 = vector.shape_cast %560 : vector<1x2x16xf32> to vector<2x16xf32>
    %cst_337 = arith.constant dense<0.000000e+00> : vector<2x16xf32>
    %562 = tpu.matmul %532, %86, %cst_337 {dimension_numbers = #tpu.dot_dimension_numbers<[1], [0], [0], [1], [0, 0, 1, 1], [], []>} : vector<2x16xf32>, vector<16x16xf32>, vector<2x16xf32> -> vector<2x16xf32>
    %563 = arith.addf %561, %562 : vector<2x16xf32>
    %c2_338 = arith.constant 2 : index
    %c12_339 = arith.constant 12 : index
    %c0_340 = arith.constant 0 : index
    %564 = vector.load %arg14[%c2_338, %c12_339, %c0_340] : memref<4x16x16xf32, #tpu.memory_space<vmem>>, vector<1x2x16xf32>
    %565 = vector.shape_cast %564 : vector<1x2x16xf32> to vector<2x16xf32>
    %cst_341 = arith.constant dense<0.000000e+00> : vector<2x16xf32>
    %566 = tpu.matmul %532, %88, %cst_341 {dimension_numbers = #tpu.dot_dimension_numbers<[1], [0], [0], [1], [0, 0, 1, 1], [], []>} : vector<2x16xf32>, vector<16x16xf32>, vector<2x16xf32> -> vector<2x16xf32>
    %567 = arith.addf %565, %566 : vector<2x16xf32>
    %c3_342 = arith.constant 3 : index
    %c12_343 = arith.constant 12 : index
    %c0_344 = arith.constant 0 : index
    %568 = vector.load %arg14[%c3_342, %c12_343, %c0_344] : memref<4x16x16xf32, #tpu.memory_space<vmem>>, vector<1x2x16xf32>
    %569 = vector.shape_cast %568 : vector<1x2x16xf32> to vector<2x16xf32>
    %cst_345 = arith.constant dense<0.000000e+00> : vector<2x16xf32>
    %570 = tpu.matmul %532, %90, %cst_345 {dimension_numbers = #tpu.dot_dimension_numbers<[1], [0], [0], [1], [0, 0, 1, 1], [], []>} : vector<2x16xf32>, vector<16x16xf32>, vector<2x16xf32> -> vector<2x16xf32>
    %571 = arith.addf %569, %570 : vector<2x16xf32>
    %c0_346 = arith.constant 0 : index
    %c2_347 = arith.constant 2 : index
    %c0_348 = arith.constant 0 : index
    %572 = vector.load %arg15[%c0_346, %c2_347, %c0_348] : memref<4x16x16xf32, #tpu.memory_space<vmem>>, vector<1x2x16xf32>
    %573 = vector.shape_cast %572 : vector<1x2x16xf32> to vector<2x16xf32>
    %cst_349 = arith.constant dense<0.000000e+00> : vector<2x16xf32>
    %574 = tpu.matmul %553, %92, %cst_349 {dimension_numbers = #tpu.dot_dimension_numbers<[1], [0], [0], [1], [0, 0, 1, 1], [], []>} : vector<2x16xf32>, vector<16x16xf32>, vector<2x16xf32> -> vector<2x16xf32>
    %575 = arith.addf %573, %574 : vector<2x16xf32>
    %c1_350 = arith.constant 1 : index
    %c2_351 = arith.constant 2 : index
    %c0_352 = arith.constant 0 : index
    %576 = vector.load %arg15[%c1_350, %c2_351, %c0_352] : memref<4x16x16xf32, #tpu.memory_space<vmem>>, vector<1x2x16xf32>
    %577 = vector.shape_cast %576 : vector<1x2x16xf32> to vector<2x16xf32>
    %cst_353 = arith.constant dense<0.000000e+00> : vector<2x16xf32>
    %578 = tpu.matmul %553, %94, %cst_353 {dimension_numbers = #tpu.dot_dimension_numbers<[1], [0], [0], [1], [0, 0, 1, 1], [], []>} : vector<2x16xf32>, vector<16x16xf32>, vector<2x16xf32> -> vector<2x16xf32>
    %579 = arith.addf %577, %578 : vector<2x16xf32>
    %c2_354 = arith.constant 2 : index
    %c2_355 = arith.constant 2 : index
    %c0_356 = arith.constant 0 : index
    %580 = vector.load %arg15[%c2_354, %c2_355, %c0_356] : memref<4x16x16xf32, #tpu.memory_space<vmem>>, vector<1x2x16xf32>
    %581 = vector.shape_cast %580 : vector<1x2x16xf32> to vector<2x16xf32>
    %cst_357 = arith.constant dense<0.000000e+00> : vector<2x16xf32>
    %582 = tpu.matmul %553, %96, %cst_357 {dimension_numbers = #tpu.dot_dimension_numbers<[1], [0], [0], [1], [0, 0, 1, 1], [], []>} : vector<2x16xf32>, vector<16x16xf32>, vector<2x16xf32> -> vector<2x16xf32>
    %583 = arith.addf %581, %582 : vector<2x16xf32>
    %c3_358 = arith.constant 3 : index
    %c2_359 = arith.constant 2 : index
    %c0_360 = arith.constant 0 : index
    %584 = vector.load %arg15[%c3_358, %c2_359, %c0_360] : memref<4x16x16xf32, #tpu.memory_space<vmem>>, vector<1x2x16xf32>
    %585 = vector.shape_cast %584 : vector<1x2x16xf32> to vector<2x16xf32>
    %cst_361 = arith.constant dense<0.000000e+00> : vector<2x16xf32>
    %586 = tpu.matmul %553, %98, %cst_361 {dimension_numbers = #tpu.dot_dimension_numbers<[1], [0], [0], [1], [0, 0, 1, 1], [], []>} : vector<2x16xf32>, vector<16x16xf32>, vector<2x16xf32> -> vector<2x16xf32>
    %587 = arith.addf %585, %586 : vector<2x16xf32>
    %588 = arith.negf %563 : vector<2x16xf32>
    %589 = math.exp %588 : vector<2x16xf32>
    %cst_362 = arith.constant 1.000000e+00 : f32
    %590 = vector.broadcast %cst_362 : f32 to vector<2x16xf32>
    %591 = arith.addf %590, %589 : vector<2x16xf32>
    %592 = arith.divf %590, %591 : vector<2x16xf32>
    %593 = arith.mulf %592, %525 : vector<2x16xf32>
    %594 = arith.negf %559 : vector<2x16xf32>
    %595 = math.exp %594 : vector<2x16xf32>
    %cst_363 = arith.constant 1.000000e+00 : f32
    %596 = vector.broadcast %cst_363 : f32 to vector<2x16xf32>
    %597 = arith.addf %596, %595 : vector<2x16xf32>
    %598 = arith.divf %596, %597 : vector<2x16xf32>
    %599 = math.tanh %567 : vector<2x16xf32>
    %600 = arith.mulf %598, %599 : vector<2x16xf32>
    %601 = arith.addf %593, %600 : vector<2x16xf32>
    %602 = arith.negf %571 : vector<2x16xf32>
    %603 = math.exp %602 : vector<2x16xf32>
    %cst_364 = arith.constant 1.000000e+00 : f32
    %604 = vector.broadcast %cst_364 : f32 to vector<2x16xf32>
    %605 = arith.addf %604, %603 : vector<2x16xf32>
    %606 = arith.divf %604, %605 : vector<2x16xf32>
    %607 = math.tanh %601 : vector<2x16xf32>
    %608 = arith.mulf %606, %607 : vector<2x16xf32>
    %609 = arith.negf %579 : vector<2x16xf32>
    %610 = math.exp %609 : vector<2x16xf32>
    %cst_365 = arith.constant 1.000000e+00 : f32
    %611 = vector.broadcast %cst_365 : f32 to vector<2x16xf32>
    %612 = arith.addf %611, %610 : vector<2x16xf32>
    %613 = arith.divf %611, %612 : vector<2x16xf32>
    %614 = arith.mulf %613, %546 : vector<2x16xf32>
    %615 = arith.negf %575 : vector<2x16xf32>
    %616 = math.exp %615 : vector<2x16xf32>
    %cst_366 = arith.constant 1.000000e+00 : f32
    %617 = vector.broadcast %cst_366 : f32 to vector<2x16xf32>
    %618 = arith.addf %617, %616 : vector<2x16xf32>
    %619 = arith.divf %617, %618 : vector<2x16xf32>
    %620 = math.tanh %583 : vector<2x16xf32>
    %621 = arith.mulf %619, %620 : vector<2x16xf32>
    %622 = arith.addf %614, %621 : vector<2x16xf32>
    %623 = arith.negf %587 : vector<2x16xf32>
    %624 = math.exp %623 : vector<2x16xf32>
    %cst_367 = arith.constant 1.000000e+00 : f32
    %625 = vector.broadcast %cst_367 : f32 to vector<2x16xf32>
    %626 = arith.addf %625, %624 : vector<2x16xf32>
    %627 = arith.divf %625, %626 : vector<2x16xf32>
    %628 = math.tanh %622 : vector<2x16xf32>
    %629 = arith.mulf %627, %628 : vector<2x16xf32>
    %c12_368 = arith.constant 12 : index
    %c0_369 = arith.constant 0 : index
    %630 = vector.load %arg16[%c12_368, %c0_369] : memref<16x16xf32, #tpu.memory_space<vmem>>, vector<2x16xf32>
    tpu.vector_store %arg16[%c12_368, %c0_369], %608 {strides = array<i32>} : memref<16x16xf32, #tpu.memory_space<vmem>>, vector<2x16xf32>,
    %c2_370 = arith.constant 2 : index
    %c0_371 = arith.constant 0 : index
    %631 = vector.load %arg17[%c2_370, %c0_371] : memref<16x16xf32, #tpu.memory_space<vmem>>, vector<2x16xf32>
    tpu.vector_store %arg17[%c2_370, %c0_371], %629 {strides = array<i32>} : memref<16x16xf32, #tpu.memory_space<vmem>>, vector<2x16xf32>,
    %c0_372 = arith.constant 0 : index
    %c14_373 = arith.constant 14 : index
    %c0_374 = arith.constant 0 : index
    %632 = vector.load %arg14[%c0_372, %c14_373, %c0_374] : memref<4x16x16xf32, #tpu.memory_space<vmem>>, vector<1x2x16xf32>
    %633 = vector.shape_cast %632 : vector<1x2x16xf32> to vector<2x16xf32>
    %cst_375 = arith.constant dense<0.000000e+00> : vector<2x16xf32>
    %634 = tpu.matmul %608, %84, %cst_375 {dimension_numbers = #tpu.dot_dimension_numbers<[1], [0], [0], [1], [0, 0, 1, 1], [], []>} : vector<2x16xf32>, vector<16x16xf32>, vector<2x16xf32> -> vector<2x16xf32>
    %635 = arith.addf %633, %634 : vector<2x16xf32>
    %c1_376 = arith.constant 1 : index
    %c14_377 = arith.constant 14 : index
    %c0_378 = arith.constant 0 : index
    %636 = vector.load %arg14[%c1_376, %c14_377, %c0_378] : memref<4x16x16xf32, #tpu.memory_space<vmem>>, vector<1x2x16xf32>
    %637 = vector.shape_cast %636 : vector<1x2x16xf32> to vector<2x16xf32>
    %cst_379 = arith.constant dense<0.000000e+00> : vector<2x16xf32>
    %638 = tpu.matmul %608, %86, %cst_379 {dimension_numbers = #tpu.dot_dimension_numbers<[1], [0], [0], [1], [0, 0, 1, 1], [], []>} : vector<2x16xf32>, vector<16x16xf32>, vector<2x16xf32> -> vector<2x16xf32>
    %639 = arith.addf %637, %638 : vector<2x16xf32>
    %c2_380 = arith.constant 2 : index
    %c14_381 = arith.constant 14 : index
    %c0_382 = arith.constant 0 : index
    %640 = vector.load %arg14[%c2_380, %c14_381, %c0_382] : memref<4x16x16xf32, #tpu.memory_space<vmem>>, vector<1x2x16xf32>
    %641 = vector.shape_cast %640 : vector<1x2x16xf32> to vector<2x16xf32>
    %cst_383 = arith.constant dense<0.000000e+00> : vector<2x16xf32>
    %642 = tpu.matmul %608, %88, %cst_383 {dimension_numbers = #tpu.dot_dimension_numbers<[1], [0], [0], [1], [0, 0, 1, 1], [], []>} : vector<2x16xf32>, vector<16x16xf32>, vector<2x16xf32> -> vector<2x16xf32>
    %643 = arith.addf %641, %642 : vector<2x16xf32>
    %c3_384 = arith.constant 3 : index
    %c14_385 = arith.constant 14 : index
    %c0_386 = arith.constant 0 : index
    %644 = vector.load %arg14[%c3_384, %c14_385, %c0_386] : memref<4x16x16xf32, #tpu.memory_space<vmem>>, vector<1x2x16xf32>
    %645 = vector.shape_cast %644 : vector<1x2x16xf32> to vector<2x16xf32>
    %cst_387 = arith.constant dense<0.000000e+00> : vector<2x16xf32>
    %646 = tpu.matmul %608, %90, %cst_387 {dimension_numbers = #tpu.dot_dimension_numbers<[1], [0], [0], [1], [0, 0, 1, 1], [], []>} : vector<2x16xf32>, vector<16x16xf32>, vector<2x16xf32> -> vector<2x16xf32>
    %647 = arith.addf %645, %646 : vector<2x16xf32>
    %c0_388 = arith.constant 0 : index
    %c0_389 = arith.constant 0 : index
    %c0_390 = arith.constant 0 : index
    %648 = vector.load %arg15[%c0_388, %c0_389, %c0_390] : memref<4x16x16xf32, #tpu.memory_space<vmem>>, vector<1x2x16xf32>
    %649 = vector.shape_cast %648 : vector<1x2x16xf32> to vector<2x16xf32>
    %cst_391 = arith.constant dense<0.000000e+00> : vector<2x16xf32>
    %650 = tpu.matmul %629, %92, %cst_391 {dimension_numbers = #tpu.dot_dimension_numbers<[1], [0], [0], [1], [0, 0, 1, 1], [], []>} : vector<2x16xf32>, vector<16x16xf32>, vector<2x16xf32> -> vector<2x16xf32>
    %651 = arith.addf %649, %650 : vector<2x16xf32>
    %c1_392 = arith.constant 1 : index
    %c0_393 = arith.constant 0 : index
    %c0_394 = arith.constant 0 : index
    %652 = vector.load %arg15[%c1_392, %c0_393, %c0_394] : memref<4x16x16xf32, #tpu.memory_space<vmem>>, vector<1x2x16xf32>
    %653 = vector.shape_cast %652 : vector<1x2x16xf32> to vector<2x16xf32>
    %cst_395 = arith.constant dense<0.000000e+00> : vector<2x16xf32>
    %654 = tpu.matmul %629, %94, %cst_395 {dimension_numbers = #tpu.dot_dimension_numbers<[1], [0], [0], [1], [0, 0, 1, 1], [], []>} : vector<2x16xf32>, vector<16x16xf32>, vector<2x16xf32> -> vector<2x16xf32>
    %655 = arith.addf %653, %654 : vector<2x16xf32>
    %c2_396 = arith.constant 2 : index
    %c0_397 = arith.constant 0 : index
    %c0_398 = arith.constant 0 : index
    %656 = vector.load %arg15[%c2_396, %c0_397, %c0_398] : memref<4x16x16xf32, #tpu.memory_space<vmem>>, vector<1x2x16xf32>
    %657 = vector.shape_cast %656 : vector<1x2x16xf32> to vector<2x16xf32>
    %cst_399 = arith.constant dense<0.000000e+00> : vector<2x16xf32>
    %658 = tpu.matmul %629, %96, %cst_399 {dimension_numbers = #tpu.dot_dimension_numbers<[1], [0], [0], [1], [0, 0, 1, 1], [], []>} : vector<2x16xf32>, vector<16x16xf32>, vector<2x16xf32> -> vector<2x16xf32>
    %659 = arith.addf %657, %658 : vector<2x16xf32>
    %c3_400 = arith.constant 3 : index
    %c0_401 = arith.constant 0 : index
    %c0_402 = arith.constant 0 : index
    %660 = vector.load %arg15[%c3_400, %c0_401, %c0_402] : memref<4x16x16xf32, #tpu.memory_space<vmem>>, vector<1x2x16xf32>
    %661 = vector.shape_cast %660 : vector<1x2x16xf32> to vector<2x16xf32>
    %cst_403 = arith.constant dense<0.000000e+00> : vector<2x16xf32>
    %662 = tpu.matmul %629, %98, %cst_403 {dimension_numbers = #tpu.dot_dimension_numbers<[1], [0], [0], [1], [0, 0, 1, 1], [], []>} : vector<2x16xf32>, vector<16x16xf32>, vector<2x16xf32> -> vector<2x16xf32>
    %663 = arith.addf %661, %662 : vector<2x16xf32>
    %664 = arith.negf %639 : vector<2x16xf32>
    %665 = math.exp %664 : vector<2x16xf32>
    %cst_404 = arith.constant 1.000000e+00 : f32
    %666 = vector.broadcast %cst_404 : f32 to vector<2x16xf32>
    %667 = arith.addf %666, %665 : vector<2x16xf32>
    %668 = arith.divf %666, %667 : vector<2x16xf32>
    %669 = arith.mulf %668, %601 : vector<2x16xf32>
    %670 = arith.negf %635 : vector<2x16xf32>
    %671 = math.exp %670 : vector<2x16xf32>
    %cst_405 = arith.constant 1.000000e+00 : f32
    %672 = vector.broadcast %cst_405 : f32 to vector<2x16xf32>
    %673 = arith.addf %672, %671 : vector<2x16xf32>
    %674 = arith.divf %672, %673 : vector<2x16xf32>
    %675 = math.tanh %643 : vector<2x16xf32>
    %676 = arith.mulf %674, %675 : vector<2x16xf32>
    %677 = arith.addf %669, %676 : vector<2x16xf32>
    %678 = arith.negf %647 : vector<2x16xf32>
    %679 = math.exp %678 : vector<2x16xf32>
    %cst_406 = arith.constant 1.000000e+00 : f32
    %680 = vector.broadcast %cst_406 : f32 to vector<2x16xf32>
    %681 = arith.addf %680, %679 : vector<2x16xf32>
    %682 = arith.divf %680, %681 : vector<2x16xf32>
    %683 = math.tanh %677 : vector<2x16xf32>
    %684 = arith.mulf %682, %683 : vector<2x16xf32>
    %685 = arith.negf %655 : vector<2x16xf32>
    %686 = math.exp %685 : vector<2x16xf32>
    %cst_407 = arith.constant 1.000000e+00 : f32
    %687 = vector.broadcast %cst_407 : f32 to vector<2x16xf32>
    %688 = arith.addf %687, %686 : vector<2x16xf32>
    %689 = arith.divf %687, %688 : vector<2x16xf32>
    %690 = arith.mulf %689, %622 : vector<2x16xf32>
    %691 = arith.negf %651 : vector<2x16xf32>
    %692 = math.exp %691 : vector<2x16xf32>
    %cst_408 = arith.constant 1.000000e+00 : f32
    %693 = vector.broadcast %cst_408 : f32 to vector<2x16xf32>
    %694 = arith.addf %693, %692 : vector<2x16xf32>
    %695 = arith.divf %693, %694 : vector<2x16xf32>
    %696 = math.tanh %659 : vector<2x16xf32>
    %697 = arith.mulf %695, %696 : vector<2x16xf32>
    %698 = arith.addf %690, %697 : vector<2x16xf32>
    %699 = arith.negf %663 : vector<2x16xf32>
    %700 = math.exp %699 : vector<2x16xf32>
    %cst_409 = arith.constant 1.000000e+00 : f32
    %701 = vector.broadcast %cst_409 : f32 to vector<2x16xf32>
    %702 = arith.addf %701, %700 : vector<2x16xf32>
    %703 = arith.divf %701, %702 : vector<2x16xf32>
    %704 = math.tanh %698 : vector<2x16xf32>
    %705 = arith.mulf %703, %704 : vector<2x16xf32>
    %c14_410 = arith.constant 14 : index
    %c0_411 = arith.constant 0 : index
    %706 = vector.load %arg16[%c14_410, %c0_411] : memref<16x16xf32, #tpu.memory_space<vmem>>, vector<2x16xf32>
    tpu.vector_store %arg16[%c14_410, %c0_411], %684 {strides = array<i32>} : memref<16x16xf32, #tpu.memory_space<vmem>>, vector<2x16xf32>,
    %c0_412 = arith.constant 0 : index
    %c0_413 = arith.constant 0 : index
    %707 = vector.load %arg17[%c0_412, %c0_413] : memref<16x16xf32, #tpu.memory_space<vmem>>, vector<2x16xf32>
    tpu.vector_store %arg17[%c0_412, %c0_413], %705 {strides = array<i32>} : memref<16x16xf32, #tpu.memory_space<vmem>>, vector<2x16xf32>,
    %c0_414 = arith.constant 0 : index
    %c0_415 = arith.constant 0 : index
    %708 = vector.load %arg16[%c0_414, %c0_415] : memref<16x16xf32, #tpu.memory_space<vmem>>, vector<16x16xf32>
    %c0_416 = arith.constant 0 : index
    %c0_417 = arith.constant 0 : index
    %709 = vector.load %arg7[%c0_416, %c0_417] : memref<16x5xf32, #tpu.memory_space<vmem>>, vector<16x5xf32>
    %cst_418 = arith.constant dense<0.000000e+00> : vector<16x5xf32>
    %710 = tpu.matmul %708, %709, %cst_418 {dimension_numbers = #tpu.dot_dimension_numbers<[1], [0], [0], [1], [0, 0, 1, 1], [], []>} : vector<16x16xf32>, vector<16x5xf32>, vector<16x5xf32> -> vector<16x5xf32>
    %c0_419 = arith.constant 0 : index
    %c0_420 = arith.constant 0 : index
    %711 = vector.load %arg17[%c0_419, %c0_420] : memref<16x16xf32, #tpu.memory_space<vmem>>, vector<16x16xf32>
    %c0_421 = arith.constant 0 : index
    %c0_422 = arith.constant 0 : index
    %712 = vector.load %arg8[%c0_421, %c0_422] : memref<16x5xf32, #tpu.memory_space<vmem>>, vector<16x5xf32>
    %cst_423 = arith.constant dense<0.000000e+00> : vector<16x5xf32>
    %713 = tpu.matmul %711, %712, %cst_423 {dimension_numbers = #tpu.dot_dimension_numbers<[1], [0], [0], [1], [0, 0, 1, 1], [], []>} : vector<16x16xf32>, vector<16x5xf32>, vector<16x5xf32> -> vector<16x5xf32>
    %714 = arith.addf %710, %713 : vector<16x5xf32>
    %c0_424 = arith.constant 0 : index
    %c0_425 = arith.constant 0 : index
    %715 = vector.load %arg9[%c0_424, %c0_425] : memref<1x5xf32, #tpu.memory_space<vmem>>, vector<1x5xf32>
    %716 = vector.broadcast %715 : vector<1x5xf32> to vector<16x5xf32>
    %717 = arith.addf %714, %716 : vector<16x5xf32>
    %c0_426 = arith.constant 0 : index
    %c0_427 = arith.constant 0 : index
    %718 = vector.load %arg12[%c0_426, %c0_427] : memref<5x5xf32, #tpu.memory_space<vmem>>, vector<5x5xf32>
    %719 = tpu.iota {dimensions = array<i32: 1>} : vector<2x5x5xi32>
    %c0_428 = arith.constant 0 : index
    %c0_429 = arith.constant 0 : index
    %720 = vector.load %arg10[%c0_428, %c0_429] : memref<1x5xf32, #tpu.memory_space<vmem>>, vector<1x5xf32>
    %721 = vector.extract_strided_slice %717 {offsets = [0, 0], sizes = [2, 5], strides = [1, 1]} : vector<16x5xf32> to vector<2x5xf32>
    %722 = vector.broadcast %720 : vector<1x5xf32> to vector<2x5xf32>
    %723 = arith.addf %722, %721 : vector<2x5xf32>
    %724 = vector.shape_cast %723 : vector<2x5xf32> to vector<2x5x1xf32>
    %725 = vector.shape_cast %718 : vector<5x5xf32> to vector<1x5x5xf32>
    %726 = vector.broadcast %724 : vector<2x5x1xf32> to vector<2x5x5xf32>
    %727 = vector.broadcast %725 : vector<1x5x5xf32> to vector<2x5x5xf32>
    %728 = arith.addf %726, %727 : vector<2x5x5xf32>
    %cst_430 = arith.constant dense<0xFF800000> : vector<2x5xf32>
    %729 = vector.multi_reduction <maximumf>, %728, %cst_430 [1] : vector<2x5x5xf32> to vector<2x5xf32>
    %730 = vector.shape_cast %729 : vector<2x5xf32> to vector<2x1x5xf32>
    %731 = vector.broadcast %730 : vector<2x1x5xf32> to vector<2x5x5xf32>
    %732 = arith.cmpf oeq, %728, %731 : vector<2x5x5xf32>
    %c5_i32 = arith.constant 5 : i32
    %733 = vector.broadcast %c5_i32 : i32 to vector<2x5x5xi32>
    %734 = arith.select %732, %719, %733 : vector<2x5x5xi1>, vector<2x5x5xi32>
    %cst_431 = arith.constant dense<2147483647> : vector<2x5xi32>
    %735 = vector.multi_reduction <minsi>, %734, %cst_431 [1] : vector<2x5x5xi32> to vector<2x5xi32>
    %736 = vector.extract_strided_slice %717 {offsets = [2, 0], sizes = [2, 5], strides = [1, 1]} : vector<16x5xf32> to vector<2x5xf32>
    %737 = arith.addf %729, %736 : vector<2x5xf32>
    %738 = vector.shape_cast %737 : vector<2x5xf32> to vector<2x5x1xf32>
    %739 = vector.shape_cast %718 : vector<5x5xf32> to vector<1x5x5xf32>
    %740 = vector.broadcast %738 : vector<2x5x1xf32> to vector<2x5x5xf32>
    %741 = vector.broadcast %739 : vector<1x5x5xf32> to vector<2x5x5xf32>
    %742 = arith.addf %740, %741 : vector<2x5x5xf32>
    %cst_432 = arith.constant dense<0xFF800000> : vector<2x5xf32>
    %743 = vector.multi_reduction <maximumf>, %742, %cst_432 [1] : vector<2x5x5xf32> to vector<2x5xf32>
    %744 = vector.shape_cast %743 : vector<2x5xf32> to vector<2x1x5xf32>
    %745 = vector.broadcast %744 : vector<2x1x5xf32> to vector<2x5x5xf32>
    %746 = arith.cmpf oeq, %742, %745 : vector<2x5x5xf32>
    %c5_i32_433 = arith.constant 5 : i32
    %747 = vector.broadcast %c5_i32_433 : i32 to vector<2x5x5xi32>
    %748 = arith.select %746, %719, %747 : vector<2x5x5xi1>, vector<2x5x5xi32>
    %cst_434 = arith.constant dense<2147483647> : vector<2x5xi32>
    %749 = vector.multi_reduction <minsi>, %748, %cst_434 [1] : vector<2x5x5xi32> to vector<2x5xi32>
    %750 = vector.extract_strided_slice %717 {offsets = [4, 0], sizes = [2, 5], strides = [1, 1]} : vector<16x5xf32> to vector<2x5xf32>
    %751 = arith.addf %743, %750 : vector<2x5xf32>
    %752 = vector.shape_cast %751 : vector<2x5xf32> to vector<2x5x1xf32>
    %753 = vector.shape_cast %718 : vector<5x5xf32> to vector<1x5x5xf32>
    %754 = vector.broadcast %752 : vector<2x5x1xf32> to vector<2x5x5xf32>
    %755 = vector.broadcast %753 : vector<1x5x5xf32> to vector<2x5x5xf32>
    %756 = arith.addf %754, %755 : vector<2x5x5xf32>
    %cst_435 = arith.constant dense<0xFF800000> : vector<2x5xf32>
    %757 = vector.multi_reduction <maximumf>, %756, %cst_435 [1] : vector<2x5x5xf32> to vector<2x5xf32>
    %758 = vector.shape_cast %757 : vector<2x5xf32> to vector<2x1x5xf32>
    %759 = vector.broadcast %758 : vector<2x1x5xf32> to vector<2x5x5xf32>
    %760 = arith.cmpf oeq, %756, %759 : vector<2x5x5xf32>
    %c5_i32_436 = arith.constant 5 : i32
    %761 = vector.broadcast %c5_i32_436 : i32 to vector<2x5x5xi32>
    %762 = arith.select %760, %719, %761 : vector<2x5x5xi1>, vector<2x5x5xi32>
    %cst_437 = arith.constant dense<2147483647> : vector<2x5xi32>
    %763 = vector.multi_reduction <minsi>, %762, %cst_437 [1] : vector<2x5x5xi32> to vector<2x5xi32>
    %764 = vector.extract_strided_slice %717 {offsets = [6, 0], sizes = [2, 5], strides = [1, 1]} : vector<16x5xf32> to vector<2x5xf32>
    %765 = arith.addf %757, %764 : vector<2x5xf32>
    %766 = vector.shape_cast %765 : vector<2x5xf32> to vector<2x5x1xf32>
    %767 = vector.shape_cast %718 : vector<5x5xf32> to vector<1x5x5xf32>
    %768 = vector.broadcast %766 : vector<2x5x1xf32> to vector<2x5x5xf32>
    %769 = vector.broadcast %767 : vector<1x5x5xf32> to vector<2x5x5xf32>
    %770 = arith.addf %768, %769 : vector<2x5x5xf32>
    %cst_438 = arith.constant dense<0xFF800000> : vector<2x5xf32>
    %771 = vector.multi_reduction <maximumf>, %770, %cst_438 [1] : vector<2x5x5xf32> to vector<2x5xf32>
    %772 = vector.shape_cast %771 : vector<2x5xf32> to vector<2x1x5xf32>
    %773 = vector.broadcast %772 : vector<2x1x5xf32> to vector<2x5x5xf32>
    %774 = arith.cmpf oeq, %770, %773 : vector<2x5x5xf32>
    %c5_i32_439 = arith.constant 5 : i32
    %775 = vector.broadcast %c5_i32_439 : i32 to vector<2x5x5xi32>
    %776 = arith.select %774, %719, %775 : vector<2x5x5xi1>, vector<2x5x5xi32>
    %cst_440 = arith.constant dense<2147483647> : vector<2x5xi32>
    %777 = vector.multi_reduction <minsi>, %776, %cst_440 [1] : vector<2x5x5xi32> to vector<2x5xi32>
    %778 = vector.extract_strided_slice %717 {offsets = [8, 0], sizes = [2, 5], strides = [1, 1]} : vector<16x5xf32> to vector<2x5xf32>
    %779 = arith.addf %771, %778 : vector<2x5xf32>
    %780 = vector.shape_cast %779 : vector<2x5xf32> to vector<2x5x1xf32>
    %781 = vector.shape_cast %718 : vector<5x5xf32> to vector<1x5x5xf32>
    %782 = vector.broadcast %780 : vector<2x5x1xf32> to vector<2x5x5xf32>
    %783 = vector.broadcast %781 : vector<1x5x5xf32> to vector<2x5x5xf32>
    %784 = arith.addf %782, %783 : vector<2x5x5xf32>
    %cst_441 = arith.constant dense<0xFF800000> : vector<2x5xf32>
    %785 = vector.multi_reduction <maximumf>, %784, %cst_441 [1] : vector<2x5x5xf32> to vector<2x5xf32>
    %786 = vector.shape_cast %785 : vector<2x5xf32> to vector<2x1x5xf32>
    %787 = vector.broadcast %786 : vector<2x1x5xf32> to vector<2x5x5xf32>
    %788 = arith.cmpf oeq, %784, %787 : vector<2x5x5xf32>
    %c5_i32_442 = arith.constant 5 : i32
    %789 = vector.broadcast %c5_i32_442 : i32 to vector<2x5x5xi32>
    %790 = arith.select %788, %719, %789 : vector<2x5x5xi1>, vector<2x5x5xi32>
    %cst_443 = arith.constant dense<2147483647> : vector<2x5xi32>
    %791 = vector.multi_reduction <minsi>, %790, %cst_443 [1] : vector<2x5x5xi32> to vector<2x5xi32>
    %792 = vector.extract_strided_slice %717 {offsets = [10, 0], sizes = [2, 5], strides = [1, 1]} : vector<16x5xf32> to vector<2x5xf32>
    %793 = arith.addf %785, %792 : vector<2x5xf32>
    %794 = vector.shape_cast %793 : vector<2x5xf32> to vector<2x5x1xf32>
    %795 = vector.shape_cast %718 : vector<5x5xf32> to vector<1x5x5xf32>
    %796 = vector.broadcast %794 : vector<2x5x1xf32> to vector<2x5x5xf32>
    %797 = vector.broadcast %795 : vector<1x5x5xf32> to vector<2x5x5xf32>
    %798 = arith.addf %796, %797 : vector<2x5x5xf32>
    %cst_444 = arith.constant dense<0xFF800000> : vector<2x5xf32>
    %799 = vector.multi_reduction <maximumf>, %798, %cst_444 [1] : vector<2x5x5xf32> to vector<2x5xf32>
    %800 = vector.shape_cast %799 : vector<2x5xf32> to vector<2x1x5xf32>
    %801 = vector.broadcast %800 : vector<2x1x5xf32> to vector<2x5x5xf32>
    %802 = arith.cmpf oeq, %798, %801 : vector<2x5x5xf32>
    %c5_i32_445 = arith.constant 5 : i32
    %803 = vector.broadcast %c5_i32_445 : i32 to vector<2x5x5xi32>
    %804 = arith.select %802, %719, %803 : vector<2x5x5xi1>, vector<2x5x5xi32>
    %cst_446 = arith.constant dense<2147483647> : vector<2x5xi32>
    %805 = vector.multi_reduction <minsi>, %804, %cst_446 [1] : vector<2x5x5xi32> to vector<2x5xi32>
    %806 = vector.extract_strided_slice %717 {offsets = [12, 0], sizes = [2, 5], strides = [1, 1]} : vector<16x5xf32> to vector<2x5xf32>
    %807 = arith.addf %799, %806 : vector<2x5xf32>
    %808 = vector.shape_cast %807 : vector<2x5xf32> to vector<2x5x1xf32>
    %809 = vector.shape_cast %718 : vector<5x5xf32> to vector<1x5x5xf32>
    %810 = vector.broadcast %808 : vector<2x5x1xf32> to vector<2x5x5xf32>
    %811 = vector.broadcast %809 : vector<1x5x5xf32> to vector<2x5x5xf32>
    %812 = arith.addf %810, %811 : vector<2x5x5xf32>
    %cst_447 = arith.constant dense<0xFF800000> : vector<2x5xf32>
    %813 = vector.multi_reduction <maximumf>, %812, %cst_447 [1] : vector<2x5x5xf32> to vector<2x5xf32>
    %814 = vector.shape_cast %813 : vector<2x5xf32> to vector<2x1x5xf32>
    %815 = vector.broadcast %814 : vector<2x1x5xf32> to vector<2x5x5xf32>
    %816 = arith.cmpf oeq, %812, %815 : vector<2x5x5xf32>
    %c5_i32_448 = arith.constant 5 : i32
    %817 = vector.broadcast %c5_i32_448 : i32 to vector<2x5x5xi32>
    %818 = arith.select %816, %719, %817 : vector<2x5x5xi1>, vector<2x5x5xi32>
    %cst_449 = arith.constant dense<2147483647> : vector<2x5xi32>
    %819 = vector.multi_reduction <minsi>, %818, %cst_449 [1] : vector<2x5x5xi32> to vector<2x5xi32>
    %820 = vector.extract_strided_slice %717 {offsets = [14, 0], sizes = [2, 5], strides = [1, 1]} : vector<16x5xf32> to vector<2x5xf32>
    %821 = arith.addf %813, %820 : vector<2x5xf32>
    %c0_450 = arith.constant 0 : index
    %c0_451 = arith.constant 0 : index
    %822 = vector.load %arg11[%c0_450, %c0_451] : memref<1x5xf32, #tpu.memory_space<vmem>>, vector<1x5xf32>
    %823 = vector.broadcast %822 : vector<1x5xf32> to vector<2x5xf32>
    %824 = arith.addf %821, %823 : vector<2x5xf32>
    %825 = tpu.iota {dimensions = array<i32: 1>} : vector<2x5xi32>
    %cst_452 = arith.constant dense<0xFF800000> : vector<2xf32>
    %826 = vector.multi_reduction <maximumf>, %824, %cst_452 [1] : vector<2x5xf32> to vector<2xf32>
    %827 = vector.shape_cast %826 : vector<2xf32> to vector<2x1xf32>
    %828 = vector.broadcast %827 : vector<2x1xf32> to vector<2x5xf32>
    %829 = arith.cmpf oeq, %824, %828 : vector<2x5xf32>
    %c5_i32_453 = arith.constant 5 : i32
    %830 = vector.broadcast %c5_i32_453 : i32 to vector<2x5xi32>
    %831 = arith.select %829, %825, %830 : vector<2x5xi1>, vector<2x5xi32>
    %cst_454 = arith.constant dense<2147483647> : vector<2xi32>
    %832 = vector.multi_reduction <minsi>, %831, %cst_454 [1] : vector<2x5xi32> to vector<2xi32>
    %833 = vector.shape_cast %832 : vector<2xi32> to vector<2x1xi32>
    %834 = tpu.iota {dimensions = array<i32: 1>} : vector<2x8xi32>
    %c7_i32 = arith.constant 7 : i32
    %835 = vector.broadcast %c7_i32 : i32 to vector<2x8xi32>
    %836 = arith.cmpi eq, %834, %835 : vector<2x8xi32>
    %c0_i32 = arith.constant 0 : i32
    %837 = vector.shape_cast %833 : vector<2x1xi32> to vector<2x1xi32>
    %838 = vector.broadcast %837 : vector<2x1xi32> to vector<2x8xi32>
    %839 = vector.broadcast %c0_i32 : i32 to vector<2x8xi32>
    %840 = arith.select %836, %838, %839 : vector<2x8xi1>, vector<2x8xi32>
    %841 = vector.broadcast %833 : vector<2x1xi32> to vector<2x5xi32>
    %842 = arith.cmpi eq, %825, %841 : vector<2x5xi32>
    %c0_i32_455 = arith.constant 0 : i32
    %843 = vector.broadcast %c0_i32_455 : i32 to vector<2x5xi32>
    %844 = arith.select %842, %819, %843 : vector<2x5xi1>, vector<2x5xi32>
    %cst_456 = arith.constant dense<0> : vector<2xi32>
    %845 = vector.multi_reduction <add>, %844, %cst_456 [1] : vector<2x5xi32> to vector<2xi32>
    %846 = vector.shape_cast %845 : vector<2xi32> to vector<2x1xi32>
    %c6_i32 = arith.constant 6 : i32
    %847 = vector.broadcast %c6_i32 : i32 to vector<2x8xi32>
    %848 = arith.cmpi eq, %834, %847 : vector<2x8xi32>
    %849 = vector.shape_cast %846 : vector<2x1xi32> to vector<2x1xi32>
    %850 = vector.broadcast %849 : vector<2x1xi32> to vector<2x8xi32>
    %851 = arith.select %848, %850, %840 : vector<2x8xi1>, vector<2x8xi32>
    %852 = vector.broadcast %846 : vector<2x1xi32> to vector<2x5xi32>
    %853 = arith.cmpi eq, %825, %852 : vector<2x5xi32>
    %c0_i32_457 = arith.constant 0 : i32
    %854 = vector.broadcast %c0_i32_457 : i32 to vector<2x5xi32>
    %855 = arith.select %853, %805, %854 : vector<2x5xi1>, vector<2x5xi32>
    %cst_458 = arith.constant dense<0> : vector<2xi32>
    %856 = vector.multi_reduction <add>, %855, %cst_458 [1] : vector<2x5xi32> to vector<2xi32>
    %857 = vector.shape_cast %856 : vector<2xi32> to vector<2x1xi32>
    %c5_i32_459 = arith.constant 5 : i32
    %858 = vector.broadcast %c5_i32_459 : i32 to vector<2x8xi32>
    %859 = arith.cmpi eq, %834, %858 : vector<2x8xi32>
    %860 = vector.shape_cast %857 : vector<2x1xi32> to vector<2x1xi32>
    %861 = vector.broadcast %860 : vector<2x1xi32> to vector<2x8xi32>
    %862 = arith.select %859, %861, %851 : vector<2x8xi1>, vector<2x8xi32>
    %863 = vector.broadcast %857 : vector<2x1xi32> to vector<2x5xi32>
    %864 = arith.cmpi eq, %825, %863 : vector<2x5xi32>
    %c0_i32_460 = arith.constant 0 : i32
    %865 = vector.broadcast %c0_i32_460 : i32 to vector<2x5xi32>
    %866 = arith.select %864, %791, %865 : vector<2x5xi1>, vector<2x5xi32>
    %cst_461 = arith.constant dense<0> : vector<2xi32>
    %867 = vector.multi_reduction <add>, %866, %cst_461 [1] : vector<2x5xi32> to vector<2xi32>
    %868 = vector.shape_cast %867 : vector<2xi32> to vector<2x1xi32>
    %c4_i32 = arith.constant 4 : i32
    %869 = vector.broadcast %c4_i32 : i32 to vector<2x8xi32>
    %870 = arith.cmpi eq, %834, %869 : vector<2x8xi32>
    %871 = vector.shape_cast %868 : vector<2x1xi32> to vector<2x1xi32>
    %872 = vector.broadcast %871 : vector<2x1xi32> to vector<2x8xi32>
    %873 = arith.select %870, %872, %862 : vector<2x8xi1>, vector<2x8xi32>
    %874 = vector.broadcast %868 : vector<2x1xi32> to vector<2x5xi32>
    %875 = arith.cmpi eq, %825, %874 : vector<2x5xi32>
    %c0_i32_462 = arith.constant 0 : i32
    %876 = vector.broadcast %c0_i32_462 : i32 to vector<2x5xi32>
    %877 = arith.select %875, %777, %876 : vector<2x5xi1>, vector<2x5xi32>
    %cst_463 = arith.constant dense<0> : vector<2xi32>
    %878 = vector.multi_reduction <add>, %877, %cst_463 [1] : vector<2x5xi32> to vector<2xi32>
    %879 = vector.shape_cast %878 : vector<2xi32> to vector<2x1xi32>
    %c3_i32 = arith.constant 3 : i32
    %880 = vector.broadcast %c3_i32 : i32 to vector<2x8xi32>
    %881 = arith.cmpi eq, %834, %880 : vector<2x8xi32>
    %882 = vector.shape_cast %879 : vector<2x1xi32> to vector<2x1xi32>
    %883 = vector.broadcast %882 : vector<2x1xi32> to vector<2x8xi32>
    %884 = arith.select %881, %883, %873 : vector<2x8xi1>, vector<2x8xi32>
    %885 = vector.broadcast %879 : vector<2x1xi32> to vector<2x5xi32>
    %886 = arith.cmpi eq, %825, %885 : vector<2x5xi32>
    %c0_i32_464 = arith.constant 0 : i32
    %887 = vector.broadcast %c0_i32_464 : i32 to vector<2x5xi32>
    %888 = arith.select %886, %763, %887 : vector<2x5xi1>, vector<2x5xi32>
    %cst_465 = arith.constant dense<0> : vector<2xi32>
    %889 = vector.multi_reduction <add>, %888, %cst_465 [1] : vector<2x5xi32> to vector<2xi32>
    %890 = vector.shape_cast %889 : vector<2xi32> to vector<2x1xi32>
    %c2_i32 = arith.constant 2 : i32
    %891 = vector.broadcast %c2_i32 : i32 to vector<2x8xi32>
    %892 = arith.cmpi eq, %834, %891 : vector<2x8xi32>
    %893 = vector.shape_cast %890 : vector<2x1xi32> to vector<2x1xi32>
    %894 = vector.broadcast %893 : vector<2x1xi32> to vector<2x8xi32>
    %895 = arith.select %892, %894, %884 : vector<2x8xi1>, vector<2x8xi32>
    %896 = vector.broadcast %890 : vector<2x1xi32> to vector<2x5xi32>
    %897 = arith.cmpi eq, %825, %896 : vector<2x5xi32>
    %c0_i32_466 = arith.constant 0 : i32
    %898 = vector.broadcast %c0_i32_466 : i32 to vector<2x5xi32>
    %899 = arith.select %897, %749, %898 : vector<2x5xi1>, vector<2x5xi32>
    %cst_467 = arith.constant dense<0> : vector<2xi32>
    %900 = vector.multi_reduction <add>, %899, %cst_467 [1] : vector<2x5xi32> to vector<2xi32>
    %901 = vector.shape_cast %900 : vector<2xi32> to vector<2x1xi32>
    %c1_i32 = arith.constant 1 : i32
    %902 = vector.broadcast %c1_i32 : i32 to vector<2x8xi32>
    %903 = arith.cmpi eq, %834, %902 : vector<2x8xi32>
    %904 = vector.shape_cast %901 : vector<2x1xi32> to vector<2x1xi32>
    %905 = vector.broadcast %904 : vector<2x1xi32> to vector<2x8xi32>
    %906 = arith.select %903, %905, %895 : vector<2x8xi1>, vector<2x8xi32>
    %907 = vector.broadcast %901 : vector<2x1xi32> to vector<2x5xi32>
    %908 = arith.cmpi eq, %825, %907 : vector<2x5xi32>
    %c0_i32_468 = arith.constant 0 : i32
    %909 = vector.broadcast %c0_i32_468 : i32 to vector<2x5xi32>
    %910 = arith.select %908, %735, %909 : vector<2x5xi1>, vector<2x5xi32>
    %cst_469 = arith.constant dense<0> : vector<2xi32>
    %911 = vector.multi_reduction <add>, %910, %cst_469 [1] : vector<2x5xi32> to vector<2xi32>
    %912 = vector.shape_cast %911 : vector<2xi32> to vector<2x1xi32>
    %c0_i32_470 = arith.constant 0 : i32
    %913 = vector.broadcast %c0_i32_470 : i32 to vector<2x8xi32>
    %914 = arith.cmpi eq, %834, %913 : vector<2x8xi32>
    %915 = vector.shape_cast %912 : vector<2x1xi32> to vector<2x1xi32>
    %916 = vector.broadcast %915 : vector<2x1xi32> to vector<2x8xi32>
    %917 = arith.select %914, %916, %906 : vector<2x8xi1>, vector<2x8xi32>
    %c0_471 = arith.constant 0 : index
    %c0_472 = arith.constant 0 : index
    %918 = vector.load %arg13[%c0_471, %c0_472] : memref<2x8xi32, #tpu.memory_space<vmem>>, vector<2x8xi32>
    tpu.vector_store %arg13[%c0_471, %c0_472], %917 {strides = array<i32>} : memref<2x8xi32, #tpu.memory_space<vmem>>, vector<2x8xi32>,
    return
  }
}

</mosaic_0001>

<llo_original>
// kernel: bilstm_crf_decode.1
$region0: #{bilstm_crf_decode.1}
  #allocation0 [shape = 'u32[]', space=smem, size = 0x4, offset = 0x4, fixed_abs, tag = 'smem constant byte address 0x4 - core index']
  #allocation1 [shape = 'u32[144,128]{1,0:T(1,128)}', space=vmem, size = 0x12000, scoped, tag = 'internal scratch']
  #allocation2 [shape = 'f32[4,16,16]{2,1,0:T(8,128)}', space=vmem, size = 0x8000, scoped, tag = 'scratch operand']
  #allocation3 [shape = 'f32[4,16,16]{2,1,0:T(8,128)}', space=vmem, size = 0x8000, scoped, tag = 'scratch operand']
  #allocation4 [shape = 'f32[16,16]{1,0:T(8,128)}', space=vmem, size = 0x2000, scoped, tag = 'scratch operand']
  #allocation5 [shape = 'f32[16,16]{1,0:T(8,128)}', space=vmem, size = 0x2000, scoped, tag = 'scratch operand']
  %s0 = inlined_call_operand.vmem [shape: f32[16,16], index: 0, kind: input, shape index: {}]
  %s1 = inlined_call_operand.vmem [shape: f32[4,16,16], index: 1, kind: input, shape index: {}]
  %s2 = inlined_call_operand.vmem [shape: f32[4,16,16], index: 2, kind: input, shape index: {}]
  %s3 = inlined_call_operand.vmem [shape: f32[4,1,16], index: 3, kind: input, shape index: {}]
  %s4 = inlined_call_operand.vmem [shape: f32[4,16,16], index: 4, kind: input, shape index: {}]
  %s5 = inlined_call_operand.vmem [shape: f32[4,16,16], index: 5, kind: input, shape index: {}]
  %s6 = inlined_call_operand.vmem [shape: f32[4,1,16], index: 6, kind: input, shape index: {}]
  %s7 = inlined_call_operand.vmem [shape: f32[16,5], index: 7, kind: input, shape index: {}]
  %s8 = inlined_call_operand.vmem [shape: f32[16,5], index: 8, kind: input, shape index: {}]
  %s9 = inlined_call_operand.vmem [shape: f32[1,5], index: 9, kind: input, shape index: {}]
  %s10 = inlined_call_operand.vmem [shape: f32[1,5], index: 10, kind: input, shape index: {}]
  %s11 = inlined_call_operand.vmem [shape: f32[1,5], index: 11, kind: input, shape index: {}]
  %s12 = inlined_call_operand.vmem [shape: f32[5,5], index: 12, kind: input, shape index: {}]
  %s13 = inlined_call_operand.hbm [shape: s32[2,8], index: 13, kind: output, shape index: {}]
  %s14 = sld [smem:[#allocation0]]
  $region62: #{bilstm_crf_decode.1} parent=0
    _
  %s16 = ssub.s32 1, %s14
  %s17 = scalar_select 0, %s16, %s14
  $region1: #{bilstm_crf_decode.1} parent=0
    #allocation6 [shape = 'u8[1024]{0}', space=vmem, size = 0x400, scoped, tag = 'output window, operand 0, single buffered']
    #allocation7 [shape = 's32[1]{0}', space=sflag, size = 0x4, scoped, tag = 'scoped memory for bilstm_crf_decode.1']
    %18 = vsyncpa [#allocation7], 0
    // Predicated region
    $region2: #{bilstm_crf_decode.1} parent=1 // pred_check
      _
    $region3: #{bilstm_crf_decode.1} parent=1 // pred_check_branch
      %20 = sbr.rel (0) target = $region5
    $region4: #{bilstm_crf_decode.1} parent=1 // pred_region
      _
    $region5: #{bilstm_crf_decode.1} parent=1 // pred_fallthru
      _
    // Predicated region
    $region6: #{bilstm_crf_decode.1} parent=1 // pred_check
      _
    $region7: #{bilstm_crf_decode.1} parent=1 // pred_check_branch
      %22 = sbr.rel (0) target = $region9
    $region8: #{bilstm_crf_decode.1} parent=1 // pred_region
      _
    $region9: #{bilstm_crf_decode.1} parent=1 // pred_fallthru
      _
    // Predicated region
    $region10: #{bilstm_crf_decode.1} parent=1 // pred_check
      _
    $region11: #{bilstm_crf_decode.1} parent=1 // pred_check_branch
      %24 = sbr.rel (0) target = $region13
    $region12: #{bilstm_crf_decode.1} parent=1 // pred_region
      _
    $region13: #{bilstm_crf_decode.1} parent=1 // pred_fallthru
      _
    // Predicated region
    $region14: #{bilstm_crf_decode.1} parent=1 // pred_check
      _
    $region15: #{bilstm_crf_decode.1} parent=1 // pred_check_branch
      %26 = sbr.rel (0) target = $region17
    $region16: #{bilstm_crf_decode.1} parent=1 // pred_region
      _
    $region17: #{bilstm_crf_decode.1} parent=1 // pred_fallthru
      _
    // Predicated region
    $region18: #{bilstm_crf_decode.1} parent=1 // pred_check
      _
    $region19: #{bilstm_crf_decode.1} parent=1 // pred_check_branch
      %28 = sbr.rel (0) target = $region21
    $region20: #{bilstm_crf_decode.1} parent=1 // pred_region
      _
    $region21: #{bilstm_crf_decode.1} parent=1 // pred_fallthru
      _
    // Predicated region
    $region22: #{bilstm_crf_decode.1} parent=1 // pred_check
      _
    $region23: #{bilstm_crf_decode.1} parent=1 // pred_check_branch
      %30 = sbr.rel (0) target = $region25
    $region24: #{bilstm_crf_decode.1} parent=1 // pred_region
      _
    $region25: #{bilstm_crf_decode.1} parent=1 // pred_fallthru
      _
    // Predicated region
    $region26: #{bilstm_crf_decode.1} parent=1 // pred_check
      _
    $region27: #{bilstm_crf_decode.1} parent=1 // pred_check_branch
      %32 = sbr.rel (0) target = $region29
    $region28: #{bilstm_crf_decode.1} parent=1 // pred_region
      _
    $region29: #{bilstm_crf_decode.1} parent=1 // pred_fallthru
      _
    // Predicated region
    $region30: #{bilstm_crf_decode.1} parent=1 // pred_check
      _
    $region31: #{bilstm_crf_decode.1} parent=1 // pred_check_branch
      %34 = sbr.rel (0) target = $region33
    $region32: #{bilstm_crf_decode.1} parent=1 // pred_region
      _
    $region33: #{bilstm_crf_decode.1} parent=1 // pred_fallthru
      _
    // Predicated region
    $region34: #{bilstm_crf_decode.1} parent=1 // pred_check
      _
    $region35: #{bilstm_crf_decode.1} parent=1 // pred_check_branch
      %36 = sbr.rel (0) target = $region37
    $region36: #{bilstm_crf_decode.1} parent=1 // pred_region
      _
    $region37: #{bilstm_crf_decode.1} parent=1 // pred_fallthru
      _
    // Predicated region
    $region38: #{bilstm_crf_decode.1} parent=1 // pred_check
      _
    $region39: #{bilstm_crf_decode.1} parent=1 // pred_check_branch
      %38 = sbr.rel (0) target = $region41
    $region40: #{bilstm_crf_decode.1} parent=1 // pred_region
      _
    $region41: #{bilstm_crf_decode.1} parent=1 // pred_fallthru
      _
    // Predicated region
    $region42: #{bilstm_crf_decode.1} parent=1 // pred_check
      _
    $region43: #{bilstm_crf_decode.1} parent=1 // pred_check_branch
      %40 = sbr.rel (0) target = $region45
    $region44: #{bilstm_crf_decode.1} parent=1 // pred_region
      _
    $region45: #{bilstm_crf_decode.1} parent=1 // pred_fallthru
      _
    // Predicated region
    $region46: #{bilstm_crf_decode.1} parent=1 // pred_check
      _
    $region47: #{bilstm_crf_decode.1} parent=1 // pred_check_branch
      %42 = sbr.rel (0) target = $region49
    $region48: #{bilstm_crf_decode.1} parent=1 // pred_region
      _
    $region49: #{bilstm_crf_decode.1} parent=1 // pred_fallthru
      _
    // Predicated region
    $region50: #{bilstm_crf_decode.1} parent=1 // pred_check
      _
    $region51: #{bilstm_crf_decode.1} parent=1 // pred_check_branch
      %44 = sbr.rel (0) target = $region53
    $region52: #{bilstm_crf_decode.1} parent=1 // pred_region
      _
    $region53: #{bilstm_crf_decode.1} parent=1 // pred_fallthru
      _
    %v45 = vld [vmem:[%s0] sm:$0xff]
    %v46 = vld [vmem:[%s0 + $0x8] sm:$0xff]
    %v47 = vld [vmem:[%s3] sm:$0x1]
    %v48 = vld [vmem:[%s3 + $0x1] sm:$0x1]
    %v49 = vld [vmem:[%s3 + $0x2] sm:$0x1]
    %v50 = vld [vmem:[%s3 + $0x3] sm:$0x1]
    %v51 = vld [vmem:[%s6] sm:$0x1]
    %v52 = vld [vmem:[%s6 + $0x1] sm:$0x1]
    %v53 = vld [vmem:[%s6 + $0x2] sm:$0x1]
    %v54 = vld [vmem:[%s6 + $0x3] sm:$0x1]
    %v55 = vld [vmem:[%s1] sm:$0xff]
    %v56 = vld [vmem:[%s1 + $0x8] sm:$0xff]
    %v58 = vlaneseq
    %v59 = vshrl.u32 %v58, 7
    %v60 = vsub.s32 0, %v59
    %v61 = vrot.slane %v47, %v60
    %vm63 = vcmask 130048
    %v65 = vsel %vm63, %v45, 0
    %v68 = vsel %vm63, %v46, 0
    %70 = vmatprep.subr.mxu0 0.0
    %71 = vmatpush1.msra.mxu0 %v55
    %72 = vmatprep.subr.mxu0 0.0
    %73 = vmatpush1.msra.mxu0 %v56
    %74 = vmatprep.subr.mxu0 0.0
    %75 = vmatpush1.msra.mxu0 0.0
    %76 = vmatprep.subr.mxu0 0.0
    %77 = vmatpush1.msra.mxu0 0.0
    %78 = vmatprep.subr.mxu0 0.0
    %79 = vmatpush1.msra.mxu0 0.0
    %80 = vmatprep.subr.mxu0 0.0
    %81 = vmatpush1.msra.mxu0 0.0
    %82 = vmatprep.subr.mxu0 0.0
    %83 = vmatpush1.msra.mxu0 0.0
    %84 = vmatprep.subr.mxu0 0.0
    %85 = vmatpush1.msra.mxu0 0.0
    %86 = vmatprep.subr.mxu0 0.0
    %87 = vmatpush1.msra.mxu0 0.0
    %88 = vmatprep.subr.mxu0 0.0
    %89 = vmatpush1.msra.mxu0 0.0
    %90 = vmatprep.subr.mxu0 0.0
    %91 = vmatpush1.msra.mxu0 0.0
    %92 = vmatprep.subr.mxu0 0.0
    %93 = vmatpush1.msra.mxu0 0.0
    %94 = vmatprep.subr.mxu0 0.0
    %95 = vmatpush1.msra.mxu0 0.0
    %96 = vmatprep.subr.mxu0 0.0
    %97 = vmatpush1.msra.mxu0 0.0
    %98 = vmatprep.subr.mxu0 0.0
    %99 = vmatpush1.msra.mxu0 0.0
    %100 = vmatprep.subr.mxu0 0.0
    %101 = vmatpush1.msra.mxu0 0.0
    %102 = vmatprep.subr.mxu0 0.0
    %103 = vmatpush1.msra.mxu0 0.0
    %104 = vmatprep.subr.mxu0 0.0
    %105 = vmatpush1.msra.mxu0 0.0
    %106 = vmatprep.subr.mxu0 0.0
    %107 = vmatpush1.msra.mxu0 0.0
    %108 = vmatprep.subr.mxu0 0.0
    %109 = vmatpush1.msra.mxu0 0.0
    %110 = vmatprep.subr.mxu0 0.0
    %111 = vmatpush1.msra.mxu0 0.0
    %112 = vmatprep.subr.mxu0 0.0
    %113 = vmatpush1.msra.mxu0 0.0
    %114 = vmatprep.subr.mxu0 0.0
    %115 = vmatpush1.msra.mxu0 0.0
    %116 = vmatprep.subr.mxu0 0.0
    %117 = vmatpush1.msra.mxu0 0.0
    %118 = vmatprep.subr.mxu0 0.0
    %119 = vmatpush1.msra.mxu0 0.0
    %120 = vmatprep.subr.mxu0 0.0
    %121 = vmatpush1.msra.mxu0 0.0
    %122 = vmatprep.subr.mxu0 0.0
    %123 = vmatpush1.msra.mxu0 0.0
    %124 = vmatprep.subr.mxu0 0.0
    %125 = vmatpush1.msra.mxu0 0.0
    %126 = vmatprep.subr.mxu0 0.0
    %127 = vmatpush1.msra.mxu0 0.0
    %128 = vmatprep.subr.mxu0 0.0
    %129 = vmatpush1.msra.mxu0 0.0
    %130 = vmatprep.subr.mxu0 0.0
    %131 = vmatpush1.msra.mxu0 0.0
    %132 = vmatprep.subr.mxu0 0.0
    %133 = vmatpush1.msra.mxu0 0.0
    %134 = vmatprep.mubr.f32.mxu0 0.0
    %135 = vmatmul.mubr.f32.gmra.mrb[0].mxu0 %v65
    %v136 = vpop.f32.mrb[0].mxu0
    %v137 = vadd.f32 %v61, %v136
    %v138 = vpop.f32.mrb[0].mxu0
    %139 = vmatprep.mubr.f32.mxu0 0.0
    %140 = vmatmul.mubr.f32.gmra.mrb[0].mxu0 %v68
    %v141 = vpop.f32.mrb[0].mxu0
    %v142 = vadd.f32 %v61, %v141
    %v143 = vpop.f32.mrb[0].mxu0
    %144 = vdwg.mxu0
    %145 = vst.msk [vmem:[#allocation2] sm:$0xff] %vm63, %v137
    %146 = vst.msk [vmem:[#allocation2 + $0x8] sm:$0xff] %vm63, %v142
    %v147 = vld [vmem:[%s4] sm:$0xff]
    %v148 = vld [vmem:[%s4 + $0x8] sm:$0xff]
    %v150 = vlaneseq
    %v151 = vshrl.u32 %v150, 7
    %v152 = vsub.s32 0, %v151
    %v153 = vrot.slane %v51, %v152
    %155 = vmatprep.subr.mxu0 0.0
    %156 = vmatpush1.msra.mxu0 %v147
    %157 = vmatprep.subr.mxu0 0.0
    %158 = vmatpush1.msra.mxu0 %v148
    %159 = vmatprep.subr.mxu0 0.0
    %160 = vmatpush1.msra.mxu0 0.0
    %161 = vmatprep.subr.mxu0 0.0
    %162 = vmatpush1.msra.mxu0 0.0
    %163 = vmatprep.subr.mxu0 0.0
    %164 = vmatpush1.msra.mxu0 0.0
    %165 = vmatprep.subr.mxu0 0.0
    %166 = vmatpush1.msra.mxu0 0.0
    %167 = vmatprep.subr.mxu0 0.0
    %168 = vmatpush1.msra.mxu0 0.0
    %169 = vmatprep.subr.mxu0 0.0
    %170 = vmatpush1.msra.mxu0 0.0
    %171 = vmatprep.subr.mxu0 0.0
    %172 = vmatpush1.msra.mxu0 0.0
    %173 = vmatprep.subr.mxu0 0.0
    %174 = vmatpush1.msra.mxu0 0.0
    %175 = vmatprep.subr.mxu0 0.0
    %176 = vmatpush1.msra.mxu0 0.0
    %177 = vmatprep.subr.mxu0 0.0
    %178 = vmatpush1.msra.mxu0 0.0
    %179 = vmatprep.subr.mxu0 0.0
    %180 = vmatpush1.msra.mxu0 0.0
    %181 = vmatprep.subr.mxu0 0.0
    %182 = vmatpush1.msra.mxu0 0.0
    %183 = vmatprep.subr.mxu0 0.0
    %184 = vmatpush1.msra.mxu0 0.0
    %185 = vmatprep.subr.mxu0 0.0
    %186 = vmatpush1.msra.mxu0 0.0
    %187 = vmatprep.subr.mxu0 0.0
    %188 = vmatpush1.msra.mxu0 0.0
    %189 = vmatprep.subr.mxu0 0.0
    %190 = vmatpush1.msra.mxu0 0.0
    %191 = vmatprep.subr.mxu0 0.0
    %192 = vmatpush1.msra.mxu0 0.0
    %193 = vmatprep.subr.mxu0 0.0
    %194 = vmatpush1.msra.mxu0 0.0
    %195 = vmatprep.subr.mxu0 0.0
    %196 = vmatpush1.msra.mxu0 0.0
    %197 = vmatprep.subr.mxu0 0.0
    %198 = vmatpush1.msra.mxu0 0.0
    %199 = vmatprep.subr.mxu0 0.0
    %200 = vmatpush1.msra.mxu0 0.0
    %201 = vmatprep.subr.mxu0 0.0
    %202 = vmatpush1.msra.mxu0 0.0
    %203 = vmatprep.subr.mxu0 0.0
    %204 = vmatpush1.msra.mxu0 0.0
    %205 = vmatprep.subr.mxu0 0.0
    %206 = vmatpush1.msra.mxu0 0.0
    %207 = vmatprep.subr.mxu0 0.0
    %208 = vmatpush1.msra.mxu0 0.0
    %209 = vmatprep.subr.mxu0 0.0
    %210 = vmatpush1.msra.mxu0 0.0
    %211 = vmatprep.subr.mxu0 0.0
    %212 = vmatpush1.msra.mxu0 0.0
    %213 = vmatprep.subr.mxu0 0.0
    %214 = vmatpush1.msra.mxu0 0.0
    %215 = vmatprep.subr.mxu0 0.0
    %216 = vmatpush1.msra.mxu0 0.0
    %217 = vmatprep.subr.mxu0 0.0
    %218 = vmatpush1.msra.mxu0 0.0
    %219 = vmatprep.mubr.f32.mxu0 0.0
    %220 = vmatmul.mubr.f32.gmra.mrb[0].mxu0 %v65
    %v221 = vpop.f32.mrb[0].mxu0
    %v222 = vadd.f32 %v153, %v221
    %v223 = vpop.f32.mrb[0].mxu0
    %224 = vmatprep.mubr.f32.mxu0 0.0
    %225 = vmatmul.mubr.f32.gmra.mrb[0].mxu0 %v68
    %v226 = vpop.f32.mrb[0].mxu0
    %v227 = vadd.f32 %v153, %v226
    %v228 = vpop.f32.mrb[0].mxu0
    %229 = vdwg.mxu0
    %230 = vst.msk [vmem:[#allocation3] sm:$0xff] %vm63, %v222
    %231 = vst.msk [vmem:[#allocation3 + $0x8] sm:$0xff] %vm63, %v227
    %s232 = scalar_lea.vmem %s1, 16
    %v233 = vld [vmem:[%s232] sm:$0xff]
    %v234 = vld [vmem:[%s232 + $0x8] sm:$0xff]
    %v236 = vlaneseq
    %v237 = vshrl.u32 %v236, 7
    %v238 = vsub.s32 0, %v237
    %v239 = vrot.slane %v48, %v238
    %241 = vmatprep.subr.mxu0 0.0
    %242 = vmatpush1.msra.mxu0 %v233
    %243 = vmatprep.subr.mxu0 0.0
    %244 = vmatpush1.msra.mxu0 %v234
    %245 = vmatprep.subr.mxu0 0.0
    %246 = vmatpush1.msra.mxu0 0.0
    %247 = vmatprep.subr.mxu0 0.0
    %248 = vmatpush1.msra.mxu0 0.0
    %249 = vmatprep.subr.mxu0 0.0
    %250 = vmatpush1.msra.mxu0 0.0
    %251 = vmatprep.subr.mxu0 0.0
    %252 = vmatpush1.msra.mxu0 0.0
    %253 = vmatprep.subr.mxu0 0.0
    %254 = vmatpush1.msra.mxu0 0.0
    %255 = vmatprep.subr.mxu0 0.0
    %256 = vmatpush1.msra.mxu0 0.0
    %257 = vmatprep.subr.mxu0 0.0
    %258 = vmatpush1.msra.mxu0 0.0
    %259 = vmatprep.subr.mxu0 0.0
    %260 = vmatpush1.msra.mxu0 0.0
    %261 = vmatprep.subr.mxu0 0.0
    %262 = vmatpush1.msra.mxu0 0.0
    %263 = vmatprep.subr.mxu0 0.0
    %264 = vmatpush1.msra.mxu0 0.0
    %265 = vmatprep.subr.mxu0 0.0
    %266 = vmatpush1.msra.mxu0 0.0
    %267 = vmatprep.subr.mxu0 0.0
    %268 = vmatpush1.msra.mxu0 0.0
    %269 = vmatprep.subr.mxu0 0.0
    %270 = vmatpush1.msra.mxu0 0.0
    %271 = vmatprep.subr.mxu0 0.0
    %272 = vmatpush1.msra.mxu0 0.0
    %273 = vmatprep.subr.mxu0 0.0
    %274 = vmatpush1.msra.mxu0 0.0
    %275 = vmatprep.subr.mxu0 0.0
    %276 = vmatpush1.msra.mxu0 0.0
    %277 = vmatprep.subr.mxu0 0.0
    %278 = vmatpush1.msra.mxu0 0.0
    %279 = vmatprep.subr.mxu0 0.0
    %280 = vmatpush1.msra.mxu0 0.0
    %281 = vmatprep.subr.mxu0 0.0
    %282 = vmatpush1.msra.mxu0 0.0
    %283 = vmatprep.subr.mxu0 0.0
    %284 = vmatpush1.msra.mxu0 0.0
    %285 = vmatprep.subr.mxu0 0.0
    %286 = vmatpush1.msra.mxu0 0.0
    %287 = vmatprep.subr.mxu0 0.0
    %288 = vmatpush1.msra.mxu0 0.0
    %289 = vmatprep.subr.mxu0 0.0
    %290 = vmatpush1.msra.mxu0 0.0
    %291 = vmatprep.subr.mxu0 0.0
    %292 = vmatpush1.msra.mxu0 0.0
    %293 = vmatprep.subr.mxu0 0.0
    %294 = vmatpush1.msra.mxu0 0.0
    %295 = vmatprep.subr.mxu0 0.0
    %296 = vmatpush1.msra.mxu0 0.0
    %297 = vmatprep.subr.mxu0 0.0
    %298 = vmatpush1.msra.mxu0 0.0
    %299 = vmatprep.subr.mxu0 0.0
    %300 = vmatpush1.msra.mxu0 0.0
    %301 = vmatprep.subr.mxu0 0.0
    %302 = vmatpush1.msra.mxu0 0.0
    %303 = vmatprep.subr.mxu0 0.0
    %304 = vmatpush1.msra.mxu0 0.0
    %305 = vmatprep.mubr.f32.mxu0 0.0
    %306 = vmatmul.mubr.f32.gmra.mrb[0].mxu0 %v65
    %v307 = vpop.f32.mrb[0].mxu0
    %v308 = vadd.f32 %v239, %v307
    %v309 = vpop.f32.mrb[0].mxu0
    %310 = vmatprep.mubr.f32.mxu0 0.0
    %311 = vmatmul.mubr.f32.gmra.mrb[0].mxu0 %v68
    %v312 = vpop.f32.mrb[0].mxu0
    %v313 = vadd.f32 %v239, %v312
    %v314 = vpop.f32.mrb[0].mxu0
    %315 = vdwg.mxu0
    %s316 = scalar_lea.vmem [#allocation2], 16
    %317 = vst.msk [vmem:[%s316] sm:$0xff] %vm63, %v308
    %318 = vst.msk [vmem:[%s316 + $0x8] sm:$0xff] %vm63, %v313
    %s319 = scalar_lea.vmem %s4, 16
    %v320 = vld [vmem:[%s319] sm:$0xff]
    %v321 = vld [vmem:[%s319 + $0x8] sm:$0xff]
    %v323 = vlaneseq
    %v324 = vshrl.u32 %v323, 7
    %v325 = vsub.s32 0, %v324
    %v326 = vrot.slane %v52, %v325
    %328 = vmatprep.subr.mxu0 0.0
    %329 = vmatpush1.msra.mxu0 %v320
    %330 = vmatprep.subr.mxu0 0.0
    %331 = vmatpush1.msra.mxu0 %v321
    %332 = vmatprep.subr.mxu0 0.0
    %333 = vmatpush1.msra.mxu0 0.0
    %334 = vmatprep.subr.mxu0 0.0
    %335 = vmatpush1.msra.mxu0 0.0
    %336 = vmatprep.subr.mxu0 0.0
    %337 = vmatpush1.msra.mxu0 0.0
    %338 = vmatprep.subr.mxu0 0.0
    %339 = vmatpush1.msra.mxu0 0.0
    %340 = vmatprep.subr.mxu0 0.0
    %341 = vmatpush1.msra.mxu0 0.0
    %342 = vmatprep.subr.mxu0 0.0
    %343 = vmatpush1.msra.mxu0 0.0
    %344 = vmatprep.subr.mxu0 0.0
    %345 = vmatpush1.msra.mxu0 0.0
    %346 = vmatprep.subr.mxu0 0.0
    %347 = vmatpush1.msra.mxu0 0.0
    %348 = vmatprep.subr.mxu0 0.0
    %349 = vmatpush1.msra.mxu0 0.0
    %350 = vmatprep.subr.mxu0 0.0
    %351 = vmatpush1.msra.mxu0 0.0
    %352 = vmatprep.subr.mxu0 0.0
    %353 = vmatpush1.msra.mxu0 0.0
    %354 = vmatprep.subr.mxu0 0.0
    %355 = vmatpush1.msra.mxu0 0.0
    %356 = vmatprep.subr.mxu0 0.0
    %357 = vmatpush1.msra.mxu0 0.0
    %358 = vmatprep.subr.mxu0 0.0
    %359 = vmatpush1.msra.mxu0 0.0
    %360 = vmatprep.subr.mxu0 0.0
    %361 = vmatpush1.msra.mxu0 0.0
    %362 = vmatprep.subr.mxu0 0.0
    %363 = vmatpush1.msra.mxu0 0.0
    %364 = vmatprep.subr.mxu0 0.0
    %365 = vmatpush1.msra.mxu0 0.0
    %366 = vmatprep.subr.mxu0 0.0
    %367 = vmatpush1.msra.mxu0 0.0
    %368 = vmatprep.subr.mxu0 0.0
    %369 = vmatpush1.msra.mxu0 0.0
    %370 = vmatprep.subr.mxu0 0.0
    %371 = vmatpush1.msra.mxu0 0.0
    %372 = vmatprep.subr.mxu0 0.0
    %373 = vmatpush1.msra.mxu0 0.0
    %374 = vmatprep.subr.mxu0 0.0
    %375 = vmatpush1.msra.mxu0 0.0
    %376 = vmatprep.subr.mxu0 0.0
    %377 = vmatpush1.msra.mxu0 0.0
    %378 = vmatprep.subr.mxu0 0.0
    %379 = vmatpush1.msra.mxu0 0.0
    %380 = vmatprep.subr.mxu0 0.0
    %381 = vmatpush1.msra.mxu0 0.0
    %382 = vmatprep.subr.mxu0 0.0
    %383 = vmatpush1.msra.mxu0 0.0
    %384 = vmatprep.subr.mxu0 0.0
    %385 = vmatpush1.msra.mxu0 0.0
    %386 = vmatprep.subr.mxu0 0.0
    %387 = vmatpush1.msra.mxu0 0.0
    %388 = vmatprep.subr.mxu0 0.0
    %389 = vmatpush1.msra.mxu0 0.0
    %390 = vmatprep.subr.mxu0 0.0
    %391 = vmatpush1.msra.mxu0 0.0
    %392 = vmatprep.mubr.f32.mxu0 0.0
    %393 = vmatmul.mubr.f32.gmra.mrb[0].mxu0 %v65
    %v394 = vpop.f32.mrb[0].mxu0
    %v395 = vadd.f32 %v326, %v394
    %v396 = vpop.f32.mrb[0].mxu0
    %397 = vmatprep.mubr.f32.mxu0 0.0
    %398 = vmatmul.mubr.f32.gmra.mrb[0].mxu0 %v68
    %v399 = vpop.f32.mrb[0].mxu0
    %v400 = vadd.f32 %v326, %v399
    %v401 = vpop.f32.mrb[0].mxu0
    %402 = vdwg.mxu0
    %s403 = scalar_lea.vmem [#allocation3], 16
    %404 = vst.msk [vmem:[%s403] sm:$0xff] %vm63, %v395
    %405 = vst.msk [vmem:[%s403 + $0x8] sm:$0xff] %vm63, %v400
    %s406 = scalar_lea.vmem %s1, 32
    %v407 = vld [vmem:[%s406] sm:$0xff]
    %v408 = vld [vmem:[%s406 + $0x8] sm:$0xff]
    %v410 = vlaneseq
    %v411 = vshrl.u32 %v410, 7
    %v412 = vsub.s32 0, %v411
    %v413 = vrot.slane %v49, %v412
    %415 = vmatprep.subr.mxu0 0.0
    %416 = vmatpush1.msra.mxu0 %v407
    %417 = vmatprep.subr.mxu0 0.0
    %418 = vmatpush1.msra.mxu0 %v408
    %419 = vmatprep.subr.mxu0 0.0
    %420 = vmatpush1.msra.mxu0 0.0
    %421 = vmatprep.subr.mxu0 0.0
    %422 = vmatpush1.msra.mxu0 0.0
    %423 = vmatprep.subr.mxu0 0.0
    %424 = vmatpush1.msra.mxu0 0.0
    %425 = vmatprep.subr.mxu0 0.0
    %426 = vmatpush1.msra.mxu0 0.0
    %427 = vmatprep.subr.mxu0 0.0
    %428 = vmatpush1.msra.mxu0 0.0
    %429 = vmatprep.subr.mxu0 0.0
    %430 = vmatpush1.msra.mxu0 0.0
    %431 = vmatprep.subr.mxu0 0.0
    %432 = vmatpush1.msra.mxu0 0.0
    %433 = vmatprep.subr.mxu0 0.0
    %434 = vmatpush1.msra.mxu0 0.0
    %435 = vmatprep.subr.mxu0 0.0
    %436 = vmatpush1.msra.mxu0 0.0
    %437 = vmatprep.subr.mxu0 0.0
    %438 = vmatpush1.msra.mxu0 0.0
    %439 = vmatprep.subr.mxu0 0.0
    %440 = vmatpush1.msra.mxu0 0.0
    %441 = vmatprep.subr.mxu0 0.0
    %442 = vmatpush1.msra.mxu0 0.0
    %443 = vmatprep.subr.mxu0 0.0
    %444 = vmatpush1.msra.mxu0 0.0
    %445 = vmatprep.subr.mxu0 0.0
    %446 = vmatpush1.msra.mxu0 0.0
    %447 = vmatprep.subr.mxu0 0.0
    %448 = vmatpush1.msra.mxu0 0.0
    %449 = vmatprep.subr.mxu0 0.0
    %450 = vmatpush1.msra.mxu0 0.0
    %451 = vmatprep.subr.mxu0 0.0
    %452 = vmatpush1.msra.mxu0 0.0
    %453 = vmatprep.subr.mxu0 0.0
    %454 = vmatpush1.msra.mxu0 0.0
    %455 = vmatprep.subr.mxu0 0.0
    %456 = vmatpush1.msra.mxu0 0.0
    %457 = vmatprep.subr.mxu0 0.0
    %458 = vmatpush1.msra.mxu0 0.0
    %459 = vmatprep.subr.mxu0 0.0
    %460 = vmatpush1.msra.mxu0 0.0
    %461 = vmatprep.subr.mxu0 0.0
    %462 = vmatpush1.msra.mxu0 0.0
    %463 = vmatprep.subr.mxu0 0.0
    %464 = vmatpush1.msra.mxu0 0.0
    %465 = vmatprep.subr.mxu0 0.0
    %466 = vmatpush1.msra.mxu0 0.0
    %467 = vmatprep.subr.mxu0 0.0
    %468 = vmatpush1.msra.mxu0 0.0
    %469 = vmatprep.subr.mxu0 0.0
    %470 = vmatpush1.msra.mxu0 0.0
    %471 = vmatprep.subr.mxu0 0.0
    %472 = vmatpush1.msra.mxu0 0.0
    %473 = vmatprep.subr.mxu0 0.0
    %474 = vmatpush1.msra.mxu0 0.0
    %475 = vmatprep.subr.mxu0 0.0
    %476 = vmatpush1.msra.mxu0 0.0
    %477 = vmatprep.subr.mxu0 0.0
    %478 = vmatpush1.msra.mxu0 0.0
    %479 = vmatprep.mubr.f32.mxu0 0.0
    %480 = vmatmul.mubr.f32.gmra.mrb[0].mxu0 %v65
    %v481 = vpop.f32.mrb[0].mxu0
    %v482 = vadd.f32 %v413, %v481
    %v483 = vpop.f32.mrb[0].mxu0
    %484 = vmatprep.mubr.f32.mxu0 0.0
    %485 = vmatmul.mubr.f32.gmra.mrb[0].mxu0 %v68
    %v486 = vpop.f32.mrb[0].mxu0
    %v487 = vadd.f32 %v413, %v486
    %v488 = vpop.f32.mrb[0].mxu0
    %489 = vdwg.mxu0
    %s490 = scalar_lea.vmem [#allocation2], 32
    %491 = vst.msk [vmem:[%s490] sm:$0xff] %vm63, %v482
    %492 = vst.msk [vmem:[%s490 + $0x8] sm:$0xff] %vm63, %v487
    %s493 = scalar_lea.vmem %s4, 32
    %v494 = vld [vmem:[%s493] sm:$0xff]
    %v495 = vld [vmem:[%s493 + $0x8] sm:$0xff]
    %v497 = vlaneseq
    %v498 = vshrl.u32 %v497, 7
    %v499 = vsub.s32 0, %v498
    %v500 = vrot.slane %v53, %v499
    %502 = vmatprep.subr.mxu0 0.0
    %503 = vmatpush1.msra.mxu0 %v494
    %504 = vmatprep.subr.mxu0 0.0
    %505 = vmatpush1.msra.mxu0 %v495
    %506 = vmatprep.subr.mxu0 0.0
    %507 = vmatpush1.msra.mxu0 0.0
    %508 = vmatprep.subr.mxu0 0.0
    %509 = vmatpush1.msra.mxu0 0.0
    %510 = vmatprep.subr.mxu0 0.0
    %511 = vmatpush1.msra.mxu0 0.0
    %512 = vmatprep.subr.mxu0 0.0
    %513 = vmatpush1.msra.mxu0 0.0
    %514 = vmatprep.subr.mxu0 0.0
    %515 = vmatpush1.msra.mxu0 0.0
    %516 = vmatprep.subr.mxu0 0.0
    %517 = vmatpush1.msra.mxu0 0.0
    %518 = vmatprep.subr.mxu0 0.0
    %519 = vmatpush1.msra.mxu0 0.0
    %520 = vmatprep.subr.mxu0 0.0
    %521 = vmatpush1.msra.mxu0 0.0
    %522 = vmatprep.subr.mxu0 0.0
    %523 = vmatpush1.msra.mxu0 0.0
    %524 = vmatprep.subr.mxu0 0.0
    %525 = vmatpush1.msra.mxu0 0.0
    %526 = vmatprep.subr.mxu0 0.0
    %527 = vmatpush1.msra.mxu0 0.0
    %528 = vmatprep.subr.mxu0 0.0
    %529 = vmatpush1.msra.mxu0 0.0
    %530 = vmatprep.subr.mxu0 0.0
    %531 = vmatpush1.msra.mxu0 0.0
    %532 = vmatprep.subr.mxu0 0.0
    %533 = vmatpush1.msra.mxu0 0.0
    %534 = vmatprep.subr.mxu0 0.0
    %535 = vmatpush1.msra.mxu0 0.0
    %536 = vmatprep.subr.mxu0 0.0
    %537 = vmatpush1.msra.mxu0 0.0
    %538 = vmatprep.subr.mxu0 0.0
    %539 = vmatpush1.msra.mxu0 0.0
    %540 = vmatprep.subr.mxu0 0.0
    %541 = vmatpush1.msra.mxu0 0.0
    %542 = vmatprep.subr.mxu0 0.0
    %543 = vmatpush1.msra.mxu0 0.0
    %544 = vmatprep.subr.mxu0 0.0
    %545 = vmatpush1.msra.mxu0 0.0
    %546 = vmatprep.subr.mxu0 0.0
    %547 = vmatpush1.msra.mxu0 0.0
    %548 = vmatprep.subr.mxu0 0.0
    %549 = vmatpush1.msra.mxu0 0.0
    %550 = vmatprep.subr.mxu0 0.0
    %551 = vmatpush1.msra.mxu0 0.0
    %552 = vmatprep.subr.mxu0 0.0
    %553 = vmatpush1.msra.mxu0 0.0
    %554 = vmatprep.subr.mxu0 0.0
    %555 = vmatpush1.msra.mxu0 0.0
    %556 = vmatprep.subr.mxu0 0.0
    %557 = vmatpush1.msra.mxu0 0.0
    %558 = vmatprep.subr.mxu0 0.0
    %559 = vmatpush1.msra.mxu0 0.0
    %560 = vmatprep.subr.mxu0 0.0
    %561 = vmatpush1.msra.mxu0 0.0
    %562 = vmatprep.subr.mxu0 0.0
    %563 = vmatpush1.msra.mxu0 0.0
    %564 = vmatprep.subr.mxu0 0.0
    %565 = vmatpush1.msra.mxu0 0.0
    %566 = vmatprep.mubr.f32.mxu0 0.0
    %567 = vmatmul.mubr.f32.gmra.mrb[0].mxu0 %v65
    %v568 = vpop.f32.mrb[0].mxu0
    %v569 = vadd.f32 %v500, %v568
    %v570 = vpop.f32.mrb[0].mxu0
    %571 = vmatprep.mubr.f32.mxu0 0.0
    %572 = vmatmul.mubr.f32.gmra.mrb[0].mxu0 %v68
    %v573 = vpop.f32.mrb[0].mxu0
    %v574 = vadd.f32 %v500, %v573
    %v575 = vpop.f32.mrb[0].mxu0
    %576 = vdwg.mxu0
    %s577 = scalar_lea.vmem [#allocation3], 32
    %578 = vst.msk [vmem:[%s577] sm:$0xff] %vm63, %v569
    %579 = vst.msk [vmem:[%s577 + $0x8] sm:$0xff] %vm63, %v574
    %s580 = scalar_lea.vmem %s1, 48
    %v581 = vld [vmem:[%s580] sm:$0xff]
    %v582 = vld [vmem:[%s580 + $0x8] sm:$0xff]
    %v584 = vlaneseq
    %v585 = vshrl.u32 %v584, 7
    %v586 = vsub.s32 0, %v585
    %v587 = vrot.slane %v50, %v586
    %589 = vmatprep.subr.mxu0 0.0
    %590 = vmatpush1.msra.mxu0 %v581
    %591 = vmatprep.subr.mxu0 0.0
    %592 = vmatpush1.msra.mxu0 %v582
    %593 = vmatprep.subr.mxu0 0.0
    %594 = vmatpush1.msra.mxu0 0.0
    %595 = vmatprep.subr.mxu0 0.0
    %596 = vmatpush1.msra.mxu0 0.0
    %597 = vmatprep.subr.mxu0 0.0
    %598 = vmatpush1.msra.mxu0 0.0
    %599 = vmatprep.subr.mxu0 0.0
    %600 = vmatpush1.msra.mxu0 0.0
    %601 = vmatprep.subr.mxu0 0.0
    %602 = vmatpush1.msra.mxu0 0.0
    %603 = vmatprep.subr.mxu0 0.0
    %604 = vmatpush1.msra.mxu0 0.0
    %605 = vmatprep.subr.mxu0 0.0
    %606 = vmatpush1.msra.mxu0 0.0
    %607 = vmatprep.subr.mxu0 0.0
    %608 = vmatpush1.msra.mxu0 0.0
    %609 = vmatprep.subr.mxu0 0.0
    %610 = vmatpush1.msra.mxu0 0.0
    %611 = vmatprep.subr.mxu0 0.0
    %612 = vmatpush1.msra.mxu0 0.0
    %613 = vmatprep.subr.mxu0 0.0
    %614 = vmatpush1.msra.mxu0 0.0
    %615 = vmatprep.subr.mxu0 0.0
    %616 = vmatpush1.msra.mxu0 0.0
    %617 = vmatprep.subr.mxu0 0.0
    %618 = vmatpush1.msra.mxu0 0.0
    %619 = vmatprep.subr.mxu0 0.0
    %620 = vmatpush1.msra.mxu0 0.0
    %621 = vmatprep.subr.mxu0 0.0
    %622 = vmatpush1.msra.mxu0 0.0
    %623 = vmatprep.subr.mxu0 0.0
    %624 = vmatpush1.msra.mxu0 0.0
    %625 = vmatprep.subr.mxu0 0.0
    %626 = vmatpush1.msra.mxu0 0.0
    %627 = vmatprep.subr.mxu0 0.0
    %628 = vmatpush1.msra.mxu0 0.0
    %629 = vmatprep.subr.mxu0 0.0
    %630 = vmatpush1.msra.mxu0 0.0
    %631 = vmatprep.subr.mxu0 0.0
    %632 = vmatpush1.msra.mxu0 0.0
    %633 = vmatprep.subr.mxu0 0.0
    %634 = vmatpush1.msra.mxu0 0.0
    %635 = vmatprep.subr.mxu0 0.0
    %636 = vmatpush1.msra.mxu0 0.0
    %637 = vmatprep.subr.mxu0 0.0
    %638 = vmatpush1.msra.mxu0 0.0
    %639 = vmatprep.subr.mxu0 0.0
    %640 = vmatpush1.msra.mxu0 0.0
    %641 = vmatprep.subr.mxu0 0.0
    %642 = vmatpush1.msra.mxu0 0.0
    %643 = vmatprep.subr.mxu0 0.0
    %644 = vmatpush1.msra.mxu0 0.0
    %645 = vmatprep.subr.mxu0 0.0
    %646 = vmatpush1.msra.mxu0 0.0
    %647 = vmatprep.subr.mxu0 0.0
    %648 = vmatpush1.msra.mxu0 0.0
    %649 = vmatprep.subr.mxu0 0.0
    %650 = vmatpush1.msra.mxu0 0.0
    %651 = vmatprep.subr.mxu0 0.0
    %652 = vmatpush1.msra.mxu0 0.0
    %653 = vmatprep.mubr.f32.mxu0 0.0
    %654 = vmatmul.mubr.f32.gmra.mrb[0].mxu0 %v65
    %v655 = vpop.f32.mrb[0].mxu0
    %v656 = vadd.f32 %v587, %v655
    %v657 = vpop.f32.mrb[0].mxu0
    %658 = vmatprep.mubr.f32.mxu0 0.0
    %659 = vmatmul.mubr.f32.gmra.mrb[0].mxu0 %v68
    %v660 = vpop.f32.mrb[0].mxu0
    %v661 = vadd.f32 %v587, %v660
    %v662 = vpop.f32.mrb[0].mxu0
    %663 = vdwg.mxu0
    %s664 = scalar_lea.vmem [#allocation2], 48
    %665 = vst.msk [vmem:[%s664] sm:$0xff] %vm63, %v656
    %666 = vst.msk [vmem:[%s664 + $0x8] sm:$0xff] %vm63, %v661
    %s667 = scalar_lea.vmem %s4, 48
    %v668 = vld [vmem:[%s667] sm:$0xff]
    %v669 = vld [vmem:[%s667 + $0x8] sm:$0xff]
    %v671 = vlaneseq
    %v672 = vshrl.u32 %v671, 7
    %v673 = vsub.s32 0, %v672
    %v674 = vrot.slane %v54, %v673
    %676 = vmatprep.subr.mxu0 0.0
    %677 = vmatpush1.msra.mxu0 %v668
    %678 = vmatprep.subr.mxu0 0.0
    %679 = vmatpush1.msra.mxu0 %v669
    %680 = vmatprep.subr.mxu0 0.0
    %681 = vmatpush1.msra.mxu0 0.0
    %682 = vmatprep.subr.mxu0 0.0
    %683 = vmatpush1.msra.mxu0 0.0
    %684 = vmatprep.subr.mxu0 0.0
    %685 = vmatpush1.msra.mxu0 0.0
    %686 = vmatprep.subr.mxu0 0.0
    %687 = vmatpush1.msra.mxu0 0.0
    %688 = vmatprep.subr.mxu0 0.0
    %689 = vmatpush1.msra.mxu0 0.0
    %690 = vmatprep.subr.mxu0 0.0
    %691 = vmatpush1.msra.mxu0 0.0
    %692 = vmatprep.subr.mxu0 0.0
    %693 = vmatpush1.msra.mxu0 0.0
    %694 = vmatprep.subr.mxu0 0.0
    %695 = vmatpush1.msra.mxu0 0.0
    %696 = vmatprep.subr.mxu0 0.0
    %697 = vmatpush1.msra.mxu0 0.0
    %698 = vmatprep.subr.mxu0 0.0
    %699 = vmatpush1.msra.mxu0 0.0
    %700 = vmatprep.subr.mxu0 0.0
    %701 = vmatpush1.msra.mxu0 0.0
    %702 = vmatprep.subr.mxu0 0.0
    %703 = vmatpush1.msra.mxu0 0.0
    %704 = vmatprep.subr.mxu0 0.0
    %705 = vmatpush1.msra.mxu0 0.0
    %706 = vmatprep.subr.mxu0 0.0
    %707 = vmatpush1.msra.mxu0 0.0
    %708 = vmatprep.subr.mxu0 0.0
    %709 = vmatpush1.msra.mxu0 0.0
    %710 = vmatprep.subr.mxu0 0.0
    %711 = vmatpush1.msra.mxu0 0.0
    %712 = vmatprep.subr.mxu0 0.0
    %713 = vmatpush1.msra.mxu0 0.0
    %714 = vmatprep.subr.mxu0 0.0
    %715 = vmatpush1.msra.mxu0 0.0
    %716 = vmatprep.subr.mxu0 0.0
    %717 = vmatpush1.msra.mxu0 0.0
    %718 = vmatprep.subr.mxu0 0.0
    %719 = vmatpush1.msra.mxu0 0.0
    %720 = vmatprep.subr.mxu0 0.0
    %721 = vmatpush1.msra.mxu0 0.0
    %722 = vmatprep.subr.mxu0 0.0
    %723 = vmatpush1.msra.mxu0 0.0
    %724 = vmatprep.subr.mxu0 0.0
    %725 = vmatpush1.msra.mxu0 0.0
    %726 = vmatprep.subr.mxu0 0.0
    %727 = vmatpush1.msra.mxu0 0.0
    %728 = vmatprep.subr.mxu0 0.0
    %729 = vmatpush1.msra.mxu0 0.0
    %730 = vmatprep.subr.mxu0 0.0
    %731 = vmatpush1.msra.mxu0 0.0
    %732 = vmatprep.subr.mxu0 0.0
    %733 = vmatpush1.msra.mxu0 0.0
    %734 = vmatprep.subr.mxu0 0.0
    %735 = vmatpush1.msra.mxu0 0.0
    %736 = vmatprep.subr.mxu0 0.0
    %737 = vmatpush1.msra.mxu0 0.0
    %738 = vmatprep.subr.mxu0 0.0
    %739 = vmatpush1.msra.mxu0 0.0
    %740 = vmatprep.mubr.f32.mxu0 0.0
    %741 = vmatmul.mubr.f32.gmra.mrb[0].mxu0 %v65
    %v742 = vpop.f32.mrb[0].mxu0
    %v743 = vadd.f32 %v674, %v742
    %v744 = vpop.f32.mrb[0].mxu0
    %745 = vmatprep.mubr.f32.mxu0 0.0
    %746 = vmatmul.mubr.f32.gmra.mrb[0].mxu0 %v68
    %v747 = vpop.f32.mrb[0].mxu0
    %v748 = vadd.f32 %v674, %v747
    %v749 = vpop.f32.mrb[0].mxu0
    %750 = vdwg.mxu0
    %s751 = scalar_lea.vmem [#allocation3], 48
    %752 = vst.msk [vmem:[%s751] sm:$0xff] %vm63, %v743
    %753 = vst.msk [vmem:[%s751 + $0x8] sm:$0xff] %vm63, %v748
    %v754 = vld [vmem:[%s2] sm:$0xff]
    %v755 = vld [vmem:[%s2 + $0x8] sm:$0xff]
    %s756 = scalar_lea.vmem %s2, 16
    %v757 = vld [vmem:[%s756] sm:$0xff]
    %v758 = vld [vmem:[%s756 + $0x8] sm:$0xff]
    %s759 = scalar_lea.vmem %s2, 32
    %v760 = vld [vmem:[%s759] sm:$0xff]
    %v761 = vld [vmem:[%s759 + $0x8] sm:$0xff]
    %s762 = scalar_lea.vmem %s2, 48
    %v763 = vld [vmem:[%s762] sm:$0xff]
    %v764 = vld [vmem:[%s762 + $0x8] sm:$0xff]
    %v765 = vld [vmem:[%s5] sm:$0xff]
    %v766 = vld [vmem:[%s5 + $0x8] sm:$0xff]
    %s767 = scalar_lea.vmem %s5, 16
    %v768 = vld [vmem:[%s767] sm:$0xff]
    %v769 = vld [vmem:[%s767 + $0x8] sm:$0xff]
    %s770 = scalar_lea.vmem %s5, 32
    %v771 = vld [vmem:[%s770] sm:$0xff]
    %v772 = vld [vmem:[%s770 + $0x8] sm:$0xff]
    %s773 = scalar_lea.vmem %s5, 48
    %v774 = vld [vmem:[%s773] sm:$0xff]
    %v775 = vld [vmem:[%s773 + $0x8] sm:$0xff]
    %v776 = vld [vmem:[#allocation2] sm:$0x3]
    %v778 = vsel %vm63, 0.0, 0
    %780 = vmatprep.subr.mxu0 0.0
    %781 = vmatpush1.msra.mxu0 %v754
    %782 = vmatprep.subr.mxu0 0.0
    %783 = vmatpush1.msra.mxu0 %v755
    %784 = vmatprep.subr.mxu0 0.0
    %785 = vmatpush1.msra.mxu0 0.0
    %786 = vmatprep.subr.mxu0 0.0
    %787 = vmatpush1.msra.mxu0 0.0
    %788 = vmatprep.subr.mxu0 0.0
    %789 = vmatpush1.msra.mxu0 0.0
    %790 = vmatprep.subr.mxu0 0.0
    %791 = vmatpush1.msra.mxu0 0.0
    %792 = vmatprep.subr.mxu0 0.0
    %793 = vmatpush1.msra.mxu0 0.0
    %794 = vmatprep.subr.mxu0 0.0
    %795 = vmatpush1.msra.mxu0 0.0
    %796 = vmatprep.subr.mxu0 0.0
    %797 = vmatpush1.msra.mxu0 0.0
    %798 = vmatprep.subr.mxu0 0.0
    %799 = vmatpush1.msra.mxu0 0.0
    %800 = vmatprep.subr.mxu0 0.0
    %801 = vmatpush1.msra.mxu0 0.0
    %802 = vmatprep.subr.mxu0 0.0
    %803 = vmatpush1.msra.mxu0 0.0
    %804 = vmatprep.subr.mxu0 0.0
    %805 = vmatpush1.msra.mxu0 0.0
    %806 = vmatprep.subr.mxu0 0.0
    %807 = vmatpush1.msra.mxu0 0.0
    %808 = vmatprep.subr.mxu0 0.0
    %809 = vmatpush1.msra.mxu0 0.0
    %810 = vmatprep.subr.mxu0 0.0
    %811 = vmatpush1.msra.mxu0 0.0
    %812 = vmatprep.subr.mxu0 0.0
    %813 = vmatpush1.msra.mxu0 0.0
    %814 = vmatprep.subr.mxu0 0.0
    %815 = vmatpush1.msra.mxu0 0.0
    %816 = vmatprep.subr.mxu0 0.0
    %817 = vmatpush1.msra.mxu0 0.0
    %818 = vmatprep.subr.mxu0 0.0
    %819 = vmatpush1.msra.mxu0 0.0
    %820 = vmatprep.subr.mxu0 0.0
    %821 = vmatpush1.msra.mxu0 0.0
    %822 = vmatprep.subr.mxu0 0.0
    %823 = vmatpush1.msra.mxu0 0.0
    %824 = vmatprep.subr.mxu0 0.0
    %825 = vmatpush1.msra.mxu0 0.0
    %826 = vmatprep.subr.mxu0 0.0
    %827 = vmatpush1.msra.mxu0 0.0
    %828 = vmatprep.subr.mxu0 0.0
    %829 = vmatpush1.msra.mxu0 0.0
    %830 = vmatprep.subr.mxu0 0.0
    %831 = vmatpush1.msra.mxu0 0.0
    %832 = vmatprep.subr.mxu0 0.0
    %833 = vmatpush1.msra.mxu0 0.0
    %834 = vmatprep.subr.mxu0 0.0
    %835 = vmatpush1.msra.mxu0 0.0
    %836 = vmatprep.subr.mxu0 0.0
    %837 = vmatpush1.msra.mxu0 0.0
    %838 = vmatprep.subr.mxu0 0.0
    %839 = vmatpush1.msra.mxu0 0.0
    %840 = vmatprep.subr.mxu0 0.0
    %841 = vmatpush1.msra.mxu0 0.0
    %842 = vmatprep.subr.mxu0 0.0
    %843 = vmatpush1.msra.mxu0 0.0
    %844 = vmatprep.mubr.f32.mxu0 0.0
    %845 = vmatmul.mubr.f32.gmra.mrb[0].mxu0 %v778
    %v846 = vpop.f32.mrb[0].mxu0
    %v847 = vadd.f32 0.0, %v846
    %v848 = vpop.f32.mrb[0].mxu0
    %849 = vdwg.mxu0
    %v850 = vadd.f32 %v776, %v847
    %v851 = vld [vmem:[%s316] sm:$0x3]
    %852 = vmatprep.subr.mxu0 0.0
    %853 = vmatpush1.msra.mxu0 %v757
    %854 = vmatprep.subr.mxu0 0.0
    %855 = vmatpush1.msra.mxu0 %v758
    %856 = vmatprep.subr.mxu0 0.0
    %857 = vmatpush1.msra.mxu0 0.0
    %858 = vmatprep.subr.mxu0 0.0
    %859 = vmatpush1.msra.mxu0 0.0
    %860 = vmatprep.subr.mxu0 0.0
    %861 = vmatpush1.msra.mxu0 0.0
    %862 = vmatprep.subr.mxu0 0.0
    %863 = vmatpush1.msra.mxu0 0.0
    %864 = vmatprep.subr.mxu0 0.0
    %865 = vmatpush1.msra.mxu0 0.0
    %866 = vmatprep.subr.mxu0 0.0
    %867 = vmatpush1.msra.mxu0 0.0
    %868 = vmatprep.subr.mxu0 0.0
    %869 = vmatpush1.msra.mxu0 0.0
    %870 = vmatprep.subr.mxu0 0.0
    %871 = vmatpush1.msra.mxu0 0.0
    %872 = vmatprep.subr.mxu0 0.0
    %873 = vmatpush1.msra.mxu0 0.0
    %874 = vmatprep.subr.mxu0 0.0
    %875 = vmatpush1.msra.mxu0 0.0
    %876 = vmatprep.subr.mxu0 0.0
    %877 = vmatpush1.msra.mxu0 0.0
    %878 = vmatprep.subr.mxu0 0.0
    %879 = vmatpush1.msra.mxu0 0.0
    %880 = vmatprep.subr.mxu0 0.0
    %881 = vmatpush1.msra.mxu0 0.0
    %882 = vmatprep.subr.mxu0 0.0
    %883 = vmatpush1.msra.mxu0 0.0
    %884 = vmatprep.subr.mxu0 0.0
    %885 = vmatpush1.msra.mxu0 0.0
    %886 = vmatprep.subr.mxu0 0.0
    %887 = vmatpush1.msra.mxu0 0.0
    %888 = vmatprep.subr.mxu0 0.0
    %889 = vmatpush1.msra.mxu0 0.0
    %890 = vmatprep.subr.mxu0 0.0
    %891 = vmatpush1.msra.mxu0 0.0
    %892 = vmatprep.subr.mxu0 0.0
    %893 = vmatpush1.msra.mxu0 0.0
    %894 = vmatprep.subr.mxu0 0.0
    %895 = vmatpush1.msra.mxu0 0.0
    %896 = vmatprep.subr.mxu0 0.0
    %897 = vmatpush1.msra.mxu0 0.0
    %898 = vmatprep.subr.mxu0 0.0
    %899 = vmatpush1.msra.mxu0 0.0
    %900 = vmatprep.subr.mxu0 0.0
    %901 = vmatpush1.msra.mxu0 0.0
    %902 = vmatprep.subr.mxu0 0.0
    %903 = vmatpush1.msra.mxu0 0.0
    %904 = vmatprep.subr.mxu0 0.0
    %905 = vmatpush1.msra.mxu0 0.0
    %906 = vmatprep.subr.mxu0 0.0
    %907 = vmatpush1.msra.mxu0 0.0
    %908 = vmatprep.subr.mxu0 0.0
    %909 = vmatpush1.msra.mxu0 0.0
    %910 = vmatprep.subr.mxu0 0.0
    %911 = vmatpush1.msra.mxu0 0.0
    %912 = vmatprep.subr.mxu0 0.0
    %913 = vmatpush1.msra.mxu0 0.0
    %914 = vmatprep.subr.mxu0 0.0
    %915 = vmatpush1.msra.mxu0 0.0
    %916 = vmatprep.mubr.f32.mxu0 0.0
    %917 = vmatmul.mubr.f32.gmra.mrb[0].mxu0 %v778
    %v918 = vpop.f32.mrb[0].mxu0
    %v919 = vadd.f32 0.0, %v918
    %v920 = vpop.f32.mrb[0].mxu0
    %921 = vdwg.mxu0
    %v922 = vadd.f32 %v851, %v919
    %v923 = vld [vmem:[%s490] sm:$0x3]
    %924 = vmatprep.subr.mxu0 0.0
    %925 = vmatpush1.msra.mxu0 %v760
    %926 = vmatprep.subr.mxu0 0.0
    %927 = vmatpush1.msra.mxu0 %v761
    %928 = vmatprep.subr.mxu0 0.0
    %929 = vmatpush1.msra.mxu0 0.0
    %930 = vmatprep.subr.mxu0 0.0
    %931 = vmatpush1.msra.mxu0 0.0
    %932 = vmatprep.subr.mxu0 0.0
    %933 = vmatpush1.msra.mxu0 0.0
    %934 = vmatprep.subr.mxu0 0.0
    %935 = vmatpush1.msra.mxu0 0.0
    %936 = vmatprep.subr.mxu0 0.0
    %937 = vmatpush1.msra.mxu0 0.0
    %938 = vmatprep.subr.mxu0 0.0
    %939 = vmatpush1.msra.mxu0 0.0
    %940 = vmatprep.subr.mxu0 0.0
    %941 = vmatpush1.msra.mxu0 0.0
    %942 = vmatprep.subr.mxu0 0.0
    %943 = vmatpush1.msra.mxu0 0.0
    %944 = vmatprep.subr.mxu0 0.0
    %945 = vmatpush1.msra.mxu0 0.0
    %946 = vmatprep.subr.mxu0 0.0
    %947 = vmatpush1.msra.mxu0 0.0
    %948 = vmatprep.subr.mxu0 0.0
    %949 = vmatpush1.msra.mxu0 0.0
    %950 = vmatprep.subr.mxu0 0.0
    %951 = vmatpush1.msra.mxu0 0.0
    %952 = vmatprep.subr.mxu0 0.0
    %953 = vmatpush1.msra.mxu0 0.0
    %954 = vmatprep.subr.mxu0 0.0
    %955 = vmatpush1.msra.mxu0 0.0
    %956 = vmatprep.subr.mxu0 0.0
    %957 = vmatpush1.msra.mxu0 0.0
    %958 = vmatprep.subr.mxu0 0.0
    %959 = vmatpush1.msra.mxu0 0.0
    %960 = vmatprep.subr.mxu0 0.0
    %961 = vmatpush1.msra.mxu0 0.0
    %962 = vmatprep.subr.mxu0 0.0
    %963 = vmatpush1.msra.mxu0 0.0
    %964 = vmatprep.subr.mxu0 0.0
    %965 = vmatpush1.msra.mxu0 0.0
    %966 = vmatprep.subr.mxu0 0.0
    %967 = vmatpush1.msra.mxu0 0.0
    %968 = vmatprep.subr.mxu0 0.0
    %969 = vmatpush1.msra.mxu0 0.0
    %970 = vmatprep.subr.mxu0 0.0
    %971 = vmatpush1.msra.mxu0 0.0
    %972 = vmatprep.subr.mxu0 0.0
    %973 = vmatpush1.msra.mxu0 0.0
    %974 = vmatprep.subr.mxu0 0.0
    %975 = vmatpush1.msra.mxu0 0.0
    %976 = vmatprep.subr.mxu0 0.0
    %977 = vmatpush1.msra.mxu0 0.0
    %978 = vmatprep.subr.mxu0 0.0
    %979 = vmatpush1.msra.mxu0 0.0
    %980 = vmatprep.subr.mxu0 0.0
    %981 = vmatpush1.msra.mxu0 0.0
    %982 = vmatprep.subr.mxu0 0.0
    %983 = vmatpush1.msra.mxu0 0.0
    %984 = vmatprep.subr.mxu0 0.0
    %985 = vmatpush1.msra.mxu0 0.0
    %986 = vmatprep.subr.mxu0 0.0
    %987 = vmatpush1.msra.mxu0 0.0
    %988 = vmatprep.mubr.f32.mxu0 0.0
    %989 = vmatmul.mubr.f32.gmra.mrb[0].mxu0 %v778
    %v990 = vpop.f32.mrb[0].mxu0
    %v991 = vadd.f32 0.0, %v990
    %v992 = vpop.f32.mrb[0].mxu0
    %993 = vdwg.mxu0
    %v994 = vadd.f32 %v923, %v991
    %v995 = vld [vmem:[%s664] sm:$0x3]
    %996 = vmatprep.subr.mxu0 0.0
    %997 = vmatpush1.msra.mxu0 %v763
    %998 = vmatprep.subr.mxu0 0.0
    %999 = vmatpush1.msra.mxu0 %v764
    %1000 = vmatprep.subr.mxu0 0.0
    %1001 = vmatpush1.msra.mxu0 0.0
    %1002 = vmatprep.subr.mxu0 0.0
    %1003 = vmatpush1.msra.mxu0 0.0
    %1004 = vmatprep.subr.mxu0 0.0
    %1005 = vmatpush1.msra.mxu0 0.0
    %1006 = vmatprep.subr.mxu0 0.0
    %1007 = vmatpush1.msra.mxu0 0.0
    %1008 = vmatprep.subr.mxu0 0.0
    %1009 = vmatpush1.msra.mxu0 0.0
    %1010 = vmatprep.subr.mxu0 0.0
    %1011 = vmatpush1.msra.mxu0 0.0
    %1012 = vmatprep.subr.mxu0 0.0
    %1013 = vmatpush1.msra.mxu0 0.0
    %1014 = vmatprep.subr.mxu0 0.0
    %1015 = vmatpush1.msra.mxu0 0.0
    %1016 = vmatprep.subr.mxu0 0.0
    %1017 = vmatpush1.msra.mxu0 0.0
    %1018 = vmatprep.subr.mxu0 0.0
    %1019 = vmatpush1.msra.mxu0 0.0
    %1020 = vmatprep.subr.mxu0 0.0
    %1021 = vmatpush1.msra.mxu0 0.0
    %1022 = vmatprep.subr.mxu0 0.0
    %1023 = vmatpush1.msra.mxu0 0.0
    %1024 = vmatprep.subr.mxu0 0.0
    %1025 = vmatpush1.msra.mxu0 0.0
    %1026 = vmatprep.subr.mxu0 0.0
    %1027 = vmatpush1.msra.mxu0 0.0
    %1028 = vmatprep.subr.mxu0 0.0
    %1029 = vmatpush1.msra.mxu0 0.0
    %1030 = vmatprep.subr.mxu0 0.0
    %1031 = vmatpush1.msra.mxu0 0.0
    %1032 = vmatprep.subr.mxu0 0.0
    %1033 = vmatpush1.msra.mxu0 0.0
    %1034 = vmatprep.subr.mxu0 0.0
    %1035 = vmatpush1.msra.mxu0 0.0
    %1036 = vmatprep.subr.mxu0 0.0
    %1037 = vmatpush1.msra.mxu0 0.0
    %1038 = vmatprep.subr.mxu0 0.0
    %1039 = vmatpush1.msra.mxu0 0.0
    %1040 = vmatprep.subr.mxu0 0.0
    %1041 = vmatpush1.msra.mxu0 0.0
    %1042 = vmatprep.subr.mxu0 0.0
    %1043 = vmatpush1.msra.mxu0 0.0
    %1044 = vmatprep.subr.mxu0 0.0
    %1045 = vmatpush1.msra.mxu0 0.0
    %1046 = vmatprep.subr.mxu0 0.0
    %1047 = vmatpush1.msra.mxu0 0.0
    %1048 = vmatprep.subr.mxu0 0.0
    %1049 = vmatpush1.msra.mxu0 0.0
    %1050 = vmatprep.subr.mxu0 0.0
    %1051 = vmatpush1.msra.mxu0 0.0
    %1052 = vmatprep.subr.mxu0 0.0
    %1053 = vmatpush1.msra.mxu0 0.0
    %1054 = vmatprep.subr.mxu0 0.0
    %1055 = vmatpush1.msra.mxu0 0.0
    %1056 = vmatprep.subr.mxu0 0.0
    %1057 = vmatpush1.msra.mxu0 0.0
    %1058 = vmatprep.subr.mxu0 0.0
    %1059 = vmatpush1.msra.mxu0 0.0
    %1060 = vmatprep.mubr.f32.mxu0 0.0
    %1061 = vmatmul.mubr.f32.gmra.mrb[0].mxu0 %v778
    %v1062 = vpop.f32.mrb[0].mxu0
    %v1063 = vadd.f32 0.0, %v1062
    %v1064 = vpop.f32.mrb[0].mxu0
    %1065 = vdwg.mxu0
    %v1066 = vadd.f32 %v995, %v1063
    %v1067 = vld [vmem:[#allocation3 + $0xe] sm:$0x3]
    %1068 = vmatprep.subr.mxu0 0.0
    %1069 = vmatpush1.msra.mxu0 %v765
    %1070 = vmatprep.subr.mxu0 0.0
    %1071 = vmatpush1.msra.mxu0 %v766
    %1072 = vmatprep.subr.mxu0 0.0
    %1073 = vmatpush1.msra.mxu0 0.0
    %1074 = vmatprep.subr.mxu0 0.0
    %1075 = vmatpush1.msra.mxu0 0.0
    %1076 = vmatprep.subr.mxu0 0.0
    %1077 = vmatpush1.msra.mxu0 0.0
    %1078 = vmatprep.subr.mxu0 0.0
    %1079 = vmatpush1.msra.mxu0 0.0
    %1080 = vmatprep.subr.mxu0 0.0
    %1081 = vmatpush1.msra.mxu0 0.0
    %1082 = vmatprep.subr.mxu0 0.0
    %1083 = vmatpush1.msra.mxu0 0.0
    %1084 = vmatprep.subr.mxu0 0.0
    %1085 = vmatpush1.msra.mxu0 0.0
    %1086 = vmatprep.subr.mxu0 0.0
    %1087 = vmatpush1.msra.mxu0 0.0
    %1088 = vmatprep.subr.mxu0 0.0
    %1089 = vmatpush1.msra.mxu0 0.0
    %1090 = vmatprep.subr.mxu0 0.0
    %1091 = vmatpush1.msra.mxu0 0.0
    %1092 = vmatprep.subr.mxu0 0.0
    %1093 = vmatpush1.msra.mxu0 0.0
    %1094 = vmatprep.subr.mxu0 0.0
    %1095 = vmatpush1.msra.mxu0 0.0
    %1096 = vmatprep.subr.mxu0 0.0
    %1097 = vmatpush1.msra.mxu0 0.0
    %1098 = vmatprep.subr.mxu0 0.0
    %1099 = vmatpush1.msra.mxu0 0.0
    %1100 = vmatprep.subr.mxu0 0.0
    %1101 = vmatpush1.msra.mxu0 0.0
    %1102 = vmatprep.subr.mxu0 0.0
    %1103 = vmatpush1.msra.mxu0 0.0
    %1104 = vmatprep.subr.mxu0 0.0
    %1105 = vmatpush1.msra.mxu0 0.0
    %1106 = vmatprep.subr.mxu0 0.0
    %1107 = vmatpush1.msra.mxu0 0.0
    %1108 = vmatprep.subr.mxu0 0.0
    %1109 = vmatpush1.msra.mxu0 0.0
    %1110 = vmatprep.subr.mxu0 0.0
    %1111 = vmatpush1.msra.mxu0 0.0
    %1112 = vmatprep.subr.mxu0 0.0
    %1113 = vmatpush1.msra.mxu0 0.0
    %1114 = vmatprep.subr.mxu0 0.0
    %1115 = vmatpush1.msra.mxu0 0.0
    %1116 = vmatprep.subr.mxu0 0.0
    %1117 = vmatpush1.msra.mxu0 0.0
    %1118 = vmatprep.subr.mxu0 0.0
    %1119 = vmatpush1.msra.mxu0 0.0
    %1120 = vmatprep.subr.mxu0 0.0
    %1121 = vmatpush1.msra.mxu0 0.0
    %1122 = vmatprep.subr.mxu0 0.0
    %1123 = vmatpush1.msra.mxu0 0.0
    %1124 = vmatprep.subr.mxu0 0.0
    %1125 = vmatpush1.msra.mxu0 0.0
    %1126 = vmatprep.subr.mxu0 0.0
    %1127 = vmatpush1.msra.mxu0 0.0
    %1128 = vmatprep.subr.mxu0 0.0
    %1129 = vmatpush1.msra.mxu0 0.0
    %1130 = vmatprep.subr.mxu0 0.0
    %1131 = vmatpush1.msra.mxu0 0.0
    %1132 = vmatprep.mubr.f32.mxu0 0.0
    %1133 = vmatmul.mubr.f32.gmra.mrb[0].mxu0 %v778
    %v1134 = vpop.f32.mrb[0].mxu0
    %v1135 = vadd.f32 0.0, %v1134
    %v1136 = vpop.f32.mrb[0].mxu0
    %1137 = vdwg.mxu0
    %v1138 = vadd.f32 %v1067, %v1135
    %v1139 = vld [vmem:[%s403 + $0xe] sm:$0x3]
    %1140 = vmatprep.subr.mxu0 0.0
    %1141 = vmatpush1.msra.mxu0 %v768
    %1142 = vmatprep.subr.mxu0 0.0
    %1143 = vmatpush1.msra.mxu0 %v769
    %1144 = vmatprep.subr.mxu0 0.0
    %1145 = vmatpush1.msra.mxu0 0.0
    %1146 = vmatprep.subr.mxu0 0.0
    %1147 = vmatpush1.msra.mxu0 0.0
    %1148 = vmatprep.subr.mxu0 0.0
    %1149 = vmatpush1.msra.mxu0 0.0
    %1150 = vmatprep.subr.mxu0 0.0
    %1151 = vmatpush1.msra.mxu0 0.0
    %1152 = vmatprep.subr.mxu0 0.0
    %1153 = vmatpush1.msra.mxu0 0.0
    %1154 = vmatprep.subr.mxu0 0.0
    %1155 = vmatpush1.msra.mxu0 0.0
    %1156 = vmatprep.subr.mxu0 0.0
    %1157 = vmatpush1.msra.mxu0 0.0
    %1158 = vmatprep.subr.mxu0 0.0
    %1159 = vmatpush1.msra.mxu0 0.0
    %1160 = vmatprep.subr.mxu0 0.0
    %1161 = vmatpush1.msra.mxu0 0.0
    %1162 = vmatprep.subr.mxu0 0.0
    %1163 = vmatpush1.msra.mxu0 0.0
    %1164 = vmatprep.subr.mxu0 0.0
    %1165 = vmatpush1.msra.mxu0 0.0
    %1166 = vmatprep.subr.mxu0 0.0
    %1167 = vmatpush1.msra.mxu0 0.0
    %1168 = vmatprep.subr.mxu0 0.0
    %1169 = vmatpush1.msra.mxu0 0.0
    %1170 = vmatprep.subr.mxu0 0.0
    %1171 = vmatpush1.msra.mxu0 0.0
    %1172 = vmatprep.subr.mxu0 0.0
    %1173 = vmatpush1.msra.mxu0 0.0
    %1174 = vmatprep.subr.mxu0 0.0
    %1175 = vmatpush1.msra.mxu0 0.0
    %1176 = vmatprep.subr.mxu0 0.0
    %1177 = vmatpush1.msra.mxu0 0.0
    %1178 = vmatprep.subr.mxu0 0.0
    %1179 = vmatpush1.msra.mxu0 0.0
    %1180 = vmatprep.subr.mxu0 0.0
    %1181 = vmatpush1.msra.mxu0 0.0
    %1182 = vmatprep.subr.mxu0 0.0
    %1183 = vmatpush1.msra.mxu0 0.0
    %1184 = vmatprep.subr.mxu0 0.0
    %1185 = vmatpush1.msra.mxu0 0.0
    %1186 = vmatprep.subr.mxu0 0.0
    %1187 = vmatpush1.msra.mxu0 0.0
    %1188 = vmatprep.subr.mxu0 0.0
    %1189 = vmatpush1.msra.mxu0 0.0
    %1190 = vmatprep.subr.mxu0 0.0
    %1191 = vmatpush1.msra.mxu0 0.0
    %1192 = vmatprep.subr.mxu0 0.0
    %1193 = vmatpush1.msra.mxu0 0.0
    %1194 = vmatprep.subr.mxu0 0.0
    %1195 = vmatpush1.msra.mxu0 0.0
    %1196 = vmatprep.subr.mxu0 0.0
    %1197 = vmatpush1.msra.mxu0 0.0
    %1198 = vmatprep.subr.mxu0 0.0
    %1199 = vmatpush1.msra.mxu0 0.0
    %1200 = vmatprep.subr.mxu0 0.0
    %1201 = vmatpush1.msra.mxu0 0.0
    %1202 = vmatprep.subr.mxu0 0.0
    %1203 = vmatpush1.msra.mxu0 0.0
    %1204 = vmatprep.mubr.f32.mxu0 0.0
    %1205 = vmatmul.mubr.f32.gmra.mrb[0].mxu0 %v778
    %v1206 = vpop.f32.mrb[0].mxu0
    %v1207 = vadd.f32 0.0, %v1206
    %v1208 = vpop.f32.mrb[0].mxu0
    %1209 = vdwg.mxu0
    %v1210 = vadd.f32 %v1139, %v1207
    %v1211 = vld [vmem:[%s577 + $0xe] sm:$0x3]
    %1212 = vmatprep.subr.mxu0 0.0
    %1213 = vmatpush1.msra.mxu0 %v771
    %1214 = vmatprep.subr.mxu0 0.0
    %1215 = vmatpush1.msra.mxu0 %v772
    %1216 = vmatprep.subr.mxu0 0.0
    %1217 = vmatpush1.msra.mxu0 0.0
    %1218 = vmatprep.subr.mxu0 0.0
    %1219 = vmatpush1.msra.mxu0 0.0
    %1220 = vmatprep.subr.mxu0 0.0
    %1221 = vmatpush1.msra.mxu0 0.0
    %1222 = vmatprep.subr.mxu0 0.0
    %1223 = vmatpush1.msra.mxu0 0.0
    %1224 = vmatprep.subr.mxu0 0.0
    %1225 = vmatpush1.msra.mxu0 0.0
    %1226 = vmatprep.subr.mxu0 0.0
    %1227 = vmatpush1.msra.mxu0 0.0
    %1228 = vmatprep.subr.mxu0 0.0
    %1229 = vmatpush1.msra.mxu0 0.0
    %1230 = vmatprep.subr.mxu0 0.0
    %1231 = vmatpush1.msra.mxu0 0.0
    %1232 = vmatprep.subr.mxu0 0.0
    %1233 = vmatpush1.msra.mxu0 0.0
    %1234 = vmatprep.subr.mxu0 0.0
    %1235 = vmatpush1.msra.mxu0 0.0
    %1236 = vmatprep.subr.mxu0 0.0
    %1237 = vmatpush1.msra.mxu0 0.0
    %1238 = vmatprep.subr.mxu0 0.0
    %1239 = vmatpush1.msra.mxu0 0.0
    %1240 = vmatprep.subr.mxu0 0.0
    %1241 = vmatpush1.msra.mxu0 0.0
    %1242 = vmatprep.subr.mxu0 0.0
    %1243 = vmatpush1.msra.mxu0 0.0
    %1244 = vmatprep.subr.mxu0 0.0
    %1245 = vmatpush1.msra.mxu0 0.0
    %1246 = vmatprep.subr.mxu0 0.0
    %1247 = vmatpush1.msra.mxu0 0.0
    %1248 = vmatprep.subr.mxu0 0.0
    %1249 = vmatpush1.msra.mxu0 0.0
    %1250 = vmatprep.subr.mxu0 0.0
    %1251 = vmatpush1.msra.mxu0 0.0
    %1252 = vmatprep.subr.mxu0 0.0
    %1253 = vmatpush1.msra.mxu0 0.0
    %1254 = vmatprep.subr.mxu0 0.0
    %1255 = vmatpush1.msra.mxu0 0.0
    %1256 = vmatprep.subr.mxu0 0.0
    %1257 = vmatpush1.msra.mxu0 0.0
    %1258 = vmatprep.subr.mxu0 0.0
    %1259 = vmatpush1.msra.mxu0 0.0
    %1260 = vmatprep.subr.mxu0 0.0
    %1261 = vmatpush1.msra.mxu0 0.0
    %1262 = vmatprep.subr.mxu0 0.0
    %1263 = vmatpush1.msra.mxu0 0.0
    %1264 = vmatprep.subr.mxu0 0.0
    %1265 = vmatpush1.msra.mxu0 0.0
    %1266 = vmatprep.subr.mxu0 0.0
    %1267 = vmatpush1.msra.mxu0 0.0
    %1268 = vmatprep.subr.mxu0 0.0
    %1269 = vmatpush1.msra.mxu0 0.0
    %1270 = vmatprep.subr.mxu0 0.0
    %1271 = vmatpush1.msra.mxu0 0.0
    %1272 = vmatprep.subr.mxu0 0.0
    %1273 = vmatpush1.msra.mxu0 0.0
    %1274 = vmatprep.subr.mxu0 0.0
    %1275 = vmatpush1.msra.mxu0 0.0
    %1276 = vmatprep.mubr.f32.mxu0 0.0
    %1277 = vmatmul.mubr.f32.gmra.mrb[0].mxu0 %v778
    %v1278 = vpop.f32.mrb[0].mxu0
    %v1279 = vadd.f32 0.0, %v1278
    %v1280 = vpop.f32.mrb[0].mxu0
    %1281 = vdwg.mxu0
    %v1282 = vadd.f32 %v1211, %v1279
    %v1283 = vld [vmem:[%s751 + $0xe] sm:$0x3]
    %1284 = vmatprep.subr.mxu0 0.0
    %1285 = vmatpush1.msra.mxu0 %v774
    %1286 = vmatprep.subr.mxu0 0.0
    %1287 = vmatpush1.msra.mxu0 %v775
    %1288 = vmatprep.subr.mxu0 0.0
    %1289 = vmatpush1.msra.mxu0 0.0
    %1290 = vmatprep.subr.mxu0 0.0
    %1291 = vmatpush1.msra.mxu0 0.0
    %1292 = vmatprep.subr.mxu0 0.0
    %1293 = vmatpush1.msra.mxu0 0.0
    %1294 = vmatprep.subr.mxu0 0.0
    %1295 = vmatpush1.msra.mxu0 0.0
    %1296 = vmatprep.subr.mxu0 0.0
    %1297 = vmatpush1.msra.mxu0 0.0
    %1298 = vmatprep.subr.mxu0 0.0
    %1299 = vmatpush1.msra.mxu0 0.0
    %1300 = vmatprep.subr.mxu0 0.0
    %1301 = vmatpush1.msra.mxu0 0.0
    %1302 = vmatprep.subr.mxu0 0.0
    %1303 = vmatpush1.msra.mxu0 0.0
    %1304 = vmatprep.subr.mxu0 0.0
    %1305 = vmatpush1.msra.mxu0 0.0
    %1306 = vmatprep.subr.mxu0 0.0
    %1307 = vmatpush1.msra.mxu0 0.0
    %1308 = vmatprep.subr.mxu0 0.0
    %1309 = vmatpush1.msra.mxu0 0.0
    %1310 = vmatprep.subr.mxu0 0.0
    %1311 = vmatpush1.msra.mxu0 0.0
    %1312 = vmatprep.subr.mxu0 0.0
    %1313 = vmatpush1.msra.mxu0 0.0
    %1314 = vmatprep.subr.mxu0 0.0
    %1315 = vmatpush1.msra.mxu0 0.0
    %1316 = vmatprep.subr.mxu0 0.0
    %1317 = vmatpush1.msra.mxu0 0.0
    %1318 = vmatprep.subr.mxu0 0.0
    %1319 = vmatpush1.msra.mxu0 0.0
    %1320 = vmatprep.subr.mxu0 0.0
    %1321 = vmatpush1.msra.mxu0 0.0
    %1322 = vmatprep.subr.mxu0 0.0
    %1323 = vmatpush1.msra.mxu0 0.0
    %1324 = vmatprep.subr.mxu0 0.0
    %1325 = vmatpush1.msra.mxu0 0.0
    %1326 = vmatprep.subr.mxu0 0.0
    %1327 = vmatpush1.msra.mxu0 0.0
    %1328 = vmatprep.subr.mxu0 0.0
    %1329 = vmatpush1.msra.mxu0 0.0
    %1330 = vmatprep.subr.mxu0 0.0
    %1331 = vmatpush1.msra.mxu0 0.0
    %1332 = vmatprep.subr.mxu0 0.0
    %1333 = vmatpush1.msra.mxu0 0.0
    %1334 = vmatprep.subr.mxu0 0.0
    %1335 = vmatpush1.msra.mxu0 0.0
    %1336 = vmatprep.subr.mxu0 0.0
    %1337 = vmatpush1.msra.mxu0 0.0
    %1338 = vmatprep.subr.mxu0 0.0
    %1339 = vmatpush1.msra.mxu0 0.0
    %1340 = vmatprep.subr.mxu0 0.0
    %1341 = vmatpush1.msra.mxu0 0.0
    %1342 = vmatprep.subr.mxu0 0.0
    %1343 = vmatpush1.msra.mxu0 0.0
    %1344 = vmatprep.subr.mxu0 0.0
    %1345 = vmatpush1.msra.mxu0 0.0
    %1346 = vmatprep.subr.mxu0 0.0
    %1347 = vmatpush1.msra.mxu0 0.0
    %1348 = vmatprep.mubr.f32.mxu0 0.0
    %1349 = vmatmul.mubr.f32.gmra.mrb[0].mxu0 %v778
    %v1350 = vpop.f32.mrb[0].mxu0
    %v1351 = vadd.f32 0.0, %v1350
    %v1352 = vpop.f32.mrb[0].mxu0
    %1353 = vdwg.mxu0
    %v1354 = vadd.f32 %v1283, %v1351
    %v1355 = vxor.u32 %v922, 2147483648
    %v1356 = vmul.f32 %v1355, 1.442695
    %v1357 = vpow.pop %v1356
    %v1358 = vadd.f32 %v1357, 1.0
    %v1359 = vrcp.pop %v1358
    %v1360 = vmul.f32 1.0, %v1359
    %v1361 = vmul.f32 %v1360, 0.0
    %v1362 = vxor.u32 %v850, 2147483648
    %v1363 = vmul.f32 %v1362, 1.442695
    %v1364 = vpow.pop %v1363
    %v1365 = vadd.f32 %v1364, 1.0
    %v1366 = vrcp.pop %v1365
    %v1367 = vmul.f32 1.0, %v1366
    %v1368 = vtanh.pop %v994
    %v1369 = vmul.f32 %v1367, %v1368
    %v1370 = vadd.f32 %v1361, %v1369
    %v1371 = vxor.u32 %v1066, 2147483648
    %v1372 = vmul.f32 %v1371, 1.442695
    %v1373 = vpow.pop %v1372
    %v1374 = vadd.f32 %v1373, 1.0
    %v1375 = vrcp.pop %v1374
    %v1376 = vmul.f32 1.0, %v1375
    %v1377 = vtanh.pop %v1370
    %v1378 = vmul.f32 %v1376, %v1377
    %v1379 = vxor.u32 %v1210, 2147483648
    %v1380 = vmul.f32 %v1379, 1.442695
    %v1381 = vpow.pop %v1380
    %v1382 = vadd.f32 %v1381, 1.0
    %v1383 = vrcp.pop %v1382
    %v1384 = vmul.f32 1.0, %v1383
    %v1385 = vmul.f32 %v1384, 0.0
    %v1386 = vxor.u32 %v1138, 2147483648
    %v1387 = vmul.f32 %v1386, 1.442695
    %v1388 = vpow.pop %v1387
    %v1389 = vadd.f32 %v1388, 1.0
    %v1390 = vrcp.pop %v1389
    %v1391 = vmul.f32 1.0, %v1390
    %v1392 = vtanh.pop %v1282
    %v1393 = vmul.f32 %v1391, %v1392
    %v1394 = vadd.f32 %v1385, %v1393
    %v1395 = vxor.u32 %v1354, 2147483648
    %v1396 = vmul.f32 %v1395, 1.442695
    %v1397 = vpow.pop %v1396
    %v1398 = vadd.f32 %v1397, 1.0
    %v1399 = vrcp.pop %v1398
    %v1400 = vmul.f32 1.0, %v1399
    %v1401 = vtanh.pop %v1394
    %v1402 = vmul.f32 %v1400, %v1401
    %vm1403 = vcmask 123904
    %1404 = vst.msk [vmem:[#allocation4] sm:$0x3] %vm1403, %v1378
    %1405 = vst.msk [vmem:[#allocation5 + $0xe] sm:$0x3] %vm1403, %v1402
    %v1406 = vld [vmem:[#allocation2 + $0x2] sm:$0x3]
    %v1408 = vsel %vm63, %v1378, 0
    %1410 = vmatprep.subr.mxu0 0.0
    %1411 = vmatpush1.msra.mxu0 %v754
    %1412 = vmatprep.subr.mxu0 0.0
    %1413 = vmatpush1.msra.mxu0 %v755
    %1414 = vmatprep.subr.mxu0 0.0
    %1415 = vmatpush1.msra.mxu0 0.0
    %1416 = vmatprep.subr.mxu0 0.0
    %1417 = vmatpush1.msra.mxu0 0.0
    %1418 = vmatprep.subr.mxu0 0.0
    %1419 = vmatpush1.msra.mxu0 0.0
    %1420 = vmatprep.subr.mxu0 0.0
    %1421 = vmatpush1.msra.mxu0 0.0
    %1422 = vmatprep.subr.mxu0 0.0
    %1423 = vmatpush1.msra.mxu0 0.0
    %1424 = vmatprep.subr.mxu0 0.0
    %1425 = vmatpush1.msra.mxu0 0.0
    %1426 = vmatprep.subr.mxu0 0.0
    %1427 = vmatpush1.msra.mxu0 0.0
    %1428 = vmatprep.subr.mxu0 0.0
    %1429 = vmatpush1.msra.mxu0 0.0
    %1430 = vmatprep.subr.mxu0 0.0
    %1431 = vmatpush1.msra.mxu0 0.0
    %1432 = vmatprep.subr.mxu0 0.0
    %1433 = vmatpush1.msra.mxu0 0.0
    %1434 = vmatprep.subr.mxu0 0.0
    %1435 = vmatpush1.msra.mxu0 0.0
    %1436 = vmatprep.subr.mxu0 0.0
    %1437 = vmatpush1.msra.mxu0 0.0
    %1438 = vmatprep.subr.mxu0 0.0
    %1439 = vmatpush1.msra.mxu0 0.0
    %1440 = vmatprep.subr.mxu0 0.0
    %1441 = vmatpush1.msra.mxu0 0.0
    %1442 = vmatprep.subr.mxu0 0.0
    %1443 = vmatpush1.msra.mxu0 0.0
    %1444 = vmatprep.subr.mxu0 0.0
    %1445 = vmatpush1.msra.mxu0 0.0
    %1446 = vmatprep.subr.mxu0 0.0
    %1447 = vmatpush1.msra.mxu0 0.0
    %1448 = vmatprep.subr.mxu0 0.0
    %1449 = vmatpush1.msra.mxu0 0.0
    %1450 = vmatprep.subr.mxu0 0.0
    %1451 = vmatpush1.msra.mxu0 0.0
    %1452 = vmatprep.subr.mxu0 0.0
    %1453 = vmatpush1.msra.mxu0 0.0
    %1454 = vmatprep.subr.mxu0 0.0
    %1455 = vmatpush1.msra.mxu0 0.0
    %1456 = vmatprep.subr.mxu0 0.0
    %1457 = vmatpush1.msra.mxu0 0.0
    %1458 = vmatprep.subr.mxu0 0.0
    %1459 = vmatpush1.msra.mxu0 0.0
    %1460 = vmatprep.subr.mxu0 0.0
    %1461 = vmatpush1.msra.mxu0 0.0
    %1462 = vmatprep.subr.mxu0 0.0
    %1463 = vmatpush1.msra.mxu0 0.0
    %1464 = vmatprep.subr.mxu0 0.0
    %1465 = vmatpush1.msra.mxu0 0.0
    %1466 = vmatprep.subr.mxu0 0.0
    %1467 = vmatpush1.msra.mxu0 0.0
    %1468 = vmatprep.subr.mxu0 0.0
    %1469 = vmatpush1.msra.mxu0 0.0
    %1470 = vmatprep.subr.mxu0 0.0
    %1471 = vmatpush1.msra.mxu0 0.0
    %1472 = vmatprep.subr.mxu0 0.0
    %1473 = vmatpush1.msra.mxu0 0.0
    %1474 = vmatprep.mubr.f32.mxu0 0.0
    %1475 = vmatmul.mubr.f32.gmra.mrb[0].mxu0 %v1408
    %v1476 = vpop.f32.mrb[0].mxu0
    %v1477 = vadd.f32 0.0, %v1476
    %v1478 = vpop.f32.mrb[0].mxu0
    %1479 = vdwg.mxu0
    %v1480 = vadd.f32 %v1406, %v1477
    %v1481 = vld [vmem:[%s316 + $0x2] sm:$0x3]
    %1482 = vmatprep.subr.mxu0 0.0
    %1483 = vmatpush1.msra.mxu0 %v757
    %1484 = vmatprep.subr.mxu0 0.0
    %1485 = vmatpush1.msra.mxu0 %v758
    %1486 = vmatprep.subr.mxu0 0.0
    %1487 = vmatpush1.msra.mxu0 0.0
    %1488 = vmatprep.subr.mxu0 0.0
    %1489 = vmatpush1.msra.mxu0 0.0
    %1490 = vmatprep.subr.mxu0 0.0
    %1491 = vmatpush1.msra.mxu0 0.0
    %1492 = vmatprep.subr.mxu0 0.0
    %1493 = vmatpush1.msra.mxu0 0.0
    %1494 = vmatprep.subr.mxu0 0.0
    %1495 = vmatpush1.msra.mxu0 0.0
    %1496 = vmatprep.subr.mxu0 0.0
    %1497 = vmatpush1.msra.mxu0 0.0
    %1498 = vmatprep.subr.mxu0 0.0
    %1499 = vmatpush1.msra.mxu0 0.0
    %1500 = vmatprep.subr.mxu0 0.0
    %1501 = vmatpush1.msra.mxu0 0.0
    %1502 = vmatprep.subr.mxu0 0.0
    %1503 = vmatpush1.msra.mxu0 0.0
    %1504 = vmatprep.subr.mxu0 0.0
    %1505 = vmatpush1.msra.mxu0 0.0
    %1506 = vmatprep.subr.mxu0 0.0
    %1507 = vmatpush1.msra.mxu0 0.0
    %1508 = vmatprep.subr.mxu0 0.0
    %1509 = vmatpush1.msra.mxu0 0.0
    %1510 = vmatprep.subr.mxu0 0.0
    %1511 = vmatpush1.msra.mxu0 0.0
    %1512 = vmatprep.subr.mxu0 0.0
    %1513 = vmatpush1.msra.mxu0 0.0
    %1514 = vmatprep.subr.mxu0 0.0
    %1515 = vmatpush1.msra.mxu0 0.0
    %1516 = vmatprep.subr.mxu0 0.0
    %1517 = vmatpush1.msra.mxu0 0.0
    %1518 = vmatprep.subr.mxu0 0.0
    %1519 = vmatpush1.msra.mxu0 0.0
    %1520 = vmatprep.subr.mxu0 0.0
    %1521 = vmatpush1.msra.mxu0 0.0
    %1522 = vmatprep.subr.mxu0 0.0
    %1523 = vmatpush1.msra.mxu0 0.0
    %1524 = vmatprep.subr.mxu0 0.0
    %1525 = vmatpush1.msra.mxu0 0.0
    %1526 = vmatprep.subr.mxu0 0.0
    %1527 = vmatpush1.msra.mxu0 0.0
    %1528 = vmatprep.subr.mxu0 0.0
    %1529 = vmatpush1.msra.mxu0 0.0
    %1530 = vmatprep.subr.mxu0 0.0
    %1531 = vmatpush1.msra.mxu0 0.0
    %1532 = vmatprep.subr.mxu0 0.0
    %1533 = vmatpush1.msra.mxu0 0.0
    %1534 = vmatprep.subr.mxu0 0.0
    %1535 = vmatpush1.msra.mxu0 0.0
    %1536 = vmatprep.subr.mxu0 0.0
    %1537 = vmatpush1.msra.mxu0 0.0
    %1538 = vmatprep.subr.mxu0 0.0
    %1539 = vmatpush1.msra.mxu0 0.0
    %1540 = vmatprep.subr.mxu0 0.0
    %1541 = vmatpush1.msra.mxu0 0.0
    %1542 = vmatprep.subr.mxu0 0.0
    %1543 = vmatpush1.msra.mxu0 0.0
    %1544 = vmatprep.subr.mxu0 0.0
    %1545 = vmatpush1.msra.mxu0 0.0
    %1546 = vmatprep.mubr.f32.mxu0 0.0
    %1547 = vmatmul.mubr.f32.gmra.mrb[0].mxu0 %v1408
    %v1548 = vpop.f32.mrb[0].mxu0
    %v1549 = vadd.f32 0.0, %v1548
    %v1550 = vpop.f32.mrb[0].mxu0
    %1551 = vdwg.mxu0
    %v1552 = vadd.f32 %v1481, %v1549
    %v1553 = vld [vmem:[%s490 + $0x2] sm:$0x3]
    %1554 = vmatprep.subr.mxu0 0.0
    %1555 = vmatpush1.msra.mxu0 %v760
    %1556 = vmatprep.subr.mxu0 0.0
    %1557 = vmatpush1.msra.mxu0 %v761
    %1558 = vmatprep.subr.mxu0 0.0
    %1559 = vmatpush1.msra.mxu0 0.0
    %1560 = vmatprep.subr.mxu0 0.0
    %1561 = vmatpush1.msra.mxu0 0.0
    %1562 = vmatprep.subr.mxu0 0.0
    %1563 = vmatpush1.msra.mxu0 0.0
    %1564 = vmatprep.subr.mxu0 0.0
    %1565 = vmatpush1.msra.mxu0 0.0
    %1566 = vmatprep.subr.mxu0 0.0
    %1567 = vmatpush1.msra.mxu0 0.0
    %1568 = vmatprep.subr.mxu0 0.0
    %1569 = vmatpush1.msra.mxu0 0.0
    %1570 = vmatprep.subr.mxu0 0.0
    %1571 = vmatpush1.msra.mxu0 0.0
    %1572 = vmatprep.subr.mxu0 0.0
    %1573 = vmatpush1.msra.mxu0 0.0
    %1574 = vmatprep.subr.mxu0 0.0
    %1575 = vmatpush1.msra.mxu0 0.0
    %1576 = vmatprep.subr.mxu0 0.0
    %1577 = vmatpush1.msra.mxu0 0.0
    %1578 = vmatprep.subr.mxu0 0.0
    %1579 = vmatpush1.msra.mxu0 0.0
    %1580 = vmatprep.subr.mxu0 0.0
    %1581 = vmatpush1.msra.mxu0 0.0
    %1582 = vmatprep.subr.mxu0 0.0
    %1583 = vmatpush1.msra.mxu0 0.0
    %1584 = vmatprep.subr.mxu0 0.0
    %1585 = vmatpush1.msra.mxu0 0.0
    %1586 = vmatprep.subr.mxu0 0.0
    %1587 = vmatpush1.msra.mxu0 0.0
    %1588 = vmatprep.subr.mxu0 0.0
    %1589 = vmatpush1.msra.mxu0 0.0
    %1590 = vmatprep.subr.mxu0 0.0
    %1591 = vmatpush1.msra.mxu0 0.0
    %1592 = vmatprep.subr.mxu0 0.0
    %1593 = vmatpush1.msra.mxu0 0.0
    %1594 = vmatprep.subr.mxu0 0.0
    %1595 = vmatpush1.msra.mxu0 0.0
    %1596 = vmatprep.subr.mxu0 0.0
    %1597 = vmatpush1.msra.mxu0 0.0
    %1598 = vmatprep.subr.mxu0 0.0
    %1599 = vmatpush1.msra.mxu0 0.0
    %1600 = vmatprep.subr.mxu0 0.0
    %1601 = vmatpush1.msra.mxu0 0.0
    %1602 = vmatprep.subr.mxu0 0.0
    %1603 = vmatpush1.msra.mxu0 0.0
    %1604 = vmatprep.subr.mxu0 0.0
    %1605 = vmatpush1.msra.mxu0 0.0
    %1606 = vmatprep.subr.mxu0 0.0
    %1607 = vmatpush1.msra.mxu0 0.0
    %1608 = vmatprep.subr.mxu0 0.0
    %1609 = vmatpush1.msra.mxu0 0.0
    %1610 = vmatprep.subr.mxu0 0.0
    %1611 = vmatpush1.msra.mxu0 0.0
    %1612 = vmatprep.subr.mxu0 0.0
    %1613 = vmatpush1.msra.mxu0 0.0
    %1614 = vmatprep.subr.mxu0 0.0
    %1615 = vmatpush1.msra.mxu0 0.0
    %1616 = vmatprep.subr.mxu0 0.0
    %1617 = vmatpush1.msra.mxu0 0.0
    %1618 = vmatprep.mubr.f32.mxu0 0.0
    %1619 = vmatmul.mubr.f32.gmra.mrb[0].mxu0 %v1408
    %v1620 = vpop.f32.mrb[0].mxu0
    %v1621 = vadd.f32 0.0, %v1620
    %v1622 = vpop.f32.mrb[0].mxu0
    %1623 = vdwg.mxu0
    %v1624 = vadd.f32 %v1553, %v1621
    %v1625 = vld [vmem:[%s664 + $0x2] sm:$0x3]
    %1626 = vmatprep.subr.mxu0 0.0
    %1627 = vmatpush1.msra.mxu0 %v763
    %1628 = vmatprep.subr.mxu0 0.0
    %1629 = vmatpush1.msra.mxu0 %v764
    %1630 = vmatprep.subr.mxu0 0.0
    %1631 = vmatpush1.msra.mxu0 0.0
    %1632 = vmatprep.subr.mxu0 0.0
    %1633 = vmatpush1.msra.mxu0 0.0
    %1634 = vmatprep.subr.mxu0 0.0
    %1635 = vmatpush1.msra.mxu0 0.0
    %1636 = vmatprep.subr.mxu0 0.0
    %1637 = vmatpush1.msra.mxu0 0.0
    %1638 = vmatprep.subr.mxu0 0.0
    %1639 = vmatpush1.msra.mxu0 0.0
    %1640 = vmatprep.subr.mxu0 0.0
    %1641 = vmatpush1.msra.mxu0 0.0
    %1642 = vmatprep.subr.mxu0 0.0
    %1643 = vmatpush1.msra.mxu0 0.0
    %1644 = vmatprep.subr.mxu0 0.0
    %1645 = vmatpush1.msra.mxu0 0.0
    %1646 = vmatprep.subr.mxu0 0.0
    %1647 = vmatpush1.msra.mxu0 0.0
    %1648 = vmatprep.subr.mxu0 0.0
    %1649 = vmatpush1.msra.mxu0 0.0
    %1650 = vmatprep.subr.mxu0 0.0
    %1651 = vmatpush1.msra.mxu0 0.0
    %1652 = vmatprep.subr.mxu0 0.0
    %1653 = vmatpush1.msra.mxu0 0.0
    %1654 = vmatprep.subr.mxu0 0.0
    %1655 = vmatpush1.msra.mxu0 0.0
    %1656 = vmatprep.subr.mxu0 0.0
    %1657 = vmatpush1.msra.mxu0 0.0
    %1658 = vmatprep.subr.mxu0 0.0
    %1659 = vmatpush1.msra.mxu0 0.0
    %1660 = vmatprep.subr.mxu0 0.0
    %1661 = vmatpush1.msra.mxu0 0.0
    %1662 = vmatprep.subr.mxu0 0.0
    %1663 = vmatpush1.msra.mxu0 0.0
    %1664 = vmatprep.subr.mxu0 0.0
    %1665 = vmatpush1.msra.mxu0 0.0
    %1666 = vmatprep.subr.mxu0 0.0
    %1667 = vmatpush1.msra.mxu0 0.0
    %1668 = vmatprep.subr.mxu0 0.0
    %1669 = vmatpush1.msra.mxu0 0.0
    %1670 = vmatprep.subr.mxu0 0.0
    %1671 = vmatpush1.msra.mxu0 0.0
    %1672 = vmatprep.subr.mxu0 0.0
    %1673 = vmatpush1.msra.mxu0 0.0
    %1674 = vmatprep.subr.mxu0 0.0
    %1675 = vmatpush1.msra.mxu0 0.0
    %1676 = vmatprep.subr.mxu0 0.0
    %1677 = vmatpush1.msra.mxu0 0.0
    %1678 = vmatprep.subr.mxu0 0.0
    %1679 = vmatpush1.msra.mxu0 0.0
    %1680 = vmatprep.subr.mxu0 0.0
    %1681 = vmatpush1.msra.mxu0 0.0
    %1682 = vmatprep.subr.mxu0 0.0
    %1683 = vmatpush1.msra.mxu0 0.0
    %1684 = vmatprep.subr.mxu0 0.0
    %1685 = vmatpush1.msra.mxu0 0.0
    %1686 = vmatprep.subr.mxu0 0.0
    %1687 = vmatpush1.msra.mxu0 0.0
    %1688 = vmatprep.subr.mxu0 0.0
    %1689 = vmatpush1.msra.mxu0 0.0
    %1690 = vmatprep.mubr.f32.mxu0 0.0
    %1691 = vmatmul.mubr.f32.gmra.mrb[0].mxu0 %v1408
    %v1692 = vpop.f32.mrb[0].mxu0
    %v1693 = vadd.f32 0.0, %v1692
    %v1694 = vpop.f32.mrb[0].mxu0
    %1695 = vdwg.mxu0
    %v1696 = vadd.f32 %v1625, %v1693
    %v1697 = vld [vmem:[#allocation3 + $0xc] sm:$0x3]
    %v1699 = vsel %vm63, %v1402, 0
    %1701 = vmatprep.subr.mxu0 0.0
    %1702 = vmatpush1.msra.mxu0 %v765
    %1703 = vmatprep.subr.mxu0 0.0
    %1704 = vmatpush1.msra.mxu0 %v766
    %1705 = vmatprep.subr.mxu0 0.0
    %1706 = vmatpush1.msra.mxu0 0.0
    %1707 = vmatprep.subr.mxu0 0.0
    %1708 = vmatpush1.msra.mxu0 0.0
    %1709 = vmatprep.subr.mxu0 0.0
    %1710 = vmatpush1.msra.mxu0 0.0
    %1711 = vmatprep.subr.mxu0 0.0
    %1712 = vmatpush1.msra.mxu0 0.0
    %1713 = vmatprep.subr.mxu0 0.0
    %1714 = vmatpush1.msra.mxu0 0.0
    %1715 = vmatprep.subr.mxu0 0.0
    %1716 = vmatpush1.msra.mxu0 0.0
    %1717 = vmatprep.subr.mxu0 0.0
    %1718 = vmatpush1.msra.mxu0 0.0
    %1719 = vmatprep.subr.mxu0 0.0
    %1720 = vmatpush1.msra.mxu0 0.0
    %1721 = vmatprep.subr.mxu0 0.0
    %1722 = vmatpush1.msra.mxu0 0.0
    %1723 = vmatprep.subr.mxu0 0.0
    %1724 = vmatpush1.msra.mxu0 0.0
    %1725 = vmatprep.subr.mxu0 0.0
    %1726 = vmatpush1.msra.mxu0 0.0
    %1727 = vmatprep.subr.mxu0 0.0
    %1728 = vmatpush1.msra.mxu0 0.0
    %1729 = vmatprep.subr.mxu0 0.0
    %1730 = vmatpush1.msra.mxu0 0.0
    %1731 = vmatprep.subr.mxu0 0.0
    %1732 = vmatpush1.msra.mxu0 0.0
    %1733 = vmatprep.subr.mxu0 0.0
    %1734 = vmatpush1.msra.mxu0 0.0
    %1735 = vmatprep.subr.mxu0 0.0
    %1736 = vmatpush1.msra.mxu0 0.0
    %1737 = vmatprep.subr.mxu0 0.0
    %1738 = vmatpush1.msra.mxu0 0.0
    %1739 = vmatprep.subr.mxu0 0.0
    %1740 = vmatpush1.msra.mxu0 0.0
    %1741 = vmatprep.subr.mxu0 0.0
    %1742 = vmatpush1.msra.mxu0 0.0
    %1743 = vmatprep.subr.mxu0 0.0
    %1744 = vmatpush1.msra.mxu0 0.0
    %1745 = vmatprep.subr.mxu0 0.0
    %1746 = vmatpush1.msra.mxu0 0.0
    %1747 = vmatprep.subr.mxu0 0.0
    %1748 = vmatpush1.msra.mxu0 0.0
    %1749 = vmatprep.subr.mxu0 0.0
    %1750 = vmatpush1.msra.mxu0 0.0
    %1751 = vmatprep.subr.mxu0 0.0
    %1752 = vmatpush1.msra.mxu0 0.0
    %1753 = vmatprep.subr.mxu0 0.0
    %1754 = vmatpush1.msra.mxu0 0.0
    %1755 = vmatprep.subr.mxu0 0.0
    %1756 = vmatpush1.msra.mxu0 0.0
    %1757 = vmatprep.subr.mxu0 0.0
    %1758 = vmatpush1.msra.mxu0 0.0
    %1759 = vmatprep.subr.mxu0 0.0
    %1760 = vmatpush1.msra.mxu0 0.0
    %1761 = vmatprep.subr.mxu0 0.0
    %1762 = vmatpush1.msra.mxu0 0.0
    %1763 = vmatprep.subr.mxu0 0.0
    %1764 = vmatpush1.msra.mxu0 0.0
    %1765 = vmatprep.mubr.f32.mxu0 0.0
    %1766 = vmatmul.mubr.f32.gmra.mrb[0].mxu0 %v1699
    %v1767 = vpop.f32.mrb[0].mxu0
    %v1768 = vadd.f32 0.0, %v1767
    %v1769 = vpop.f32.mrb[0].mxu0
    %1770 = vdwg.mxu0
    %v1771 = vadd.f32 %v1697, %v1768
    %v1772 = vld [vmem:[%s403 + $0xc] sm:$0x3]
    %1773 = vmatprep.subr.mxu0 0.0
    %1774 = vmatpush1.msra.mxu0 %v768
    %1775 = vmatprep.subr.mxu0 0.0
    %1776 = vmatpush1.msra.mxu0 %v769
    %1777 = vmatprep.subr.mxu0 0.0
    %1778 = vmatpush1.msra.mxu0 0.0
    %1779 = vmatprep.subr.mxu0 0.0
    %1780 = vmatpush1.msra.mxu0 0.0
    %1781 = vmatprep.subr.mxu0 0.0
    %1782 = vmatpush1.msra.mxu0 0.0
    %1783 = vmatprep.subr.mxu0 0.0
    %1784 = vmatpush1.msra.mxu0 0.0
    %1785 = vmatprep.subr.mxu0 0.0
    %1786 = vmatpush1.msra.mxu0 0.0
    %1787 = vmatprep.subr.mxu0 0.0
    %1788 = vmatpush1.msra.mxu0 0.0
    %1789 = vmatprep.subr.mxu0 0.0
    %1790 = vmatpush1.msra.mxu0 0.0
    %1791 = vmatprep.subr.mxu0 0.0
    %1792 = vmatpush1.msra.mxu0 0.0
    %1793 = vmatprep.subr.mxu0 0.0
    %1794 = vmatpush1.msra.mxu0 0.0
    %1795 = vmatprep.subr.mxu0 0.0
    %1796 = vmatpush1.msra.mxu0 0.0
    %1797 = vmatprep.subr.mxu0 0.0
    %1798 = vmatpush1.msra.mxu0 0.0
    %1799 = vmatprep.subr.mxu0 0.0
    %1800 = vmatpush1.msra.mxu0 0.0
    %1801 = vmatprep.subr.mxu0 0.0
    %1802 = vmatpush1.msra.mxu0 0.0
    %1803 = vmatprep.subr.mxu0 0.0
    %1804 = vmatpush1.msra.mxu0 0.0
    %1805 = vmatprep.subr.mxu0 0.0
    %1806 = vmatpush1.msra.mxu0 0.0
    %1807 = vmatprep.subr.mxu0 0.0
    %1808 = vmatpush1.msra.mxu0 0.0
    %1809 = vmatprep.subr.mxu0 0.0
    %1810 = vmatpush1.msra.mxu0 0.0
    %1811 = vmatprep.subr.mxu0 0.0
    %1812 = vmatpush1.msra.mxu0 0.0
    %1813 = vmatprep.subr.mxu0 0.0
    %1814 = vmatpush1.msra.mxu0 0.0
    %1815 = vmatprep.subr.mxu0 0.0
    %1816 = vmatpush1.msra.mxu0 0.0
    %1817 = vmatprep.subr.mxu0 0.0
    %1818 = vmatpush1.msra.mxu0 0.0
    %1819 = vmatprep.subr.mxu0 0.0
    %1820 = vmatpush1.msra.mxu0 0.0
    %1821 = vmatprep.subr.mxu0 0.0
    %1822 = vmatpush1.msra.mxu0 0.0
    %1823 = vmatprep.subr.mxu0 0.0
    %1824 = vmatpush1.msra.mxu0 0.0
    %1825 = vmatprep.subr.mxu0 0.0
    %1826 = vmatpush1.msra.mxu0 0.0
    %1827 = vmatprep.subr.mxu0 0.0
    %1828 = vmatpush1.msra.mxu0 0.0
    %1829 = vmatprep.subr.mxu0 0.0
    %1830 = vmatpush1.msra.mxu0 0.0
    %1831 = vmatprep.subr.mxu0 0.0
    %1832 = vmatpush1.msra.mxu0 0.0
    %1833 = vmatprep.subr.mxu0 0.0
    %1834 = vmatpush1.msra.mxu0 0.0
    %1835 = vmatprep.subr.mxu0 0.0
    %1836 = vmatpush1.msra.mxu0 0.0
    %1837 = vmatprep.mubr.f32.mxu0 0.0
    %1838 = vmatmul.mubr.f32.gmra.mrb[0].mxu0 %v1699
    %v1839 = vpop.f32.mrb[0].mxu0
    %v1840 = vadd.f32 0.0, %v1839
    %v1841 = vpop.f32.mrb[0].mxu0
    %1842 = vdwg.mxu0
    %v1843 = vadd.f32 %v1772, %v1840
    %v1844 = vld [vmem:[%s577 + $0xc] sm:$0x3]
    %1845 = vmatprep.subr.mxu0 0.0
    %1846 = vmatpush1.msra.mxu0 %v771
    %1847 = vmatprep.subr.mxu0 0.0
    %1848 = vmatpush1.msra.mxu0 %v772
    %1849 = vmatprep.subr.mxu0 0.0
    %1850 = vmatpush1.msra.mxu0 0.0
    %1851 = vmatprep.subr.mxu0 0.0
    %1852 = vmatpush1.msra.mxu0 0.0
    %1853 = vmatprep.subr.mxu0 0.0
    %1854 = vmatpush1.msra.mxu0 0.0
    %1855 = vmatprep.subr.mxu0 0.0
    %1856 = vmatpush1.msra.mxu0 0.0
    %1857 = vmatprep.subr.mxu0 0.0
    %1858 = vmatpush1.msra.mxu0 0.0
    %1859 = vmatprep.subr.mxu0 0.0
    %1860 = vmatpush1.msra.mxu0 0.0
    %1861 = vmatprep.subr.mxu0 0.0
    %1862 = vmatpush1.msra.mxu0 0.0
    %1863 = vmatprep.subr.mxu0 0.0
    %1864 = vmatpush1.msra.mxu0 0.0
    %1865 = vmatprep.subr.mxu0 0.0
    %1866 = vmatpush1.msra.mxu0 0.0
    %1867 = vmatprep.subr.mxu0 0.0
    %1868 = vmatpush1.msra.mxu0 0.0
    %1869 = vmatprep.subr.mxu0 0.0
    %1870 = vmatpush1.msra.mxu0 0.0
    %1871 = vmatprep.subr.mxu0 0.0
    %1872 = vmatpush1.msra.mxu0 0.0
    %1873 = vmatprep.subr.mxu0 0.0
    %1874 = vmatpush1.msra.mxu0 0.0
    %1875 = vmatprep.subr.mxu0 0.0
    %1876 = vmatpush1.msra.mxu0 0.0
    %1877 = vmatprep.subr.mxu0 0.0
    %1878 = vmatpush1.msra.mxu0 0.0
    %1879 = vmatprep.subr.mxu0 0.0
    %1880 = vmatpush1.msra.mxu0 0.0
    %1881 = vmatprep.subr.mxu0 0.0
    %1882 = vmatpush1.msra.mxu0 0.0
    %1883 = vmatprep.subr.mxu0 0.0
    %1884 = vmatpush1.msra.mxu0 0.0
    %1885 = vmatprep.subr.mxu0 0.0
    %1886 = vmatpush1.msra.mxu0 0.0
    %1887 = vmatprep.subr.mxu0 0.0
    %1888 = vmatpush1.msra.mxu0 0.0
    %1889 = vmatprep.subr.mxu0 0.0
    %1890 = vmatpush1.msra.mxu0 0.0
    %1891 = vmatprep.subr.mxu0 0.0
    %1892 = vmatpush1.msra.mxu0 0.0
    %1893 = vmatprep.subr.mxu0 0.0
    %1894 = vmatpush1.msra.mxu0 0.0
    %1895 = vmatprep.subr.mxu0 0.0
    %1896 = vmatpush1.msra.mxu0 0.0
    %1897 = vmatprep.subr.mxu0 0.0
    %1898 = vmatpush1.msra.mxu0 0.0
    %1899 = vmatprep.subr.mxu0 0.0
    %1900 = vmatpush1.msra.mxu0 0.0
    %1901 = vmatprep.subr.mxu0 0.0
    %1902 = vmatpush1.msra.mxu0 0.0
    %1903 = vmatprep.subr.mxu0 0.0
    %1904 = vmatpush1.msra.mxu0 0.0
    %1905 = vmatprep.subr.mxu0 0.0
    %1906 = vmatpush1.msra.mxu0 0.0
    %1907 = vmatprep.subr.mxu0 0.0
    %1908 = vmatpush1.msra.mxu0 0.0
    %1909 = vmatprep.mubr.f32.mxu0 0.0
    %1910 = vmatmul.mubr.f32.gmra.mrb[0].mxu0 %v1699
    %v1911 = vpop.f32.mrb[0].mxu0
    %v1912 = vadd.f32 0.0, %v1911
    %v1913 = vpop.f32.mrb[0].mxu0
    %1914 = vdwg.mxu0
    %v1915 = vadd.f32 %v1844, %v1912
    %v1916 = vld [vmem:[%s751 + $0xc] sm:$0x3]
    %1917 = vmatprep.subr.mxu0 0.0
    %1918 = vmatpush1.msra.mxu0 %v774
    %1919 = vmatprep.subr.mxu0 0.0
    %1920 = vmatpush1.msra.mxu0 %v775
    %1921 = vmatprep.subr.mxu0 0.0
    %1922 = vmatpush1.msra.mxu0 0.0
    %1923 = vmatprep.subr.mxu0 0.0
    %1924 = vmatpush1.msra.mxu0 0.0
    %1925 = vmatprep.subr.mxu0 0.0
    %1926 = vmatpush1.msra.mxu0 0.0
    %1927 = vmatprep.subr.mxu0 0.0
    %1928 = vmatpush1.msra.mxu0 0.0
    %1929 = vmatprep.subr.mxu0 0.0
    %1930 = vmatpush1.msra.mxu0 0.0
    %1931 = vmatprep.subr.mxu0 0.0
    %1932 = vmatpush1.msra.mxu0 0.0
    %1933 = vmatprep.subr.mxu0 0.0
    %1934 = vmatpush1.msra.mxu0 0.0
    %1935 = vmatprep.subr.mxu0 0.0
    %1936 = vmatpush1.msra.mxu0 0.0
    %1937 = vmatprep.subr.mxu0 0.0
    %1938 = vmatpush1.msra.mxu0 0.0
    %1939 = vmatprep.subr.mxu0 0.0
    %1940 = vmatpush1.msra.mxu0 0.0
    %1941 = vmatprep.subr.mxu0 0.0
    %1942 = vmatpush1.msra.mxu0 0.0
    %1943 = vmatprep.subr.mxu0 0.0
    %1944 = vmatpush1.msra.mxu0 0.0
    %1945 = vmatprep.subr.mxu0 0.0
    %1946 = vmatpush1.msra.mxu0 0.0
    %1947 = vmatprep.subr.mxu0 0.0
    %1948 = vmatpush1.msra.mxu0 0.0
    %1949 = vmatprep.subr.mxu0 0.0
    %1950 = vmatpush1.msra.mxu0 0.0
    %1951 = vmatprep.subr.mxu0 0.0
    %1952 = vmatpush1.msra.mxu0 0.0
    %1953 = vmatprep.subr.mxu0 0.0
    %1954 = vmatpush1.msra.mxu0 0.0
    %1955 = vmatprep.subr.mxu0 0.0
    %1956 = vmatpush1.msra.mxu0 0.0
    %1957 = vmatprep.subr.mxu0 0.0
    %1958 = vmatpush1.msra.mxu0 0.0
    %1959 = vmatprep.subr.mxu0 0.0
    %1960 = vmatpush1.msra.mxu0 0.0
    %1961 = vmatprep.subr.mxu0 0.0
    %1962 = vmatpush1.msra.mxu0 0.0
    %1963 = vmatprep.subr.mxu0 0.0
    %1964 = vmatpush1.msra.mxu0 0.0
    %1965 = vmatprep.subr.mxu0 0.0
    %1966 = vmatpush1.msra.mxu0 0.0
    %1967 = vmatprep.subr.mxu0 0.0
    %1968 = vmatpush1.msra.mxu0 0.0
    %1969 = vmatprep.subr.mxu0 0.0
    %1970 = vmatpush1.msra.mxu0 0.0
    %1971 = vmatprep.subr.mxu0 0.0
    %1972 = vmatpush1.msra.mxu0 0.0
    %1973 = vmatprep.subr.mxu0 0.0
    %1974 = vmatpush1.msra.mxu0 0.0
    %1975 = vmatprep.subr.mxu0 0.0
    %1976 = vmatpush1.msra.mxu0 0.0
    %1977 = vmatprep.subr.mxu0 0.0
    %1978 = vmatpush1.msra.mxu0 0.0
    %1979 = vmatprep.subr.mxu0 0.0
    %1980 = vmatpush1.msra.mxu0 0.0
    %1981 = vmatprep.mubr.f32.mxu0 0.0
    %1982 = vmatmul.mubr.f32.gmra.mrb[0].mxu0 %v1699
    %v1983 = vpop.f32.mrb[0].mxu0
    %v1984 = vadd.f32 0.0, %v1983
    %v1985 = vpop.f32.mrb[0].mxu0
    %1986 = vdwg.mxu0
    %v1987 = vadd.f32 %v1916, %v1984
    %v1988 = vxor.u32 %v1552, 2147483648
    %v1989 = vmul.f32 %v1988, 1.442695
    %v1990 = vpow.pop %v1989
    %v1991 = vadd.f32 %v1990, 1.0
    %v1992 = vrcp.pop %v1991
    %v1993 = vmul.f32 1.0, %v1992
    %v1994 = vmul.f32 %v1993, %v1370
    %v1995 = vxor.u32 %v1480, 2147483648
    %v1996 = vmul.f32 %v1995, 1.442695
    %v1997 = vpow.pop %v1996
    %v1998 = vadd.f32 %v1997, 1.0
    %v1999 = vrcp.pop %v1998
    %v2000 = vmul.f32 1.0, %v1999
    %v2001 = vtanh.pop %v1624
    %v2002 = vmul.f32 %v2000, %v2001
    %v2003 = vadd.f32 %v1994, %v2002
    %v2004 = vxor.u32 %v1696, 2147483648
    %v2005 = vmul.f32 %v2004, 1.442695
    %v2006 = vpow.pop %v2005
    %v2007 = vadd.f32 %v2006, 1.0
    %v2008 = vrcp.pop %v2007
    %v2009 = vmul.f32 1.0, %v2008
    %v2010 = vtanh.pop %v2003
    %v2011 = vmul.f32 %v2009, %v2010
    %v2012 = vxor.u32 %v1843, 2147483648
    %v2013 = vmul.f32 %v2012, 1.442695
    %v2014 = vpow.pop %v2013
    %v2015 = vadd.f32 %v2014, 1.0
    %v2016 = vrcp.pop %v2015
    %v2017 = vmul.f32 1.0, %v2016
    %v2018 = vmul.f32 %v2017, %v1394
    %v2019 = vxor.u32 %v1771, 2147483648
    %v2020 = vmul.f32 %v2019, 1.442695
    %v2021 = vpow.pop %v2020
    %v2022 = vadd.f32 %v2021, 1.0
    %v2023 = vrcp.pop %v2022
    %v2024 = vmul.f32 1.0, %v2023
    %v2025 = vtanh.pop %v1915
    %v2026 = vmul.f32 %v2024, %v2025
    %v2027 = vadd.f32 %v2018, %v2026
    %v2028 = vxor.u32 %v1987, 2147483648
    %v2029 = vmul.f32 %v2028, 1.442695
    %v2030 = vpow.pop %v2029
    %v2031 = vadd.f32 %v2030, 1.0
    %v2032 = vrcp.pop %v2031
    %v2033 = vmul.f32 1.0, %v2032
    %v2034 = vtanh.pop %v2027
    %v2035 = vmul.f32 %v2033, %v2034
    %2036 = vst.msk [vmem:[#allocation4 + $0x2] sm:$0x3] %vm1403, %v2011
    %2037 = vst.msk [vmem:[#allocation5 + $0xc] sm:$0x3] %vm1403, %v2035
    %v2038 = vld [vmem:[#allocation2 + $0x4] sm:$0x3]
    %v2040 = vsel %vm63, %v2011, 0
    %2042 = vmatprep.subr.mxu0 0.0
    %2043 = vmatpush1.msra.mxu0 %v754
    %2044 = vmatprep.subr.mxu0 0.0
    %2045 = vmatpush1.msra.mxu0 %v755
    %2046 = vmatprep.subr.mxu0 0.0
    %2047 = vmatpush1.msra.mxu0 0.0
    %2048 = vmatprep.subr.mxu0 0.0
    %2049 = vmatpush1.msra.mxu0 0.0
    %2050 = vmatprep.subr.mxu0 0.0
    %2051 = vmatpush1.msra.mxu0 0.0
    %2052 = vmatprep.subr.mxu0 0.0
    %2053 = vmatpush1.msra.mxu0 0.0
    %2054 = vmatprep.subr.mxu0 0.0
    %2055 = vmatpush1.msra.mxu0 0.0
    %2056 = vmatprep.subr.mxu0 0.0
    %2057 = vmatpush1.msra.mxu0 0.0
    %2058 = vmatprep.subr.mxu0 0.0
    %2059 = vmatpush1.msra.mxu0 0.0
    %2060 = vmatprep.subr.mxu0 0.0
    %2061 = vmatpush1.msra.mxu0 0.0
    %2062 = vmatprep.subr.mxu0 0.0
    %2063 = vmatpush1.msra.mxu0 0.0
    %2064 = vmatprep.subr.mxu0 0.0
    %2065 = vmatpush1.msra.mxu0 0.0
    %2066 = vmatprep.subr.mxu0 0.0
    %2067 = vmatpush1.msra.mxu0 0.0
    %2068 = vmatprep.subr.mxu0 0.0
    %2069 = vmatpush1.msra.mxu0 0.0
    %2070 = vmatprep.subr.mxu0 0.0
    %2071 = vmatpush1.msra.mxu0 0.0
    %2072 = vmatprep.subr.mxu0 0.0
    %2073 = vmatpush1.msra.mxu0 0.0
    %2074 = vmatprep.subr.mxu0 0.0
    %2075 = vmatpush1.msra.mxu0 0.0
    %2076 = vmatprep.subr.mxu0 0.0
    %2077 = vmatpush1.msra.mxu0 0.0
    %2078 = vmatprep.subr.mxu0 0.0
    %2079 = vmatpush1.msra.mxu0 0.0
    %2080 = vmatprep.subr.mxu0 0.0
    %2081 = vmatpush1.msra.mxu0 0.0
    %2082 = vmatprep.subr.mxu0 0.0
    %2083 = vmatpush1.msra.mxu0 0.0
    %2084 = vmatprep.subr.mxu0 0.0
    %2085 = vmatpush1.msra.mxu0 0.0
    %2086 = vmatprep.subr.mxu0 0.0
    %2087 = vmatpush1.msra.mxu0 0.0
    %2088 = vmatprep.subr.mxu0 0.0
    %2089 = vmatpush1.msra.mxu0 0.0
    %2090 = vmatprep.subr.mxu0 0.0
    %2091 = vmatpush1.msra.mxu0 0.0
    %2092 = vmatprep.subr.mxu0 0.0
    %2093 = vmatpush1.msra.mxu0 0.0
    %2094 = vmatprep.subr.mxu0 0.0
    %2095 = vmatpush1.msra.mxu0 0.0
    %2096 = vmatprep.subr.mxu0 0.0
    %2097 = vmatpush1.msra.mxu0 0.0
    %2098 = vmatprep.subr.mxu0 0.0
    %2099 = vmatpush1.msra.mxu0 0.0
    %2100 = vmatprep.subr.mxu0 0.0
    %2101 = vmatpush1.msra.mxu0 0.0
    %2102 = vmatprep.subr.mxu0 0.0
    %2103 = vmatpush1.msra.mxu0 0.0
    %2104 = vmatprep.subr.mxu0 0.0
    %2105 = vmatpush1.msra.mxu0 0.0
    %2106 = vmatprep.mubr.f32.mxu0 0.0
    %2107 = vmatmul.mubr.f32.gmra.mrb[0].mxu0 %v2040
    %v2108 = vpop.f32.mrb[0].mxu0
    %v2109 = vadd.f32 0.0, %v2108
    %v2110 = vpop.f32.mrb[0].mxu0
    %2111 = vdwg.mxu0
    %v2112 = vadd.f32 %v2038, %v2109
    %v2113 = vld [vmem:[%s316 + $0x4] sm:$0x3]
    %2114 = vmatprep.subr.mxu0 0.0
    %2115 = vmatpush1.msra.mxu0 %v757
    %2116 = vmatprep.subr.mxu0 0.0
    %2117 = vmatpush1.msra.mxu0 %v758
    %2118 = vmatprep.subr.mxu0 0.0
    %2119 = vmatpush1.msra.mxu0 0.0
    %2120 = vmatprep.subr.mxu0 0.0
    %2121 = vmatpush1.msra.mxu0 0.0
    %2122 = vmatprep.subr.mxu0 0.0
    %2123 = vmatpush1.msra.mxu0 0.0
    %2124 = vmatprep.subr.mxu0 0.0
    %2125 = vmatpush1.msra.mxu0 0.0
    %2126 = vmatprep.subr.mxu0 0.0
    %2127 = vmatpush1.msra.mxu0 0.0
    %2128 = vmatprep.subr.mxu0 0.0
    %2129 = vmatpush1.msra.mxu0 0.0
    %2130 = vmatprep.subr.mxu0 0.0
    %2131 = vmatpush1.msra.mxu0 0.0
    %2132 = vmatprep.subr.mxu0 0.0
    %2133 = vmatpush1.msra.mxu0 0.0
    %2134 = vmatprep.subr.mxu0 0.0
    %2135 = vmatpush1.msra.mxu0 0.0
    %2136 = vmatprep.subr.mxu0 0.0
    %2137 = vmatpush1.msra.mxu0 0.0
    %2138 = vmatprep.subr.mxu0 0.0
    %2139 = vmatpush1.msra.mxu0 0.0
    %2140 = vmatprep.subr.mxu0 0.0
    %2141 = vmatpush1.msra.mxu0 0.0
    %2142 = vmatprep.subr.mxu0 0.0
    %2143 = vmatpush1.msra.mxu0 0.0
    %2144 = vmatprep.subr.mxu0 0.0
    %2145 = vmatpush1.msra.mxu0 0.0
    %2146 = vmatprep.subr.mxu0 0.0
    %2147 = vmatpush1.msra.mxu0 0.0
    %2148 = vmatprep.subr.mxu0 0.0
    %2149 = vmatpush1.msra.mxu0 0.0
    %2150 = vmatprep.subr.mxu0 0.0
    %2151 = vmatpush1.msra.mxu0 0.0
    %2152 = vmatprep.subr.mxu0 0.0
    %2153 = vmatpush1.msra.mxu0 0.0
    %2154 = vmatprep.subr.mxu0 0.0
    %2155 = vmatpush1.msra.mxu0 0.0
    %2156 = vmatprep.subr.mxu0 0.0
    %2157 = vmatpush1.msra.mxu0 0.0
    %2158 = vmatprep.subr.mxu0 0.0
    %2159 = vmatpush1.msra.mxu0 0.0
    %2160 = vmatprep.subr.mxu0 0.0
    %2161 = vmatpush1.msra.mxu0 0.0
    %2162 = vmatprep.subr.mxu0 0.0
    %2163 = vmatpush1.msra.mxu0 0.0
    %2164 = vmatprep.subr.mxu0 0.0
    %2165 = vmatpush1.msra.mxu0 0.0
    %2166 = vmatprep.subr.mxu0 0.0
    %2167 = vmatpush1.msra.mxu0 0.0
    %2168 = vmatprep.subr.mxu0 0.0
    %2169 = vmatpush1.msra.mxu0 0.0
    %2170 = vmatprep.subr.mxu0 0.0
    %2171 = vmatpush1.msra.mxu0 0.0
    %2172 = vmatprep.subr.mxu0 0.0
    %2173 = vmatpush1.msra.mxu0 0.0
    %2174 = vmatprep.subr.mxu0 0.0
    %2175 = vmatpush1.msra.mxu0 0.0
    %2176 = vmatprep.subr.mxu0 0.0
    %2177 = vmatpush1.msra.mxu0 0.0
    %2178 = vmatprep.mubr.f32.mxu0 0.0
    %2179 = vmatmul.mubr.f32.gmra.mrb[0].mxu0 %v2040
    %v2180 = vpop.f32.mrb[0].mxu0
    %v2181 = vadd.f32 0.0, %v2180
    %v2182 = vpop.f32.mrb[0].mxu0
    %2183 = vdwg.mxu0
    %v2184 = vadd.f32 %v2113, %v2181
    %v2185 = vld [vmem:[%s490 + $0x4] sm:$0x3]
    %2186 = vmatprep.subr.mxu0 0.0
    %2187 = vmatpush1.msra.mxu0 %v760
    %2188 = vmatprep.subr.mxu0 0.0
    %2189 = vmatpush1.msra.mxu0 %v761
    %2190 = vmatprep.subr.mxu0 0.0
    %2191 = vmatpush1.msra.mxu0 0.0
    %2192 = vmatprep.subr.mxu0 0.0
    %2193 = vmatpush1.msra.mxu0 0.0
    %2194 = vmatprep.subr.mxu0 0.0
    %2195 = vmatpush1.msra.mxu0 0.0
    %2196 = vmatprep.subr.mxu0 0.0
    %2197 = vmatpush1.msra.mxu0 0.0
    %2198 = vmatprep.subr.mxu0 0.0
    %2199 = vmatpush1.msra.mxu0 0.0
    %2200 = vmatprep.subr.mxu0 0.0
    %2201 = vmatpush1.msra.mxu0 0.0
    %2202 = vmatprep.subr.mxu0 0.0
    %2203 = vmatpush1.msra.mxu0 0.0
    %2204 = vmatprep.subr.mxu0 0.0
    %2205 = vmatpush1.msra.mxu0 0.0
    %2206 = vmatprep.subr.mxu0 0.0
    %2207 = vmatpush1.msra.mxu0 0.0
    %2208 = vmatprep.subr.mxu0 0.0
    %2209 = vmatpush1.msra.mxu0 0.0
    %2210 = vmatprep.subr.mxu0 0.0
    %2211 = vmatpush1.msra.mxu0 0.0
    %2212 = vmatprep.subr.mxu0 0.0
    %2213 = vmatpush1.msra.mxu0 0.0
    %2214 = vmatprep.subr.mxu0 0.0
    %2215 = vmatpush1.msra.mxu0 0.0
    %2216 = vmatprep.subr.mxu0 0.0
    %2217 = vmatpush1.msra.mxu0 0.0
    %2218 = vmatprep.subr.mxu0 0.0
    %2219 = vmatpush1.msra.mxu0 0.0
    %2220 = vmatprep.subr.mxu0 0.0
    %2221 = vmatpush1.msra.mxu0 0.0
    %2222 = vmatprep.subr.mxu0 0.0
    %2223 = vmatpush1.msra.mxu0 0.0
    %2224 = vmatprep.subr.mxu0 0.0
    %2225 = vmatpush1.msra.mxu0 0.0
    %2226 = vmatprep.subr.mxu0 0.0
    %2227 = vmatpush1.msra.mxu0 0.0
    %2228 = vmatprep.subr.mxu0 0.0
    %2229 = vmatpush1.msra.mxu0 0.0
    %2230 = vmatprep.subr.mxu0 0.0
    %2231 = vmatpush1.msra.mxu0 0.0
    %2232 = vmatprep.subr.mxu0 0.0
    %2233 = vmatpush1.msra.mxu0 0.0
    %2234 = vmatprep.subr.mxu0 0.0
    %2235 = vmatpush1.msra.mxu0 0.0
    %2236 = vmatprep.subr.mxu0 0.0
    %2237 = vmatpush1.msra.mxu0 0.0
    %2238 = vmatprep.subr.mxu0 0.0
    %2239 = vmatpush1.msra.mxu0 0.0
    %2240 = vmatprep.subr.mxu0 0.0
    %2241 = vmatpush1.msra.mxu0 0.0
    %2242 = vmatprep.subr.mxu0 0.0
    %2243 = vmatpush1.msra.mxu0 0.0
    %2244 = vmatprep.subr.mxu0 0.0
    %2245 = vmatpush1.msra.mxu0 0.0
    %2246 = vmatprep.subr.mxu0 0.0
    %2247 = vmatpush1.msra.mxu0 0.0
    %2248 = vmatprep.subr.mxu0 0.0
    %2249 = vmatpush1.msra.mxu0 0.0
    %2250 = vmatprep.mubr.f32.mxu0 0.0
    %2251 = vmatmul.mubr.f32.gmra.mrb[0].mxu0 %v2040
    %v2252 = vpop.f32.mrb[0].mxu0
    %v2253 = vadd.f32 0.0, %v2252
    %v2254 = vpop.f32.mrb[0].mxu0
    %2255 = vdwg.mxu0
    %v2256 = vadd.f32 %v2185, %v2253
    %v2257 = vld [vmem:[%s664 + $0x4] sm:$0x3]
    %2258 = vmatprep.subr.mxu0 0.0
    %2259 = vmatpush1.msra.mxu0 %v763
    %2260 = vmatprep.subr.mxu0 0.0
    %2261 = vmatpush1.msra.mxu0 %v764
    %2262 = vmatprep.subr.mxu0 0.0
    %2263 = vmatpush1.msra.mxu0 0.0
    %2264 = vmatprep.subr.mxu0 0.0
    %2265 = vmatpush1.msra.mxu0 0.0
    %2266 = vmatprep.subr.mxu0 0.0
    %2267 = vmatpush1.msra.mxu0 0.0
    %2268 = vmatprep.subr.mxu0 0.0
    %2269 = vmatpush1.msra.mxu0 0.0
    %2270 = vmatprep.subr.mxu0 0.0
    %2271 = vmatpush1.msra.mxu0 0.0
    %2272 = vmatprep.subr.mxu0 0.0
    %2273 = vmatpush1.msra.mxu0 0.0
    %2274 = vmatprep.subr.mxu0 0.0
    %2275 = vmatpush1.msra.mxu0 0.0
    %2276 = vmatprep.subr.mxu0 0.0
    %2277 = vmatpush1.msra.mxu0 0.0
    %2278 = vmatprep.subr.mxu0 0.0
    %2279 = vmatpush1.msra.mxu0 0.0
    %2280 = vmatprep.subr.mxu0 0.0
    %2281 = vmatpush1.msra.mxu0 0.0
    %2282 = vmatprep.subr.mxu0 0.0
    %2283 = vmatpush1.msra.mxu0 0.0
    %2284 = vmatprep.subr.mxu0 0.0
    %2285 = vmatpush1.msra.mxu0 0.0
    %2286 = vmatprep.subr.mxu0 0.0
    %2287 = vmatpush1.msra.mxu0 0.0
    %2288 = vmatprep.subr.mxu0 0.0
    %2289 = vmatpush1.msra.mxu0 0.0
    %2290 = vmatprep.subr.mxu0 0.0
    %2291 = vmatpush1.msra.mxu0 0.0
    %2292 = vmatprep.subr.mxu0 0.0
    %2293 = vmatpush1.msra.mxu0 0.0
    %2294 = vmatprep.subr.mxu0 0.0
    %2295 = vmatpush1.msra.mxu0 0.0
    %2296 = vmatprep.subr.mxu0 0.0
    %2297 = vmatpush1.msra.mxu0 0.0
    %2298 = vmatprep.subr.mxu0 0.0
    %2299 = vmatpush1.msra.mxu0 0.0
    %2300 = vmatprep.subr.mxu0 0.0
    %2301 = vmatpush1.msra.mxu0 0.0
    %2302 = vmatprep.subr.mxu0 0.0
    %2303 = vmatpush1.msra.mxu0 0.0
    %2304 = vmatprep.subr.mxu0 0.0
    %2305 = vmatpush1.msra.mxu0 0.0
    %2306 = vmatprep.subr.mxu0 0.0
    %2307 = vmatpush1.msra.mxu0 0.0
    %2308 = vmatprep.subr.mxu0 0.0
    %2309 = vmatpush1.msra.mxu0 0.0
    %2310 = vmatprep.subr.mxu0 0.0
    %2311 = vmatpush1.msra.mxu0 0.0
    %2312 = vmatprep.subr.mxu0 0.0
    %2313 = vmatpush1.msra.mxu0 0.0
    %2314 = vmatprep.subr.mxu0 0.0
    %2315 = vmatpush1.msra.mxu0 0.0
    %2316 = vmatprep.subr.mxu0 0.0
    %2317 = vmatpush1.msra.mxu0 0.0
    %2318 = vmatprep.subr.mxu0 0.0
    %2319 = vmatpush1.msra.mxu0 0.0
    %2320 = vmatprep.subr.mxu0 0.0
    %2321 = vmatpush1.msra.mxu0 0.0
    %2322 = vmatprep.mubr.f32.mxu0 0.0
    %2323 = vmatmul.mubr.f32.gmra.mrb[0].mxu0 %v2040
    %v2324 = vpop.f32.mrb[0].mxu0
    %v2325 = vadd.f32 0.0, %v2324
    %v2326 = vpop.f32.mrb[0].mxu0
    %2327 = vdwg.mxu0
    %v2328 = vadd.f32 %v2257, %v2325
    %v2329 = vld [vmem:[#allocation3 + $0xa] sm:$0x3]
    %v2331 = vsel %vm63, %v2035, 0
    %2333 = vmatprep.subr.mxu0 0.0
    %2334 = vmatpush1.msra.mxu0 %v765
    %2335 = vmatprep.subr.mxu0 0.0
    %2336 = vmatpush1.msra.mxu0 %v766
    %2337 = vmatprep.subr.mxu0 0.0
    %2338 = vmatpush1.msra.mxu0 0.0
    %2339 = vmatprep.subr.mxu0 0.0
    %2340 = vmatpush1.msra.mxu0 0.0
    %2341 = vmatprep.subr.mxu0 0.0
    %2342 = vmatpush1.msra.mxu0 0.0
    %2343 = vmatprep.subr.mxu0 0.0
    %2344 = vmatpush1.msra.mxu0 0.0
    %2345 = vmatprep.subr.mxu0 0.0
    %2346 = vmatpush1.msra.mxu0 0.0
    %2347 = vmatprep.subr.mxu0 0.0
    %2348 = vmatpush1.msra.mxu0 0.0
    %2349 = vmatprep.subr.mxu0 0.0
    %2350 = vmatpush1.msra.mxu0 0.0
    %2351 = vmatprep.subr.mxu0 0.0
    %2352 = vmatpush1.msra.mxu0 0.0
    %2353 = vmatprep.subr.mxu0 0.0
    %2354 = vmatpush1.msra.mxu0 0.0
    %2355 = vmatprep.subr.mxu0 0.0
    %2356 = vmatpush1.msra.mxu0 0.0
    %2357 = vmatprep.subr.mxu0 0.0
    %2358 = vmatpush1.msra.mxu0 0.0
    %2359 = vmatprep.subr.mxu0 0.0
    %2360 = vmatpush1.msra.mxu0 0.0
    %2361 = vmatprep.subr.mxu0 0.0
    %2362 = vmatpush1.msra.mxu0 0.0
    %2363 = vmatprep.subr.mxu0 0.0
    %2364 = vmatpush1.msra.mxu0 0.0
    %2365 = vmatprep.subr.mxu0 0.0
    %2366 = vmatpush1.msra.mxu0 0.0
    %2367 = vmatprep.subr.mxu0 0.0
    %2368 = vmatpush1.msra.mxu0 0.0
    %2369 = vmatprep.subr.mxu0 0.0
    %2370 = vmatpush1.msra.mxu0 0.0
    %2371 = vmatprep.subr.mxu0 0.0
    %2372 = vmatpush1.msra.mxu0 0.0
    %2373 = vmatprep.subr.mxu0 0.0
    %2374 = vmatpush1.msra.mxu0 0.0
    %2375 = vmatprep.subr.mxu0 0.0
    %2376 = vmatpush1.msra.mxu0 0.0
    %2377 = vmatprep.subr.mxu0 0.0
    %2378 = vmatpush1.msra.mxu0 0.0
    %2379 = vmatprep.subr.mxu0 0.0
    %2380 = vmatpush1.msra.mxu0 0.0
    %2381 = vmatprep.subr.mxu0 0.0
    %2382 = vmatpush1.msra.mxu0 0.0
    %2383 = vmatprep.subr.mxu0 0.0
    %2384 = vmatpush1.msra.mxu0 0.0
    %2385 = vmatprep.subr.mxu0 0.0
    %2386 = vmatpush1.msra.mxu0 0.0
    %2387 = vmatprep.subr.mxu0 0.0
    %2388 = vmatpush1.msra.mxu0 0.0
    %2389 = vmatprep.subr.mxu0 0.0
    %2390 = vmatpush1.msra.mxu0 0.0
    %2391 = vmatprep.subr.mxu0 0.0
    %2392 = vmatpush1.msra.mxu0 0.0
    %2393 = vmatprep.subr.mxu0 0.0
    %2394 = vmatpush1.msra.mxu0 0.0
    %2395 = vmatprep.subr.mxu0 0.0
    %2396 = vmatpush1.msra.mxu0 0.0
    %2397 = vmatprep.mubr.f32.mxu0 0.0
    %2398 = vmatmul.mubr.f32.gmra.mrb[0].mxu0 %v2331
    %v2399 = vpop.f32.mrb[0].mxu0
    %v2400 = vadd.f32 0.0, %v2399
    %v2401 = vpop.f32.mrb[0].mxu0
    %2402 = vdwg.mxu0
    %v2403 = vadd.f32 %v2329, %v2400
    %v2404 = vld [vmem:[%s403 + $0xa] sm:$0x3]
    %2405 = vmatprep.subr.mxu0 0.0
    %2406 = vmatpush1.msra.mxu0 %v768
    %2407 = vmatprep.subr.mxu0 0.0
    %2408 = vmatpush1.msra.mxu0 %v769
    %2409 = vmatprep.subr.mxu0 0.0
    %2410 = vmatpush1.msra.mxu0 0.0
    %2411 = vmatprep.subr.mxu0 0.0
    %2412 = vmatpush1.msra.mxu0 0.0
    %2413 = vmatprep.subr.mxu0 0.0
    %2414 = vmatpush1.msra.mxu0 0.0
    %2415 = vmatprep.subr.mxu0 0.0
    %2416 = vmatpush1.msra.mxu0 0.0
    %2417 = vmatprep.subr.mxu0 0.0
    %2418 = vmatpush1.msra.mxu0 0.0
    %2419 = vmatprep.subr.mxu0 0.0
    %2420 = vmatpush1.msra.mxu0 0.0
    %2421 = vmatprep.subr.mxu0 0.0
    %2422 = vmatpush1.msra.mxu0 0.0
    %2423 = vmatprep.subr.mxu0 0.0
    %2424 = vmatpush1.msra.mxu0 0.0
    %2425 = vmatprep.subr.mxu0 0.0
    %2426 = vmatpush1.msra.mxu0 0.0
    %2427 = vmatprep.subr.mxu0 0.0
    %2428 = vmatpush1.msra.mxu0 0.0
    %2429 = vmatprep.subr.mxu0 0.0
    %2430 = vmatpush1.msra.mxu0 0.0
    %2431 = vmatprep.subr.mxu0 0.0
    %2432 = vmatpush1.msra.mxu0 0.0
    %2433 = vmatprep.subr.mxu0 0.0
    %2434 = vmatpush1.msra.mxu0 0.0
    %2435 = vmatprep.subr.mxu0 0.0
    %2436 = vmatpush1.msra.mxu0 0.0
    %2437 = vmatprep.subr.mxu0 0.0
    %2438 = vmatpush1.msra.mxu0 0.0
    %2439 = vmatprep.subr.mxu0 0.0
    %2440 = vmatpush1.msra.mxu0 0.0
    %2441 = vmatprep.subr.mxu0 0.0
    %2442 = vmatpush1.msra.mxu0 0.0
    %2443 = vmatprep.subr.mxu0 0.0
    %2444 = vmatpush1.msra.mxu0 0.0
    %2445 = vmatprep.subr.mxu0 0.0
    %2446 = vmatpush1.msra.mxu0 0.0
    %2447 = vmatprep.subr.mxu0 0.0
    %2448 = vmatpush1.msra.mxu0 0.0
    %2449 = vmatprep.subr.mxu0 0.0
    %2450 = vmatpush1.msra.mxu0 0.0
    %2451 = vmatprep.subr.mxu0 0.0
    %2452 = vmatpush1.msra.mxu0 0.0
    %2453 = vmatprep.subr.mxu0 0.0
    %2454 = vmatpush1.msra.mxu0 0.0
    %2455 = vmatprep.subr.mxu0 0.0
    %2456 = vmatpush1.msra.mxu0 0.0
    %2457 = vmatprep.subr.mxu0 0.0
    %2458 = vmatpush1.msra.mxu0 0.0
    %2459 = vmatprep.subr.mxu0 0.0
    %2460 = vmatpush1.msra.mxu0 0.0
    %2461 = vmatprep.subr.mxu0 0.0
    %2462 = vmatpush1.msra.mxu0 0.0
    %2463 = vmatprep.subr.mxu0 0.0
    %2464 = vmatpush1.msra.mxu0 0.0
    %2465 = vmatprep.subr.mxu0 0.0
    %2466 = vmatpush1.msra.mxu0 0.0
    %2467 = vmatprep.subr.mxu0 0.0
    %2468 = vmatpush1.msra.mxu0 0.0
    %2469 = vmatprep.mubr.f32.mxu0 0.0
    %2470 = vmatmul.mubr.f32.gmra.mrb[0].mxu0 %v2331
    %v2471 = vpop.f32.mrb[0].mxu0
    %v2472 = vadd.f32 0.0, %v2471
    %v2473 = vpop.f32.mrb[0].mxu0
    %2474 = vdwg.mxu0
    %v2475 = vadd.f32 %v2404, %v2472
    %v2476 = vld [vmem:[%s577 + $0xa] sm:$0x3]
    %2477 = vmatprep.subr.mxu0 0.0
    %2478 = vmatpush1.msra.mxu0 %v771
    %2479 = vmatprep.subr.mxu0 0.0
    %2480 = vmatpush1.msra.mxu0 %v772
    %2481 = vmatprep.subr.mxu0 0.0
    %2482 = vmatpush1.msra.mxu0 0.0
    %2483 = vmatprep.subr.mxu0 0.0
    %2484 = vmatpush1.msra.mxu0 0.0
    %2485 = vmatprep.subr.mxu0 0.0
    %2486 = vmatpush1.msra.mxu0 0.0
    %2487 = vmatprep.subr.mxu0 0.0
    %2488 = vmatpush1.msra.mxu0 0.0
    %2489 = vmatprep.subr.mxu0 0.0
    %2490 = vmatpush1.msra.mxu0 0.0
    %2491 = vmatprep.subr.mxu0 0.0
    %2492 = vmatpush1.msra.mxu0 0.0
    %2493 = vmatprep.subr.mxu0 0.0
    %2494 = vmatpush1.msra.mxu0 0.0
    %2495 = vmatprep.subr.mxu0 0.0
    %2496 = vmatpush1.msra.mxu0 0.0
    %2497 = vmatprep.subr.mxu0 0.0
    %2498 = vmatpush1.msra.mxu0 0.0
    %2499 = vmatprep.subr.mxu0 0.0
    %2500 = vmatpush1.msra.mxu0 0.0
    %2501 = vmatprep.subr.mxu0 0.0
    %2502 = vmatpush1.msra.mxu0 0.0
    %2503 = vmatprep.subr.mxu0 0.0
    %2504 = vmatpush1.msra.mxu0 0.0
    %2505 = vmatprep.subr.mxu0 0.0
    %2506 = vmatpush1.msra.mxu0 0.0
    %2507 = vmatprep.subr.mxu0 0.0
    %2508 = vmatpush1.msra.mxu0 0.0
    %2509 = vmatprep.subr.mxu0 0.0
    %2510 = vmatpush1.msra.mxu0 0.0
    %2511 = vmatprep.subr.mxu0 0.0
    %2512 = vmatpush1.msra.mxu0 0.0
    %2513 = vmatprep.subr.mxu0 0.0
    %2514 = vmatpush1.msra.mxu0 0.0
    %2515 = vmatprep.subr.mxu0 0.0
    %2516 = vmatpush1.msra.mxu0 0.0
    %2517 = vmatprep.subr.mxu0 0.0
    %2518 = vmatpush1.msra.mxu0 0.0
    %2519 = vmatprep.subr.mxu0 0.0
    %2520 = vmatpush1.msra.mxu0 0.0
    %2521 = vmatprep.subr.mxu0 0.0
    %2522 = vmatpush1.msra.mxu0 0.0
    %2523 = vmatprep.subr.mxu0 0.0
    %2524 = vmatpush1.msra.mxu0 0.0
    %2525 = vmatprep.subr.mxu0 0.0
    %2526 = vmatpush1.msra.mxu0 0.0
    %2527 = vmatprep.subr.mxu0 0.0
    %2528 = vmatpush1.msra.mxu0 0.0
    %2529 = vmatprep.subr.mxu0 0.0
    %2530 = vmatpush1.msra.mxu0 0.0
    %2531 = vmatprep.subr.mxu0 0.0
    %2532 = vmatpush1.msra.mxu0 0.0
    %2533 = vmatprep.subr.mxu0 0.0
    %2534 = vmatpush1.msra.mxu0 0.0
    %2535 = vmatprep.subr.mxu0 0.0
    %2536 = vmatpush1.msra.mxu0 0.0
    %2537 = vmatprep.subr.mxu0 0.0
    %2538 = vmatpush1.msra.mxu0 0.0
    %2539 = vmatprep.subr.mxu0 0.0
    %2540 = vmatpush1.msra.mxu0 0.0
    %2541 = vmatprep.mubr.f32.mxu0 0.0
    %2542 = vmatmul.mubr.f32.gmra.mrb[0].mxu0 %v2331
    %v2543 = vpop.f32.mrb[0].mxu0
    %v2544 = vadd.f32 0.0, %v2543
    %v2545 = vpop.f32.mrb[0].mxu0
    %2546 = vdwg.mxu0
    %v2547 = vadd.f32 %v2476, %v2544
    %v2548 = vld [vmem:[%s751 + $0xa] sm:$0x3]
    %2549 = vmatprep.subr.mxu0 0.0
    %2550 = vmatpush1.msra.mxu0 %v774
    %2551 = vmatprep.subr.mxu0 0.0
    %2552 = vmatpush1.msra.mxu0 %v775
    %2553 = vmatprep.subr.mxu0 0.0
    %2554 = vmatpush1.msra.mxu0 0.0
    %2555 = vmatprep.subr.mxu0 0.0
    %2556 = vmatpush1.msra.mxu0 0.0
    %2557 = vmatprep.subr.mxu0 0.0
    %2558 = vmatpush1.msra.mxu0 0.0
    %2559 = vmatprep.subr.mxu0 0.0
    %2560 = vmatpush1.msra.mxu0 0.0
    %2561 = vmatprep.subr.mxu0 0.0
    %2562 = vmatpush1.msra.mxu0 0.0
    %2563 = vmatprep.subr.mxu0 0.0
    %2564 = vmatpush1.msra.mxu0 0.0
    %2565 = vmatprep.subr.mxu0 0.0
    %2566 = vmatpush1.msra.mxu0 0.0
    %2567 = vmatprep.subr.mxu0 0.0
    %2568 = vmatpush1.msra.mxu0 0.0
    %2569 = vmatprep.subr.mxu0 0.0
    %2570 = vmatpush1.msra.mxu0 0.0
    %2571 = vmatprep.subr.mxu0 0.0
    %2572 = vmatpush1.msra.mxu0 0.0
    %2573 = vmatprep.subr.mxu0 0.0
    %2574 = vmatpush1.msra.mxu0 0.0
    %2575 = vmatprep.subr.mxu0 0.0
    %2576 = vmatpush1.msra.mxu0 0.0
    %2577 = vmatprep.subr.mxu0 0.0
    %2578 = vmatpush1.msra.mxu0 0.0
    %2579 = vmatprep.subr.mxu0 0.0
    %2580 = vmatpush1.msra.mxu0 0.0
    %2581 = vmatprep.subr.mxu0 0.0
    %2582 = vmatpush1.msra.mxu0 0.0
    %2583 = vmatprep.subr.mxu0 0.0
    %2584 = vmatpush1.msra.mxu0 0.0
    %2585 = vmatprep.subr.mxu0 0.0
    %2586 = vmatpush1.msra.mxu0 0.0
    %2587 = vmatprep.subr.mxu0 0.0
    %2588 = vmatpush1.msra.mxu0 0.0
    %2589 = vmatprep.subr.mxu0 0.0
    %2590 = vmatpush1.msra.mxu0 0.0
    %2591 = vmatprep.subr.mxu0 0.0
    %2592 = vmatpush1.msra.mxu0 0.0
    %2593 = vmatprep.subr.mxu0 0.0
    %2594 = vmatpush1.msra.mxu0 0.0
    %2595 = vmatprep.subr.mxu0 0.0
    %2596 = vmatpush1.msra.mxu0 0.0
    %2597 = vmatprep.subr.mxu0 0.0
    %2598 = vmatpush1.msra.mxu0 0.0
    %2599 = vmatprep.subr.mxu0 0.0
    %2600 = vmatpush1.msra.mxu0 0.0
    %2601 = vmatprep.subr.mxu0 0.0
    %2602 = vmatpush1.msra.mxu0 0.0
    %2603 = vmatprep.subr.mxu0 0.0
    %2604 = vmatpush1.msra.mxu0 0.0
    %2605 = vmatprep.subr.mxu0 0.0
    %2606 = vmatpush1.msra.mxu0 0.0
    %2607 = vmatprep.subr.mxu0 0.0
    %2608 = vmatpush1.msra.mxu0 0.0
    %2609 = vmatprep.subr.mxu0 0.0
    %2610 = vmatpush1.msra.mxu0 0.0
    %2611 = vmatprep.subr.mxu0 0.0
    %2612 = vmatpush1.msra.mxu0 0.0
    %2613 = vmatprep.mubr.f32.mxu0 0.0
    %2614 = vmatmul.mubr.f32.gmra.mrb[0].mxu0 %v2331
    %v2615 = vpop.f32.mrb[0].mxu0
    %v2616 = vadd.f32 0.0, %v2615
    %v2617 = vpop.f32.mrb[0].mxu0
    %2618 = vdwg.mxu0
    %v2619 = vadd.f32 %v2548, %v2616
    %v2620 = vxor.u32 %v2184, 2147483648
    %v2621 = vmul.f32 %v2620, 1.442695
    %v2622 = vpow.pop %v2621
    %v2623 = vadd.f32 %v2622, 1.0
    %v2624 = vrcp.pop %v2623
    %v2625 = vmul.f32 1.0, %v2624
    %v2626 = vmul.f32 %v2625, %v2003
    %v2627 = vxor.u32 %v2112, 2147483648
    %v2628 = vmul.f32 %v2627, 1.442695
    %v2629 = vpow.pop %v2628
    %v2630 = vadd.f32 %v2629, 1.0
    %v2631 = vrcp.pop %v2630
    %v2632 = vmul.f32 1.0, %v2631
    %v2633 = vtanh.pop %v2256
    %v2634 = vmul.f32 %v2632, %v2633
    %v2635 = vadd.f32 %v2626, %v2634
    %v2636 = vxor.u32 %v2328, 2147483648
    %v2637 = vmul.f32 %v2636, 1.442695
    %v2638 = vpow.pop %v2637
    %v2639 = vadd.f32 %v2638, 1.0
    %v2640 = vrcp.pop %v2639
    %v2641 = vmul.f32 1.0, %v2640
    %v2642 = vtanh.pop %v2635
    %v2643 = vmul.f32 %v2641, %v2642
    %v2644 = vxor.u32 %v2475, 2147483648
    %v2645 = vmul.f32 %v2644, 1.442695
    %v2646 = vpow.pop %v2645
    %v2647 = vadd.f32 %v2646, 1.0
    %v2648 = vrcp.pop %v2647
    %v2649 = vmul.f32 1.0, %v2648
    %v2650 = vmul.f32 %v2649, %v2027
    %v2651 = vxor.u32 %v2403, 2147483648
    %v2652 = vmul.f32 %v2651, 1.442695
    %v2653 = vpow.pop %v2652
    %v2654 = vadd.f32 %v2653, 1.0
    %v2655 = vrcp.pop %v2654
    %v2656 = vmul.f32 1.0, %v2655
    %v2657 = vtanh.pop %v2547
    %v2658 = vmul.f32 %v2656, %v2657
    %v2659 = vadd.f32 %v2650, %v2658
    %v2660 = vxor.u32 %v2619, 2147483648
    %v2661 = vmul.f32 %v2660, 1.442695
    %v2662 = vpow.pop %v2661
    %v2663 = vadd.f32 %v2662, 1.0
    %v2664 = vrcp.pop %v2663
    %v2665 = vmul.f32 1.0, %v2664
    %v2666 = vtanh.pop %v2659
    %v2667 = vmul.f32 %v2665, %v2666
    %2668 = vst.msk [vmem:[#allocation4 + $0x4] sm:$0x3] %vm1403, %v2643
    %2669 = vst.msk [vmem:[#allocation5 + $0xa] sm:$0x3] %vm1403, %v2667
    %v2670 = vld [vmem:[#allocation2 + $0x6] sm:$0x3]
    %v2672 = vsel %vm63, %v2643, 0
    %2674 = vmatprep.subr.mxu0 0.0
    %2675 = vmatpush1.msra.mxu0 %v754
    %2676 = vmatprep.subr.mxu0 0.0
    %2677 = vmatpush1.msra.mxu0 %v755
    %2678 = vmatprep.subr.mxu0 0.0
    %2679 = vmatpush1.msra.mxu0 0.0
    %2680 = vmatprep.subr.mxu0 0.0
    %2681 = vmatpush1.msra.mxu0 0.0
    %2682 = vmatprep.subr.mxu0 0.0
    %2683 = vmatpush1.msra.mxu0 0.0
    %2684 = vmatprep.subr.mxu0 0.0
    %2685 = vmatpush1.msra.mxu0 0.0
    %2686 = vmatprep.subr.mxu0 0.0
    %2687 = vmatpush1.msra.mxu0 0.0
    %2688 = vmatprep.subr.mxu0 0.0
    %2689 = vmatpush1.msra.mxu0 0.0
    %2690 = vmatprep.subr.mxu0 0.0
    %2691 = vmatpush1.msra.mxu0 0.0
    %2692 = vmatprep.subr.mxu0 0.0
    %2693 = vmatpush1.msra.mxu0 0.0
    %2694 = vmatprep.subr.mxu0 0.0
    %2695 = vmatpush1.msra.mxu0 0.0
    %2696 = vmatprep.subr.mxu0 0.0
    %2697 = vmatpush1.msra.mxu0 0.0
    %2698 = vmatprep.subr.mxu0 0.0
    %2699 = vmatpush1.msra.mxu0 0.0
    %2700 = vmatprep.subr.mxu0 0.0
    %2701 = vmatpush1.msra.mxu0 0.0
    %2702 = vmatprep.subr.mxu0 0.0
    %2703 = vmatpush1.msra.mxu0 0.0
    %2704 = vmatprep.subr.mxu0 0.0
    %2705 = vmatpush1.msra.mxu0 0.0
    %2706 = vmatprep.subr.mxu0 0.0
    %2707 = vmatpush1.msra.mxu0 0.0
    %2708 = vmatprep.subr.mxu0 0.0
    %2709 = vmatpush1.msra.mxu0 0.0
    %2710 = vmatprep.subr.mxu0 0.0
    %2711 = vmatpush1.msra.mxu0 0.0
    %2712 = vmatprep.subr.mxu0 0.0
    %2713 = vmatpush1.msra.mxu0 0.0
    %2714 = vmatprep.subr.mxu0 0.0
    %2715 = vmatpush1.msra.mxu0 0.0
    %2716 = vmatprep.subr.mxu0 0.0
    %2717 = vmatpush1.msra.mxu0 0.0
    %2718 = vmatprep.subr.mxu0 0.0
    %2719 = vmatpush1.msra.mxu0 0.0
    %2720 = vmatprep.subr.mxu0 0.0
    %2721 = vmatpush1.msra.mxu0 0.0
    %2722 = vmatprep.subr.mxu0 0.0
    %2723 = vmatpush1.msra.mxu0 0.0
    %2724 = vmatprep.subr.mxu0 0.0
    %2725 = vmatpush1.msra.mxu0 0.0
    %2726 = vmatprep.subr.mxu0 0.0
    %2727 = vmatpush1.msra.mxu0 0.0
    %2728 = vmatprep.subr.mxu0 0.0
    %2729 = vmatpush1.msra.mxu0 0.0
    %2730 = vmatprep.subr.mxu0 0.0
    %2731 = vmatpush1.msra.mxu0 0.0
    %2732 = vmatprep.subr.mxu0 0.0
    %2733 = vmatpush1.msra.mxu0 0.0
    %2734 = vmatprep.subr.mxu0 0.0
    %2735 = vmatpush1.msra.mxu0 0.0
    %2736 = vmatprep.subr.mxu0 0.0
    %2737 = vmatpush1.msra.mxu0 0.0
    %2738 = vmatprep.mubr.f32.mxu0 0.0
    %2739 = vmatmul.mubr.f32.gmra.mrb[0].mxu0 %v2672
    %v2740 = vpop.f32.mrb[0].mxu0
    %v2741 = vadd.f32 0.0, %v2740
    %v2742 = vpop.f32.mrb[0].mxu0
    %2743 = vdwg.mxu0
    %v2744 = vadd.f32 %v2670, %v2741
    %v2745 = vld [vmem:[%s316 + $0x6] sm:$0x3]
    %2746 = vmatprep.subr.mxu0 0.0
    %2747 = vmatpush1.msra.mxu0 %v757
    %2748 = vmatprep.subr.mxu0 0.0
    %2749 = vmatpush1.msra.mxu0 %v758
    %2750 = vmatprep.subr.mxu0 0.0
    %2751 = vmatpush1.msra.mxu0 0.0
    %2752 = vmatprep.subr.mxu0 0.0
    %2753 = vmatpush1.msra.mxu0 0.0
    %2754 = vmatprep.subr.mxu0 0.0
    %2755 = vmatpush1.msra.mxu0 0.0
    %2756 = vmatprep.subr.mxu0 0.0
    %2757 = vmatpush1.msra.mxu0 0.0
    %2758 = vmatprep.subr.mxu0 0.0
    %2759 = vmatpush1.msra.mxu0 0.0
    %2760 = vmatprep.subr.mxu0 0.0
    %2761 = vmatpush1.msra.mxu0 0.0
    %2762 = vmatprep.subr.mxu0 0.0
    %2763 = vmatpush1.msra.mxu0 0.0
    %2764 = vmatprep.subr.mxu0 0.0
    %2765 = vmatpush1.msra.mxu0 0.0
    %2766 = vmatprep.subr.mxu0 0.0
    %2767 = vmatpush1.msra.mxu0 0.0
    %2768 = vmatprep.subr.mxu0 0.0
    %2769 = vmatpush1.msra.mxu0 0.0
    %2770 = vmatprep.subr.mxu0 0.0
    %2771 = vmatpush1.msra.mxu0 0.0
    %2772 = vmatprep.subr.mxu0 0.0
    %2773 = vmatpush1.msra.mxu0 0.0
    %2774 = vmatprep.subr.mxu0 0.0
    %2775 = vmatpush1.msra.mxu0 0.0
    %2776 = vmatprep.subr.mxu0 0.0
    %2777 = vmatpush1.msra.mxu0 0.0
    %2778 = vmatprep.subr.mxu0 0.0
    %2779 = vmatpush1.msra.mxu0 0.0
    %2780 = vmatprep.subr.mxu0 0.0
    %2781 = vmatpush1.msra.mxu0 0.0
    %2782 = vmatprep.subr.mxu0 0.0
    %2783 = vmatpush1.msra.mxu0 0.0
    %2784 = vmatprep.subr.mxu0 0.0
    %2785 = vmatpush1.msra.mxu0 0.0
    %2786 = vmatprep.subr.mxu0 0.0
    %2787 = vmatpush1.msra.mxu0 0.0
    %2788 = vmatprep.subr.mxu0 0.0
    %2789 = vmatpush1.msra.mxu0 0.0
    %2790 = vmatprep.subr.mxu0 0.0
    %2791 = vmatpush1.msra.mxu0 0.0
    %2792 = vmatprep.subr.mxu0 0.0
    %2793 = vmatpush1.msra.mxu0 0.0
    %2794 = vmatprep.subr.mxu0 0.0
    %2795 = vmatpush1.msra.mxu0 0.0
    %2796 = vmatprep.subr.mxu0 0.0
    %2797 = vmatpush1.msra.mxu0 0.0
    %2798 = vmatprep.subr.mxu0 0.0
    %2799 = vmatpush1.msra.mxu0 0.0
    %2800 = vmatprep.subr.mxu0 0.0
    %2801 = vmatpush1.msra.mxu0 0.0
    %2802 = vmatprep.subr.mxu0 0.0
    %2803 = vmatpush1.msra.mxu0 0.0
    %2804 = vmatprep.subr.mxu0 0.0
    %2805 = vmatpush1.msra.mxu0 0.0
    %2806 = vmatprep.subr.mxu0 0.0
    %2807 = vmatpush1.msra.mxu0 0.0
    %2808 = vmatprep.subr.mxu0 0.0
    %2809 = vmatpush1.msra.mxu0 0.0
    %2810 = vmatprep.mubr.f32.mxu0 0.0
    %2811 = vmatmul.mubr.f32.gmra.mrb[0].mxu0 %v2672
    %v2812 = vpop.f32.mrb[0].mxu0
    %v2813 = vadd.f32 0.0, %v2812
    %v2814 = vpop.f32.mrb[0].mxu0
    %2815 = vdwg.mxu0
    %v2816 = vadd.f32 %v2745, %v2813
    %v2817 = vld [vmem:[%s490 + $0x6] sm:$0x3]
    %2818 = vmatprep.subr.mxu0 0.0
    %2819 = vmatpush1.msra.mxu0 %v760
    %2820 = vmatprep.subr.mxu0 0.0
    %2821 = vmatpush1.msra.mxu0 %v761
    %2822 = vmatprep.subr.mxu0 0.0
    %2823 = vmatpush1.msra.mxu0 0.0
    %2824 = vmatprep.subr.mxu0 0.0
    %2825 = vmatpush1.msra.mxu0 0.0
    %2826 = vmatprep.subr.mxu0 0.0
    %2827 = vmatpush1.msra.mxu0 0.0
    %2828 = vmatprep.subr.mxu0 0.0
    %2829 = vmatpush1.msra.mxu0 0.0
    %2830 = vmatprep.subr.mxu0 0.0
    %2831 = vmatpush1.msra.mxu0 0.0
    %2832 = vmatprep.subr.mxu0 0.0
    %2833 = vmatpush1.msra.mxu0 0.0
    %2834 = vmatprep.subr.mxu0 0.0
    %2835 = vmatpush1.msra.mxu0 0.0
    %2836 = vmatprep.subr.mxu0 0.0
    %2837 = vmatpush1.msra.mxu0 0.0
    %2838 = vmatprep.subr.mxu0 0.0
    %2839 = vmatpush1.msra.mxu0 0.0
    %2840 = vmatprep.subr.mxu0 0.0
    %2841 = vmatpush1.msra.mxu0 0.0
    %2842 = vmatprep.subr.mxu0 0.0
    %2843 = vmatpush1.msra.mxu0 0.0
    %2844 = vmatprep.subr.mxu0 0.0
    %2845 = vmatpush1.msra.mxu0 0.0
    %2846 = vmatprep.subr.mxu0 0.0
    %2847 = vmatpush1.msra.mxu0 0.0
    %2848 = vmatprep.subr.mxu0 0.0
    %2849 = vmatpush1.msra.mxu0 0.0
    %2850 = vmatprep.subr.mxu0 0.0
    %2851 = vmatpush1.msra.mxu0 0.0
    %2852 = vmatprep.subr.mxu0 0.0
    %2853 = vmatpush1.msra.mxu0 0.0
    %2854 = vmatprep.subr.mxu0 0.0
    %2855 = vmatpush1.msra.mxu0 0.0
    %2856 = vmatprep.subr.mxu0 0.0
    %2857 = vmatpush1.msra.mxu0 0.0
    %2858 = vmatprep.subr.mxu0 0.0
    %2859 = vmatpush1.msra.mxu0 0.0
    %2860 = vmatprep.subr.mxu0 0.0
    %2861 = vmatpush1.msra.mxu0 0.0
    %2862 = vmatprep.subr.mxu0 0.0
    %2863 = vmatpush1.msra.mxu0 0.0
    %2864 = vmatprep.subr.mxu0 0.0
    %2865 = vmatpush1.msra.mxu0 0.0
    %2866 = vmatprep.subr.mxu0 0.0
    %2867 = vmatpush1.msra.mxu0 0.0
    %2868 = vmatprep.subr.mxu0 0.0
    %2869 = vmatpush1.msra.mxu0 0.0
    %2870 = vmatprep.subr.mxu0 0.0
    %2871 = vmatpush1.msra.mxu0 0.0
    %2872 = vmatprep.subr.mxu0 0.0
    %2873 = vmatpush1.msra.mxu0 0.0
    %2874 = vmatprep.subr.mxu0 0.0
    %2875 = vmatpush1.msra.mxu0 0.0
    %2876 = vmatprep.subr.mxu0 0.0
    %2877 = vmatpush1.msra.mxu0 0.0
    %2878 = vmatprep.subr.mxu0 0.0
    %2879 = vmatpush1.msra.mxu0 0.0
    %2880 = vmatprep.subr.mxu0 0.0
    %2881 = vmatpush1.msra.mxu0 0.0
    %2882 = vmatprep.mubr.f32.mxu0 0.0
    %2883 = vmatmul.mubr.f32.gmra.mrb[0].mxu0 %v2672
    %v2884 = vpop.f32.mrb[0].mxu0
    %v2885 = vadd.f32 0.0, %v2884
    %v2886 = vpop.f32.mrb[0].mxu0
    %2887 = vdwg.mxu0
    %v2888 = vadd.f32 %v2817, %v2885
    %v2889 = vld [vmem:[%s664 + $0x6] sm:$0x3]
    %2890 = vmatprep.subr.mxu0 0.0
    %2891 = vmatpush1.msra.mxu0 %v763
    %2892 = vmatprep.subr.mxu0 0.0
    %2893 = vmatpush1.msra.mxu0 %v764
    %2894 = vmatprep.subr.mxu0 0.0
    %2895 = vmatpush1.msra.mxu0 0.0
    %2896 = vmatprep.subr.mxu0 0.0
    %2897 = vmatpush1.msra.mxu0 0.0
    %2898 = vmatprep.subr.mxu0 0.0
    %2899 = vmatpush1.msra.mxu0 0.0
    %2900 = vmatprep.subr.mxu0 0.0
    %2901 = vmatpush1.msra.mxu0 0.0
    %2902 = vmatprep.subr.mxu0 0.0
    %2903 = vmatpush1.msra.mxu0 0.0
    %2904 = vmatprep.subr.mxu0 0.0
    %2905 = vmatpush1.msra.mxu0 0.0
    %2906 = vmatprep.subr.mxu0 0.0
    %2907 = vmatpush1.msra.mxu0 0.0
    %2908 = vmatprep.subr.mxu0 0.0
    %2909 = vmatpush1.msra.mxu0 0.0
    %2910 = vmatprep.subr.mxu0 0.0
    %2911 = vmatpush1.msra.mxu0 0.0
    %2912 = vmatprep.subr.mxu0 0.0
    %2913 = vmatpush1.msra.mxu0 0.0
    %2914 = vmatprep.subr.mxu0 0.0
    %2915 = vmatpush1.msra.mxu0 0.0
    %2916 = vmatprep.subr.mxu0 0.0
    %2917 = vmatpush1.msra.mxu0 0.0
    %2918 = vmatprep.subr.mxu0 0.0
    %2919 = vmatpush1.msra.mxu0 0.0
    %2920 = vmatprep.subr.mxu0 0.0
    %2921 = vmatpush1.msra.mxu0 0.0
    %2922 = vmatprep.subr.mxu0 0.0
    %2923 = vmatpush1.msra.mxu0 0.0
    %2924 = vmatprep.subr.mxu0 0.0
    %2925 = vmatpush1.msra.mxu0 0.0
    %2926 = vmatprep.subr.mxu0 0.0
    %2927 = vmatpush1.msra.mxu0 0.0
    %2928 = vmatprep.subr.mxu0 0.0
    %2929 = vmatpush1.msra.mxu0 0.0
    %2930 = vmatprep.subr.mxu0 0.0
    %2931 = vmatpush1.msra.mxu0 0.0
    %2932 = vmatprep.subr.mxu0 0.0
    %2933 = vmatpush1.msra.mxu0 0.0
    %2934 = vmatprep.subr.mxu0 0.0
    %2935 = vmatpush1.msra.mxu0 0.0
    %2936 = vmatprep.subr.mxu0 0.0
    %2937 = vmatpush1.msra.mxu0 0.0
    %2938 = vmatprep.subr.mxu0 0.0
    %2939 = vmatpush1.msra.mxu0 0.0
    %2940 = vmatprep.subr.mxu0 0.0
    %2941 = vmatpush1.msra.mxu0 0.0
    %2942 = vmatprep.subr.mxu0 0.0
    %2943 = vmatpush1.msra.mxu0 0.0
    %2944 = vmatprep.subr.mxu0 0.0
    %2945 = vmatpush1.msra.mxu0 0.0
    %2946 = vmatprep.subr.mxu0 0.0
    %2947 = vmatpush1.msra.mxu0 0.0
    %2948 = vmatprep.subr.mxu0 0.0
    %2949 = vmatpush1.msra.mxu0 0.0
    %2950 = vmatprep.subr.mxu0 0.0
    %2951 = vmatpush1.msra.mxu0 0.0
    %2952 = vmatprep.subr.mxu0 0.0
    %2953 = vmatpush1.msra.mxu0 0.0
    %2954 = vmatprep.mubr.f32.mxu0 0.0
    %2955 = vmatmul.mubr.f32.gmra.mrb[0].mxu0 %v2672
    %v2956 = vpop.f32.mrb[0].mxu0
    %v2957 = vadd.f32 0.0, %v2956
    %v2958 = vpop.f32.mrb[0].mxu0
    %2959 = vdwg.mxu0
    %v2960 = vadd.f32 %v2889, %v2957
    %v2961 = vld [vmem:[#allocation3 + $0x8] sm:$0x3]
    %v2963 = vsel %vm63, %v2667, 0
    %2965 = vmatprep.subr.mxu0 0.0
    %2966 = vmatpush1.msra.mxu0 %v765
    %2967 = vmatprep.subr.mxu0 0.0
    %2968 = vmatpush1.msra.mxu0 %v766
    %2969 = vmatprep.subr.mxu0 0.0
    %2970 = vmatpush1.msra.mxu0 0.0
    %2971 = vmatprep.subr.mxu0 0.0
    %2972 = vmatpush1.msra.mxu0 0.0
    %2973 = vmatprep.subr.mxu0 0.0
    %2974 = vmatpush1.msra.mxu0 0.0
    %2975 = vmatprep.subr.mxu0 0.0
    %2976 = vmatpush1.msra.mxu0 0.0
    %2977 = vmatprep.subr.mxu0 0.0
    %2978 = vmatpush1.msra.mxu0 0.0
    %2979 = vmatprep.subr.mxu0 0.0
    %2980 = vmatpush1.msra.mxu0 0.0
    %2981 = vmatprep.subr.mxu0 0.0
    %2982 = vmatpush1.msra.mxu0 0.0
    %2983 = vmatprep.subr.mxu0 0.0
    %2984 = vmatpush1.msra.mxu0 0.0
    %2985 = vmatprep.subr.mxu0 0.0
    %2986 = vmatpush1.msra.mxu0 0.0
    %2987 = vmatprep.subr.mxu0 0.0
    %2988 = vmatpush1.msra.mxu0 0.0
    %2989 = vmatprep.subr.mxu0 0.0
    %2990 = vmatpush1.msra.mxu0 0.0
    %2991 = vmatprep.subr.mxu0 0.0
    %2992 = vmatpush1.msra.mxu0 0.0
    %2993 = vmatprep.subr.mxu0 0.0
    %2994 = vmatpush1.msra.mxu0 0.0
    %2995 = vmatprep.subr.mxu0 0.0
    %2996 = vmatpush1.msra.mxu0 0.0
    %2997 = vmatprep.subr.mxu0 0.0
    %2998 = vmatpush1.msra.mxu0 0.0
    %2999 = vmatprep.subr.mxu0 0.0
    %3000 = vmatpush1.msra.mxu0 0.0
    %3001 = vmatprep.subr.mxu0 0.0
    %3002 = vmatpush1.msra.mxu0 0.0
    %3003 = vmatprep.subr.mxu0 0.0
    %3004 = vmatpush1.msra.mxu0 0.0
    %3005 = vmatprep.subr.mxu0 0.0
    %3006 = vmatpush1.msra.mxu0 0.0
    %3007 = vmatprep.subr.mxu0 0.0
    %3008 = vmatpush1.msra.mxu0 0.0
    %3009 = vmatprep.subr.mxu0 0.0
    %3010 = vmatpush1.msra.mxu0 0.0
    %3011 = vmatprep.subr.mxu0 0.0
    %3012 = vmatpush1.msra.mxu0 0.0
    %3013 = vmatprep.subr.mxu0 0.0
    %3014 = vmatpush1.msra.mxu0 0.0
    %3015 = vmatprep.subr.mxu0 0.0
    %3016 = vmatpush1.msra.mxu0 0.0
    %3017 = vmatprep.subr.mxu0 0.0
    %3018 = vmatpush1.msra.mxu0 0.0
    %3019 = vmatprep.subr.mxu0 0.0
    %3020 = vmatpush1.msra.mxu0 0.0
    %3021 = vmatprep.subr.mxu0 0.0
    %3022 = vmatpush1.msra.mxu0 0.0
    %3023 = vmatprep.subr.mxu0 0.0
    %3024 = vmatpush1.msra.mxu0 0.0
    %3025 = vmatprep.subr.mxu0 0.0
    %3026 = vmatpush1.msra.mxu0 0.0
    %3027 = vmatprep.subr.mxu0 0.0
    %3028 = vmatpush1.msra.mxu0 0.0
    %3029 = vmatprep.mubr.f32.mxu0 0.0
    %3030 = vmatmul.mubr.f32.gmra.mrb[0].mxu0 %v2963
    %v3031 = vpop.f32.mrb[0].mxu0
    %v3032 = vadd.f32 0.0, %v3031
    %v3033 = vpop.f32.mrb[0].mxu0
    %3034 = vdwg.mxu0
    %v3035 = vadd.f32 %v2961, %v3032
    %v3036 = vld [vmem:[%s403 + $0x8] sm:$0x3]
    %3037 = vmatprep.subr.mxu0 0.0
    %3038 = vmatpush1.msra.mxu0 %v768
    %3039 = vmatprep.subr.mxu0 0.0
    %3040 = vmatpush1.msra.mxu0 %v769
    %3041 = vmatprep.subr.mxu0 0.0
    %3042 = vmatpush1.msra.mxu0 0.0
    %3043 = vmatprep.subr.mxu0 0.0
    %3044 = vmatpush1.msra.mxu0 0.0
    %3045 = vmatprep.subr.mxu0 0.0
    %3046 = vmatpush1.msra.mxu0 0.0
    %3047 = vmatprep.subr.mxu0 0.0
    %3048 = vmatpush1.msra.mxu0 0.0
    %3049 = vmatprep.subr.mxu0 0.0
    %3050 = vmatpush1.msra.mxu0 0.0
    %3051 = vmatprep.subr.mxu0 0.0
    %3052 = vmatpush1.msra.mxu0 0.0
    %3053 = vmatprep.subr.mxu0 0.0
    %3054 = vmatpush1.msra.mxu0 0.0
    %3055 = vmatprep.subr.mxu0 0.0
    %3056 = vmatpush1.msra.mxu0 0.0
    %3057 = vmatprep.subr.mxu0 0.0
    %3058 = vmatpush1.msra.mxu0 0.0
    %3059 = vmatprep.subr.mxu0 0.0
    %3060 = vmatpush1.msra.mxu0 0.0
    %3061 = vmatprep.subr.mxu0 0.0
    %3062 = vmatpush1.msra.mxu0 0.0
    %3063 = vmatprep.subr.mxu0 0.0
    %3064 = vmatpush1.msra.mxu0 0.0
    %3065 = vmatprep.subr.mxu0 0.0
    %3066 = vmatpush1.msra.mxu0 0.0
    %3067 = vmatprep.subr.mxu0 0.0
    %3068 = vmatpush1.msra.mxu0 0.0
    %3069 = vmatprep.subr.mxu0 0.0
    %3070 = vmatpush1.msra.mxu0 0.0
    %3071 = vmatprep.subr.mxu0 0.0
    %3072 = vmatpush1.msra.mxu0 0.0
    %3073 = vmatprep.subr.mxu0 0.0
    %3074 = vmatpush1.msra.mxu0 0.0
    %3075 = vmatprep.subr.mxu0 0.0
    %3076 = vmatpush1.msra.mxu0 0.0
    %3077 = vmatprep.subr.mxu0 0.0
    %3078 = vmatpush1.msra.mxu0 0.0
    %3079 = vmatprep.subr.mxu0 0.0
    %3080 = vmatpush1.msra.mxu0 0.0
    %3081 = vmatprep.subr.mxu0 0.0
    %3082 = vmatpush1.msra.mxu0 0.0
    %3083 = vmatprep.subr.mxu0 0.0
    %3084 = vmatpush1.msra.mxu0 0.0
    %3085 = vmatprep.subr.mxu0 0.0
    %3086 = vmatpush1.msra.mxu0 0.0
    %3087 = vmatprep.subr.mxu0 0.0
    %3088 = vmatpush1.msra.mxu0 0.0
    %3089 = vmatprep.subr.mxu0 0.0
    %3090 = vmatpush1.msra.mxu0 0.0
    %3091 = vmatprep.subr.mxu0 0.0
    %3092 = vmatpush1.msra.mxu0 0.0
    %3093 = vmatprep.subr.mxu0 0.0
    %3094 = vmatpush1.msra.mxu0 0.0
    %3095 = vmatprep.subr.mxu0 0.0
    %3096 = vmatpush1.msra.mxu0 0.0
    %3097 = vmatprep.subr.mxu0 0.0
    %3098 = vmatpush1.msra.mxu0 0.0
    %3099 = vmatprep.subr.mxu0 0.0
    %3100 = vmatpush1.msra.mxu0 0.0
    %3101 = vmatprep.mubr.f32.mxu0 0.0
    %3102 = vmatmul.mubr.f32.gmra.mrb[0].mxu0 %v2963
    %v3103 = vpop.f32.mrb[0].mxu0
    %v3104 = vadd.f32 0.0, %v3103
    %v3105 = vpop.f32.mrb[0].mxu0
    %3106 = vdwg.mxu0
    %v3107 = vadd.f32 %v3036, %v3104
    %v3108 = vld [vmem:[%s577 + $0x8] sm:$0x3]
    %3109 = vmatprep.subr.mxu0 0.0
    %3110 = vmatpush1.msra.mxu0 %v771
    %3111 = vmatprep.subr.mxu0 0.0
    %3112 = vmatpush1.msra.mxu0 %v772
    %3113 = vmatprep.subr.mxu0 0.0
    %3114 = vmatpush1.msra.mxu0 0.0
    %3115 = vmatprep.subr.mxu0 0.0
    %3116 = vmatpush1.msra.mxu0 0.0
    %3117 = vmatprep.subr.mxu0 0.0
    %3118 = vmatpush1.msra.mxu0 0.0
    %3119 = vmatprep.subr.mxu0 0.0
    %3120 = vmatpush1.msra.mxu0 0.0
    %3121 = vmatprep.subr.mxu0 0.0
    %3122 = vmatpush1.msra.mxu0 0.0
    %3123 = vmatprep.subr.mxu0 0.0
    %3124 = vmatpush1.msra.mxu0 0.0
    %3125 = vmatprep.subr.mxu0 0.0
    %3126 = vmatpush1.msra.mxu0 0.0
    %3127 = vmatprep.subr.mxu0 0.0
    %3128 = vmatpush1.msra.mxu0 0.0
    %3129 = vmatprep.subr.mxu0 0.0
    %3130 = vmatpush1.msra.mxu0 0.0
    %3131 = vmatprep.subr.mxu0 0.0
    %3132 = vmatpush1.msra.mxu0 0.0
    %3133 = vmatprep.subr.mxu0 0.0
    %3134 = vmatpush1.msra.mxu0 0.0
    %3135 = vmatprep.subr.mxu0 0.0
    %3136 = vmatpush1.msra.mxu0 0.0
    %3137 = vmatprep.subr.mxu0 0.0
    %3138 = vmatpush1.msra.mxu0 0.0
    %3139 = vmatprep.subr.mxu0 0.0
    %3140 = vmatpush1.msra.mxu0 0.0
    %3141 = vmatprep.subr.mxu0 0.0
    %3142 = vmatpush1.msra.mxu0 0.0
    %3143 = vmatprep.subr.mxu0 0.0
    %3144 = vmatpush1.msra.mxu0 0.0
    %3145 = vmatprep.subr.mxu0 0.0
    %3146 = vmatpush1.msra.mxu0 0.0
    %3147 = vmatprep.subr.mxu0 0.0
    %3148 = vmatpush1.msra.mxu0 0.0
    %3149 = vmatprep.subr.mxu0 0.0
    %3150 = vmatpush1.msra.mxu0 0.0
    %3151 = vmatprep.subr.mxu0 0.0
    %3152 = vmatpush1.msra.mxu0 0.0
    %3153 = vmatprep.subr.mxu0 0.0
    %3154 = vmatpush1.msra.mxu0 0.0
    %3155 = vmatprep.subr.mxu0 0.0
    %3156 = vmatpush1.msra.mxu0 0.0
    %3157 = vmatprep.subr.mxu0 0.0
    %3158 = vmatpush1.msra.mxu0 0.0
    %3159 = vmatprep.subr.mxu0 0.0
    %3160 = vmatpush1.msra.mxu0 0.0
    %3161 = vmatprep.subr.mxu0 0.0
    %3162 = vmatpush1.msra.mxu0 0.0
    %3163 = vmatprep.subr.mxu0 0.0
    %3164 = vmatpush1.msra.mxu0 0.0
    %3165 = vmatprep.subr.mxu0 0.0
    %3166 = vmatpush1.msra.mxu0 0.0
    %3167 = vmatprep.subr.mxu0 0.0
    %3168 = vmatpush1.msra.mxu0 0.0
    %3169 = vmatprep.subr.mxu0 0.0
    %3170 = vmatpush1.msra.mxu0 0.0
    %3171 = vmatprep.subr.mxu0 0.0
    %3172 = vmatpush1.msra.mxu0 0.0
    %3173 = vmatprep.mubr.f32.mxu0 0.0
    %3174 = vmatmul.mubr.f32.gmra.mrb[0].mxu0 %v2963
    %v3175 = vpop.f32.mrb[0].mxu0
    %v3176 = vadd.f32 0.0, %v3175
    %v3177 = vpop.f32.mrb[0].mxu0
    %3178 = vdwg.mxu0
    %v3179 = vadd.f32 %v3108, %v3176
    %v3180 = vld [vmem:[%s751 + $0x8] sm:$0x3]
    %3181 = vmatprep.subr.mxu0 0.0
    %3182 = vmatpush1.msra.mxu0 %v774
    %3183 = vmatprep.subr.mxu0 0.0
    %3184 = vmatpush1.msra.mxu0 %v775
    %3185 = vmatprep.subr.mxu0 0.0
    %3186 = vmatpush1.msra.mxu0 0.0
    %3187 = vmatprep.subr.mxu0 0.0
    %3188 = vmatpush1.msra.mxu0 0.0
    %3189 = vmatprep.subr.mxu0 0.0
    %3190 = vmatpush1.msra.mxu0 0.0
    %3191 = vmatprep.subr.mxu0 0.0
    %3192 = vmatpush1.msra.mxu0 0.0
    %3193 = vmatprep.subr.mxu0 0.0
    %3194 = vmatpush1.msra.mxu0 0.0
    %3195 = vmatprep.subr.mxu0 0.0
    %3196 = vmatpush1.msra.mxu0 0.0
    %3197 = vmatprep.subr.mxu0 0.0
    %3198 = vmatpush1.msra.mxu0 0.0
    %3199 = vmatprep.subr.mxu0 0.0
    %3200 = vmatpush1.msra.mxu0 0.0
    %3201 = vmatprep.subr.mxu0 0.0
    %3202 = vmatpush1.msra.mxu0 0.0
    %3203 = vmatprep.subr.mxu0 0.0
    %3204 = vmatpush1.msra.mxu0 0.0
    %3205 = vmatprep.subr.mxu0 0.0
    %3206 = vmatpush1.msra.mxu0 0.0
    %3207 = vmatprep.subr.mxu0 0.0
    %3208 = vmatpush1.msra.mxu0 0.0
    %3209 = vmatprep.subr.mxu0 0.0
    %3210 = vmatpush1.msra.mxu0 0.0
    %3211 = vmatprep.subr.mxu0 0.0
    %3212 = vmatpush1.msra.mxu0 0.0
    %3213 = vmatprep.subr.mxu0 0.0
    %3214 = vmatpush1.msra.mxu0 0.0
    %3215 = vmatprep.subr.mxu0 0.0
    %3216 = vmatpush1.msra.mxu0 0.0
    %3217 = vmatprep.subr.mxu0 0.0
    %3218 = vmatpush1.msra.mxu0 0.0
    %3219 = vmatprep.subr.mxu0 0.0
    %3220 = vmatpush1.msra.mxu0 0.0
    %3221 = vmatprep.subr.mxu0 0.0
    %3222 = vmatpush1.msra.mxu0 0.0
    %3223 = vmatprep.subr.mxu0 0.0
    %3224 = vmatpush1.msra.mxu0 0.0
    %3225 = vmatprep.subr.mxu0 0.0
    %3226 = vmatpush1.msra.mxu0 0.0
    %3227 = vmatprep.subr.mxu0 0.0
    %3228 = vmatpush1.msra.mxu0 0.0
    %3229 = vmatprep.subr.mxu0 0.0
    %3230 = vmatpush1.msra.mxu0 0.0
    %3231 = vmatprep.subr.mxu0 0.0
    %3232 = vmatpush1.msra.mxu0 0.0
    %3233 = vmatprep.subr.mxu0 0.0
    %3234 = vmatpush1.msra.mxu0 0.0
    %3235 = vmatprep.subr.mxu0 0.0
    %3236 = vmatpush1.msra.mxu0 0.0
    %3237 = vmatprep.subr.mxu0 0.0
    %3238 = vmatpush1.msra.mxu0 0.0
    %3239 = vmatprep.subr.mxu0 0.0
    %3240 = vmatpush1.msra.mxu0 0.0
    %3241 = vmatprep.subr.mxu0 0.0
    %3242 = vmatpush1.msra.mxu0 0.0
    %3243 = vmatprep.subr.mxu0 0.0
    %3244 = vmatpush1.msra.mxu0 0.0
    %3245 = vmatprep.mubr.f32.mxu0 0.0
    %3246 = vmatmul.mubr.f32.gmra.mrb[0].mxu0 %v2963
    %v3247 = vpop.f32.mrb[0].mxu0
    %v3248 = vadd.f32 0.0, %v3247
    %v3249 = vpop.f32.mrb[0].mxu0
    %3250 = vdwg.mxu0
    %v3251 = vadd.f32 %v3180, %v3248
    %v3252 = vxor.u32 %v2816, 2147483648
    %v3253 = vmul.f32 %v3252, 1.442695
    %v3254 = vpow.pop %v3253
    %v3255 = vadd.f32 %v3254, 1.0
    %v3256 = vrcp.pop %v3255
    %v3257 = vmul.f32 1.0, %v3256
    %v3258 = vmul.f32 %v3257, %v2635
    %v3259 = vxor.u32 %v2744, 2147483648
    %v3260 = vmul.f32 %v3259, 1.442695
    %v3261 = vpow.pop %v3260
    %v3262 = vadd.f32 %v3261, 1.0
    %v3263 = vrcp.pop %v3262
    %v3264 = vmul.f32 1.0, %v3263
    %v3265 = vtanh.pop %v2888
    %v3266 = vmul.f32 %v3264, %v3265
    %v3267 = vadd.f32 %v3258, %v3266
    %v3268 = vxor.u32 %v2960, 2147483648
    %v3269 = vmul.f32 %v3268, 1.442695
    %v3270 = vpow.pop %v3269
    %v3271 = vadd.f32 %v3270, 1.0
    %v3272 = vrcp.pop %v3271
    %v3273 = vmul.f32 1.0, %v3272
    %v3274 = vtanh.pop %v3267
    %v3275 = vmul.f32 %v3273, %v3274
    %v3276 = vxor.u32 %v3107, 2147483648
    %v3277 = vmul.f32 %v3276, 1.442695
    %v3278 = vpow.pop %v3277
    %v3279 = vadd.f32 %v3278, 1.0
    %v3280 = vrcp.pop %v3279
    %v3281 = vmul.f32 1.0, %v3280
    %v3282 = vmul.f32 %v3281, %v2659
    %v3283 = vxor.u32 %v3035, 2147483648
    %v3284 = vmul.f32 %v3283, 1.442695
    %v3285 = vpow.pop %v3284
    %v3286 = vadd.f32 %v3285, 1.0
    %v3287 = vrcp.pop %v3286
    %v3288 = vmul.f32 1.0, %v3287
    %v3289 = vtanh.pop %v3179
    %v3290 = vmul.f32 %v3288, %v3289
    %v3291 = vadd.f32 %v3282, %v3290
    %v3292 = vxor.u32 %v3251, 2147483648
    %v3293 = vmul.f32 %v3292, 1.442695
    %v3294 = vpow.pop %v3293
    %v3295 = vadd.f32 %v3294, 1.0
    %v3296 = vrcp.pop %v3295
    %v3297 = vmul.f32 1.0, %v3296
    %v3298 = vtanh.pop %v3291
    %v3299 = vmul.f32 %v3297, %v3298
    %3300 = vst.msk [vmem:[#allocation4 + $0x6] sm:$0x3] %vm1403, %v3275
    %3301 = vst.msk [vmem:[#allocation5 + $0x8] sm:$0x3] %vm1403, %v3299
    %v3302 = vld [vmem:[#allocation2 + $0x8] sm:$0x3]
    %v3304 = vsel %vm63, %v3275, 0
    %3306 = vmatprep.subr.mxu0 0.0
    %3307 = vmatpush1.msra.mxu0 %v754
    %3308 = vmatprep.subr.mxu0 0.0
    %3309 = vmatpush1.msra.mxu0 %v755
    %3310 = vmatprep.subr.mxu0 0.0
    %3311 = vmatpush1.msra.mxu0 0.0
    %3312 = vmatprep.subr.mxu0 0.0
    %3313 = vmatpush1.msra.mxu0 0.0
    %3314 = vmatprep.subr.mxu0 0.0
    %3315 = vmatpush1.msra.mxu0 0.0
    %3316 = vmatprep.subr.mxu0 0.0
    %3317 = vmatpush1.msra.mxu0 0.0
    %3318 = vmatprep.subr.mxu0 0.0
    %3319 = vmatpush1.msra.mxu0 0.0
    %3320 = vmatprep.subr.mxu0 0.0
    %3321 = vmatpush1.msra.mxu0 0.0
    %3322 = vmatprep.subr.mxu0 0.0
    %3323 = vmatpush1.msra.mxu0 0.0
    %3324 = vmatprep.subr.mxu0 0.0
    %3325 = vmatpush1.msra.mxu0 0.0
    %3326 = vmatprep.subr.mxu0 0.0
    %3327 = vmatpush1.msra.mxu0 0.0
    %3328 = vmatprep.subr.mxu0 0.0
    %3329 = vmatpush1.msra.mxu0 0.0
    %3330 = vmatprep.subr.mxu0 0.0
    %3331 = vmatpush1.msra.mxu0 0.0
    %3332 = vmatprep.subr.mxu0 0.0
    %3333 = vmatpush1.msra.mxu0 0.0
    %3334 = vmatprep.subr.mxu0 0.0
    %3335 = vmatpush1.msra.mxu0 0.0
    %3336 = vmatprep.subr.mxu0 0.0
    %3337 = vmatpush1.msra.mxu0 0.0
    %3338 = vmatprep.subr.mxu0 0.0
    %3339 = vmatpush1.msra.mxu0 0.0
    %3340 = vmatprep.subr.mxu0 0.0
    %3341 = vmatpush1.msra.mxu0 0.0
    %3342 = vmatprep.subr.mxu0 0.0
    %3343 = vmatpush1.msra.mxu0 0.0
    %3344 = vmatprep.subr.mxu0 0.0
    %3345 = vmatpush1.msra.mxu0 0.0
    %3346 = vmatprep.subr.mxu0 0.0
    %3347 = vmatpush1.msra.mxu0 0.0
    %3348 = vmatprep.subr.mxu0 0.0
    %3349 = vmatpush1.msra.mxu0 0.0
    %3350 = vmatprep.subr.mxu0 0.0
    %3351 = vmatpush1.msra.mxu0 0.0
    %3352 = vmatprep.subr.mxu0 0.0
    %3353 = vmatpush1.msra.mxu0 0.0
    %3354 = vmatprep.subr.mxu0 0.0
    %3355 = vmatpush1.msra.mxu0 0.0
    %3356 = vmatprep.subr.mxu0 0.0
    %3357 = vmatpush1.msra.mxu0 0.0
    %3358 = vmatprep.subr.mxu0 0.0
    %3359 = vmatpush1.msra.mxu0 0.0
    %3360 = vmatprep.subr.mxu0 0.0
    %3361 = vmatpush1.msra.mxu0 0.0
    %3362 = vmatprep.subr.mxu0 0.0
    %3363 = vmatpush1.msra.mxu0 0.0
    %3364 = vmatprep.subr.mxu0 0.0
    %3365 = vmatpush1.msra.mxu0 0.0
    %3366 = vmatprep.subr.mxu0 0.0
    %3367 = vmatpush1.msra.mxu0 0.0
    %3368 = vmatprep.subr.mxu0 0.0
    %3369 = vmatpush1.msra.mxu0 0.0
    %3370 = vmatprep.mubr.f32.mxu0 0.0
    %3371 = vmatmul.mubr.f32.gmra.mrb[0].mxu0 %v3304
    %v3372 = vpop.f32.mrb[0].mxu0
    %v3373 = vadd.f32 0.0, %v3372
    %v3374 = vpop.f32.mrb[0].mxu0
    %3375 = vdwg.mxu0
    %v3376 = vadd.f32 %v3302, %v3373
    %v3377 = vld [vmem:[%s316 + $0x8] sm:$0x3]
    %3378 = vmatprep.subr.mxu0 0.0
    %3379 = vmatpush1.msra.mxu0 %v757
    %3380 = vmatprep.subr.mxu0 0.0
    %3381 = vmatpush1.msra.mxu0 %v758
    %3382 = vmatprep.subr.mxu0 0.0
    %3383 = vmatpush1.msra.mxu0 0.0
    %3384 = vmatprep.subr.mxu0 0.0
    %3385 = vmatpush1.msra.mxu0 0.0
    %3386 = vmatprep.subr.mxu0 0.0
    %3387 = vmatpush1.msra.mxu0 0.0
    %3388 = vmatprep.subr.mxu0 0.0
    %3389 = vmatpush1.msra.mxu0 0.0
    %3390 = vmatprep.subr.mxu0 0.0
    %3391 = vmatpush1.msra.mxu0 0.0
    %3392 = vmatprep.subr.mxu0 0.0
    %3393 = vmatpush1.msra.mxu0 0.0
    %3394 = vmatprep.subr.mxu0 0.0
    %3395 = vmatpush1.msra.mxu0 0.0
    %3396 = vmatprep.subr.mxu0 0.0
    %3397 = vmatpush1.msra.mxu0 0.0
    %3398 = vmatprep.subr.mxu0 0.0
    %3399 = vmatpush1.msra.mxu0 0.0
    %3400 = vmatprep.subr.mxu0 0.0
    %3401 = vmatpush1.msra.mxu0 0.0
    %3402 = vmatprep.subr.mxu0 0.0
    %3403 = vmatpush1.msra.mxu0 0.0
    %3404 = vmatprep.subr.mxu0 0.0
    %3405 = vmatpush1.msra.mxu0 0.0
    %3406 = vmatprep.subr.mxu0 0.0
    %3407 = vmatpush1.msra.mxu0 0.0
    %3408 = vmatprep.subr.mxu0 0.0
    %3409 = vmatpush1.msra.mxu0 0.0
    %3410 = vmatprep.subr.mxu0 0.0
    %3411 = vmatpush1.msra.mxu0 0.0
    %3412 = vmatprep.subr.mxu0 0.0
    %3413 = vmatpush1.msra.mxu0 0.0
    %3414 = vmatprep.subr.mxu0 0.0
    %3415 = vmatpush1.msra.mxu0 0.0
    %3416 = vmatprep.subr.mxu0 0.0
    %3417 = vmatpush1.msra.mxu0 0.0
    %3418 = vmatprep.subr.mxu0 0.0
    %3419 = vmatpush1.msra.mxu0 0.0
    %3420 = vmatprep.subr.mxu0 0.0
    %3421 = vmatpush1.msra.mxu0 0.0
    %3422 = vmatprep.subr.mxu0 0.0
    %3423 = vmatpush1.msra.mxu0 0.0
    %3424 = vmatprep.subr.mxu0 0.0
    %3425 = vmatpush1.msra.mxu0 0.0
    %3426 = vmatprep.subr.mxu0 0.0
    %3427 = vmatpush1.msra.mxu0 0.0
    %3428 = vmatprep.subr.mxu0 0.0
    %3429 = vmatpush1.msra.mxu0 0.0
    %3430 = vmatprep.subr.mxu0 0.0
    %3431 = vmatpush1.msra.mxu0 0.0
    %3432 = vmatprep.subr.mxu0 0.0
    %3433 = vmatpush1.msra.mxu0 0.0
    %3434 = vmatprep.subr.mxu0 0.0
    %3435 = vmatpush1.msra.mxu0 0.0
    %3436 = vmatprep.subr.mxu0 0.0
    %3437 = vmatpush1.msra.mxu0 0.0
    %3438 = vmatprep.subr.mxu0 0.0
    %3439 = vmatpush1.msra.mxu0 0.0
    %3440 = vmatprep.subr.mxu0 0.0
    %3441 = vmatpush1.msra.mxu0 0.0
    %3442 = vmatprep.mubr.f32.mxu0 0.0
    %3443 = vmatmul.mubr.f32.gmra.mrb[0].mxu0 %v3304
    %v3444 = vpop.f32.mrb[0].mxu0
    %v3445 = vadd.f32 0.0, %v3444
    %v3446 = vpop.f32.mrb[0].mxu0
    %3447 = vdwg.mxu0
    %v3448 = vadd.f32 %v3377, %v3445
    %v3449 = vld [vmem:[%s490 + $0x8] sm:$0x3]
    %3450 = vmatprep.subr.mxu0 0.0
    %3451 = vmatpush1.msra.mxu0 %v760
    %3452 = vmatprep.subr.mxu0 0.0
    %3453 = vmatpush1.msra.mxu0 %v761
    %3454 = vmatprep.subr.mxu0 0.0
    %3455 = vmatpush1.msra.mxu0 0.0
    %3456 = vmatprep.subr.mxu0 0.0
    %3457 = vmatpush1.msra.mxu0 0.0
    %3458 = vmatprep.subr.mxu0 0.0
    %3459 = vmatpush1.msra.mxu0 0.0
    %3460 = vmatprep.subr.mxu0 0.0
    %3461 = vmatpush1.msra.mxu0 0.0
    %3462 = vmatprep.subr.mxu0 0.0
    %3463 = vmatpush1.msra.mxu0 0.0
    %3464 = vmatprep.subr.mxu0 0.0
    %3465 = vmatpush1.msra.mxu0 0.0
    %3466 = vmatprep.subr.mxu0 0.0
    %3467 = vmatpush1.msra.mxu0 0.0
    %3468 = vmatprep.subr.mxu0 0.0
    %3469 = vmatpush1.msra.mxu0 0.0
    %3470 = vmatprep.subr.mxu0 0.0
    %3471 = vmatpush1.msra.mxu0 0.0
    %3472 = vmatprep.subr.mxu0 0.0
    %3473 = vmatpush1.msra.mxu0 0.0
    %3474 = vmatprep.subr.mxu0 0.0
    %3475 = vmatpush1.msra.mxu0 0.0
    %3476 = vmatprep.subr.mxu0 0.0
    %3477 = vmatpush1.msra.mxu0 0.0
    %3478 = vmatprep.subr.mxu0 0.0
    %3479 = vmatpush1.msra.mxu0 0.0
    %3480 = vmatprep.subr.mxu0 0.0
    %3481 = vmatpush1.msra.mxu0 0.0
    %3482 = vmatprep.subr.mxu0 0.0
    %3483 = vmatpush1.msra.mxu0 0.0
    %3484 = vmatprep.subr.mxu0 0.0
    %3485 = vmatpush1.msra.mxu0 0.0
    %3486 = vmatprep.subr.mxu0 0.0
    %3487 = vmatpush1.msra.mxu0 0.0
    %3488 = vmatprep.subr.mxu0 0.0
    %3489 = vmatpush1.msra.mxu0 0.0
    %3490 = vmatprep.subr.mxu0 0.0
    %3491 = vmatpush1.msra.mxu0 0.0
    %3492 = vmatprep.subr.mxu0 0.0
    %3493 = vmatpush1.msra.mxu0 0.0
    %3494 = vmatprep.subr.mxu0 0.0
    %3495 = vmatpush1.msra.mxu0 0.0
    %3496 = vmatprep.subr.mxu0 0.0
    %3497 = vmatpush1.msra.mxu0 0.0
    %3498 = vmatprep.subr.mxu0 0.0
    %3499 = vmatpush1.msra.mxu0 0.0
    %3500 = vmatprep.subr.mxu0 0.0
    %3501 = vmatpush1.msra.mxu0 0.0
    %3502 = vmatprep.subr.mxu0 0.0
    %3503 = vmatpush1.msra.mxu0 0.0
    %3504 = vmatprep.subr.mxu0 0.0
    %3505 = vmatpush1.msra.mxu0 0.0
    %3506 = vmatprep.subr.mxu0 0.0
    %3507 = vmatpush1.msra.mxu0 0.0
    %3508 = vmatprep.subr.mxu0 0.0
    %3509 = vmatpush1.msra.mxu0 0.0
    %3510 = vmatprep.subr.mxu0 0.0
    %3511 = vmatpush1.msra.mxu0 0.0
    %3512 = vmatprep.subr.mxu0 0.0
    %3513 = vmatpush1.msra.mxu0 0.0
    %3514 = vmatprep.mubr.f32.mxu0 0.0
    %3515 = vmatmul.mubr.f32.gmra.mrb[0].mxu0 %v3304
    %v3516 = vpop.f32.mrb[0].mxu0
    %v3517 = vadd.f32 0.0, %v3516
    %v3518 = vpop.f32.mrb[0].mxu0
    %3519 = vdwg.mxu0
    %v3520 = vadd.f32 %v3449, %v3517
    %v3521 = vld [vmem:[%s664 + $0x8] sm:$0x3]
    %3522 = vmatprep.subr.mxu0 0.0
    %3523 = vmatpush1.msra.mxu0 %v763
    %3524 = vmatprep.subr.mxu0 0.0
    %3525 = vmatpush1.msra.mxu0 %v764
    %3526 = vmatprep.subr.mxu0 0.0
    %3527 = vmatpush1.msra.mxu0 0.0
    %3528 = vmatprep.subr.mxu0 0.0
    %3529 = vmatpush1.msra.mxu0 0.0
    %3530 = vmatprep.subr.mxu0 0.0
    %3531 = vmatpush1.msra.mxu0 0.0
    %3532 = vmatprep.subr.mxu0 0.0
    %3533 = vmatpush1.msra.mxu0 0.0
    %3534 = vmatprep.subr.mxu0 0.0
    %3535 = vmatpush1.msra.mxu0 0.0
    %3536 = vmatprep.subr.mxu0 0.0
    %3537 = vmatpush1.msra.mxu0 0.0
    %3538 = vmatprep.subr.mxu0 0.0
    %3539 = vmatpush1.msra.mxu0 0.0
    %3540 = vmatprep.subr.mxu0 0.0
    %3541 = vmatpush1.msra.mxu0 0.0
    %3542 = vmatprep.subr.mxu0 0.0
    %3543 = vmatpush1.msra.mxu0 0.0
    %3544 = vmatprep.subr.mxu0 0.0
    %3545 = vmatpush1.msra.mxu0 0.0
    %3546 = vmatprep.subr.mxu0 0.0
    %3547 = vmatpush1.msra.mxu0 0.0
    %3548 = vmatprep.subr.mxu0 0.0
    %3549 = vmatpush1.msra.mxu0 0.0
    %3550 = vmatprep.subr.mxu0 0.0
    %3551 = vmatpush1.msra.mxu0 0.0
    %3552 = vmatprep.subr.mxu0 0.0
    %3553 = vmatpush1.msra.mxu0 0.0
    %3554 = vmatprep.subr.mxu0 0.0
    %3555 = vmatpush1.msra.mxu0 0.0
    %3556 = vmatprep.subr.mxu0 0.0
    %3557 = vmatpush1.msra.mxu0 0.0
    %3558 = vmatprep.subr.mxu0 0.0
    %3559 = vmatpush1.msra.mxu0 0.0
    %3560 = vmatprep.subr.mxu0 0.0
    %3561 = vmatpush1.msra.mxu0 0.0
    %3562 = vmatprep.subr.mxu0 0.0
    %3563 = vmatpush1.msra.mxu0 0.0
    %3564 = vmatprep.subr.mxu0 0.0
    %3565 = vmatpush1.msra.mxu0 0.0
    %3566 = vmatprep.subr.mxu0 0.0
    %3567 = vmatpush1.msra.mxu0 0.0
    %3568 = vmatprep.subr.mxu0 0.0
    %3569 = vmatpush1.msra.mxu0 0.0
    %3570 = vmatprep.subr.mxu0 0.0
    %3571 = vmatpush1.msra.mxu0 0.0
    %3572 = vmatprep.subr.mxu0 0.0
    %3573 = vmatpush1.msra.mxu0 0.0
    %3574 = vmatprep.subr.mxu0 0.0
    %3575 = vmatpush1.msra.mxu0 0.0
    %3576 = vmatprep.subr.mxu0 0.0
    %3577 = vmatpush1.msra.mxu0 0.0
    %3578 = vmatprep.subr.mxu0 0.0
    %3579 = vmatpush1.msra.mxu0 0.0
    %3580 = vmatprep.subr.mxu0 0.0
    %3581 = vmatpush1.msra.mxu0 0.0
    %3582 = vmatprep.subr.mxu0 0.0
    %3583 = vmatpush1.msra.mxu0 0.0
    %3584 = vmatprep.subr.mxu0 0.0
    %3585 = vmatpush1.msra.mxu0 0.0
    %3586 = vmatprep.mubr.f32.mxu0 0.0
    %3587 = vmatmul.mubr.f32.gmra.mrb[0].mxu0 %v3304
    %v3588 = vpop.f32.mrb[0].mxu0
    %v3589 = vadd.f32 0.0, %v3588
    %v3590 = vpop.f32.mrb[0].mxu0
    %3591 = vdwg.mxu0
    %v3592 = vadd.f32 %v3521, %v3589
    %v3593 = vld [vmem:[#allocation3 + $0x6] sm:$0x3]
    %v3595 = vsel %vm63, %v3299, 0
    %3597 = vmatprep.subr.mxu0 0.0
    %3598 = vmatpush1.msra.mxu0 %v765
    %3599 = vmatprep.subr.mxu0 0.0
    %3600 = vmatpush1.msra.mxu0 %v766
    %3601 = vmatprep.subr.mxu0 0.0
    %3602 = vmatpush1.msra.mxu0 0.0
    %3603 = vmatprep.subr.mxu0 0.0
    %3604 = vmatpush1.msra.mxu0 0.0
    %3605 = vmatprep.subr.mxu0 0.0
    %3606 = vmatpush1.msra.mxu0 0.0
    %3607 = vmatprep.subr.mxu0 0.0
    %3608 = vmatpush1.msra.mxu0 0.0
    %3609 = vmatprep.subr.mxu0 0.0
    %3610 = vmatpush1.msra.mxu0 0.0
    %3611 = vmatprep.subr.mxu0 0.0
    %3612 = vmatpush1.msra.mxu0 0.0
    %3613 = vmatprep.subr.mxu0 0.0
    %3614 = vmatpush1.msra.mxu0 0.0
    %3615 = vmatprep.subr.mxu0 0.0
    %3616 = vmatpush1.msra.mxu0 0.0
    %3617 = vmatprep.subr.mxu0 0.0
    %3618 = vmatpush1.msra.mxu0 0.0
    %3619 = vmatprep.subr.mxu0 0.0
    %3620 = vmatpush1.msra.mxu0 0.0
    %3621 = vmatprep.subr.mxu0 0.0
    %3622 = vmatpush1.msra.mxu0 0.0
    %3623 = vmatprep.subr.mxu0 0.0
    %3624 = vmatpush1.msra.mxu0 0.0
    %3625 = vmatprep.subr.mxu0 0.0
    %3626 = vmatpush1.msra.mxu0 0.0
    %3627 = vmatprep.subr.mxu0 0.0
    %3628 = vmatpush1.msra.mxu0 0.0
    %3629 = vmatprep.subr.mxu0 0.0
    %3630 = vmatpush1.msra.mxu0 0.0
    %3631 = vmatprep.subr.mxu0 0.0
    %3632 = vmatpush1.msra.mxu0 0.0
    %3633 = vmatprep.subr.mxu0 0.0
    %3634 = vmatpush1.msra.mxu0 0.0
    %3635 = vmatprep.subr.mxu0 0.0
    %3636 = vmatpush1.msra.mxu0 0.0
    %3637 = vmatprep.subr.mxu0 0.0
    %3638 = vmatpush1.msra.mxu0 0.0
    %3639 = vmatprep.subr.mxu0 0.0
    %3640 = vmatpush1.msra.mxu0 0.0
    %3641 = vmatprep.subr.mxu0 0.0
    %3642 = vmatpush1.msra.mxu0 0.0
    %3643 = vmatprep.subr.mxu0 0.0
    %3644 = vmatpush1.msra.mxu0 0.0
    %3645 = vmatprep.subr.mxu0 0.0
    %3646 = vmatpush1.msra.mxu0 0.0
    %3647 = vmatprep.subr.mxu0 0.0
    %3648 = vmatpush1.msra.mxu0 0.0
    %3649 = vmatprep.subr.mxu0 0.0
    %3650 = vmatpush1.msra.mxu0 0.0
    %3651 = vmatprep.subr.mxu0 0.0
    %3652 = vmatpush1.msra.mxu0 0.0
    %3653 = vmatprep.subr.mxu0 0.0
    %3654 = vmatpush1.msra.mxu0 0.0
    %3655 = vmatprep.subr.mxu0 0.0
    %3656 = vmatpush1.msra.mxu0 0.0
    %3657 = vmatprep.subr.mxu0 0.0
    %3658 = vmatpush1.msra.mxu0 0.0
    %3659 = vmatprep.subr.mxu0 0.0
    %3660 = vmatpush1.msra.mxu0 0.0
    %3661 = vmatprep.mubr.f32.mxu0 0.0
    %3662 = vmatmul.mubr.f32.gmra.mrb[0].mxu0 %v3595
    %v3663 = vpop.f32.mrb[0].mxu0
    %v3664 = vadd.f32 0.0, %v3663
    %v3665 = vpop.f32.mrb[0].mxu0
    %3666 = vdwg.mxu0
    %v3667 = vadd.f32 %v3593, %v3664
    %v3668 = vld [vmem:[%s403 + $0x6] sm:$0x3]
    %3669 = vmatprep.subr.mxu0 0.0
    %3670 = vmatpush1.msra.mxu0 %v768
    %3671 = vmatprep.subr.mxu0 0.0
    %3672 = vmatpush1.msra.mxu0 %v769
    %3673 = vmatprep.subr.mxu0 0.0
    %3674 = vmatpush1.msra.mxu0 0.0
    %3675 = vmatprep.subr.mxu0 0.0
    %3676 = vmatpush1.msra.mxu0 0.0
    %3677 = vmatprep.subr.mxu0 0.0
    %3678 = vmatpush1.msra.mxu0 0.0
    %3679 = vmatprep.subr.mxu0 0.0
    %3680 = vmatpush1.msra.mxu0 0.0
    %3681 = vmatprep.subr.mxu0 0.0
    %3682 = vmatpush1.msra.mxu0 0.0
    %3683 = vmatprep.subr.mxu0 0.0
    %3684 = vmatpush1.msra.mxu0 0.0
    %3685 = vmatprep.subr.mxu0 0.0
    %3686 = vmatpush1.msra.mxu0 0.0
    %3687 = vmatprep.subr.mxu0 0.0
    %3688 = vmatpush1.msra.mxu0 0.0
    %3689 = vmatprep.subr.mxu0 0.0
    %3690 = vmatpush1.msra.mxu0 0.0
    %3691 = vmatprep.subr.mxu0 0.0
    %3692 = vmatpush1.msra.mxu0 0.0
    %3693 = vmatprep.subr.mxu0 0.0
    %3694 = vmatpush1.msra.mxu0 0.0
    %3695 = vmatprep.subr.mxu0 0.0
    %3696 = vmatpush1.msra.mxu0 0.0
    %3697 = vmatprep.subr.mxu0 0.0
    %3698 = vmatpush1.msra.mxu0 0.0
    %3699 = vmatprep.subr.mxu0 0.0
    %3700 = vmatpush1.msra.mxu0 0.0
    %3701 = vmatprep.subr.mxu0 0.0
    %3702 = vmatpush1.msra.mxu0 0.0
    %3703 = vmatprep.subr.mxu0 0.0
    %3704 = vmatpush1.msra.mxu0 0.0
    %3705 = vmatprep.subr.mxu0 0.0
    %3706 = vmatpush1.msra.mxu0 0.0
    %3707 = vmatprep.subr.mxu0 0.0
    %3708 = vmatpush1.msra.mxu0 0.0
    %3709 = vmatprep.subr.mxu0 0.0
    %3710 = vmatpush1.msra.mxu0 0.0
    %3711 = vmatprep.subr.mxu0 0.0
    %3712 = vmatpush1.msra.mxu0 0.0
    %3713 = vmatprep.subr.mxu0 0.0
    %3714 = vmatpush1.msra.mxu0 0.0
    %3715 = vmatprep.subr.mxu0 0.0
    %3716 = vmatpush1.msra.mxu0 0.0
    %3717 = vmatprep.subr.mxu0 0.0
    %3718 = vmatpush1.msra.mxu0 0.0
    %3719 = vmatprep.subr.mxu0 0.0
    %3720 = vmatpush1.msra.mxu0 0.0
    %3721 = vmatprep.subr.mxu0 0.0
    %3722 = vmatpush1.msra.mxu0 0.0
    %3723 = vmatprep.subr.mxu0 0.0
    %3724 = vmatpush1.msra.mxu0 0.0
    %3725 = vmatprep.subr.mxu0 0.0
    %3726 = vmatpush1.msra.mxu0 0.0
    %3727 = vmatprep.subr.mxu0 0.0
    %3728 = vmatpush1.msra.mxu0 0.0
    %3729 = vmatprep.subr.mxu0 0.0
    %3730 = vmatpush1.msra.mxu0 0.0
    %3731 = vmatprep.subr.mxu0 0.0
    %3732 = vmatpush1.msra.mxu0 0.0
    %3733 = vmatprep.mubr.f32.mxu0 0.0
    %3734 = vmatmul.mubr.f32.gmra.mrb[0].mxu0 %v3595
    %v3735 = vpop.f32.mrb[0].mxu0
    %v3736 = vadd.f32 0.0, %v3735
    %v3737 = vpop.f32.mrb[0].mxu0
    %3738 = vdwg.mxu0
    %v3739 = vadd.f32 %v3668, %v3736
    %v3740 = vld [vmem:[%s577 + $0x6] sm:$0x3]
    %3741 = vmatprep.subr.mxu0 0.0
    %3742 = vmatpush1.msra.mxu0 %v771
    %3743 = vmatprep.subr.mxu0 0.0
    %3744 = vmatpush1.msra.mxu0 %v772
    %3745 = vmatprep.subr.mxu0 0.0
    %3746 = vmatpush1.msra.mxu0 0.0
    %3747 = vmatprep.subr.mxu0 0.0
    %3748 = vmatpush1.msra.mxu0 0.0
    %3749 = vmatprep.subr.mxu0 0.0
    %3750 = vmatpush1.msra.mxu0 0.0
    %3751 = vmatprep.subr.mxu0 0.0
    %3752 = vmatpush1.msra.mxu0 0.0
    %3753 = vmatprep.subr.mxu0 0.0
    %3754 = vmatpush1.msra.mxu0 0.0
    %3755 = vmatprep.subr.mxu0 0.0
    %3756 = vmatpush1.msra.mxu0 0.0
    %3757 = vmatprep.subr.mxu0 0.0
    %3758 = vmatpush1.msra.mxu0 0.0
    %3759 = vmatprep.subr.mxu0 0.0
    %3760 = vmatpush1.msra.mxu0 0.0
    %3761 = vmatprep.subr.mxu0 0.0
    %3762 = vmatpush1.msra.mxu0 0.0
    %3763 = vmatprep.subr.mxu0 0.0
    %3764 = vmatpush1.msra.mxu0 0.0
    %3765 = vmatprep.subr.mxu0 0.0
    %3766 = vmatpush1.msra.mxu0 0.0
    %3767 = vmatprep.subr.mxu0 0.0
    %3768 = vmatpush1.msra.mxu0 0.0
    %3769 = vmatprep.subr.mxu0 0.0
    %3770 = vmatpush1.msra.mxu0 0.0
    %3771 = vmatprep.subr.mxu0 0.0
    %3772 = vmatpush1.msra.mxu0 0.0
    %3773 = vmatprep.subr.mxu0 0.0
    %3774 = vmatpush1.msra.mxu0 0.0
    %3775 = vmatprep.subr.mxu0 0.0
    %3776 = vmatpush1.msra.mxu0 0.0
    %3777 = vmatprep.subr.mxu0 0.0
    %3778 = vmatpush1.msra.mxu0 0.0
    %3779 = vmatprep.subr.mxu0 0.0
    %3780 = vmatpush1.msra.mxu0 0.0
    %3781 = vmatprep.subr.mxu0 0.0
    %3782 = vmatpush1.msra.mxu0 0.0
    %3783 = vmatprep.subr.mxu0 0.0
    %3784 = vmatpush1.msra.mxu0 0.0
    %3785 = vmatprep.subr.mxu0 0.0
    %3786 = vmatpush1.msra.mxu0 0.0
    %3787 = vmatprep.subr.mxu0 0.0
    %3788 = vmatpush1.msra.mxu0 0.0
    %3789 = vmatprep.subr.mxu0 0.0
    %3790 = vmatpush1.msra.mxu0 0.0
    %3791 = vmatprep.subr.mxu0 0.0
    %3792 = vmatpush1.msra.mxu0 0.0
    %3793 = vmatprep.subr.mxu0 0.0
    %3794 = vmatpush1.msra.mxu0 0.0
    %3795 = vmatprep.subr.mxu0 0.0
    %3796 = vmatpush1.msra.mxu0 0.0
    %3797 = vmatprep.subr.mxu0 0.0
    %3798 = vmatpush1.msra.mxu0 0.0
    %3799 = vmatprep.subr.mxu0 0.0
    %3800 = vmatpush1.msra.mxu0 0.0
    %3801 = vmatprep.subr.mxu0 0.0
    %3802 = vmatpush1.msra.mxu0 0.0
    %3803 = vmatprep.subr.mxu0 0.0
    %3804 = vmatpush1.msra.mxu0 0.0
    %3805 = vmatprep.mubr.f32.mxu0 0.0
    %3806 = vmatmul.mubr.f32.gmra.mrb[0].mxu0 %v3595
    %v3807 = vpop.f32.mrb[0].mxu0
    %v3808 = vadd.f32 0.0, %v3807
    %v3809 = vpop.f32.mrb[0].mxu0
    %3810 = vdwg.mxu0
    %v3811 = vadd.f32 %v3740, %v3808
    %v3812 = vld [vmem:[%s751 + $0x6] sm:$0x3]
    %3813 = vmatprep.subr.mxu0 0.0
    %3814 = vmatpush1.msra.mxu0 %v774
    %3815 = vmatprep.subr.mxu0 0.0
    %3816 = vmatpush1.msra.mxu0 %v775
    %3817 = vmatprep.subr.mxu0 0.0
    %3818 = vmatpush1.msra.mxu0 0.0
    %3819 = vmatprep.subr.mxu0 0.0
    %3820 = vmatpush1.msra.mxu0 0.0
    %3821 = vmatprep.subr.mxu0 0.0
    %3822 = vmatpush1.msra.mxu0 0.0
    %3823 = vmatprep.subr.mxu0 0.0
    %3824 = vmatpush1.msra.mxu0 0.0
    %3825 = vmatprep.subr.mxu0 0.0
    %3826 = vmatpush1.msra.mxu0 0.0
    %3827 = vmatprep.subr.mxu0 0.0
    %3828 = vmatpush1.msra.mxu0 0.0
    %3829 = vmatprep.subr.mxu0 0.0
    %3830 = vmatpush1.msra.mxu0 0.0
    %3831 = vmatprep.subr.mxu0 0.0
    %3832 = vmatpush1.msra.mxu0 0.0
    %3833 = vmatprep.subr.mxu0 0.0
    %3834 = vmatpush1.msra.mxu0 0.0
    %3835 = vmatprep.subr.mxu0 0.0
    %3836 = vmatpush1.msra.mxu0 0.0
    %3837 = vmatprep.subr.mxu0 0.0
    %3838 = vmatpush1.msra.mxu0 0.0
    %3839 = vmatprep.subr.mxu0 0.0
    %3840 = vmatpush1.msra.mxu0 0.0
    %3841 = vmatprep.subr.mxu0 0.0
    %3842 = vmatpush1.msra.mxu0 0.0
    %3843 = vmatprep.subr.mxu0 0.0
    %3844 = vmatpush1.msra.mxu0 0.0
    %3845 = vmatprep.subr.mxu0 0.0
    %3846 = vmatpush1.msra.mxu0 0.0
    %3847 = vmatprep.subr.mxu0 0.0
    %3848 = vmatpush1.msra.mxu0 0.0
    %3849 = vmatprep.subr.mxu0 0.0
    %3850 = vmatpush1.msra.mxu0 0.0
    %3851 = vmatprep.subr.mxu0 0.0
    %3852 = vmatpush1.msra.mxu0 0.0
    %3853 = vmatprep.subr.mxu0 0.0
    %3854 = vmatpush1.msra.mxu0 0.0
    %3855 = vmatprep.subr.mxu0 0.0
    %3856 = vmatpush1.msra.mxu0 0.0
    %3857 = vmatprep.subr.mxu0 0.0
    %3858 = vmatpush1.msra.mxu0 0.0
    %3859 = vmatprep.subr.mxu0 0.0
    %3860 = vmatpush1.msra.mxu0 0.0
    %3861 = vmatprep.subr.mxu0 0.0
    %3862 = vmatpush1.msra.mxu0 0.0
    %3863 = vmatprep.subr.mxu0 0.0
    %3864 = vmatpush1.msra.mxu0 0.0
    %3865 = vmatprep.subr.mxu0 0.0
    %3866 = vmatpush1.msra.mxu0 0.0
    %3867 = vmatprep.subr.mxu0 0.0
    %3868 = vmatpush1.msra.mxu0 0.0
    %3869 = vmatprep.subr.mxu0 0.0
    %3870 = vmatpush1.msra.mxu0 0.0
    %3871 = vmatprep.subr.mxu0 0.0
    %3872 = vmatpush1.msra.mxu0 0.0
    %3873 = vmatprep.subr.mxu0 0.0
    %3874 = vmatpush1.msra.mxu0 0.0
    %3875 = vmatprep.subr.mxu0 0.0
    %3876 = vmatpush1.msra.mxu0 0.0
    %3877 = vmatprep.mubr.f32.mxu0 0.0
    %3878 = vmatmul.mubr.f32.gmra.mrb[0].mxu0 %v3595
    %v3879 = vpop.f32.mrb[0].mxu0
    %v3880 = vadd.f32 0.0, %v3879
    %v3881 = vpop.f32.mrb[0].mxu0
    %3882 = vdwg.mxu0
    %v3883 = vadd.f32 %v3812, %v3880
    %v3884 = vxor.u32 %v3448, 2147483648
    %v3885 = vmul.f32 %v3884, 1.442695
    %v3886 = vpow.pop %v3885
    %v3887 = vadd.f32 %v3886, 1.0
    %v3888 = vrcp.pop %v3887
    %v3889 = vmul.f32 1.0, %v3888
    %v3890 = vmul.f32 %v3889, %v3267
    %v3891 = vxor.u32 %v3376, 2147483648
    %v3892 = vmul.f32 %v3891, 1.442695
    %v3893 = vpow.pop %v3892
    %v3894 = vadd.f32 %v3893, 1.0
    %v3895 = vrcp.pop %v3894
    %v3896 = vmul.f32 1.0, %v3895
    %v3897 = vtanh.pop %v3520
    %v3898 = vmul.f32 %v3896, %v3897
    %v3899 = vadd.f32 %v3890, %v3898
    %v3900 = vxor.u32 %v3592, 2147483648
    %v3901 = vmul.f32 %v3900, 1.442695
    %v3902 = vpow.pop %v3901
    %v3903 = vadd.f32 %v3902, 1.0
    %v3904 = vrcp.pop %v3903
    %v3905 = vmul.f32 1.0, %v3904
    %v3906 = vtanh.pop %v3899
    %v3907 = vmul.f32 %v3905, %v3906
    %v3908 = vxor.u32 %v3739, 2147483648
    %v3909 = vmul.f32 %v3908, 1.442695
    %v3910 = vpow.pop %v3909
    %v3911 = vadd.f32 %v3910, 1.0
    %v3912 = vrcp.pop %v3911
    %v3913 = vmul.f32 1.0, %v3912
    %v3914 = vmul.f32 %v3913, %v3291
    %v3915 = vxor.u32 %v3667, 2147483648
    %v3916 = vmul.f32 %v3915, 1.442695
    %v3917 = vpow.pop %v3916
    %v3918 = vadd.f32 %v3917, 1.0
    %v3919 = vrcp.pop %v3918
    %v3920 = vmul.f32 1.0, %v3919
    %v3921 = vtanh.pop %v3811
    %v3922 = vmul.f32 %v3920, %v3921
    %v3923 = vadd.f32 %v3914, %v3922
    %v3924 = vxor.u32 %v3883, 2147483648
    %v3925 = vmul.f32 %v3924, 1.442695
    %v3926 = vpow.pop %v3925
    %v3927 = vadd.f32 %v3926, 1.0
    %v3928 = vrcp.pop %v3927
    %v3929 = vmul.f32 1.0, %v3928
    %v3930 = vtanh.pop %v3923
    %v3931 = vmul.f32 %v3929, %v3930
    %3932 = vst.msk [vmem:[#allocation4 + $0x8] sm:$0x3] %vm1403, %v3907
    %3933 = vst.msk [vmem:[#allocation5 + $0x6] sm:$0x3] %vm1403, %v3931
    %v3934 = vld [vmem:[#allocation2 + $0xa] sm:$0x3]
    %v3936 = vsel %vm63, %v3907, 0
    %3938 = vmatprep.subr.mxu0 0.0
    %3939 = vmatpush1.msra.mxu0 %v754
    %3940 = vmatprep.subr.mxu0 0.0
    %3941 = vmatpush1.msra.mxu0 %v755
    %3942 = vmatprep.subr.mxu0 0.0
    %3943 = vmatpush1.msra.mxu0 0.0
    %3944 = vmatprep.subr.mxu0 0.0
    %3945 = vmatpush1.msra.mxu0 0.0
    %3946 = vmatprep.subr.mxu0 0.0
    %3947 = vmatpush1.msra.mxu0 0.0
    %3948 = vmatprep.subr.mxu0 0.0
    %3949 = vmatpush1.msra.mxu0 0.0
    %3950 = vmatprep.subr.mxu0 0.0
    %3951 = vmatpush1.msra.mxu0 0.0
    %3952 = vmatprep.subr.mxu0 0.0
    %3953 = vmatpush1.msra.mxu0 0.0
    %3954 = vmatprep.subr.mxu0 0.0
    %3955 = vmatpush1.msra.mxu0 0.0
    %3956 = vmatprep.subr.mxu0 0.0
    %3957 = vmatpush1.msra.mxu0 0.0
    %3958 = vmatprep.subr.mxu0 0.0
    %3959 = vmatpush1.msra.mxu0 0.0
    %3960 = vmatprep.subr.mxu0 0.0
    %3961 = vmatpush1.msra.mxu0 0.0
    %3962 = vmatprep.subr.mxu0 0.0
    %3963 = vmatpush1.msra.mxu0 0.0
    %3964 = vmatprep.subr.mxu0 0.0
    %3965 = vmatpush1.msra.mxu0 0.0
    %3966 = vmatprep.subr.mxu0 0.0
    %3967 = vmatpush1.msra.mxu0 0.0
    %3968 = vmatprep.subr.mxu0 0.0
    %3969 = vmatpush1.msra.mxu0 0.0
    %3970 = vmatprep.subr.mxu0 0.0
    %3971 = vmatpush1.msra.mxu0 0.0
    %3972 = vmatprep.subr.mxu0 0.0
    %3973 = vmatpush1.msra.mxu0 0.0
    %3974 = vmatprep.subr.mxu0 0.0
    %3975 = vmatpush1.msra.mxu0 0.0
    %3976 = vmatprep.subr.mxu0 0.0
    %3977 = vmatpush1.msra.mxu0 0.0
    %3978 = vmatprep.subr.mxu0 0.0
    %3979 = vmatpush1.msra.mxu0 0.0
    %3980 = vmatprep.subr.mxu0 0.0
    %3981 = vmatpush1.msra.mxu0 0.0
    %3982 = vmatprep.subr.mxu0 0.0
    %3983 = vmatpush1.msra.mxu0 0.0
    %3984 = vmatprep.subr.mxu0 0.0
    %3985 = vmatpush1.msra.mxu0 0.0
    %3986 = vmatprep.subr.mxu0 0.0
    %3987 = vmatpush1.msra.mxu0 0.0
    %3988 = vmatprep.subr.mxu0 0.0
    %3989 = vmatpush1.msra.mxu0 0.0
    %3990 = vmatprep.subr.mxu0 0.0
    %3991 = vmatpush1.msra.mxu0 0.0
    %3992 = vmatprep.subr.mxu0 0.0
    %3993 = vmatpush1.msra.mxu0 0.0
    %3994 = vmatprep.subr.mxu0 0.0
    %3995 = vmatpush1.msra.mxu0 0.0
    %3996 = vmatprep.subr.mxu0 0.0
    %3997 = vmatpush1.msra.mxu0 0.0
    %3998 = vmatprep.subr.mxu0 0.0
    %3999 = vmatpush1.msra.mxu0 0.0
    %4000 = vmatprep.subr.mxu0 0.0
    %4001 = vmatpush1.msra.mxu0 0.0
    %4002 = vmatprep.mubr.f32.mxu0 0.0
    %4003 = vmatmul.mubr.f32.gmra.mrb[0].mxu0 %v3936
    %v4004 = vpop.f32.mrb[0].mxu0
    %v4005 = vadd.f32 0.0, %v4004
    %v4006 = vpop.f32.mrb[0].mxu0
    %4007 = vdwg.mxu0
    %v4008 = vadd.f32 %v3934, %v4005
    %v4009 = vld [vmem:[%s316 + $0xa] sm:$0x3]
    %4010 = vmatprep.subr.mxu0 0.0
    %4011 = vmatpush1.msra.mxu0 %v757
    %4012 = vmatprep.subr.mxu0 0.0
    %4013 = vmatpush1.msra.mxu0 %v758
    %4014 = vmatprep.subr.mxu0 0.0
    %4015 = vmatpush1.msra.mxu0 0.0
    %4016 = vmatprep.subr.mxu0 0.0
    %4017 = vmatpush1.msra.mxu0 0.0
    %4018 = vmatprep.subr.mxu0 0.0
    %4019 = vmatpush1.msra.mxu0 0.0
    %4020 = vmatprep.subr.mxu0 0.0
    %4021 = vmatpush1.msra.mxu0 0.0
    %4022 = vmatprep.subr.mxu0 0.0
    %4023 = vmatpush1.msra.mxu0 0.0
    %4024 = vmatprep.subr.mxu0 0.0
    %4025 = vmatpush1.msra.mxu0 0.0
    %4026 = vmatprep.subr.mxu0 0.0
    %4027 = vmatpush1.msra.mxu0 0.0
    %4028 = vmatprep.subr.mxu0 0.0
    %4029 = vmatpush1.msra.mxu0 0.0
    %4030 = vmatprep.subr.mxu0 0.0
    %4031 = vmatpush1.msra.mxu0 0.0
    %4032 = vmatprep.subr.mxu0 0.0
    %4033 = vmatpush1.msra.mxu0 0.0
    %4034 = vmatprep.subr.mxu0 0.0
    %4035 = vmatpush1.msra.mxu0 0.0
    %4036 = vmatprep.subr.mxu0 0.0
    %4037 = vmatpush1.msra.mxu0 0.0
    %4038 = vmatprep.subr.mxu0 0.0
    %4039 = vmatpush1.msra.mxu0 0.0
    %4040 = vmatprep.subr.mxu0 0.0
    %4041 = vmatpush1.msra.mxu0 0.0
    %4042 = vmatprep.subr.mxu0 0.0
    %4043 = vmatpush1.msra.mxu0 0.0
    %4044 = vmatprep.subr.mxu0 0.0
    %4045 = vmatpush1.msra.mxu0 0.0
    %4046 = vmatprep.subr.mxu0 0.0
    %4047 = vmatpush1.msra.mxu0 0.0
    %4048 = vmatprep.subr.mxu0 0.0
    %4049 = vmatpush1.msra.mxu0 0.0
    %4050 = vmatprep.subr.mxu0 0.0
    %4051 = vmatpush1.msra.mxu0 0.0
    %4052 = vmatprep.subr.mxu0 0.0
    %4053 = vmatpush1.msra.mxu0 0.0
    %4054 = vmatprep.subr.mxu0 0.0
    %4055 = vmatpush1.msra.mxu0 0.0
    %4056 = vmatprep.subr.mxu0 0.0
    %4057 = vmatpush1.msra.mxu0 0.0
    %4058 = vmatprep.subr.mxu0 0.0
    %4059 = vmatpush1.msra.mxu0 0.0
    %4060 = vmatprep.subr.mxu0 0.0
    %4061 = vmatpush1.msra.mxu0 0.0
    %4062 = vmatprep.subr.mxu0 0.0
    %4063 = vmatpush1.msra.mxu0 0.0
    %4064 = vmatprep.subr.mxu0 0.0
    %4065 = vmatpush1.msra.mxu0 0.0
    %4066 = vmatprep.subr.mxu0 0.0
    %4067 = vmatpush1.msra.mxu0 0.0
    %4068 = vmatprep.subr.mxu0 0.0
    %4069 = vmatpush1.msra.mxu0 0.0
    %4070 = vmatprep.subr.mxu0 0.0
    %4071 = vmatpush1.msra.mxu0 0.0
    %4072 = vmatprep.subr.mxu0 0.0
    %4073 = vmatpush1.msra.mxu0 0.0
    %4074 = vmatprep.mubr.f32.mxu0 0.0
    %4075 = vmatmul.mubr.f32.gmra.mrb[0].mxu0 %v3936
    %v4076 = vpop.f32.mrb[0].mxu0
    %v4077 = vadd.f32 0.0, %v4076
    %v4078 = vpop.f32.mrb[0].mxu0
    %4079 = vdwg.mxu0
    %v4080 = vadd.f32 %v4009, %v4077
    %v4081 = vld [vmem:[%s490 + $0xa] sm:$0x3]
    %4082 = vmatprep.subr.mxu0 0.0
    %4083 = vmatpush1.msra.mxu0 %v760
    %4084 = vmatprep.subr.mxu0 0.0
    %4085 = vmatpush1.msra.mxu0 %v761
    %4086 = vmatprep.subr.mxu0 0.0
    %4087 = vmatpush1.msra.mxu0 0.0
    %4088 = vmatprep.subr.mxu0 0.0
    %4089 = vmatpush1.msra.mxu0 0.0
    %4090 = vmatprep.subr.mxu0 0.0
    %4091 = vmatpush1.msra.mxu0 0.0
    %4092 = vmatprep.subr.mxu0 0.0
    %4093 = vmatpush1.msra.mxu0 0.0
    %4094 = vmatprep.subr.mxu0 0.0
    %4095 = vmatpush1.msra.mxu0 0.0
    %4096 = vmatprep.subr.mxu0 0.0
    %4097 = vmatpush1.msra.mxu0 0.0
    %4098 = vmatprep.subr.mxu0 0.0
    %4099 = vmatpush1.msra.mxu0 0.0
    %4100 = vmatprep.subr.mxu0 0.0
    %4101 = vmatpush1.msra.mxu0 0.0
    %4102 = vmatprep.subr.mxu0 0.0
    %4103 = vmatpush1.msra.mxu0 0.0
    %4104 = vmatprep.subr.mxu0 0.0
    %4105 = vmatpush1.msra.mxu0 0.0
    %4106 = vmatprep.subr.mxu0 0.0
    %4107 = vmatpush1.msra.mxu0 0.0
    %4108 = vmatprep.subr.mxu0 0.0
    %4109 = vmatpush1.msra.mxu0 0.0
    %4110 = vmatprep.subr.mxu0 0.0
    %4111 = vmatpush1.msra.mxu0 0.0
    %4112 = vmatprep.subr.mxu0 0.0
    %4113 = vmatpush1.msra.mxu0 0.0
    %4114 = vmatprep.subr.mxu0 0.0
    %4115 = vmatpush1.msra.mxu0 0.0
    %4116 = vmatprep.subr.mxu0 0.0
    %4117 = vmatpush1.msra.mxu0 0.0
    %4118 = vmatprep.subr.mxu0 0.0
    %4119 = vmatpush1.msra.mxu0 0.0
    %4120 = vmatprep.subr.mxu0 0.0
    %4121 = vmatpush1.msra.mxu0 0.0
    %4122 = vmatprep.subr.mxu0 0.0
    %4123 = vmatpush1.msra.mxu0 0.0
    %4124 = vmatprep.subr.mxu0 0.0
    %4125 = vmatpush1.msra.mxu0 0.0
    %4126 = vmatprep.subr.mxu0 0.0
    %4127 = vmatpush1.msra.mxu0 0.0
    %4128 = vmatprep.subr.mxu0 0.0
    %4129 = vmatpush1.msra.mxu0 0.0
    %4130 = vmatprep.subr.mxu0 0.0
    %4131 = vmatpush1.msra.mxu0 0.0
    %4132 = vmatprep.subr.mxu0 0.0
    %4133 = vmatpush1.msra.mxu0 0.0
    %4134 = vmatprep.subr.mxu0 0.0
    %4135 = vmatpush1.msra.mxu0 0.0
    %4136 = vmatprep.subr.mxu0 0.0
    %4137 = vmatpush1.msra.mxu0 0.0
    %4138 = vmatprep.subr.mxu0 0.0
    %4139 = vmatpush1.msra.mxu0 0.0
    %4140 = vmatprep.subr.mxu0 0.0
    %4141 = vmatpush1.msra.mxu0 0.0
    %4142 = vmatprep.subr.mxu0 0.0
    %4143 = vmatpush1.msra.mxu0 0.0
    %4144 = vmatprep.subr.mxu0 0.0
    %4145 = vmatpush1.msra.mxu0 0.0
    %4146 = vmatprep.mubr.f32.mxu0 0.0
    %4147 = vmatmul.mubr.f32.gmra.mrb[0].mxu0 %v3936
    %v4148 = vpop.f32.mrb[0].mxu0
    %v4149 = vadd.f32 0.0, %v4148
    %v4150 = vpop.f32.mrb[0].mxu0
    %4151 = vdwg.mxu0
    %v4152 = vadd.f32 %v4081, %v4149
    %v4153 = vld [vmem:[%s664 + $0xa] sm:$0x3]
    %4154 = vmatprep.subr.mxu0 0.0
    %4155 = vmatpush1.msra.mxu0 %v763
    %4156 = vmatprep.subr.mxu0 0.0
    %4157 = vmatpush1.msra.mxu0 %v764
    %4158 = vmatprep.subr.mxu0 0.0
    %4159 = vmatpush1.msra.mxu0 0.0
    %4160 = vmatprep.subr.mxu0 0.0
    %4161 = vmatpush1.msra.mxu0 0.0
    %4162 = vmatprep.subr.mxu0 0.0
    %4163 = vmatpush1.msra.mxu0 0.0
    %4164 = vmatprep.subr.mxu0 0.0
    %4165 = vmatpush1.msra.mxu0 0.0
    %4166 = vmatprep.subr.mxu0 0.0
    %4167 = vmatpush1.msra.mxu0 0.0
    %4168 = vmatprep.subr.mxu0 0.0
    %4169 = vmatpush1.msra.mxu0 0.0
    %4170 = vmatprep.subr.mxu0 0.0
    %4171 = vmatpush1.msra.mxu0 0.0
    %4172 = vmatprep.subr.mxu0 0.0
    %4173 = vmatpush1.msra.mxu0 0.0
    %4174 = vmatprep.subr.mxu0 0.0
    %4175 = vmatpush1.msra.mxu0 0.0
    %4176 = vmatprep.subr.mxu0 0.0
    %4177 = vmatpush1.msra.mxu0 0.0
    %4178 = vmatprep.subr.mxu0 0.0
    %4179 = vmatpush1.msra.mxu0 0.0
    %4180 = vmatprep.subr.mxu0 0.0
    %4181 = vmatpush1.msra.mxu0 0.0
    %4182 = vmatprep.subr.mxu0 0.0
    %4183 = vmatpush1.msra.mxu0 0.0
    %4184 = vmatprep.subr.mxu0 0.0
    %4185 = vmatpush1.msra.mxu0 0.0
    %4186 = vmatprep.subr.mxu0 0.0
    %4187 = vmatpush1.msra.mxu0 0.0
    %4188 = vmatprep.subr.mxu0 0.0
    %4189 = vmatpush1.msra.mxu0 0.0
    %4190 = vmatprep.subr.mxu0 0.0
    %4191 = vmatpush1.msra.mxu0 0.0
    %4192 = vmatprep.subr.mxu0 0.0
    %4193 = vmatpush1.msra.mxu0 0.0
    %4194 = vmatprep.subr.mxu0 0.0
    %4195 = vmatpush1.msra.mxu0 0.0
    %4196 = vmatprep.subr.mxu0 0.0
    %4197 = vmatpush1.msra.mxu0 0.0
    %4198 = vmatprep.subr.mxu0 0.0
    %4199 = vmatpush1.msra.mxu0 0.0
    %4200 = vmatprep.subr.mxu0 0.0
    %4201 = vmatpush1.msra.mxu0 0.0
    %4202 = vmatprep.subr.mxu0 0.0
    %4203 = vmatpush1.msra.mxu0 0.0
    %4204 = vmatprep.subr.mxu0 0.0
    %4205 = vmatpush1.msra.mxu0 0.0
    %4206 = vmatprep.subr.mxu0 0.0
    %4207 = vmatpush1.msra.mxu0 0.0
    %4208 = vmatprep.subr.mxu0 0.0
    %4209 = vmatpush1.msra.mxu0 0.0
    %4210 = vmatprep.subr.mxu0 0.0
    %4211 = vmatpush1.msra.mxu0 0.0
    %4212 = vmatprep.subr.mxu0 0.0
    %4213 = vmatpush1.msra.mxu0 0.0
    %4214 = vmatprep.subr.mxu0 0.0
    %4215 = vmatpush1.msra.mxu0 0.0
    %4216 = vmatprep.subr.mxu0 0.0
    %4217 = vmatpush1.msra.mxu0 0.0
    %4218 = vmatprep.mubr.f32.mxu0 0.0
    %4219 = vmatmul.mubr.f32.gmra.mrb[0].mxu0 %v3936
    %v4220 = vpop.f32.mrb[0].mxu0
    %v4221 = vadd.f32 0.0, %v4220
    %v4222 = vpop.f32.mrb[0].mxu0
    %4223 = vdwg.mxu0
    %v4224 = vadd.f32 %v4153, %v4221
    %v4225 = vld [vmem:[#allocation3 + $0x4] sm:$0x3]
    %v4227 = vsel %vm63, %v3931, 0
    %4229 = vmatprep.subr.mxu0 0.0
    %4230 = vmatpush1.msra.mxu0 %v765
    %4231 = vmatprep.subr.mxu0 0.0
    %4232 = vmatpush1.msra.mxu0 %v766
    %4233 = vmatprep.subr.mxu0 0.0
    %4234 = vmatpush1.msra.mxu0 0.0
    %4235 = vmatprep.subr.mxu0 0.0
    %4236 = vmatpush1.msra.mxu0 0.0
    %4237 = vmatprep.subr.mxu0 0.0
    %4238 = vmatpush1.msra.mxu0 0.0
    %4239 = vmatprep.subr.mxu0 0.0
    %4240 = vmatpush1.msra.mxu0 0.0
    %4241 = vmatprep.subr.mxu0 0.0
    %4242 = vmatpush1.msra.mxu0 0.0
    %4243 = vmatprep.subr.mxu0 0.0
    %4244 = vmatpush1.msra.mxu0 0.0
    %4245 = vmatprep.subr.mxu0 0.0
    %4246 = vmatpush1.msra.mxu0 0.0
    %4247 = vmatprep.subr.mxu0 0.0
    %4248 = vmatpush1.msra.mxu0 0.0
    %4249 = vmatprep.subr.mxu0 0.0
    %4250 = vmatpush1.msra.mxu0 0.0
    %4251 = vmatprep.subr.mxu0 0.0
    %4252 = vmatpush1.msra.mxu0 0.0
    %4253 = vmatprep.subr.mxu0 0.0
    %4254 = vmatpush1.msra.mxu0 0.0
    %4255 = vmatprep.subr.mxu0 0.0
    %4256 = vmatpush1.msra.mxu0 0.0
    %4257 = vmatprep.subr.mxu0 0.0
    %4258 = vmatpush1.msra.mxu0 0.0
    %4259 = vmatprep.subr.mxu0 0.0
    %4260 = vmatpush1.msra.mxu0 0.0
    %4261 = vmatprep.subr.mxu0 0.0
    %4262 = vmatpush1.msra.mxu0 0.0
    %4263 = vmatprep.subr.mxu0 0.0
    %4264 = vmatpush1.msra.mxu0 0.0
    %4265 = vmatprep.subr.mxu0 0.0
    %4266 = vmatpush1.msra.mxu0 0.0
    %4267 = vmatprep.subr.mxu0 0.0
    %4268 = vmatpush1.msra.mxu0 0.0
    %4269 = vmatprep.subr.mxu0 0.0
    %4270 = vmatpush1.msra.mxu0 0.0
    %4271 = vmatprep.subr.mxu0 0.0
    %4272 = vmatpush1.msra.mxu0 0.0
    %4273 = vmatprep.subr.mxu0 0.0
    %4274 = vmatpush1.msra.mxu0 0.0
    %4275 = vmatprep.subr.mxu0 0.0
    %4276 = vmatpush1.msra.mxu0 0.0
    %4277 = vmatprep.subr.mxu0 0.0
    %4278 = vmatpush1.msra.mxu0 0.0
    %4279 = vmatprep.subr.mxu0 0.0
    %4280 = vmatpush1.msra.mxu0 0.0
    %4281 = vmatprep.subr.mxu0 0.0
    %4282 = vmatpush1.msra.mxu0 0.0
    %4283 = vmatprep.subr.mxu0 0.0
    %4284 = vmatpush1.msra.mxu0 0.0
    %4285 = vmatprep.subr.mxu0 0.0
    %4286 = vmatpush1.msra.mxu0 0.0
    %4287 = vmatprep.subr.mxu0 0.0
    %4288 = vmatpush1.msra.mxu0 0.0
    %4289 = vmatprep.subr.mxu0 0.0
    %4290 = vmatpush1.msra.mxu0 0.0
    %4291 = vmatprep.subr.mxu0 0.0
    %4292 = vmatpush1.msra.mxu0 0.0
    %4293 = vmatprep.mubr.f32.mxu0 0.0
    %4294 = vmatmul.mubr.f32.gmra.mrb[0].mxu0 %v4227
    %v4295 = vpop.f32.mrb[0].mxu0
    %v4296 = vadd.f32 0.0, %v4295
    %v4297 = vpop.f32.mrb[0].mxu0
    %4298 = vdwg.mxu0
    %v4299 = vadd.f32 %v4225, %v4296
    %v4300 = vld [vmem:[%s403 + $0x4] sm:$0x3]
    %4301 = vmatprep.subr.mxu0 0.0
    %4302 = vmatpush1.msra.mxu0 %v768
    %4303 = vmatprep.subr.mxu0 0.0
    %4304 = vmatpush1.msra.mxu0 %v769
    %4305 = vmatprep.subr.mxu0 0.0
    %4306 = vmatpush1.msra.mxu0 0.0
    %4307 = vmatprep.subr.mxu0 0.0
    %4308 = vmatpush1.msra.mxu0 0.0
    %4309 = vmatprep.subr.mxu0 0.0
    %4310 = vmatpush1.msra.mxu0 0.0
    %4311 = vmatprep.subr.mxu0 0.0
    %4312 = vmatpush1.msra.mxu0 0.0
    %4313 = vmatprep.subr.mxu0 0.0
    %4314 = vmatpush1.msra.mxu0 0.0
    %4315 = vmatprep.subr.mxu0 0.0
    %4316 = vmatpush1.msra.mxu0 0.0
    %4317 = vmatprep.subr.mxu0 0.0
    %4318 = vmatpush1.msra.mxu0 0.0
    %4319 = vmatprep.subr.mxu0 0.0
    %4320 = vmatpush1.msra.mxu0 0.0
    %4321 = vmatprep.subr.mxu0 0.0
    %4322 = vmatpush1.msra.mxu0 0.0
    %4323 = vmatprep.subr.mxu0 0.0
    %4324 = vmatpush1.msra.mxu0 0.0
    %4325 = vmatprep.subr.mxu0 0.0
    %4326 = vmatpush1.msra.mxu0 0.0
    %4327 = vmatprep.subr.mxu0 0.0
    %4328 = vmatpush1.msra.mxu0 0.0
    %4329 = vmatprep.subr.mxu0 0.0
    %4330 = vmatpush1.msra.mxu0 0.0
    %4331 = vmatprep.subr.mxu0 0.0
    %4332 = vmatpush1.msra.mxu0 0.0
    %4333 = vmatprep.subr.mxu0 0.0
    %4334 = vmatpush1.msra.mxu0 0.0
    %4335 = vmatprep.subr.mxu0 0.0
    %4336 = vmatpush1.msra.mxu0 0.0
    %4337 = vmatprep.subr.mxu0 0.0
    %4338 = vmatpush1.msra.mxu0 0.0
    %4339 = vmatprep.subr.mxu0 0.0
    %4340 = vmatpush1.msra.mxu0 0.0
    %4341 = vmatprep.subr.mxu0 0.0
    %4342 = vmatpush1.msra.mxu0 0.0
    %4343 = vmatprep.subr.mxu0 0.0
    %4344 = vmatpush1.msra.mxu0 0.0
    %4345 = vmatprep.subr.mxu0 0.0
    %4346 = vmatpush1.msra.mxu0 0.0
    %4347 = vmatprep.subr.mxu0 0.0
    %4348 = vmatpush1.msra.mxu0 0.0
    %4349 = vmatprep.subr.mxu0 0.0
    %4350 = vmatpush1.msra.mxu0 0.0
    %4351 = vmatprep.subr.mxu0 0.0
    %4352 = vmatpush1.msra.mxu0 0.0
    %4353 = vmatprep.subr.mxu0 0.0
    %4354 = vmatpush1.msra.mxu0 0.0
    %4355 = vmatprep.subr.mxu0 0.0
    %4356 = vmatpush1.msra.mxu0 0.0
    %4357 = vmatprep.subr.mxu0 0.0
    %4358 = vmatpush1.msra.mxu0 0.0
    %4359 = vmatprep.subr.mxu0 0.0
    %4360 = vmatpush1.msra.mxu0 0.0
    %4361 = vmatprep.subr.mxu0 0.0
    %4362 = vmatpush1.msra.mxu0 0.0
    %4363 = vmatprep.subr.mxu0 0.0
    %4364 = vmatpush1.msra.mxu0 0.0
    %4365 = vmatprep.mubr.f32.mxu0 0.0
    %4366 = vmatmul.mubr.f32.gmra.mrb[0].mxu0 %v4227
    %v4367 = vpop.f32.mrb[0].mxu0
    %v4368 = vadd.f32 0.0, %v4367
    %v4369 = vpop.f32.mrb[0].mxu0
    %4370 = vdwg.mxu0
    %v4371 = vadd.f32 %v4300, %v4368
    %v4372 = vld [vmem:[%s577 + $0x4] sm:$0x3]
    %4373 = vmatprep.subr.mxu0 0.0
    %4374 = vmatpush1.msra.mxu0 %v771
    %4375 = vmatprep.subr.mxu0 0.0
    %4376 = vmatpush1.msra.mxu0 %v772
    %4377 = vmatprep.subr.mxu0 0.0
    %4378 = vmatpush1.msra.mxu0 0.0
    %4379 = vmatprep.subr.mxu0 0.0
    %4380 = vmatpush1.msra.mxu0 0.0
    %4381 = vmatprep.subr.mxu0 0.0
    %4382 = vmatpush1.msra.mxu0 0.0
    %4383 = vmatprep.subr.mxu0 0.0
    %4384 = vmatpush1.msra.mxu0 0.0
    %4385 = vmatprep.subr.mxu0 0.0
    %4386 = vmatpush1.msra.mxu0 0.0
    %4387 = vmatprep.subr.mxu0 0.0
    %4388 = vmatpush1.msra.mxu0 0.0
    %4389 = vmatprep.subr.mxu0 0.0
    %4390 = vmatpush1.msra.mxu0 0.0
    %4391 = vmatprep.subr.mxu0 0.0
    %4392 = vmatpush1.msra.mxu0 0.0
    %4393 = vmatprep.subr.mxu0 0.0
    %4394 = vmatpush1.msra.mxu0 0.0
    %4395 = vmatprep.subr.mxu0 0.0
    %4396 = vmatpush1.msra.mxu0 0.0
    %4397 = vmatprep.subr.mxu0 0.0
    %4398 = vmatpush1.msra.mxu0 0.0
    %4399 = vmatprep.subr.mxu0 0.0
    %4400 = vmatpush1.msra.mxu0 0.0
    %4401 = vmatprep.subr.mxu0 0.0
    %4402 = vmatpush1.msra.mxu0 0.0
    %4403 = vmatprep.subr.mxu0 0.0
    %4404 = vmatpush1.msra.mxu0 0.0
    %4405 = vmatprep.subr.mxu0 0.0
    %4406 = vmatpush1.msra.mxu0 0.0
    %4407 = vmatprep.subr.mxu0 0.0
    %4408 = vmatpush1.msra.mxu0 0.0
    %4409 = vmatprep.subr.mxu0 0.0
    %4410 = vmatpush1.msra.mxu0 0.0
    %4411 = vmatprep.subr.mxu0 0.0
    %4412 = vmatpush1.msra.mxu0 0.0
    %4413 = vmatprep.subr.mxu0 0.0
    %4414 = vmatpush1.msra.mxu0 0.0
    %4415 = vmatprep.subr.mxu0 0.0
    %4416 = vmatpush1.msra.mxu0 0.0
    %4417 = vmatprep.subr.mxu0 0.0
    %4418 = vmatpush1.msra.mxu0 0.0
    %4419 = vmatprep.subr.mxu0 0.0
    %4420 = vmatpush1.msra.mxu0 0.0
    %4421 = vmatprep.subr.mxu0 0.0
    %4422 = vmatpush1.msra.mxu0 0.0
    %4423 = vmatprep.subr.mxu0 0.0
    %4424 = vmatpush1.msra.mxu0 0.0
    %4425 = vmatprep.subr.mxu0 0.0
    %4426 = vmatpush1.msra.mxu0 0.0
    %4427 = vmatprep.subr.mxu0 0.0
    %4428 = vmatpush1.msra.mxu0 0.0
    %4429 = vmatprep.subr.mxu0 0.0
    %4430 = vmatpush1.msra.mxu0 0.0
    %4431 = vmatprep.subr.mxu0 0.0
    %4432 = vmatpush1.msra.mxu0 0.0
    %4433 = vmatprep.subr.mxu0 0.0
    %4434 = vmatpush1.msra.mxu0 0.0
    %4435 = vmatprep.subr.mxu0 0.0
    %4436 = vmatpush1.msra.mxu0 0.0
    %4437 = vmatprep.mubr.f32.mxu0 0.0
    %4438 = vmatmul.mubr.f32.gmra.mrb[0].mxu0 %v4227
    %v4439 = vpop.f32.mrb[0].mxu0
    %v4440 = vadd.f32 0.0, %v4439
    %v4441 = vpop.f32.mrb[0].mxu0
    %4442 = vdwg.mxu0
    %v4443 = vadd.f32 %v4372, %v4440
    %v4444 = vld [vmem:[%s751 + $0x4] sm:$0x3]
    %4445 = vmatprep.subr.mxu0 0.0
    %4446 = vmatpush1.msra.mxu0 %v774
    %4447 = vmatprep.subr.mxu0 0.0
    %4448 = vmatpush1.msra.mxu0 %v775
    %4449 = vmatprep.subr.mxu0 0.0
    %4450 = vmatpush1.msra.mxu0 0.0
    %4451 = vmatprep.subr.mxu0 0.0
    %4452 = vmatpush1.msra.mxu0 0.0
    %4453 = vmatprep.subr.mxu0 0.0
    %4454 = vmatpush1.msra.mxu0 0.0
    %4455 = vmatprep.subr.mxu0 0.0
    %4456 = vmatpush1.msra.mxu0 0.0
    %4457 = vmatprep.subr.mxu0 0.0
    %4458 = vmatpush1.msra.mxu0 0.0
    %4459 = vmatprep.subr.mxu0 0.0
    %4460 = vmatpush1.msra.mxu0 0.0
    %4461 = vmatprep.subr.mxu0 0.0
    %4462 = vmatpush1.msra.mxu0 0.0
    %4463 = vmatprep.subr.mxu0 0.0
    %4464 = vmatpush1.msra.mxu0 0.0
    %4465 = vmatprep.subr.mxu0 0.0
    %4466 = vmatpush1.msra.mxu0 0.0
    %4467 = vmatprep.subr.mxu0 0.0
    %4468 = vmatpush1.msra.mxu0 0.0
    %4469 = vmatprep.subr.mxu0 0.0
    %4470 = vmatpush1.msra.mxu0 0.0
    %4471 = vmatprep.subr.mxu0 0.0
    %4472 = vmatpush1.msra.mxu0 0.0
    %4473 = vmatprep.subr.mxu0 0.0
    %4474 = vmatpush1.msra.mxu0 0.0
    %4475 = vmatprep.subr.mxu0 0.0
    %4476 = vmatpush1.msra.mxu0 0.0
    %4477 = vmatprep.subr.mxu0 0.0
    %4478 = vmatpush1.msra.mxu0 0.0
    %4479 = vmatprep.subr.mxu0 0.0
    %4480 = vmatpush1.msra.mxu0 0.0
    %4481 = vmatprep.subr.mxu0 0.0
    %4482 = vmatpush1.msra.mxu0 0.0
    %4483 = vmatprep.subr.mxu0 0.0
    %4484 = vmatpush1.msra.mxu0 0.0
    %4485 = vmatprep.subr.mxu0 0.0
    %4486 = vmatpush1.msra.mxu0 0.0
    %4487 = vmatprep.subr.mxu0 0.0
    %4488 = vmatpush1.msra.mxu0 0.0
    %4489 = vmatprep.subr.mxu0 0.0
    %4490 = vmatpush1.msra.mxu0 0.0
    %4491 = vmatprep.subr.mxu0 0.0
    %4492 = vmatpush1.msra.mxu0 0.0
    %4493 = vmatprep.subr.mxu0 0.0
    %4494 = vmatpush1.msra.mxu0 0.0
    %4495 = vmatprep.subr.mxu0 0.0
    %4496 = vmatpush1.msra.mxu0 0.0
    %4497 = vmatprep.subr.mxu0 0.0
    %4498 = vmatpush1.msra.mxu0 0.0
    %4499 = vmatprep.subr.mxu0 0.0
    %4500 = vmatpush1.msra.mxu0 0.0
    %4501 = vmatprep.subr.mxu0 0.0
    %4502 = vmatpush1.msra.mxu0 0.0
    %4503 = vmatprep.subr.mxu0 0.0
    %4504 = vmatpush1.msra.mxu0 0.0
    %4505 = vmatprep.subr.mxu0 0.0
    %4506 = vmatpush1.msra.mxu0 0.0
    %4507 = vmatprep.subr.mxu0 0.0
    %4508 = vmatpush1.msra.mxu0 0.0
    %4509 = vmatprep.mubr.f32.mxu0 0.0
    %4510 = vmatmul.mubr.f32.gmra.mrb[0].mxu0 %v4227
    %v4511 = vpop.f32.mrb[0].mxu0
    %v4512 = vadd.f32 0.0, %v4511
    %v4513 = vpop.f32.mrb[0].mxu0
    %4514 = vdwg.mxu0
    %v4515 = vadd.f32 %v4444, %v4512
    %v4516 = vxor.u32 %v4080, 2147483648
    %v4517 = vmul.f32 %v4516, 1.442695
    %v4518 = vpow.pop %v4517
    %v4519 = vadd.f32 %v4518, 1.0
    %v4520 = vrcp.pop %v4519
    %v4521 = vmul.f32 1.0, %v4520
    %v4522 = vmul.f32 %v4521, %v3899
    %v4523 = vxor.u32 %v4008, 2147483648
    %v4524 = vmul.f32 %v4523, 1.442695
    %v4525 = vpow.pop %v4524
    %v4526 = vadd.f32 %v4525, 1.0
    %v4527 = vrcp.pop %v4526
    %v4528 = vmul.f32 1.0, %v4527
    %v4529 = vtanh.pop %v4152
    %v4530 = vmul.f32 %v4528, %v4529
    %v4531 = vadd.f32 %v4522, %v4530
    %v4532 = vxor.u32 %v4224, 2147483648
    %v4533 = vmul.f32 %v4532, 1.442695
    %v4534 = vpow.pop %v4533
    %v4535 = vadd.f32 %v4534, 1.0
    %v4536 = vrcp.pop %v4535
    %v4537 = vmul.f32 1.0, %v4536
    %v4538 = vtanh.pop %v4531
    %v4539 = vmul.f32 %v4537, %v4538
    %v4540 = vxor.u32 %v4371, 2147483648
    %v4541 = vmul.f32 %v4540, 1.442695
    %v4542 = vpow.pop %v4541
    %v4543 = vadd.f32 %v4542, 1.0
    %v4544 = vrcp.pop %v4543
    %v4545 = vmul.f32 1.0, %v4544
    %v4546 = vmul.f32 %v4545, %v3923
    %v4547 = vxor.u32 %v4299, 2147483648
    %v4548 = vmul.f32 %v4547, 1.442695
    %v4549 = vpow.pop %v4548
    %v4550 = vadd.f32 %v4549, 1.0
    %v4551 = vrcp.pop %v4550
    %v4552 = vmul.f32 1.0, %v4551
    %v4553 = vtanh.pop %v4443
    %v4554 = vmul.f32 %v4552, %v4553
    %v4555 = vadd.f32 %v4546, %v4554
    %v4556 = vxor.u32 %v4515, 2147483648
    %v4557 = vmul.f32 %v4556, 1.442695
    %v4558 = vpow.pop %v4557
    %v4559 = vadd.f32 %v4558, 1.0
    %v4560 = vrcp.pop %v4559
    %v4561 = vmul.f32 1.0, %v4560
    %v4562 = vtanh.pop %v4555
    %v4563 = vmul.f32 %v4561, %v4562
    %4564 = vst.msk [vmem:[#allocation4 + $0xa] sm:$0x3] %vm1403, %v4539
    %4565 = vst.msk [vmem:[#allocation5 + $0x4] sm:$0x3] %vm1403, %v4563
    %v4566 = vld [vmem:[#allocation2 + $0xc] sm:$0x3]
    %v4568 = vsel %vm63, %v4539, 0
    %4570 = vmatprep.subr.mxu0 0.0
    %4571 = vmatpush1.msra.mxu0 %v754
    %4572 = vmatprep.subr.mxu0 0.0
    %4573 = vmatpush1.msra.mxu0 %v755
    %4574 = vmatprep.subr.mxu0 0.0
    %4575 = vmatpush1.msra.mxu0 0.0
    %4576 = vmatprep.subr.mxu0 0.0
    %4577 = vmatpush1.msra.mxu0 0.0
    %4578 = vmatprep.subr.mxu0 0.0
    %4579 = vmatpush1.msra.mxu0 0.0
    %4580 = vmatprep.subr.mxu0 0.0
    %4581 = vmatpush1.msra.mxu0 0.0
    %4582 = vmatprep.subr.mxu0 0.0
    %4583 = vmatpush1.msra.mxu0 0.0
    %4584 = vmatprep.subr.mxu0 0.0
    %4585 = vmatpush1.msra.mxu0 0.0
    %4586 = vmatprep.subr.mxu0 0.0
    %4587 = vmatpush1.msra.mxu0 0.0
    %4588 = vmatprep.subr.mxu0 0.0
    %4589 = vmatpush1.msra.mxu0 0.0
    %4590 = vmatprep.subr.mxu0 0.0
    %4591 = vmatpush1.msra.mxu0 0.0
    %4592 = vmatprep.subr.mxu0 0.0
    %4593 = vmatpush1.msra.mxu0 0.0
    %4594 = vmatprep.subr.mxu0 0.0
    %4595 = vmatpush1.msra.mxu0 0.0
    %4596 = vmatprep.subr.mxu0 0.0
    %4597 = vmatpush1.msra.mxu0 0.0
    %4598 = vmatprep.subr.mxu0 0.0
    %4599 = vmatpush1.msra.mxu0 0.0
    %4600 = vmatprep.subr.mxu0 0.0
    %4601 = vmatpush1.msra.mxu0 0.0
    %4602 = vmatprep.subr.mxu0 0.0
    %4603 = vmatpush1.msra.mxu0 0.0
    %4604 = vmatprep.subr.mxu0 0.0
    %4605 = vmatpush1.msra.mxu0 0.0
    %4606 = vmatprep.subr.mxu0 0.0
    %4607 = vmatpush1.msra.mxu0 0.0
    %4608 = vmatprep.subr.mxu0 0.0
    %4609 = vmatpush1.msra.mxu0 0.0
    %4610 = vmatprep.subr.mxu0 0.0
    %4611 = vmatpush1.msra.mxu0 0.0
    %4612 = vmatprep.subr.mxu0 0.0
    %4613 = vmatpush1.msra.mxu0 0.0
    %4614 = vmatprep.subr.mxu0 0.0
    %4615 = vmatpush1.msra.mxu0 0.0
    %4616 = vmatprep.subr.mxu0 0.0
    %4617 = vmatpush1.msra.mxu0 0.0
    %4618 = vmatprep.subr.mxu0 0.0
    %4619 = vmatpush1.msra.mxu0 0.0
    %4620 = vmatprep.subr.mxu0 0.0
    %4621 = vmatpush1.msra.mxu0 0.0
    %4622 = vmatprep.subr.mxu0 0.0
    %4623 = vmatpush1.msra.mxu0 0.0
    %4624 = vmatprep.subr.mxu0 0.0
    %4625 = vmatpush1.msra.mxu0 0.0
    %4626 = vmatprep.subr.mxu0 0.0
    %4627 = vmatpush1.msra.mxu0 0.0
    %4628 = vmatprep.subr.mxu0 0.0
    %4629 = vmatpush1.msra.mxu0 0.0
    %4630 = vmatprep.subr.mxu0 0.0
    %4631 = vmatpush1.msra.mxu0 0.0
    %4632 = vmatprep.subr.mxu0 0.0
    %4633 = vmatpush1.msra.mxu0 0.0
    %4634 = vmatprep.mubr.f32.mxu0 0.0
    %4635 = vmatmul.mubr.f32.gmra.mrb[0].mxu0 %v4568
    %v4636 = vpop.f32.mrb[0].mxu0
    %v4637 = vadd.f32 0.0, %v4636
    %v4638 = vpop.f32.mrb[0].mxu0
    %4639 = vdwg.mxu0
    %v4640 = vadd.f32 %v4566, %v4637
    %v4641 = vld [vmem:[%s316 + $0xc] sm:$0x3]
    %4642 = vmatprep.subr.mxu0 0.0
    %4643 = vmatpush1.msra.mxu0 %v757
    %4644 = vmatprep.subr.mxu0 0.0
    %4645 = vmatpush1.msra.mxu0 %v758
    %4646 = vmatprep.subr.mxu0 0.0
    %4647 = vmatpush1.msra.mxu0 0.0
    %4648 = vmatprep.subr.mxu0 0.0
    %4649 = vmatpush1.msra.mxu0 0.0
    %4650 = vmatprep.subr.mxu0 0.0
    %4651 = vmatpush1.msra.mxu0 0.0
    %4652 = vmatprep.subr.mxu0 0.0
    %4653 = vmatpush1.msra.mxu0 0.0
    %4654 = vmatprep.subr.mxu0 0.0
    %4655 = vmatpush1.msra.mxu0 0.0
    %4656 = vmatprep.subr.mxu0 0.0
    %4657 = vmatpush1.msra.mxu0 0.0
    %4658 = vmatprep.subr.mxu0 0.0
    %4659 = vmatpush1.msra.mxu0 0.0
    %4660 = vmatprep.subr.mxu0 0.0
    %4661 = vmatpush1.msra.mxu0 0.0
    %4662 = vmatprep.subr.mxu0 0.0
    %4663 = vmatpush1.msra.mxu0 0.0
    %4664 = vmatprep.subr.mxu0 0.0
    %4665 = vmatpush1.msra.mxu0 0.0
    %4666 = vmatprep.subr.mxu0 0.0
    %4667 = vmatpush1.msra.mxu0 0.0
    %4668 = vmatprep.subr.mxu0 0.0
    %4669 = vmatpush1.msra.mxu0 0.0
    %4670 = vmatprep.subr.mxu0 0.0
    %4671 = vmatpush1.msra.mxu0 0.0
    %4672 = vmatprep.subr.mxu0 0.0
    %4673 = vmatpush1.msra.mxu0 0.0
    %4674 = vmatprep.subr.mxu0 0.0
    %4675 = vmatpush1.msra.mxu0 0.0
    %4676 = vmatprep.subr.mxu0 0.0
    %4677 = vmatpush1.msra.mxu0 0.0
    %4678 = vmatprep.subr.mxu0 0.0
    %4679 = vmatpush1.msra.mxu0 0.0
    %4680 = vmatprep.subr.mxu0 0.0
    %4681 = vmatpush1.msra.mxu0 0.0
    %4682 = vmatprep.subr.mxu0 0.0
    %4683 = vmatpush1.msra.mxu0 0.0
    %4684 = vmatprep.subr.mxu0 0.0
    %4685 = vmatpush1.msra.mxu0 0.0
    %4686 = vmatprep.subr.mxu0 0.0
    %4687 = vmatpush1.msra.mxu0 0.0
    %4688 = vmatprep.subr.mxu0 0.0
    %4689 = vmatpush1.msra.mxu0 0.0
    %4690 = vmatprep.subr.mxu0 0.0
    %4691 = vmatpush1.msra.mxu0 0.0
    %4692 = vmatprep.subr.mxu0 0.0
    %4693 = vmatpush1.msra.mxu0 0.0
    %4694 = vmatprep.subr.mxu0 0.0
    %4695 = vmatpush1.msra.mxu0 0.0
    %4696 = vmatprep.subr.mxu0 0.0
    %4697 = vmatpush1.msra.mxu0 0.0
    %4698 = vmatprep.subr.mxu0 0.0
    %4699 = vmatpush1.msra.mxu0 0.0
    %4700 = vmatprep.subr.mxu0 0.0
    %4701 = vmatpush1.msra.mxu0 0.0
    %4702 = vmatprep.subr.mxu0 0.0
    %4703 = vmatpush1.msra.mxu0 0.0
    %4704 = vmatprep.subr.mxu0 0.0
    %4705 = vmatpush1.msra.mxu0 0.0
    %4706 = vmatprep.mubr.f32.mxu0 0.0
    %4707 = vmatmul.mubr.f32.gmra.mrb[0].mxu0 %v4568
    %v4708 = vpop.f32.mrb[0].mxu0
    %v4709 = vadd.f32 0.0, %v4708
    %v4710 = vpop.f32.mrb[0].mxu0
    %4711 = vdwg.mxu0
    %v4712 = vadd.f32 %v4641, %v4709
    %v4713 = vld [vmem:[%s490 + $0xc] sm:$0x3]
    %4714 = vmatprep.subr.mxu0 0.0
    %4715 = vmatpush1.msra.mxu0 %v760
    %4716 = vmatprep.subr.mxu0 0.0
    %4717 = vmatpush1.msra.mxu0 %v761
    %4718 = vmatprep.subr.mxu0 0.0
    %4719 = vmatpush1.msra.mxu0 0.0
    %4720 = vmatprep.subr.mxu0 0.0
    %4721 = vmatpush1.msra.mxu0 0.0
    %4722 = vmatprep.subr.mxu0 0.0
    %4723 = vmatpush1.msra.mxu0 0.0
    %4724 = vmatprep.subr.mxu0 0.0
    %4725 = vmatpush1.msra.mxu0 0.0
    %4726 = vmatprep.subr.mxu0 0.0
    %4727 = vmatpush1.msra.mxu0 0.0
    %4728 = vmatprep.subr.mxu0 0.0
    %4729 = vmatpush1.msra.mxu0 0.0
    %4730 = vmatprep.subr.mxu0 0.0
    %4731 = vmatpush1.msra.mxu0 0.0
    %4732 = vmatprep.subr.mxu0 0.0
    %4733 = vmatpush1.msra.mxu0 0.0
    %4734 = vmatprep.subr.mxu0 0.0
    %4735 = vmatpush1.msra.mxu0 0.0
    %4736 = vmatprep.subr.mxu0 0.0
    %4737 = vmatpush1.msra.mxu0 0.0
    %4738 = vmatprep.subr.mxu0 0.0
    %4739 = vmatpush1.msra.mxu0 0.0
    %4740 = vmatprep.subr.mxu0 0.0
    %4741 = vmatpush1.msra.mxu0 0.0
    %4742 = vmatprep.subr.mxu0 0.0
    %4743 = vmatpush1.msra.mxu0 0.0
    %4744 = vmatprep.subr.mxu0 0.0
    %4745 = vmatpush1.msra.mxu0 0.0
    %4746 = vmatprep.subr.mxu0 0.0
    %4747 = vmatpush1.msra.mxu0 0.0
    %4748 = vmatprep.subr.mxu0 0.0
    %4749 = vmatpush1.msra.mxu0 0.0
    %4750 = vmatprep.subr.mxu0 0.0
    %4751 = vmatpush1.msra.mxu0 0.0
    %4752 = vmatprep.subr.mxu0 0.0
    %4753 = vmatpush1.msra.mxu0 0.0
    %4754 = vmatprep.subr.mxu0 0.0
    %4755 = vmatpush1.msra.mxu0 0.0
    %4756 = vmatprep.subr.mxu0 0.0
    %4757 = vmatpush1.msra.mxu0 0.0
    %4758 = vmatprep.subr.mxu0 0.0
    %4759 = vmatpush1.msra.mxu0 0.0
    %4760 = vmatprep.subr.mxu0 0.0
    %4761 = vmatpush1.msra.mxu0 0.0
    %4762 = vmatprep.subr.mxu0 0.0
    %4763 = vmatpush1.msra.mxu0 0.0
    %4764 = vmatprep.subr.mxu0 0.0
    %4765 = vmatpush1.msra.mxu0 0.0
    %4766 = vmatprep.subr.mxu0 0.0
    %4767 = vmatpush1.msra.mxu0 0.0
    %4768 = vmatprep.subr.mxu0 0.0
    %4769 = vmatpush1.msra.mxu0 0.0
    %4770 = vmatprep.subr.mxu0 0.0
    %4771 = vmatpush1.msra.mxu0 0.0
    %4772 = vmatprep.subr.mxu0 0.0
    %4773 = vmatpush1.msra.mxu0 0.0
    %4774 = vmatprep.subr.mxu0 0.0
    %4775 = vmatpush1.msra.mxu0 0.0
    %4776 = vmatprep.subr.mxu0 0.0
    %4777 = vmatpush1.msra.mxu0 0.0
    %4778 = vmatprep.mubr.f32.mxu0 0.0
    %4779 = vmatmul.mubr.f32.gmra.mrb[0].mxu0 %v4568
    %v4780 = vpop.f32.mrb[0].mxu0
    %v4781 = vadd.f32 0.0, %v4780
    %v4782 = vpop.f32.mrb[0].mxu0
    %4783 = vdwg.mxu0
    %v4784 = vadd.f32 %v4713, %v4781
    %v4785 = vld [vmem:[%s664 + $0xc] sm:$0x3]
    %4786 = vmatprep.subr.mxu0 0.0
    %4787 = vmatpush1.msra.mxu0 %v763
    %4788 = vmatprep.subr.mxu0 0.0
    %4789 = vmatpush1.msra.mxu0 %v764
    %4790 = vmatprep.subr.mxu0 0.0
    %4791 = vmatpush1.msra.mxu0 0.0
    %4792 = vmatprep.subr.mxu0 0.0
    %4793 = vmatpush1.msra.mxu0 0.0
    %4794 = vmatprep.subr.mxu0 0.0
    %4795 = vmatpush1.msra.mxu0 0.0
    %4796 = vmatprep.subr.mxu0 0.0
    %4797 = vmatpush1.msra.mxu0 0.0
    %4798 = vmatprep.subr.mxu0 0.0
    %4799 = vmatpush1.msra.mxu0 0.0
    %4800 = vmatprep.subr.mxu0 0.0
    %4801 = vmatpush1.msra.mxu0 0.0
    %4802 = vmatprep.subr.mxu0 0.0
    %4803 = vmatpush1.msra.mxu0 0.0
    %4804 = vmatprep.subr.mxu0 0.0
    %4805 = vmatpush1.msra.mxu0 0.0
    %4806 = vmatprep.subr.mxu0 0.0
    %4807 = vmatpush1.msra.mxu0 0.0
    %4808 = vmatprep.subr.mxu0 0.0
    %4809 = vmatpush1.msra.mxu0 0.0
    %4810 = vmatprep.subr.mxu0 0.0
    %4811 = vmatpush1.msra.mxu0 0.0
    %4812 = vmatprep.subr.mxu0 0.0
    %4813 = vmatpush1.msra.mxu0 0.0
    %4814 = vmatprep.subr.mxu0 0.0
    %4815 = vmatpush1.msra.mxu0 0.0
    %4816 = vmatprep.subr.mxu0 0.0
    %4817 = vmatpush1.msra.mxu0 0.0
    %4818 = vmatprep.subr.mxu0 0.0
    %4819 = vmatpush1.msra.mxu0 0.0
    %4820 = vmatprep.subr.mxu0 0.0
    %4821 = vmatpush1.msra.mxu0 0.0
    %4822 = vmatprep.subr.mxu0 0.0
    %4823 = vmatpush1.msra.mxu0 0.0
    %4824 = vmatprep.subr.mxu0 0.0
    %4825 = vmatpush1.msra.mxu0 0.0
    %4826 = vmatprep.subr.mxu0 0.0
    %4827 = vmatpush1.msra.mxu0 0.0
    %4828 = vmatprep.subr.mxu0 0.0
    %4829 = vmatpush1.msra.mxu0 0.0
    %4830 = vmatprep.subr.mxu0 0.0
    %4831 = vmatpush1.msra.mxu0 0.0
    %4832 = vmatprep.subr.mxu0 0.0
    %4833 = vmatpush1.msra.mxu0 0.0
    %4834 = vmatprep.subr.mxu0 0.0
    %4835 = vmatpush1.msra.mxu0 0.0
    %4836 = vmatprep.subr.mxu0 0.0
    %4837 = vmatpush1.msra.mxu0 0.0
    %4838 = vmatprep.subr.mxu0 0.0
    %4839 = vmatpush1.msra.mxu0 0.0
    %4840 = vmatprep.subr.mxu0 0.0
    %4841 = vmatpush1.msra.mxu0 0.0
    %4842 = vmatprep.subr.mxu0 0.0
    %4843 = vmatpush1.msra.mxu0 0.0
    %4844 = vmatprep.subr.mxu0 0.0
    %4845 = vmatpush1.msra.mxu0 0.0
    %4846 = vmatprep.subr.mxu0 0.0
    %4847 = vmatpush1.msra.mxu0 0.0
    %4848 = vmatprep.subr.mxu0 0.0
    %4849 = vmatpush1.msra.mxu0 0.0
    %4850 = vmatprep.mubr.f32.mxu0 0.0
    %4851 = vmatmul.mubr.f32.gmra.mrb[0].mxu0 %v4568
    %v4852 = vpop.f32.mrb[0].mxu0
    %v4853 = vadd.f32 0.0, %v4852
    %v4854 = vpop.f32.mrb[0].mxu0
    %4855 = vdwg.mxu0
    %v4856 = vadd.f32 %v4785, %v4853
    %v4857 = vld [vmem:[#allocation3 + $0x2] sm:$0x3]
    %v4859 = vsel %vm63, %v4563, 0
    %4861 = vmatprep.subr.mxu0 0.0
    %4862 = vmatpush1.msra.mxu0 %v765
    %4863 = vmatprep.subr.mxu0 0.0
    %4864 = vmatpush1.msra.mxu0 %v766
    %4865 = vmatprep.subr.mxu0 0.0
    %4866 = vmatpush1.msra.mxu0 0.0
    %4867 = vmatprep.subr.mxu0 0.0
    %4868 = vmatpush1.msra.mxu0 0.0
    %4869 = vmatprep.subr.mxu0 0.0
    %4870 = vmatpush1.msra.mxu0 0.0
    %4871 = vmatprep.subr.mxu0 0.0
    %4872 = vmatpush1.msra.mxu0 0.0
    %4873 = vmatprep.subr.mxu0 0.0
    %4874 = vmatpush1.msra.mxu0 0.0
    %4875 = vmatprep.subr.mxu0 0.0
    %4876 = vmatpush1.msra.mxu0 0.0
    %4877 = vmatprep.subr.mxu0 0.0
    %4878 = vmatpush1.msra.mxu0 0.0
    %4879 = vmatprep.subr.mxu0 0.0
    %4880 = vmatpush1.msra.mxu0 0.0
    %4881 = vmatprep.subr.mxu0 0.0
    %4882 = vmatpush1.msra.mxu0 0.0
    %4883 = vmatprep.subr.mxu0 0.0
    %4884 = vmatpush1.msra.mxu0 0.0
    %4885 = vmatprep.subr.mxu0 0.0
    %4886 = vmatpush1.msra.mxu0 0.0
    %4887 = vmatprep.subr.mxu0 0.0
    %4888 = vmatpush1.msra.mxu0 0.0
    %4889 = vmatprep.subr.mxu0 0.0
    %4890 = vmatpush1.msra.mxu0 0.0
    %4891 = vmatprep.subr.mxu0 0.0
    %4892 = vmatpush1.msra.mxu0 0.0
    %4893 = vmatprep.subr.mxu0 0.0
    %4894 = vmatpush1.msra.mxu0 0.0
    %4895 = vmatprep.subr.mxu0 0.0
    %4896 = vmatpush1.msra.mxu0 0.0
    %4897 = vmatprep.subr.mxu0 0.0
    %4898 = vmatpush1.msra.mxu0 0.0
    %4899 = vmatprep.subr.mxu0 0.0
    %4900 = vmatpush1.msra.mxu0 0.0
    %4901 = vmatprep.subr.mxu0 0.0
    %4902 = vmatpush1.msra.mxu0 0.0
    %4903 = vmatprep.subr.mxu0 0.0
    %4904 = vmatpush1.msra.mxu0 0.0
    %4905 = vmatprep.subr.mxu0 0.0
    %4906 = vmatpush1.msra.mxu0 0.0
    %4907 = vmatprep.subr.mxu0 0.0
    %4908 = vmatpush1.msra.mxu0 0.0
    %4909 = vmatprep.subr.mxu0 0.0
    %4910 = vmatpush1.msra.mxu0 0.0
    %4911 = vmatprep.subr.mxu0 0.0
    %4912 = vmatpush1.msra.mxu0 0.0
    %4913 = vmatprep.subr.mxu0 0.0
    %4914 = vmatpush1.msra.mxu0 0.0
    %4915 = vmatprep.subr.mxu0 0.0
    %4916 = vmatpush1.msra.mxu0 0.0
    %4917 = vmatprep.subr.mxu0 0.0
    %4918 = vmatpush1.msra.mxu0 0.0
    %4919 = vmatprep.subr.mxu0 0.0
    %4920 = vmatpush1.msra.mxu0 0.0
    %4921 = vmatprep.subr.mxu0 0.0
    %4922 = vmatpush1.msra.mxu0 0.0
    %4923 = vmatprep.subr.mxu0 0.0
    %4924 = vmatpush1.msra.mxu0 0.0
    %4925 = vmatprep.mubr.f32.mxu0 0.0
    %4926 = vmatmul.mubr.f32.gmra.mrb[0].mxu0 %v4859
    %v4927 = vpop.f32.mrb[0].mxu0
    %v4928 = vadd.f32 0.0, %v4927
    %v4929 = vpop.f32.mrb[0].mxu0
    %4930 = vdwg.mxu0
    %v4931 = vadd.f32 %v4857, %v4928
    %v4932 = vld [vmem:[%s403 + $0x2] sm:$0x3]
    %4933 = vmatprep.subr.mxu0 0.0
    %4934 = vmatpush1.msra.mxu0 %v768
    %4935 = vmatprep.subr.mxu0 0.0
    %4936 = vmatpush1.msra.mxu0 %v769
    %4937 = vmatprep.subr.mxu0 0.0
    %4938 = vmatpush1.msra.mxu0 0.0
    %4939 = vmatprep.subr.mxu0 0.0
    %4940 = vmatpush1.msra.mxu0 0.0
    %4941 = vmatprep.subr.mxu0 0.0
    %4942 = vmatpush1.msra.mxu0 0.0
    %4943 = vmatprep.subr.mxu0 0.0
    %4944 = vmatpush1.msra.mxu0 0.0
    %4945 = vmatprep.subr.mxu0 0.0
    %4946 = vmatpush1.msra.mxu0 0.0
    %4947 = vmatprep.subr.mxu0 0.0
    %4948 = vmatpush1.msra.mxu0 0.0
    %4949 = vmatprep.subr.mxu0 0.0
    %4950 = vmatpush1.msra.mxu0 0.0
    %4951 = vmatprep.subr.mxu0 0.0
    %4952 = vmatpush1.msra.mxu0 0.0
    %4953 = vmatprep.subr.mxu0 0.0
    %4954 = vmatpush1.msra.mxu0 0.0
    %4955 = vmatprep.subr.mxu0 0.0
    %4956 = vmatpush1.msra.mxu0 0.0
    %4957 = vmatprep.subr.mxu0 0.0
    %4958 = vmatpush1.msra.mxu0 0.0
    %4959 = vmatprep.subr.mxu0 0.0
    %4960 = vmatpush1.msra.mxu0 0.0
    %4961 = vmatprep.subr.mxu0 0.0
    %4962 = vmatpush1.msra.mxu0 0.0
    %4963 = vmatprep.subr.mxu0 0.0
    %4964 = vmatpush1.msra.mxu0 0.0
    %4965 = vmatprep.subr.mxu0 0.0
    %4966 = vmatpush1.msra.mxu0 0.0
    %4967 = vmatprep.subr.mxu0 0.0
    %4968 = vmatpush1.msra.mxu0 0.0
    %4969 = vmatprep.subr.mxu0 0.0
    %4970 = vmatpush1.msra.mxu0 0.0
    %4971 = vmatprep.subr.mxu0 0.0
    %4972 = vmatpush1.msra.mxu0 0.0
    %4973 = vmatprep.subr.mxu0 0.0
    %4974 = vmatpush1.msra.mxu0 0.0
    %4975 = vmatprep.subr.mxu0 0.0
    %4976 = vmatpush1.msra.mxu0 0.0
    %4977 = vmatprep.subr.mxu0 0.0
    %4978 = vmatpush1.msra.mxu0 0.0
    %4979 = vmatprep.subr.mxu0 0.0
    %4980 = vmatpush1.msra.mxu0 0.0
    %4981 = vmatprep.subr.mxu0 0.0
    %4982 = vmatpush1.msra.mxu0 0.0
    %4983 = vmatprep.subr.mxu0 0.0
    %4984 = vmatpush1.msra.mxu0 0.0
    %4985 = vmatprep.subr.mxu0 0.0
    %4986 = vmatpush1.msra.mxu0 0.0
    %4987 = vmatprep.subr.mxu0 0.0
    %4988 = vmatpush1.msra.mxu0 0.0
    %4989 = vmatprep.subr.mxu0 0.0
    %4990 = vmatpush1.msra.mxu0 0.0
    %4991 = vmatprep.subr.mxu0 0.0
    %4992 = vmatpush1.msra.mxu0 0.0
    %4993 = vmatprep.subr.mxu0 0.0
    %4994 = vmatpush1.msra.mxu0 0.0
    %4995 = vmatprep.subr.mxu0 0.0
    %4996 = vmatpush1.msra.mxu0 0.0
    %4997 = vmatprep.mubr.f32.mxu0 0.0
    %4998 = vmatmul.mubr.f32.gmra.mrb[0].mxu0 %v4859
    %v4999 = vpop.f32.mrb[0].mxu0
    %v5000 = vadd.f32 0.0, %v4999
    %v5001 = vpop.f32.mrb[0].mxu0
    %5002 = vdwg.mxu0
    %v5003 = vadd.f32 %v4932, %v5000
    %v5004 = vld [vmem:[%s577 + $0x2] sm:$0x3]
    %5005 = vmatprep.subr.mxu0 0.0
    %5006 = vmatpush1.msra.mxu0 %v771
    %5007 = vmatprep.subr.mxu0 0.0
    %5008 = vmatpush1.msra.mxu0 %v772
    %5009 = vmatprep.subr.mxu0 0.0
    %5010 = vmatpush1.msra.mxu0 0.0
    %5011 = vmatprep.subr.mxu0 0.0
    %5012 = vmatpush1.msra.mxu0 0.0
    %5013 = vmatprep.subr.mxu0 0.0
    %5014 = vmatpush1.msra.mxu0 0.0
    %5015 = vmatprep.subr.mxu0 0.0
    %5016 = vmatpush1.msra.mxu0 0.0
    %5017 = vmatprep.subr.mxu0 0.0
    %5018 = vmatpush1.msra.mxu0 0.0
    %5019 = vmatprep.subr.mxu0 0.0
    %5020 = vmatpush1.msra.mxu0 0.0
    %5021 = vmatprep.subr.mxu0 0.0
    %5022 = vmatpush1.msra.mxu0 0.0
    %5023 = vmatprep.subr.mxu0 0.0
    %5024 = vmatpush1.msra.mxu0 0.0
    %5025 = vmatprep.subr.mxu0 0.0
    %5026 = vmatpush1.msra.mxu0 0.0
    %5027 = vmatprep.subr.mxu0 0.0
    %5028 = vmatpush1.msra.mxu0 0.0
    %5029 = vmatprep.subr.mxu0 0.0
    %5030 = vmatpush1.msra.mxu0 0.0
    %5031 = vmatprep.subr.mxu0 0.0
    %5032 = vmatpush1.msra.mxu0 0.0
    %5033 = vmatprep.subr.mxu0 0.0
    %5034 = vmatpush1.msra.mxu0 0.0
    %5035 = vmatprep.subr.mxu0 0.0
    %5036 = vmatpush1.msra.mxu0 0.0
    %5037 = vmatprep.subr.mxu0 0.0
    %5038 = vmatpush1.msra.mxu0 0.0
    %5039 = vmatprep.subr.mxu0 0.0
    %5040 = vmatpush1.msra.mxu0 0.0
    %5041 = vmatprep.subr.mxu0 0.0
    %5042 = vmatpush1.msra.mxu0 0.0
    %5043 = vmatprep.subr.mxu0 0.0
    %5044 = vmatpush1.msra.mxu0 0.0
    %5045 = vmatprep.subr.mxu0 0.0
    %5046 = vmatpush1.msra.mxu0 0.0
    %5047 = vmatprep.subr.mxu0 0.0
    %5048 = vmatpush1.msra.mxu0 0.0
    %5049 = vmatprep.subr.mxu0 0.0
    %5050 = vmatpush1.msra.mxu0 0.0
    %5051 = vmatprep.subr.mxu0 0.0
    %5052 = vmatpush1.msra.mxu0 0.0
    %5053 = vmatprep.subr.mxu0 0.0
    %5054 = vmatpush1.msra.mxu0 0.0
    %5055 = vmatprep.subr.mxu0 0.0
    %5056 = vmatpush1.msra.mxu0 0.0
    %5057 = vmatprep.subr.mxu0 0.0
    %5058 = vmatpush1.msra.mxu0 0.0
    %5059 = vmatprep.subr.mxu0 0.0
    %5060 = vmatpush1.msra.mxu0 0.0
    %5061 = vmatprep.subr.mxu0 0.0
    %5062 = vmatpush1.msra.mxu0 0.0
    %5063 = vmatprep.subr.mxu0 0.0
    %5064 = vmatpush1.msra.mxu0 0.0
    %5065 = vmatprep.subr.mxu0 0.0
    %5066 = vmatpush1.msra.mxu0 0.0
    %5067 = vmatprep.subr.mxu0 0.0
    %5068 = vmatpush1.msra.mxu0 0.0
    %5069 = vmatprep.mubr.f32.mxu0 0.0
    %5070 = vmatmul.mubr.f32.gmra.mrb[0].mxu0 %v4859
    %v5071 = vpop.f32.mrb[0].mxu0
    %v5072 = vadd.f32 0.0, %v5071
    %v5073 = vpop.f32.mrb[0].mxu0
    %5074 = vdwg.mxu0
    %v5075 = vadd.f32 %v5004, %v5072
    %v5076 = vld [vmem:[%s751 + $0x2] sm:$0x3]
    %5077 = vmatprep.subr.mxu0 0.0
    %5078 = vmatpush1.msra.mxu0 %v774
    %5079 = vmatprep.subr.mxu0 0.0
    %5080 = vmatpush1.msra.mxu0 %v775
    %5081 = vmatprep.subr.mxu0 0.0
    %5082 = vmatpush1.msra.mxu0 0.0
    %5083 = vmatprep.subr.mxu0 0.0
    %5084 = vmatpush1.msra.mxu0 0.0
    %5085 = vmatprep.subr.mxu0 0.0
    %5086 = vmatpush1.msra.mxu0 0.0
    %5087 = vmatprep.subr.mxu0 0.0
    %5088 = vmatpush1.msra.mxu0 0.0
    %5089 = vmatprep.subr.mxu0 0.0
    %5090 = vmatpush1.msra.mxu0 0.0
    %5091 = vmatprep.subr.mxu0 0.0
    %5092 = vmatpush1.msra.mxu0 0.0
    %5093 = vmatprep.subr.mxu0 0.0
    %5094 = vmatpush1.msra.mxu0 0.0
    %5095 = vmatprep.subr.mxu0 0.0
    %5096 = vmatpush1.msra.mxu0 0.0
    %5097 = vmatprep.subr.mxu0 0.0
    %5098 = vmatpush1.msra.mxu0 0.0
    %5099 = vmatprep.subr.mxu0 0.0
    %5100 = vmatpush1.msra.mxu0 0.0
    %5101 = vmatprep.subr.mxu0 0.0
    %5102 = vmatpush1.msra.mxu0 0.0
    %5103 = vmatprep.subr.mxu0 0.0
    %5104 = vmatpush1.msra.mxu0 0.0
    %5105 = vmatprep.subr.mxu0 0.0
    %5106 = vmatpush1.msra.mxu0 0.0
    %5107 = vmatprep.subr.mxu0 0.0
    %5108 = vmatpush1.msra.mxu0 0.0
    %5109 = vmatprep.subr.mxu0 0.0
    %5110 = vmatpush1.msra.mxu0 0.0
    %5111 = vmatprep.subr.mxu0 0.0
    %5112 = vmatpush1.msra.mxu0 0.0
    %5113 = vmatprep.subr.mxu0 0.0
    %5114 = vmatpush1.msra.mxu0 0.0
    %5115 = vmatprep.subr.mxu0 0.0
    %5116 = vmatpush1.msra.mxu0 0.0
    %5117 = vmatprep.subr.mxu0 0.0
    %5118 = vmatpush1.msra.mxu0 0.0
    %5119 = vmatprep.subr.mxu0 0.0
    %5120 = vmatpush1.msra.mxu0 0.0
    %5121 = vmatprep.subr.mxu0 0.0
    %5122 = vmatpush1.msra.mxu0 0.0
    %5123 = vmatprep.subr.mxu0 0.0
    %5124 = vmatpush1.msra.mxu0 0.0
    %5125 = vmatprep.subr.mxu0 0.0
    %5126 = vmatpush1.msra.mxu0 0.0
    %5127 = vmatprep.subr.mxu0 0.0
    %5128 = vmatpush1.msra.mxu0 0.0
    %5129 = vmatprep.subr.mxu0 0.0
    %5130 = vmatpush1.msra.mxu0 0.0
    %5131 = vmatprep.subr.mxu0 0.0
    %5132 = vmatpush1.msra.mxu0 0.0
    %5133 = vmatprep.subr.mxu0 0.0
    %5134 = vmatpush1.msra.mxu0 0.0
    %5135 = vmatprep.subr.mxu0 0.0
    %5136 = vmatpush1.msra.mxu0 0.0
    %5137 = vmatprep.subr.mxu0 0.0
    %5138 = vmatpush1.msra.mxu0 0.0
    %5139 = vmatprep.subr.mxu0 0.0
    %5140 = vmatpush1.msra.mxu0 0.0
    %5141 = vmatprep.mubr.f32.mxu0 0.0
    %5142 = vmatmul.mubr.f32.gmra.mrb[0].mxu0 %v4859
    %v5143 = vpop.f32.mrb[0].mxu0
    %v5144 = vadd.f32 0.0, %v5143
    %v5145 = vpop.f32.mrb[0].mxu0
    %5146 = vdwg.mxu0
    %v5147 = vadd.f32 %v5076, %v5144
    %v5148 = vxor.u32 %v4712, 2147483648
    %v5149 = vmul.f32 %v5148, 1.442695
    %v5150 = vpow.pop %v5149
    %v5151 = vadd.f32 %v5150, 1.0
    %v5152 = vrcp.pop %v5151
    %v5153 = vmul.f32 1.0, %v5152
    %v5154 = vmul.f32 %v5153, %v4531
    %v5155 = vxor.u32 %v4640, 2147483648
    %v5156 = vmul.f32 %v5155, 1.442695
    %v5157 = vpow.pop %v5156
    %v5158 = vadd.f32 %v5157, 1.0
    %v5159 = vrcp.pop %v5158
    %v5160 = vmul.f32 1.0, %v5159
    %v5161 = vtanh.pop %v4784
    %v5162 = vmul.f32 %v5160, %v5161
    %v5163 = vadd.f32 %v5154, %v5162
    %v5164 = vxor.u32 %v4856, 2147483648
    %v5165 = vmul.f32 %v5164, 1.442695
    %v5166 = vpow.pop %v5165
    %v5167 = vadd.f32 %v5166, 1.0
    %v5168 = vrcp.pop %v5167
    %v5169 = vmul.f32 1.0, %v5168
    %v5170 = vtanh.pop %v5163
    %v5171 = vmul.f32 %v5169, %v5170
    %v5172 = vxor.u32 %v5003, 2147483648
    %v5173 = vmul.f32 %v5172, 1.442695
    %v5174 = vpow.pop %v5173
    %v5175 = vadd.f32 %v5174, 1.0
    %v5176 = vrcp.pop %v5175
    %v5177 = vmul.f32 1.0, %v5176
    %v5178 = vmul.f32 %v5177, %v4555
    %v5179 = vxor.u32 %v4931, 2147483648
    %v5180 = vmul.f32 %v5179, 1.442695
    %v5181 = vpow.pop %v5180
    %v5182 = vadd.f32 %v5181, 1.0
    %v5183 = vrcp.pop %v5182
    %v5184 = vmul.f32 1.0, %v5183
    %v5185 = vtanh.pop %v5075
    %v5186 = vmul.f32 %v5184, %v5185
    %v5187 = vadd.f32 %v5178, %v5186
    %v5188 = vxor.u32 %v5147, 2147483648
    %v5189 = vmul.f32 %v5188, 1.442695
    %v5190 = vpow.pop %v5189
    %v5191 = vadd.f32 %v5190, 1.0
    %v5192 = vrcp.pop %v5191
    %v5193 = vmul.f32 1.0, %v5192
    %v5194 = vtanh.pop %v5187
    %v5195 = vmul.f32 %v5193, %v5194
    %5196 = vst.msk [vmem:[#allocation4 + $0xc] sm:$0x3] %vm1403, %v5171
    %5197 = vst.msk [vmem:[#allocation5 + $0x2] sm:$0x3] %vm1403, %v5195
    %v5198 = vld [vmem:[#allocation2 + $0xe] sm:$0x3]
    %v5200 = vsel %vm63, %v5171, 0
    %5202 = vmatprep.subr.mxu0 0.0
    %5203 = vmatpush1.msra.mxu0 %v754
    %5204 = vmatprep.subr.mxu0 0.0
    %5205 = vmatpush1.msra.mxu0 %v755
    %5206 = vmatprep.subr.mxu0 0.0
    %5207 = vmatpush1.msra.mxu0 0.0
    %5208 = vmatprep.subr.mxu0 0.0
    %5209 = vmatpush1.msra.mxu0 0.0
    %5210 = vmatprep.subr.mxu0 0.0
    %5211 = vmatpush1.msra.mxu0 0.0
    %5212 = vmatprep.subr.mxu0 0.0
    %5213 = vmatpush1.msra.mxu0 0.0
    %5214 = vmatprep.subr.mxu0 0.0
    %5215 = vmatpush1.msra.mxu0 0.0
    %5216 = vmatprep.subr.mxu0 0.0
    %5217 = vmatpush1.msra.mxu0 0.0
    %5218 = vmatprep.subr.mxu0 0.0
    %5219 = vmatpush1.msra.mxu0 0.0
    %5220 = vmatprep.subr.mxu0 0.0
    %5221 = vmatpush1.msra.mxu0 0.0
    %5222 = vmatprep.subr.mxu0 0.0
    %5223 = vmatpush1.msra.mxu0 0.0
    %5224 = vmatprep.subr.mxu0 0.0
    %5225 = vmatpush1.msra.mxu0 0.0
    %5226 = vmatprep.subr.mxu0 0.0
    %5227 = vmatpush1.msra.mxu0 0.0
    %5228 = vmatprep.subr.mxu0 0.0
    %5229 = vmatpush1.msra.mxu0 0.0
    %5230 = vmatprep.subr.mxu0 0.0
    %5231 = vmatpush1.msra.mxu0 0.0
    %5232 = vmatprep.subr.mxu0 0.0
    %5233 = vmatpush1.msra.mxu0 0.0
    %5234 = vmatprep.subr.mxu0 0.0
    %5235 = vmatpush1.msra.mxu0 0.0
    %5236 = vmatprep.subr.mxu0 0.0
    %5237 = vmatpush1.msra.mxu0 0.0
    %5238 = vmatprep.subr.mxu0 0.0
    %5239 = vmatpush1.msra.mxu0 0.0
    %5240 = vmatprep.subr.mxu0 0.0
    %5241 = vmatpush1.msra.mxu0 0.0
    %5242 = vmatprep.subr.mxu0 0.0
    %5243 = vmatpush1.msra.mxu0 0.0
    %5244 = vmatprep.subr.mxu0 0.0
    %5245 = vmatpush1.msra.mxu0 0.0
    %5246 = vmatprep.subr.mxu0 0.0
    %5247 = vmatpush1.msra.mxu0 0.0
    %5248 = vmatprep.subr.mxu0 0.0
    %5249 = vmatpush1.msra.mxu0 0.0
    %5250 = vmatprep.subr.mxu0 0.0
    %5251 = vmatpush1.msra.mxu0 0.0
    %5252 = vmatprep.subr.mxu0 0.0
    %5253 = vmatpush1.msra.mxu0 0.0
    %5254 = vmatprep.subr.mxu0 0.0
    %5255 = vmatpush1.msra.mxu0 0.0
    %5256 = vmatprep.subr.mxu0 0.0
    %5257 = vmatpush1.msra.mxu0 0.0
    %5258 = vmatprep.subr.mxu0 0.0
    %5259 = vmatpush1.msra.mxu0 0.0
    %5260 = vmatprep.subr.mxu0 0.0
    %5261 = vmatpush1.msra.mxu0 0.0
    %5262 = vmatprep.subr.mxu0 0.0
    %5263 = vmatpush1.msra.mxu0 0.0
    %5264 = vmatprep.subr.mxu0 0.0
    %5265 = vmatpush1.msra.mxu0 0.0
    %5266 = vmatprep.mubr.f32.mxu0 0.0
    %5267 = vmatmul.mubr.f32.gmra.mrb[0].mxu0 %v5200
    %v5268 = vpop.f32.mrb[0].mxu0
    %v5269 = vadd.f32 0.0, %v5268
    %v5270 = vpop.f32.mrb[0].mxu0
    %5271 = vdwg.mxu0
    %v5272 = vadd.f32 %v5198, %v5269
    %v5273 = vld [vmem:[%s316 + $0xe] sm:$0x3]
    %5274 = vmatprep.subr.mxu0 0.0
    %5275 = vmatpush1.msra.mxu0 %v757
    %5276 = vmatprep.subr.mxu0 0.0
    %5277 = vmatpush1.msra.mxu0 %v758
    %5278 = vmatprep.subr.mxu0 0.0
    %5279 = vmatpush1.msra.mxu0 0.0
    %5280 = vmatprep.subr.mxu0 0.0
    %5281 = vmatpush1.msra.mxu0 0.0
    %5282 = vmatprep.subr.mxu0 0.0
    %5283 = vmatpush1.msra.mxu0 0.0
    %5284 = vmatprep.subr.mxu0 0.0
    %5285 = vmatpush1.msra.mxu0 0.0
    %5286 = vmatprep.subr.mxu0 0.0
    %5287 = vmatpush1.msra.mxu0 0.0
    %5288 = vmatprep.subr.mxu0 0.0
    %5289 = vmatpush1.msra.mxu0 0.0
    %5290 = vmatprep.subr.mxu0 0.0
    %5291 = vmatpush1.msra.mxu0 0.0
    %5292 = vmatprep.subr.mxu0 0.0
    %5293 = vmatpush1.msra.mxu0 0.0
    %5294 = vmatprep.subr.mxu0 0.0
    %5295 = vmatpush1.msra.mxu0 0.0
    %5296 = vmatprep.subr.mxu0 0.0
    %5297 = vmatpush1.msra.mxu0 0.0
    %5298 = vmatprep.subr.mxu0 0.0
    %5299 = vmatpush1.msra.mxu0 0.0
    %5300 = vmatprep.subr.mxu0 0.0
    %5301 = vmatpush1.msra.mxu0 0.0
    %5302 = vmatprep.subr.mxu0 0.0
    %5303 = vmatpush1.msra.mxu0 0.0
    %5304 = vmatprep.subr.mxu0 0.0
    %5305 = vmatpush1.msra.mxu0 0.0
    %5306 = vmatprep.subr.mxu0 0.0
    %5307 = vmatpush1.msra.mxu0 0.0
    %5308 = vmatprep.subr.mxu0 0.0
    %5309 = vmatpush1.msra.mxu0 0.0
    %5310 = vmatprep.subr.mxu0 0.0
    %5311 = vmatpush1.msra.mxu0 0.0
    %5312 = vmatprep.subr.mxu0 0.0
    %5313 = vmatpush1.msra.mxu0 0.0
    %5314 = vmatprep.subr.mxu0 0.0
    %5315 = vmatpush1.msra.mxu0 0.0
    %5316 = vmatprep.subr.mxu0 0.0
    %5317 = vmatpush1.msra.mxu0 0.0
    %5318 = vmatprep.subr.mxu0 0.0
    %5319 = vmatpush1.msra.mxu0 0.0
    %5320 = vmatprep.subr.mxu0 0.0
    %5321 = vmatpush1.msra.mxu0 0.0
    %5322 = vmatprep.subr.mxu0 0.0
    %5323 = vmatpush1.msra.mxu0 0.0
    %5324 = vmatprep.subr.mxu0 0.0
    %5325 = vmatpush1.msra.mxu0 0.0
    %5326 = vmatprep.subr.mxu0 0.0
    %5327 = vmatpush1.msra.mxu0 0.0
    %5328 = vmatprep.subr.mxu0 0.0
    %5329 = vmatpush1.msra.mxu0 0.0
    %5330 = vmatprep.subr.mxu0 0.0
    %5331 = vmatpush1.msra.mxu0 0.0
    %5332 = vmatprep.subr.mxu0 0.0
    %5333 = vmatpush1.msra.mxu0 0.0
    %5334 = vmatprep.subr.mxu0 0.0
    %5335 = vmatpush1.msra.mxu0 0.0
    %5336 = vmatprep.subr.mxu0 0.0
    %5337 = vmatpush1.msra.mxu0 0.0
    %5338 = vmatprep.mubr.f32.mxu0 0.0
    %5339 = vmatmul.mubr.f32.gmra.mrb[0].mxu0 %v5200
    %v5340 = vpop.f32.mrb[0].mxu0
    %v5341 = vadd.f32 0.0, %v5340
    %v5342 = vpop.f32.mrb[0].mxu0
    %5343 = vdwg.mxu0
    %v5344 = vadd.f32 %v5273, %v5341
    %v5345 = vld [vmem:[%s490 + $0xe] sm:$0x3]
    %5346 = vmatprep.subr.mxu0 0.0
    %5347 = vmatpush1.msra.mxu0 %v760
    %5348 = vmatprep.subr.mxu0 0.0
    %5349 = vmatpush1.msra.mxu0 %v761
    %5350 = vmatprep.subr.mxu0 0.0
    %5351 = vmatpush1.msra.mxu0 0.0
    %5352 = vmatprep.subr.mxu0 0.0
    %5353 = vmatpush1.msra.mxu0 0.0
    %5354 = vmatprep.subr.mxu0 0.0
    %5355 = vmatpush1.msra.mxu0 0.0
    %5356 = vmatprep.subr.mxu0 0.0
    %5357 = vmatpush1.msra.mxu0 0.0
    %5358 = vmatprep.subr.mxu0 0.0
    %5359 = vmatpush1.msra.mxu0 0.0
    %5360 = vmatprep.subr.mxu0 0.0
    %5361 = vmatpush1.msra.mxu0 0.0
    %5362 = vmatprep.subr.mxu0 0.0
    %5363 = vmatpush1.msra.mxu0 0.0
    %5364 = vmatprep.subr.mxu0 0.0
    %5365 = vmatpush1.msra.mxu0 0.0
    %5366 = vmatprep.subr.mxu0 0.0
    %5367 = vmatpush1.msra.mxu0 0.0
    %5368 = vmatprep.subr.mxu0 0.0
    %5369 = vmatpush1.msra.mxu0 0.0
    %5370 = vmatprep.subr.mxu0 0.0
    %5371 = vmatpush1.msra.mxu0 0.0
    %5372 = vmatprep.subr.mxu0 0.0
    %5373 = vmatpush1.msra.mxu0 0.0
    %5374 = vmatprep.subr.mxu0 0.0
    %5375 = vmatpush1.msra.mxu0 0.0
    %5376 = vmatprep.subr.mxu0 0.0
    %5377 = vmatpush1.msra.mxu0 0.0
    %5378 = vmatprep.subr.mxu0 0.0
    %5379 = vmatpush1.msra.mxu0 0.0
    %5380 = vmatprep.subr.mxu0 0.0
    %5381 = vmatpush1.msra.mxu0 0.0
    %5382 = vmatprep.subr.mxu0 0.0
    %5383 = vmatpush1.msra.mxu0 0.0
    %5384 = vmatprep.subr.mxu0 0.0
    %5385 = vmatpush1.msra.mxu0 0.0
    %5386 = vmatprep.subr.mxu0 0.0
    %5387 = vmatpush1.msra.mxu0 0.0
    %5388 = vmatprep.subr.mxu0 0.0
    %5389 = vmatpush1.msra.mxu0 0.0
    %5390 = vmatprep.subr.mxu0 0.0
    %5391 = vmatpush1.msra.mxu0 0.0
    %5392 = vmatprep.subr.mxu0 0.0
    %5393 = vmatpush1.msra.mxu0 0.0
    %5394 = vmatprep.subr.mxu0 0.0
    %5395 = vmatpush1.msra.mxu0 0.0
    %5396 = vmatprep.subr.mxu0 0.0
    %5397 = vmatpush1.msra.mxu0 0.0
    %5398 = vmatprep.subr.mxu0 0.0
    %5399 = vmatpush1.msra.mxu0 0.0
    %5400 = vmatprep.subr.mxu0 0.0
    %5401 = vmatpush1.msra.mxu0 0.0
    %5402 = vmatprep.subr.mxu0 0.0
    %5403 = vmatpush1.msra.mxu0 0.0
    %5404 = vmatprep.subr.mxu0 0.0
    %5405 = vmatpush1.msra.mxu0 0.0
    %5406 = vmatprep.subr.mxu0 0.0
    %5407 = vmatpush1.msra.mxu0 0.0
    %5408 = vmatprep.subr.mxu0 0.0
    %5409 = vmatpush1.msra.mxu0 0.0
    %5410 = vmatprep.mubr.f32.mxu0 0.0
    %5411 = vmatmul.mubr.f32.gmra.mrb[0].mxu0 %v5200
    %v5412 = vpop.f32.mrb[0].mxu0
    %v5413 = vadd.f32 0.0, %v5412
    %v5414 = vpop.f32.mrb[0].mxu0
    %5415 = vdwg.mxu0
    %v5416 = vadd.f32 %v5345, %v5413
    %v5417 = vld [vmem:[%s664 + $0xe] sm:$0x3]
    %5418 = vmatprep.subr.mxu0 0.0
    %5419 = vmatpush1.msra.mxu0 %v763
    %5420 = vmatprep.subr.mxu0 0.0
    %5421 = vmatpush1.msra.mxu0 %v764
    %5422 = vmatprep.subr.mxu0 0.0
    %5423 = vmatpush1.msra.mxu0 0.0
    %5424 = vmatprep.subr.mxu0 0.0
    %5425 = vmatpush1.msra.mxu0 0.0
    %5426 = vmatprep.subr.mxu0 0.0
    %5427 = vmatpush1.msra.mxu0 0.0
    %5428 = vmatprep.subr.mxu0 0.0
    %5429 = vmatpush1.msra.mxu0 0.0
    %5430 = vmatprep.subr.mxu0 0.0
    %5431 = vmatpush1.msra.mxu0 0.0
    %5432 = vmatprep.subr.mxu0 0.0
    %5433 = vmatpush1.msra.mxu0 0.0
    %5434 = vmatprep.subr.mxu0 0.0
    %5435 = vmatpush1.msra.mxu0 0.0
    %5436 = vmatprep.subr.mxu0 0.0
    %5437 = vmatpush1.msra.mxu0 0.0
    %5438 = vmatprep.subr.mxu0 0.0
    %5439 = vmatpush1.msra.mxu0 0.0
    %5440 = vmatprep.subr.mxu0 0.0
    %5441 = vmatpush1.msra.mxu0 0.0
    %5442 = vmatprep.subr.mxu0 0.0
    %5443 = vmatpush1.msra.mxu0 0.0
    %5444 = vmatprep.subr.mxu0 0.0
    %5445 = vmatpush1.msra.mxu0 0.0
    %5446 = vmatprep.subr.mxu0 0.0
    %5447 = vmatpush1.msra.mxu0 0.0
    %5448 = vmatprep.subr.mxu0 0.0
    %5449 = vmatpush1.msra.mxu0 0.0
    %5450 = vmatprep.subr.mxu0 0.0
    %5451 = vmatpush1.msra.mxu0 0.0
    %5452 = vmatprep.subr.mxu0 0.0
    %5453 = vmatpush1.msra.mxu0 0.0
    %5454 = vmatprep.subr.mxu0 0.0
    %5455 = vmatpush1.msra.mxu0 0.0
    %5456 = vmatprep.subr.mxu0 0.0
    %5457 = vmatpush1.msra.mxu0 0.0
    %5458 = vmatprep.subr.mxu0 0.0
    %5459 = vmatpush1.msra.mxu0 0.0
    %5460 = vmatprep.subr.mxu0 0.0
    %5461 = vmatpush1.msra.mxu0 0.0
    %5462 = vmatprep.subr.mxu0 0.0
    %5463 = vmatpush1.msra.mxu0 0.0
    %5464 = vmatprep.subr.mxu0 0.0
    %5465 = vmatpush1.msra.mxu0 0.0
    %5466 = vmatprep.subr.mxu0 0.0
    %5467 = vmatpush1.msra.mxu0 0.0
    %5468 = vmatprep.subr.mxu0 0.0
    %5469 = vmatpush1.msra.mxu0 0.0
    %5470 = vmatprep.subr.mxu0 0.0
    %5471 = vmatpush1.msra.mxu0 0.0
    %5472 = vmatprep.subr.mxu0 0.0
    %5473 = vmatpush1.msra.mxu0 0.0
    %5474 = vmatprep.subr.mxu0 0.0
    %5475 = vmatpush1.msra.mxu0 0.0
    %5476 = vmatprep.subr.mxu0 0.0
    %5477 = vmatpush1.msra.mxu0 0.0
    %5478 = vmatprep.subr.mxu0 0.0
    %5479 = vmatpush1.msra.mxu0 0.0
    %5480 = vmatprep.subr.mxu0 0.0
    %5481 = vmatpush1.msra.mxu0 0.0
    %5482 = vmatprep.mubr.f32.mxu0 0.0
    %5483 = vmatmul.mubr.f32.gmra.mrb[0].mxu0 %v5200
    %v5484 = vpop.f32.mrb[0].mxu0
    %v5485 = vadd.f32 0.0, %v5484
    %v5486 = vpop.f32.mrb[0].mxu0
    %5487 = vdwg.mxu0
    %v5488 = vadd.f32 %v5417, %v5485
    %v5489 = vld [vmem:[#allocation3] sm:$0x3]
    %v5491 = vsel %vm63, %v5195, 0
    %5493 = vmatprep.subr.mxu0 0.0
    %5494 = vmatpush1.msra.mxu0 %v765
    %5495 = vmatprep.subr.mxu0 0.0
    %5496 = vmatpush1.msra.mxu0 %v766
    %5497 = vmatprep.subr.mxu0 0.0
    %5498 = vmatpush1.msra.mxu0 0.0
    %5499 = vmatprep.subr.mxu0 0.0
    %5500 = vmatpush1.msra.mxu0 0.0
    %5501 = vmatprep.subr.mxu0 0.0
    %5502 = vmatpush1.msra.mxu0 0.0
    %5503 = vmatprep.subr.mxu0 0.0
    %5504 = vmatpush1.msra.mxu0 0.0
    %5505 = vmatprep.subr.mxu0 0.0
    %5506 = vmatpush1.msra.mxu0 0.0
    %5507 = vmatprep.subr.mxu0 0.0
    %5508 = vmatpush1.msra.mxu0 0.0
    %5509 = vmatprep.subr.mxu0 0.0
    %5510 = vmatpush1.msra.mxu0 0.0
    %5511 = vmatprep.subr.mxu0 0.0
    %5512 = vmatpush1.msra.mxu0 0.0
    %5513 = vmatprep.subr.mxu0 0.0
    %5514 = vmatpush1.msra.mxu0 0.0
    %5515 = vmatprep.subr.mxu0 0.0
    %5516 = vmatpush1.msra.mxu0 0.0
    %5517 = vmatprep.subr.mxu0 0.0
    %5518 = vmatpush1.msra.mxu0 0.0
    %5519 = vmatprep.subr.mxu0 0.0
    %5520 = vmatpush1.msra.mxu0 0.0
    %5521 = vmatprep.subr.mxu0 0.0
    %5522 = vmatpush1.msra.mxu0 0.0
    %5523 = vmatprep.subr.mxu0 0.0
    %5524 = vmatpush1.msra.mxu0 0.0
    %5525 = vmatprep.subr.mxu0 0.0
    %5526 = vmatpush1.msra.mxu0 0.0
    %5527 = vmatprep.subr.mxu0 0.0
    %5528 = vmatpush1.msra.mxu0 0.0
    %5529 = vmatprep.subr.mxu0 0.0
    %5530 = vmatpush1.msra.mxu0 0.0
    %5531 = vmatprep.subr.mxu0 0.0
    %5532 = vmatpush1.msra.mxu0 0.0
    %5533 = vmatprep.subr.mxu0 0.0
    %5534 = vmatpush1.msra.mxu0 0.0
    %5535 = vmatprep.subr.mxu0 0.0
    %5536 = vmatpush1.msra.mxu0 0.0
    %5537 = vmatprep.subr.mxu0 0.0
    %5538 = vmatpush1.msra.mxu0 0.0
    %5539 = vmatprep.subr.mxu0 0.0
    %5540 = vmatpush1.msra.mxu0 0.0
    %5541 = vmatprep.subr.mxu0 0.0
    %5542 = vmatpush1.msra.mxu0 0.0
    %5543 = vmatprep.subr.mxu0 0.0
    %5544 = vmatpush1.msra.mxu0 0.0
    %5545 = vmatprep.subr.mxu0 0.0
    %5546 = vmatpush1.msra.mxu0 0.0
    %5547 = vmatprep.subr.mxu0 0.0
    %5548 = vmatpush1.msra.mxu0 0.0
    %5549 = vmatprep.subr.mxu0 0.0
    %5550 = vmatpush1.msra.mxu0 0.0
    %5551 = vmatprep.subr.mxu0 0.0
    %5552 = vmatpush1.msra.mxu0 0.0
    %5553 = vmatprep.subr.mxu0 0.0
    %5554 = vmatpush1.msra.mxu0 0.0
    %5555 = vmatprep.subr.mxu0 0.0
    %5556 = vmatpush1.msra.mxu0 0.0
    %5557 = vmatprep.mubr.f32.mxu0 0.0
    %5558 = vmatmul.mubr.f32.gmra.mrb[0].mxu0 %v5491
    %v5559 = vpop.f32.mrb[0].mxu0
    %v5560 = vadd.f32 0.0, %v5559
    %v5561 = vpop.f32.mrb[0].mxu0
    %5562 = vdwg.mxu0
    %v5563 = vadd.f32 %v5489, %v5560
    %v5564 = vld [vmem:[%s403] sm:$0x3]
    %5565 = vmatprep.subr.mxu0 0.0
    %5566 = vmatpush1.msra.mxu0 %v768
    %5567 = vmatprep.subr.mxu0 0.0
    %5568 = vmatpush1.msra.mxu0 %v769
    %5569 = vmatprep.subr.mxu0 0.0
    %5570 = vmatpush1.msra.mxu0 0.0
    %5571 = vmatprep.subr.mxu0 0.0
    %5572 = vmatpush1.msra.mxu0 0.0
    %5573 = vmatprep.subr.mxu0 0.0
    %5574 = vmatpush1.msra.mxu0 0.0
    %5575 = vmatprep.subr.mxu0 0.0
    %5576 = vmatpush1.msra.mxu0 0.0
    %5577 = vmatprep.subr.mxu0 0.0
    %5578 = vmatpush1.msra.mxu0 0.0
    %5579 = vmatprep.subr.mxu0 0.0
    %5580 = vmatpush1.msra.mxu0 0.0
    %5581 = vmatprep.subr.mxu0 0.0
    %5582 = vmatpush1.msra.mxu0 0.0
    %5583 = vmatprep.subr.mxu0 0.0
    %5584 = vmatpush1.msra.mxu0 0.0
    %5585 = vmatprep.subr.mxu0 0.0
    %5586 = vmatpush1.msra.mxu0 0.0
    %5587 = vmatprep.subr.mxu0 0.0
    %5588 = vmatpush1.msra.mxu0 0.0
    %5589 = vmatprep.subr.mxu0 0.0
    %5590 = vmatpush1.msra.mxu0 0.0
    %5591 = vmatprep.subr.mxu0 0.0
    %5592 = vmatpush1.msra.mxu0 0.0
    %5593 = vmatprep.subr.mxu0 0.0
    %5594 = vmatpush1.msra.mxu0 0.0
    %5595 = vmatprep.subr.mxu0 0.0
    %5596 = vmatpush1.msra.mxu0 0.0
    %5597 = vmatprep.subr.mxu0 0.0
    %5598 = vmatpush1.msra.mxu0 0.0
    %5599 = vmatprep.subr.mxu0 0.0
    %5600 = vmatpush1.msra.mxu0 0.0
    %5601 = vmatprep.subr.mxu0 0.0
    %5602 = vmatpush1.msra.mxu0 0.0
    %5603 = vmatprep.subr.mxu0 0.0
    %5604 = vmatpush1.msra.mxu0 0.0
    %5605 = vmatprep.subr.mxu0 0.0
    %5606 = vmatpush1.msra.mxu0 0.0
    %5607 = vmatprep.subr.mxu0 0.0
    %5608 = vmatpush1.msra.mxu0 0.0
    %5609 = vmatprep.subr.mxu0 0.0
    %5610 = vmatpush1.msra.mxu0 0.0
    %5611 = vmatprep.subr.mxu0 0.0
    %5612 = vmatpush1.msra.mxu0 0.0
    %5613 = vmatprep.subr.mxu0 0.0
    %5614 = vmatpush1.msra.mxu0 0.0
    %5615 = vmatprep.subr.mxu0 0.0
    %5616 = vmatpush1.msra.mxu0 0.0
    %5617 = vmatprep.subr.mxu0 0.0
    %5618 = vmatpush1.msra.mxu0 0.0
    %5619 = vmatprep.subr.mxu0 0.0
    %5620 = vmatpush1.msra.mxu0 0.0
    %5621 = vmatprep.subr.mxu0 0.0
    %5622 = vmatpush1.msra.mxu0 0.0
    %5623 = vmatprep.subr.mxu0 0.0
    %5624 = vmatpush1.msra.mxu0 0.0
    %5625 = vmatprep.subr.mxu0 0.0
    %5626 = vmatpush1.msra.mxu0 0.0
    %5627 = vmatprep.subr.mxu0 0.0
    %5628 = vmatpush1.msra.mxu0 0.0
    %5629 = vmatprep.mubr.f32.mxu0 0.0
    %5630 = vmatmul.mubr.f32.gmra.mrb[0].mxu0 %v5491
    %v5631 = vpop.f32.mrb[0].mxu0
    %v5632 = vadd.f32 0.0, %v5631
    %v5633 = vpop.f32.mrb[0].mxu0
    %5634 = vdwg.mxu0
    %v5635 = vadd.f32 %v5564, %v5632
    %v5636 = vld [vmem:[%s577] sm:$0x3]
    %5637 = vmatprep.subr.mxu0 0.0
    %5638 = vmatpush1.msra.mxu0 %v771
    %5639 = vmatprep.subr.mxu0 0.0
    %5640 = vmatpush1.msra.mxu0 %v772
    %5641 = vmatprep.subr.mxu0 0.0
    %5642 = vmatpush1.msra.mxu0 0.0
    %5643 = vmatprep.subr.mxu0 0.0
    %5644 = vmatpush1.msra.mxu0 0.0
    %5645 = vmatprep.subr.mxu0 0.0
    %5646 = vmatpush1.msra.mxu0 0.0
    %5647 = vmatprep.subr.mxu0 0.0
    %5648 = vmatpush1.msra.mxu0 0.0
    %5649 = vmatprep.subr.mxu0 0.0
    %5650 = vmatpush1.msra.mxu0 0.0
    %5651 = vmatprep.subr.mxu0 0.0
    %5652 = vmatpush1.msra.mxu0 0.0
    %5653 = vmatprep.subr.mxu0 0.0
    %5654 = vmatpush1.msra.mxu0 0.0
    %5655 = vmatprep.subr.mxu0 0.0
    %5656 = vmatpush1.msra.mxu0 0.0
    %5657 = vmatprep.subr.mxu0 0.0
    %5658 = vmatpush1.msra.mxu0 0.0
    %5659 = vmatprep.subr.mxu0 0.0
    %5660 = vmatpush1.msra.mxu0 0.0
    %5661 = vmatprep.subr.mxu0 0.0
    %5662 = vmatpush1.msra.mxu0 0.0
    %5663 = vmatprep.subr.mxu0 0.0
    %5664 = vmatpush1.msra.mxu0 0.0
    %5665 = vmatprep.subr.mxu0 0.0
    %5666 = vmatpush1.msra.mxu0 0.0
    %5667 = vmatprep.subr.mxu0 0.0
    %5668 = vmatpush1.msra.mxu0 0.0
    %5669 = vmatprep.subr.mxu0 0.0
    %5670 = vmatpush1.msra.mxu0 0.0
    %5671 = vmatprep.subr.mxu0 0.0
    %5672 = vmatpush1.msra.mxu0 0.0
    %5673 = vmatprep.subr.mxu0 0.0
    %5674 = vmatpush1.msra.mxu0 0.0
    %5675 = vmatprep.subr.mxu0 0.0
    %5676 = vmatpush1.msra.mxu0 0.0
    %5677 = vmatprep.subr.mxu0 0.0
    %5678 = vmatpush1.msra.mxu0 0.0
    %5679 = vmatprep.subr.mxu0 0.0
    %5680 = vmatpush1.msra.mxu0 0.0
    %5681 = vmatprep.subr.mxu0 0.0
    %5682 = vmatpush1.msra.mxu0 0.0
    %5683 = vmatprep.subr.mxu0 0.0
    %5684 = vmatpush1.msra.mxu0 0.0
    %5685 = vmatprep.subr.mxu0 0.0
    %5686 = vmatpush1.msra.mxu0 0.0
    %5687 = vmatprep.subr.mxu0 0.0
    %5688 = vmatpush1.msra.mxu0 0.0
    %5689 = vmatprep.subr.mxu0 0.0
    %5690 = vmatpush1.msra.mxu0 0.0
    %5691 = vmatprep.subr.mxu0 0.0
    %5692 = vmatpush1.msra.mxu0 0.0
    %5693 = vmatprep.subr.mxu0 0.0
    %5694 = vmatpush1.msra.mxu0 0.0
    %5695 = vmatprep.subr.mxu0 0.0
    %5696 = vmatpush1.msra.mxu0 0.0
    %5697 = vmatprep.subr.mxu0 0.0
    %5698 = vmatpush1.msra.mxu0 0.0
    %5699 = vmatprep.subr.mxu0 0.0
    %5700 = vmatpush1.msra.mxu0 0.0
    %5701 = vmatprep.mubr.f32.mxu0 0.0
    %5702 = vmatmul.mubr.f32.gmra.mrb[0].mxu0 %v5491
    %v5703 = vpop.f32.mrb[0].mxu0
    %v5704 = vadd.f32 0.0, %v5703
    %v5705 = vpop.f32.mrb[0].mxu0
    %5706 = vdwg.mxu0
    %v5707 = vadd.f32 %v5636, %v5704
    %v5708 = vld [vmem:[%s751] sm:$0x3]
    %5709 = vmatprep.subr.mxu0 0.0
    %5710 = vmatpush1.msra.mxu0 %v774
    %5711 = vmatprep.subr.mxu0 0.0
    %5712 = vmatpush1.msra.mxu0 %v775
    %5713 = vmatprep.subr.mxu0 0.0
    %5714 = vmatpush1.msra.mxu0 0.0
    %5715 = vmatprep.subr.mxu0 0.0
    %5716 = vmatpush1.msra.mxu0 0.0
    %5717 = vmatprep.subr.mxu0 0.0
    %5718 = vmatpush1.msra.mxu0 0.0
    %5719 = vmatprep.subr.mxu0 0.0
    %5720 = vmatpush1.msra.mxu0 0.0
    %5721 = vmatprep.subr.mxu0 0.0
    %5722 = vmatpush1.msra.mxu0 0.0
    %5723 = vmatprep.subr.mxu0 0.0
    %5724 = vmatpush1.msra.mxu0 0.0
    %5725 = vmatprep.subr.mxu0 0.0
    %5726 = vmatpush1.msra.mxu0 0.0
    %5727 = vmatprep.subr.mxu0 0.0
    %5728 = vmatpush1.msra.mxu0 0.0
    %5729 = vmatprep.subr.mxu0 0.0
    %5730 = vmatpush1.msra.mxu0 0.0
    %5731 = vmatprep.subr.mxu0 0.0
    %5732 = vmatpush1.msra.mxu0 0.0
    %5733 = vmatprep.subr.mxu0 0.0
    %5734 = vmatpush1.msra.mxu0 0.0
    %5735 = vmatprep.subr.mxu0 0.0
    %5736 = vmatpush1.msra.mxu0 0.0
    %5737 = vmatprep.subr.mxu0 0.0
    %5738 = vmatpush1.msra.mxu0 0.0
    %5739 = vmatprep.subr.mxu0 0.0
    %5740 = vmatpush1.msra.mxu0 0.0
    %5741 = vmatprep.subr.mxu0 0.0
    %5742 = vmatpush1.msra.mxu0 0.0
    %5743 = vmatprep.subr.mxu0 0.0
    %5744 = vmatpush1.msra.mxu0 0.0
    %5745 = vmatprep.subr.mxu0 0.0
    %5746 = vmatpush1.msra.mxu0 0.0
    %5747 = vmatprep.subr.mxu0 0.0
    %5748 = vmatpush1.msra.mxu0 0.0
    %5749 = vmatprep.subr.mxu0 0.0
    %5750 = vmatpush1.msra.mxu0 0.0
    %5751 = vmatprep.subr.mxu0 0.0
    %5752 = vmatpush1.msra.mxu0 0.0
    %5753 = vmatprep.subr.mxu0 0.0
    %5754 = vmatpush1.msra.mxu0 0.0
    %5755 = vmatprep.subr.mxu0 0.0
    %5756 = vmatpush1.msra.mxu0 0.0
    %5757 = vmatprep.subr.mxu0 0.0
    %5758 = vmatpush1.msra.mxu0 0.0
    %5759 = vmatprep.subr.mxu0 0.0
    %5760 = vmatpush1.msra.mxu0 0.0
    %5761 = vmatprep.subr.mxu0 0.0
    %5762 = vmatpush1.msra.mxu0 0.0
    %5763 = vmatprep.subr.mxu0 0.0
    %5764 = vmatpush1.msra.mxu0 0.0
    %5765 = vmatprep.subr.mxu0 0.0
    %5766 = vmatpush1.msra.mxu0 0.0
    %5767 = vmatprep.subr.mxu0 0.0
    %5768 = vmatpush1.msra.mxu0 0.0
    %5769 = vmatprep.subr.mxu0 0.0
    %5770 = vmatpush1.msra.mxu0 0.0
    %5771 = vmatprep.subr.mxu0 0.0
    %5772 = vmatpush1.msra.mxu0 0.0
    %5773 = vmatprep.mubr.f32.mxu0 0.0
    %5774 = vmatmul.mubr.f32.gmra.mrb[0].mxu0 %v5491
    %v5775 = vpop.f32.mrb[0].mxu0
    %v5776 = vadd.f32 0.0, %v5775
    %v5777 = vpop.f32.mrb[0].mxu0
    %5778 = vdwg.mxu0
    %v5779 = vadd.f32 %v5708, %v5776
    %v5780 = vxor.u32 %v5344, 2147483648
    %v5781 = vmul.f32 %v5780, 1.442695
    %v5782 = vpow.pop %v5781
    %v5783 = vadd.f32 %v5782, 1.0
    %v5784 = vrcp.pop %v5783
    %v5785 = vmul.f32 1.0, %v5784
    %v5786 = vmul.f32 %v5785, %v5163
    %v5787 = vxor.u32 %v5272, 2147483648
    %v5788 = vmul.f32 %v5787, 1.442695
    %v5789 = vpow.pop %v5788
    %v5790 = vadd.f32 %v5789, 1.0
    %v5791 = vrcp.pop %v5790
    %v5792 = vmul.f32 1.0, %v5791
    %v5793 = vtanh.pop %v5416
    %v5794 = vmul.f32 %v5792, %v5793
    %v5795 = vadd.f32 %v5786, %v5794
    %v5796 = vxor.u32 %v5488, 2147483648
    %v5797 = vmul.f32 %v5796, 1.442695
    %v5798 = vpow.pop %v5797
    %v5799 = vadd.f32 %v5798, 1.0
    %v5800 = vrcp.pop %v5799
    %v5801 = vmul.f32 1.0, %v5800
    %v5802 = vtanh.pop %v5795
    %v5803 = vmul.f32 %v5801, %v5802
    %v5804 = vxor.u32 %v5635, 2147483648
    %v5805 = vmul.f32 %v5804, 1.442695
    %v5806 = vpow.pop %v5805
    %v5807 = vadd.f32 %v5806, 1.0
    %v5808 = vrcp.pop %v5807
    %v5809 = vmul.f32 1.0, %v5808
    %v5810 = vmul.f32 %v5809, %v5187
    %v5811 = vxor.u32 %v5563, 2147483648
    %v5812 = vmul.f32 %v5811, 1.442695
    %v5813 = vpow.pop %v5812
    %v5814 = vadd.f32 %v5813, 1.0
    %v5815 = vrcp.pop %v5814
    %v5816 = vmul.f32 1.0, %v5815
    %v5817 = vtanh.pop %v5707
    %v5818 = vmul.f32 %v5816, %v5817
    %v5819 = vadd.f32 %v5810, %v5818
    %v5820 = vxor.u32 %v5779, 2147483648
    %v5821 = vmul.f32 %v5820, 1.442695
    %v5822 = vpow.pop %v5821
    %v5823 = vadd.f32 %v5822, 1.0
    %v5824 = vrcp.pop %v5823
    %v5825 = vmul.f32 1.0, %v5824
    %v5826 = vtanh.pop %v5819
    %v5827 = vmul.f32 %v5825, %v5826
    %5828 = vst.msk [vmem:[#allocation4 + $0xe] sm:$0x3] %vm1403, %v5803
    %5829 = vst.msk [vmem:[#allocation5] sm:$0x3] %vm1403, %v5827
    %v5830 = vld [vmem:[#allocation4] sm:$0xff]
    %v5831 = vld [vmem:[#allocation4 + $0x8] sm:$0xff]
    %v5832 = vld [vmem:[%s7] sm:$0xff]
    %v5833 = vld [vmem:[%s7 + $0x8] sm:$0xff]
    %v5834 = vld [vmem:[#allocation5] sm:$0xff]
    %v5835 = vld [vmem:[#allocation5 + $0x8] sm:$0xff]
    %v5836 = vld [vmem:[%s8] sm:$0xff]
    %v5837 = vld [vmem:[%s8 + $0x8] sm:$0xff]
    %v5839 = vsel %vm63, %v5834, 0
    %v5842 = vsel %vm63, %v5835, 0
    %5844 = vmatprep.subr.mxu0 0.0
    %5845 = vmatpush1.msra.mxu0 %v5836
    %5846 = vmatprep.subr.mxu0 0.0
    %5847 = vmatpush1.msra.mxu0 %v5837
    %5848 = vmatprep.subr.mxu0 0.0
    %5849 = vmatpush1.msra.mxu0 0.0
    %5850 = vmatprep.subr.mxu0 0.0
    %5851 = vmatpush1.msra.mxu0 0.0
    %5852 = vmatprep.subr.mxu0 0.0
    %5853 = vmatpush1.msra.mxu0 0.0
    %5854 = vmatprep.subr.mxu0 0.0
    %5855 = vmatpush1.msra.mxu0 0.0
    %5856 = vmatprep.subr.mxu0 0.0
    %5857 = vmatpush1.msra.mxu0 0.0
    %5858 = vmatprep.subr.mxu0 0.0
    %5859 = vmatpush1.msra.mxu0 0.0
    %5860 = vmatprep.subr.mxu0 0.0
    %5861 = vmatpush1.msra.mxu0 0.0
    %5862 = vmatprep.subr.mxu0 0.0
    %5863 = vmatpush1.msra.mxu0 0.0
    %5864 = vmatprep.subr.mxu0 0.0
    %5865 = vmatpush1.msra.mxu0 0.0
    %5866 = vmatprep.subr.mxu0 0.0
    %5867 = vmatpush1.msra.mxu0 0.0
    %5868 = vmatprep.subr.mxu0 0.0
    %5869 = vmatpush1.msra.mxu0 0.0
    %5870 = vmatprep.subr.mxu0 0.0
    %5871 = vmatpush1.msra.mxu0 0.0
    %5872 = vmatprep.subr.mxu0 0.0
    %5873 = vmatpush1.msra.mxu0 0.0
    %5874 = vmatprep.subr.mxu0 0.0
    %5875 = vmatpush1.msra.mxu0 0.0
    %5876 = vmatprep.subr.mxu0 0.0
    %5877 = vmatpush1.msra.mxu0 0.0
    %5878 = vmatprep.subr.mxu0 0.0
    %5879 = vmatpush1.msra.mxu0 0.0
    %5880 = vmatprep.subr.mxu0 0.0
    %5881 = vmatpush1.msra.mxu0 0.0
    %5882 = vmatprep.subr.mxu0 0.0
    %5883 = vmatpush1.msra.mxu0 0.0
    %5884 = vmatprep.subr.mxu0 0.0
    %5885 = vmatpush1.msra.mxu0 0.0
    %5886 = vmatprep.subr.mxu0 0.0
    %5887 = vmatpush1.msra.mxu0 0.0
    %5888 = vmatprep.subr.mxu0 0.0
    %5889 = vmatpush1.msra.mxu0 0.0
    %5890 = vmatprep.subr.mxu0 0.0
    %5891 = vmatpush1.msra.mxu0 0.0
    %5892 = vmatprep.subr.mxu0 0.0
    %5893 = vmatpush1.msra.mxu0 0.0
    %5894 = vmatprep.subr.mxu0 0.0
    %5895 = vmatpush1.msra.mxu0 0.0
    %5896 = vmatprep.subr.mxu0 0.0
    %5897 = vmatpush1.msra.mxu0 0.0
    %5898 = vmatprep.subr.mxu0 0.0
    %5899 = vmatpush1.msra.mxu0 0.0
    %5900 = vmatprep.subr.mxu0 0.0
    %5901 = vmatpush1.msra.mxu0 0.0
    %5902 = vmatprep.subr.mxu0 0.0
    %5903 = vmatpush1.msra.mxu0 0.0
    %5904 = vmatprep.subr.mxu0 0.0
    %5905 = vmatpush1.msra.mxu0 0.0
    %5906 = vmatprep.subr.mxu0 0.0
    %5907 = vmatpush1.msra.mxu0 0.0
    %5908 = vmatprep.mubr.f32.mxu0 0.0
    %5909 = vmatmul.mubr.f32.gmra.mrb[0].mxu0 %v5839
    %v5910 = vpop.f32.mrb[0].mxu0
    %v5911 = vadd.f32 0.0, %v5910
    %v5912 = vpop.f32.mrb[0].mxu0
    %5913 = vmatprep.mubr.f32.mxu0 0.0
    %5914 = vmatmul.mubr.f32.gmra.mrb[0].mxu0 %v5842
    %v5915 = vpop.f32.mrb[0].mxu0
    %v5916 = vadd.f32 0.0, %v5915
    %v5917 = vpop.f32.mrb[0].mxu0
    %5918 = vdwg.mxu0
    %v5920 = vsel %vm63, %v5830, 0
    %v5923 = vsel %vm63, %v5831, 0
    %5925 = vmatprep.subr.mxu0 0.0
    %5926 = vmatpush1.msra.mxu0 %v5832
    %5927 = vmatprep.subr.mxu0 0.0
    %5928 = vmatpush1.msra.mxu0 %v5833
    %5929 = vmatprep.subr.mxu0 0.0
    %5930 = vmatpush1.msra.mxu0 0.0
    %5931 = vmatprep.subr.mxu0 0.0
    %5932 = vmatpush1.msra.mxu0 0.0
    %5933 = vmatprep.subr.mxu0 0.0
    %5934 = vmatpush1.msra.mxu0 0.0
    %5935 = vmatprep.subr.mxu0 0.0
    %5936 = vmatpush1.msra.mxu0 0.0
    %5937 = vmatprep.subr.mxu0 0.0
    %5938 = vmatpush1.msra.mxu0 0.0
    %5939 = vmatprep.subr.mxu0 0.0
    %5940 = vmatpush1.msra.mxu0 0.0
    %5941 = vmatprep.subr.mxu0 0.0
    %5942 = vmatpush1.msra.mxu0 0.0
    %5943 = vmatprep.subr.mxu0 0.0
    %5944 = vmatpush1.msra.mxu0 0.0
    %5945 = vmatprep.subr.mxu0 0.0
    %5946 = vmatpush1.msra.mxu0 0.0
    %5947 = vmatprep.subr.mxu0 0.0
    %5948 = vmatpush1.msra.mxu0 0.0
    %5949 = vmatprep.subr.mxu0 0.0
    %5950 = vmatpush1.msra.mxu0 0.0
    %5951 = vmatprep.subr.mxu0 0.0
    %5952 = vmatpush1.msra.mxu0 0.0
    %5953 = vmatprep.subr.mxu0 0.0
    %5954 = vmatpush1.msra.mxu0 0.0
    %5955 = vmatprep.subr.mxu0 0.0
    %5956 = vmatpush1.msra.mxu0 0.0
    %5957 = vmatprep.subr.mxu0 0.0
    %5958 = vmatpush1.msra.mxu0 0.0
    %5959 = vmatprep.subr.mxu0 0.0
    %5960 = vmatpush1.msra.mxu0 0.0
    %5961 = vmatprep.subr.mxu0 0.0
    %5962 = vmatpush1.msra.mxu0 0.0
    %5963 = vmatprep.subr.mxu0 0.0
    %5964 = vmatpush1.msra.mxu0 0.0
    %5965 = vmatprep.subr.mxu0 0.0
    %5966 = vmatpush1.msra.mxu0 0.0
    %5967 = vmatprep.subr.mxu0 0.0
    %5968 = vmatpush1.msra.mxu0 0.0
    %5969 = vmatprep.subr.mxu0 0.0
    %5970 = vmatpush1.msra.mxu0 0.0
    %5971 = vmatprep.subr.mxu0 0.0
    %5972 = vmatpush1.msra.mxu0 0.0
    %5973 = vmatprep.subr.mxu0 0.0
    %5974 = vmatpush1.msra.mxu0 0.0
    %5975 = vmatprep.subr.mxu0 0.0
    %5976 = vmatpush1.msra.mxu0 0.0
    %5977 = vmatprep.subr.mxu0 0.0
    %5978 = vmatpush1.msra.mxu0 0.0
    %5979 = vmatprep.subr.mxu0 0.0
    %5980 = vmatpush1.msra.mxu0 0.0
    %5981 = vmatprep.subr.mxu0 0.0
    %5982 = vmatpush1.msra.mxu0 0.0
    %5983 = vmatprep.subr.mxu0 0.0
    %5984 = vmatpush1.msra.mxu0 0.0
    %5985 = vmatprep.subr.mxu0 0.0
    %5986 = vmatpush1.msra.mxu0 0.0
    %5987 = vmatprep.subr.mxu0 0.0
    %5988 = vmatpush1.msra.mxu0 0.0
    %5989 = vmatprep.mubr.f32.mxu0 0.0
    %5990 = vmatmul.mubr.f32.gmra.mrb[0].mxu0 %v5920
    %v5991 = vpop.f32.mrb[0].mxu0
    %v5992 = vadd.f32 %v5911, %v5991
    %v5993 = vpop.f32.mrb[0].mxu0
    %5994 = vmatprep.mubr.f32.mxu0 0.0
    %5995 = vmatmul.mubr.f32.gmra.mrb[0].mxu0 %v5923
    %v5996 = vpop.f32.mrb[0].mxu0
    %v5997 = vadd.f32 %v5916, %v5996
    %v5998 = vpop.f32.mrb[0].mxu0
    %5999 = vdwg.mxu0
    %v6000 = vld [vmem:[%s9] sm:$0x1]
    %v6002 = vlaneseq
    %v6003 = vshrl.u32 %v6002, 7
    %v6004 = vsub.s32 0, %v6003
    %v6005 = vrot.slane %v6000, %v6004
    %v6007 = vadd.f32 %v5992, %v6005
    %v6008 = vadd.f32 %v5997, %v6005
    %v6009 = vld [vmem:[%s12] sm:$0x1f]
    %v6010 = vlaneseq
    %v6011 = vshrl.u32 %v6010, 7
    %v6012 = vld [vmem:[%s10] sm:$0x1]
    %v6014 = vlaneseq
    %v6015 = vshrl.u32 %v6014, 7
    %v6016 = vsub.s32 0, %v6015
    %v6017 = vrot.slane %v6012, %v6016
    %v6019 = vadd.f32 %v6017, %v6007
    %v6020 = vlaneseq
    %v6021 = vshrl.u32 %v6020, 7
    %v6022 = vsub.s32 0, %v6021
    %v6023 = vrot.slane %v6019, %v6022
    %6025 = vbcast.lane.b32.xlu0 %v6023, 256
    %v6026 = vpop.permute.xlu0 %6025
    %v6027 = vlaneseq
    %v6028 = vshrl.u32 %v6027, 7
    %v6029 = vsub.s32 1, %v6028
    %v6030 = vrot.slane %v6019, %v6029
    %6032 = vbcast.lane.b32.xlu0 %v6030, 256
    %v6033 = vpop.permute.xlu0 %6032
    %v6034 = vadd.f32 %v6026, %v6009
    %v6035 = vadd.f32 %v6033, %v6009
    %vm6036 = vcmask 36864
    %v6037 = vsel %vm6036, %v6034, -inf
    %v6038 = vrot.slane %v6037, 4
    %v6039 = vmax.f32 %v6037, %v6038
    %v6040 = vrot.slane %v6039, 2
    %v6041 = vmax.f32 %v6039, %v6040
    %v6042 = vrot.slane %v6041, 1
    %v6043 = vmax.f32 %v6041, %v6042
    %v6044 = vsel %vm6036, %v6035, -inf
    %v6045 = vrot.slane %v6044, 4
    %v6046 = vmax.f32 %v6044, %v6045
    %v6047 = vrot.slane %v6046, 2
    %v6048 = vmax.f32 %v6046, %v6047
    %v6049 = vrot.slane %v6048, 1
    %v6050 = vmax.f32 %v6048, %v6049
    %vm6051 = vcmp.eq.f32.partialorder %v6034, %v6043
    %vm6052 = vcmp.eq.f32.partialorder %v6035, %v6050
    %v6053 = vsel %vm6051, %v6011, 5
    %v6054 = vsel %vm6052, %v6011, 5
    %v6055 = vsel %vm6036, %v6053, 2147483647
    %v6056 = vrot.slane %v6055, 4
    %vm6057 = vcmp.lt.s32.totalorder %v6055, %v6056
    %v6058 = vsel %vm6057, %v6055, %v6056
    %v6059 = vrot.slane %v6058, 2
    %vm6060 = vcmp.lt.s32.totalorder %v6058, %v6059
    %v6061 = vsel %vm6060, %v6058, %v6059
    %v6062 = vrot.slane %v6061, 1
    %vm6063 = vcmp.lt.s32.totalorder %v6061, %v6062
    %v6064 = vsel %vm6063, %v6061, %v6062
    %v6065 = vsel %vm6036, %v6054, 2147483647
    %v6066 = vrot.slane %v6065, 4
    %vm6067 = vcmp.lt.s32.totalorder %v6065, %v6066
    %v6068 = vsel %vm6067, %v6065, %v6066
    %v6069 = vrot.slane %v6068, 2
    %vm6070 = vcmp.lt.s32.totalorder %v6068, %v6069
    %v6071 = vsel %vm6070, %v6068, %v6069
    %v6072 = vrot.slane %v6071, 1
    %vm6073 = vcmp.lt.s32.totalorder %v6071, %v6072
    %v6074 = vsel %vm6073, %v6071, %v6072
    %v6076 = vrot.slane %v6007, 2
    %v6077 = vrot.slane %v6007, 3
    %v6080 = vadd.f32 %v6043, %v6076
    %v6081 = vadd.f32 %v6050, %v6077
    %v6082 = vlaneseq
    %v6083 = vshrl.u32 %v6082, 7
    %v6084 = vsub.s32 0, %v6083
    %v6085 = vrot.slane %v6080, %v6084
    %6087 = vbcast.lane.b32.xlu0 %v6085, 256
    %v6088 = vpop.permute.xlu0 %6087
    %v6089 = vlaneseq
    %v6090 = vshrl.u32 %v6089, 7
    %v6091 = vsub.s32 0, %v6090
    %v6092 = vrot.slane %v6081, %v6091
    %6094 = vbcast.lane.b32.xlu0 %v6092, 256
    %v6095 = vpop.permute.xlu0 %6094
    %v6096 = vadd.f32 %v6088, %v6009
    %v6097 = vadd.f32 %v6095, %v6009
    %v6098 = vsel %vm6036, %v6096, -inf
    %v6099 = vrot.slane %v6098, 4
    %v6100 = vmax.f32 %v6098, %v6099
    %v6101 = vrot.slane %v6100, 2
    %v6102 = vmax.f32 %v6100, %v6101
    %v6103 = vrot.slane %v6102, 1
    %v6104 = vmax.f32 %v6102, %v6103
    %v6105 = vsel %vm6036, %v6097, -inf
    %v6106 = vrot.slane %v6105, 4
    %v6107 = vmax.f32 %v6105, %v6106
    %v6108 = vrot.slane %v6107, 2
    %v6109 = vmax.f32 %v6107, %v6108
    %v6110 = vrot.slane %v6109, 1
    %v6111 = vmax.f32 %v6109, %v6110
    %vm6112 = vcmp.eq.f32.partialorder %v6096, %v6104
    %vm6113 = vcmp.eq.f32.partialorder %v6097, %v6111
    %v6114 = vsel %vm6112, %v6011, 5
    %v6115 = vsel %vm6113, %v6011, 5
    %v6116 = vsel %vm6036, %v6114, 2147483647
    %v6117 = vrot.slane %v6116, 4
    %vm6118 = vcmp.lt.s32.totalorder %v6116, %v6117
    %v6119 = vsel %vm6118, %v6116, %v6117
    %v6120 = vrot.slane %v6119, 2
    %vm6121 = vcmp.lt.s32.totalorder %v6119, %v6120
    %v6122 = vsel %vm6121, %v6119, %v6120
    %v6123 = vrot.slane %v6122, 1
    %vm6124 = vcmp.lt.s32.totalorder %v6122, %v6123
    %v6125 = vsel %vm6124, %v6122, %v6123
    %v6126 = vsel %vm6036, %v6115, 2147483647
    %v6127 = vrot.slane %v6126, 4
    %vm6128 = vcmp.lt.s32.totalorder %v6126, %v6127
    %v6129 = vsel %vm6128, %v6126, %v6127
    %v6130 = vrot.slane %v6129, 2
    %vm6131 = vcmp.lt.s32.totalorder %v6129, %v6130
    %v6132 = vsel %vm6131, %v6129, %v6130
    %v6133 = vrot.slane %v6132, 1
    %vm6134 = vcmp.lt.s32.totalorder %v6132, %v6133
    %v6135 = vsel %vm6134, %v6132, %v6133
    %v6136 = vrot.slane %v6007, 4
    %v6137 = vrot.slane %v6007, 5
    %v6140 = vadd.f32 %v6104, %v6136
    %v6141 = vadd.f32 %v6111, %v6137
    %v6142 = vlaneseq
    %v6143 = vshrl.u32 %v6142, 7
    %v6144 = vsub.s32 0, %v6143
    %v6145 = vrot.slane %v6140, %v6144
    %6147 = vbcast.lane.b32.xlu0 %v6145, 256
    %v6148 = vpop.permute.xlu0 %6147
    %v6149 = vlaneseq
    %v6150 = vshrl.u32 %v6149, 7
    %v6151 = vsub.s32 0, %v6150
    %v6152 = vrot.slane %v6141, %v6151
    %6154 = vbcast.lane.b32.xlu0 %v6152, 256
    %v6155 = vpop.permute.xlu0 %6154
    %v6156 = vadd.f32 %v6148, %v6009
    %v6157 = vadd.f32 %v6155, %v6009
    %v6158 = vsel %vm6036, %v6156, -inf
    %v6159 = vrot.slane %v6158, 4
    %v6160 = vmax.f32 %v6158, %v6159
    %v6161 = vrot.slane %v6160, 2
    %v6162 = vmax.f32 %v6160, %v6161
    %v6163 = vrot.slane %v6162, 1
    %v6164 = vmax.f32 %v6162, %v6163
    %v6165 = vsel %vm6036, %v6157, -inf
    %v6166 = vrot.slane %v6165, 4
    %v6167 = vmax.f32 %v6165, %v6166
    %v6168 = vrot.slane %v6167, 2
    %v6169 = vmax.f32 %v6167, %v6168
    %v6170 = vrot.slane %v6169, 1
    %v6171 = vmax.f32 %v6169, %v6170
    %vm6172 = vcmp.eq.f32.partialorder %v6156, %v6164
    %vm6173 = vcmp.eq.f32.partialorder %v6157, %v6171
    %v6174 = vsel %vm6172, %v6011, 5
    %v6175 = vsel %vm6173, %v6011, 5
    %v6176 = vsel %vm6036, %v6174, 2147483647
    %v6177 = vrot.slane %v6176, 4
    %vm6178 = vcmp.lt.s32.totalorder %v6176, %v6177
    %v6179 = vsel %vm6178, %v6176, %v6177
    %v6180 = vrot.slane %v6179, 2
    %vm6181 = vcmp.lt.s32.totalorder %v6179, %v6180
    %v6182 = vsel %vm6181, %v6179, %v6180
    %v6183 = vrot.slane %v6182, 1
    %vm6184 = vcmp.lt.s32.totalorder %v6182, %v6183
    %v6185 = vsel %vm6184, %v6182, %v6183
    %v6186 = vsel %vm6036, %v6175, 2147483647
    %v6187 = vrot.slane %v6186, 4
    %vm6188 = vcmp.lt.s32.totalorder %v6186, %v6187
    %v6189 = vsel %vm6188, %v6186, %v6187
    %v6190 = vrot.slane %v6189, 2
    %vm6191 = vcmp.lt.s32.totalorder %v6189, %v6190
    %v6192 = vsel %vm6191, %v6189, %v6190
    %v6193 = vrot.slane %v6192, 1
    %vm6194 = vcmp.lt.s32.totalorder %v6192, %v6193
    %v6195 = vsel %vm6194, %v6192, %v6193
    %v6196 = vrot.slane %v6007, 6
    %v6197 = vrot.slane %v6007, 7
    %v6200 = vadd.f32 %v6164, %v6196
    %v6201 = vadd.f32 %v6171, %v6197
    %v6202 = vlaneseq
    %v6203 = vshrl.u32 %v6202, 7
    %v6204 = vsub.s32 0, %v6203
    %v6205 = vrot.slane %v6200, %v6204
    %6207 = vbcast.lane.b32.xlu0 %v6205, 256
    %v6208 = vpop.permute.xlu0 %6207
    %v6209 = vlaneseq
    %v6210 = vshrl.u32 %v6209, 7
    %v6211 = vsub.s32 0, %v6210
    %v6212 = vrot.slane %v6201, %v6211
    %6214 = vbcast.lane.b32.xlu0 %v6212, 256
    %v6215 = vpop.permute.xlu0 %6214
    %v6216 = vadd.f32 %v6208, %v6009
    %v6217 = vadd.f32 %v6215, %v6009
    %v6218 = vsel %vm6036, %v6216, -inf
    %v6219 = vrot.slane %v6218, 4
    %v6220 = vmax.f32 %v6218, %v6219
    %v6221 = vrot.slane %v6220, 2
    %v6222 = vmax.f32 %v6220, %v6221
    %v6223 = vrot.slane %v6222, 1
    %v6224 = vmax.f32 %v6222, %v6223
    %v6225 = vsel %vm6036, %v6217, -inf
    %v6226 = vrot.slane %v6225, 4
    %v6227 = vmax.f32 %v6225, %v6226
    %v6228 = vrot.slane %v6227, 2
    %v6229 = vmax.f32 %v6227, %v6228
    %v6230 = vrot.slane %v6229, 1
    %v6231 = vmax.f32 %v6229, %v6230
    %vm6232 = vcmp.eq.f32.partialorder %v6216, %v6224
    %vm6233 = vcmp.eq.f32.partialorder %v6217, %v6231
    %v6234 = vsel %vm6232, %v6011, 5
    %v6235 = vsel %vm6233, %v6011, 5
    %v6236 = vsel %vm6036, %v6234, 2147483647
    %v6237 = vrot.slane %v6236, 4
    %vm6238 = vcmp.lt.s32.totalorder %v6236, %v6237
    %v6239 = vsel %vm6238, %v6236, %v6237
    %v6240 = vrot.slane %v6239, 2
    %vm6241 = vcmp.lt.s32.totalorder %v6239, %v6240
    %v6242 = vsel %vm6241, %v6239, %v6240
    %v6243 = vrot.slane %v6242, 1
    %vm6244 = vcmp.lt.s32.totalorder %v6242, %v6243
    %v6245 = vsel %vm6244, %v6242, %v6243
    %v6246 = vsel %vm6036, %v6235, 2147483647
    %v6247 = vrot.slane %v6246, 4
    %vm6248 = vcmp.lt.s32.totalorder %v6246, %v6247
    %v6249 = vsel %vm6248, %v6246, %v6247
    %v6250 = vrot.slane %v6249, 2
    %vm6251 = vcmp.lt.s32.totalorder %v6249, %v6250
    %v6252 = vsel %vm6251, %v6249, %v6250
    %v6253 = vrot.slane %v6252, 1
    %vm6254 = vcmp.lt.s32.totalorder %v6252, %v6253
    %v6255 = vsel %vm6254, %v6252, %v6253
    %v6257 = vrot.slane %v6008, 1
    %v6260 = vadd.f32 %v6224, %v6008
    %v6261 = vadd.f32 %v6231, %v6257
    %v6262 = vlaneseq
    %v6263 = vshrl.u32 %v6262, 7
    %v6264 = vsub.s32 0, %v6263
    %v6265 = vrot.slane %v6260, %v6264
    %6267 = vbcast.lane.b32.xlu0 %v6265, 256
    %v6268 = vpop.permute.xlu0 %6267
    %v6269 = vlaneseq
    %v6270 = vshrl.u32 %v6269, 7
    %v6271 = vsub.s32 0, %v6270
    %v6272 = vrot.slane %v6261, %v6271
    %6274 = vbcast.lane.b32.xlu0 %v6272, 256
    %v6275 = vpop.permute.xlu0 %6274
    %v6276 = vadd.f32 %v6268, %v6009
    %v6277 = vadd.f32 %v6275, %v6009
    %v6278 = vsel %vm6036, %v6276, -inf
    %v6279 = vrot.slane %v6278, 4
    %v6280 = vmax.f32 %v6278, %v6279
    %v6281 = vrot.slane %v6280, 2
    %v6282 = vmax.f32 %v6280, %v6281
    %v6283 = vrot.slane %v6282, 1
    %v6284 = vmax.f32 %v6282, %v6283
    %v6285 = vsel %vm6036, %v6277, -inf
    %v6286 = vrot.slane %v6285, 4
    %v6287 = vmax.f32 %v6285, %v6286
    %v6288 = vrot.slane %v6287, 2
    %v6289 = vmax.f32 %v6287, %v6288
    %v6290 = vrot.slane %v6289, 1
    %v6291 = vmax.f32 %v6289, %v6290
    %vm6292 = vcmp.eq.f32.partialorder %v6276, %v6284
    %vm6293 = vcmp.eq.f32.partialorder %v6277, %v6291
    %v6294 = vsel %vm6292, %v6011, 5
    %v6295 = vsel %vm6293, %v6011, 5
    %v6296 = vsel %vm6036, %v6294, 2147483647
    %v6297 = vrot.slane %v6296, 4
    %vm6298 = vcmp.lt.s32.totalorder %v6296, %v6297
    %v6299 = vsel %vm6298, %v6296, %v6297
    %v6300 = vrot.slane %v6299, 2
    %vm6301 = vcmp.lt.s32.totalorder %v6299, %v6300
    %v6302 = vsel %vm6301, %v6299, %v6300
    %v6303 = vrot.slane %v6302, 1
    %vm6304 = vcmp.lt.s32.totalorder %v6302, %v6303
    %v6305 = vsel %vm6304, %v6302, %v6303
    %v6306 = vsel %vm6036, %v6295, 2147483647
    %v6307 = vrot.slane %v6306, 4
    %vm6308 = vcmp.lt.s32.totalorder %v6306, %v6307
    %v6309 = vsel %vm6308, %v6306, %v6307
    %v6310 = vrot.slane %v6309, 2
    %vm6311 = vcmp.lt.s32.totalorder %v6309, %v6310
    %v6312 = vsel %vm6311, %v6309, %v6310
    %v6313 = vrot.slane %v6312, 1
    %vm6314 = vcmp.lt.s32.totalorder %v6312, %v6313
    %v6315 = vsel %vm6314, %v6312, %v6313
    %v6316 = vrot.slane %v6008, 2
    %v6317 = vrot.slane %v6008, 3
    %v6320 = vadd.f32 %v6284, %v6316
    %v6321 = vadd.f32 %v6291, %v6317
    %v6322 = vlaneseq
    %v6323 = vshrl.u32 %v6322, 7
    %v6324 = vsub.s32 0, %v6323
    %v6325 = vrot.slane %v6320, %v6324
    %6327 = vbcast.lane.b32.xlu0 %v6325, 256
    %v6328 = vpop.permute.xlu0 %6327
    %v6329 = vlaneseq
    %v6330 = vshrl.u32 %v6329, 7
    %v6331 = vsub.s32 0, %v6330
    %v6332 = vrot.slane %v6321, %v6331
    %6334 = vbcast.lane.b32.xlu0 %v6332, 256
    %v6335 = vpop.permute.xlu0 %6334
    %v6336 = vadd.f32 %v6328, %v6009
    %v6337 = vadd.f32 %v6335, %v6009
    %v6338 = vsel %vm6036, %v6336, -inf
    %v6339 = vrot.slane %v6338, 4
    %v6340 = vmax.f32 %v6338, %v6339
    %v6341 = vrot.slane %v6340, 2
    %v6342 = vmax.f32 %v6340, %v6341
    %v6343 = vrot.slane %v6342, 1
    %v6344 = vmax.f32 %v6342, %v6343
    %v6345 = vsel %vm6036, %v6337, -inf
    %v6346 = vrot.slane %v6345, 4
    %v6347 = vmax.f32 %v6345, %v6346
    %v6348 = vrot.slane %v6347, 2
    %v6349 = vmax.f32 %v6347, %v6348
    %v6350 = vrot.slane %v6349, 1
    %v6351 = vmax.f32 %v6349, %v6350
    %vm6352 = vcmp.eq.f32.partialorder %v6336, %v6344
    %vm6353 = vcmp.eq.f32.partialorder %v6337, %v6351
    %v6354 = vsel %vm6352, %v6011, 5
    %v6355 = vsel %vm6353, %v6011, 5
    %v6356 = vsel %vm6036, %v6354, 2147483647
    %v6357 = vrot.slane %v6356, 4
    %vm6358 = vcmp.lt.s32.totalorder %v6356, %v6357
    %v6359 = vsel %vm6358, %v6356, %v6357
    %v6360 = vrot.slane %v6359, 2
    %vm6361 = vcmp.lt.s32.totalorder %v6359, %v6360
    %v6362 = vsel %vm6361, %v6359, %v6360
    %v6363 = vrot.slane %v6362, 1
    %vm6364 = vcmp.lt.s32.totalorder %v6362, %v6363
    %v6365 = vsel %vm6364, %v6362, %v6363
    %v6366 = vsel %vm6036, %v6355, 2147483647
    %v6367 = vrot.slane %v6366, 4
    %vm6368 = vcmp.lt.s32.totalorder %v6366, %v6367
    %v6369 = vsel %vm6368, %v6366, %v6367
    %v6370 = vrot.slane %v6369, 2
    %vm6371 = vcmp.lt.s32.totalorder %v6369, %v6370
    %v6372 = vsel %vm6371, %v6369, %v6370
    %v6373 = vrot.slane %v6372, 1
    %vm6374 = vcmp.lt.s32.totalorder %v6372, %v6373
    %v6375 = vsel %vm6374, %v6372, %v6373
    %v6376 = vrot.slane %v6008, 4
    %v6377 = vrot.slane %v6008, 5
    %v6380 = vadd.f32 %v6344, %v6376
    %v6381 = vadd.f32 %v6351, %v6377
    %v6382 = vlaneseq
    %v6383 = vshrl.u32 %v6382, 7
    %v6384 = vsub.s32 0, %v6383
    %v6385 = vrot.slane %v6380, %v6384
    %6387 = vbcast.lane.b32.xlu0 %v6385, 256
    %v6388 = vpop.permute.xlu0 %6387
    %v6389 = vlaneseq
    %v6390 = vshrl.u32 %v6389, 7
    %v6391 = vsub.s32 0, %v6390
    %v6392 = vrot.slane %v6381, %v6391
    %6394 = vbcast.lane.b32.xlu0 %v6392, 256
    %v6395 = vpop.permute.xlu0 %6394
    %v6396 = vadd.f32 %v6388, %v6009
    %v6397 = vadd.f32 %v6395, %v6009
    %v6398 = vsel %vm6036, %v6396, -inf
    %v6399 = vrot.slane %v6398, 4
    %v6400 = vmax.f32 %v6398, %v6399
    %v6401 = vrot.slane %v6400, 2
    %v6402 = vmax.f32 %v6400, %v6401
    %v6403 = vrot.slane %v6402, 1
    %v6404 = vmax.f32 %v6402, %v6403
    %v6405 = vsel %vm6036, %v6397, -inf
    %v6406 = vrot.slane %v6405, 4
    %v6407 = vmax.f32 %v6405, %v6406
    %v6408 = vrot.slane %v6407, 2
    %v6409 = vmax.f32 %v6407, %v6408
    %v6410 = vrot.slane %v6409, 1
    %v6411 = vmax.f32 %v6409, %v6410
    %vm6412 = vcmp.eq.f32.partialorder %v6396, %v6404
    %vm6413 = vcmp.eq.f32.partialorder %v6397, %v6411
    %v6414 = vsel %vm6412, %v6011, 5
    %v6415 = vsel %vm6413, %v6011, 5
    %v6416 = vsel %vm6036, %v6414, 2147483647
    %v6417 = vrot.slane %v6416, 4
    %vm6418 = vcmp.lt.s32.totalorder %v6416, %v6417
    %v6419 = vsel %vm6418, %v6416, %v6417
    %v6420 = vrot.slane %v6419, 2
    %vm6421 = vcmp.lt.s32.totalorder %v6419, %v6420
    %v6422 = vsel %vm6421, %v6419, %v6420
    %v6423 = vrot.slane %v6422, 1
    %vm6424 = vcmp.lt.s32.totalorder %v6422, %v6423
    %v6425 = vsel %vm6424, %v6422, %v6423
    %v6426 = vsel %vm6036, %v6415, 2147483647
    %v6427 = vrot.slane %v6426, 4
    %vm6428 = vcmp.lt.s32.totalorder %v6426, %v6427
    %v6429 = vsel %vm6428, %v6426, %v6427
    %v6430 = vrot.slane %v6429, 2
    %vm6431 = vcmp.lt.s32.totalorder %v6429, %v6430
    %v6432 = vsel %vm6431, %v6429, %v6430
    %v6433 = vrot.slane %v6432, 1
    %vm6434 = vcmp.lt.s32.totalorder %v6432, %v6433
    %v6435 = vsel %vm6434, %v6432, %v6433
    %v6436 = vrot.slane %v6008, 6
    %v6437 = vrot.slane %v6008, 7
    %v6440 = vadd.f32 %v6404, %v6436
    %v6441 = vadd.f32 %v6411, %v6437
    %v6442 = vld [vmem:[%s11] sm:$0x1]
    %v6444 = vlaneseq
    %v6445 = vshrl.u32 %v6444, 7
    %v6446 = vsub.s32 0, %v6445
    %v6447 = vrot.slane %v6442, %v6446
    %v6449 = vadd.f32 %v6440, %v6447
    %v6450 = vadd.f32 %v6441, %v6447
    %v6451 = vlaneseq
    %v6452 = vand.u32 %v6451, 127
    %v6455 = vrot.slane %v6450, 7
    %vm6456 = vcmask 1041409
    %v6457 = vsel %vm6456, %v6455, %v6449
    %vm6459 = vcmask 33792
    %v6460 = vsel %vm6459, %v6457, -inf
    %6461 = vmax.xlane.f32.xlu0 %v6460
    %v6462 = vpop.xlane.xlu0 %6461
    %v6464 = vrot.slane %v6462, 1
    %vm6467 = vcmp.eq.f32.partialorder %v6449, %v6462
    %vm6468 = vcmp.eq.f32.partialorder %v6450, %v6464
    %v6469 = vsel %vm6467, %v6452, 5
    %v6470 = vsel %vm6468, %v6452, 5
    %v6471 = vrot.slane %v6470, 7
    %v6472 = vsel %vm6456, %v6471, %v6469
    %v6473 = vsel %vm6459, %v6472, 2147483647
    %v6474 = vand.u32 %v6473, 65535
    %v6475 = vshra.s32 %v6473, 16
    %v6476 = vcvt.s32.f32 %v6474
    %v6477 = vcvt.s32.f32 %v6475
    %6478 = vmin.xlane.f32.xlu0 %v6477
    %v6479 = vpop.xlane.xlu0 %6478
    %vm6480 = vcmp.eq.f32.partialorder %v6477, %v6479
    %v6481 = vsel %vm6480, %v6476, inf
    %6482 = vmin.xlane.f32.xlu0 %v6481
    %v6483 = vpop.xlane.xlu0 %6482
    %v6484 = vcvt.f32.s32 %v6483
    %v6485 = vcvt.f32.s32 %v6479
    %v6486 = vshll.u32 %v6485, 16
    %v6487 = vadd.s32 %v6486, %v6484
    %vm6488 = vcmp.eq.s32.totalorder %v6452, 7
    %v6489 = vsel %vm6488, %v6487, 0
    %vm6490 = vcmp.eq.s32.totalorder %v6452, %v6487
    %v6491 = vsel %vm6456, %v6435, %v6425
    %v6492 = vsel %vm6490, %v6491, 0
    %v6493 = vsel %vm6459, %v6492, 0
    %v6494 = vand.u32 %v6493, 65535
    %v6495 = vshrl.u32 %v6493, 16
    %v6496 = vcvt.s32.f32 %v6494
    %v6497 = vcvt.s32.f32 %v6495
    %6498 = vadd.xlane.f32.xlu0 %v6496
    %v6499 = vpop.xlane.xlu0 %6498
    %6500 = vadd.xlane.f32.xlu0 %v6497
    %v6501 = vpop.xlane.xlu0 %6500
    %v6502 = vcvt.f32.s32 %v6499
    %v6503 = vcvt.f32.s32 %v6501
    %v6504 = vshll.u32 %v6503, 16
    %v6505 = vadd.s32 %v6504, %v6502
    %vm6506 = vcmp.eq.s32.totalorder %v6452, 6
    %v6507 = vsel %vm6506, %v6505, %v6489
    %vm6508 = vcmp.eq.s32.totalorder %v6452, %v6505
    %v6509 = vsel %vm6456, %v6375, %v6365
    %v6510 = vsel %vm6508, %v6509, 0
    %v6511 = vsel %vm6459, %v6510, 0
    %v6512 = vand.u32 %v6511, 65535
    %v6513 = vshrl.u32 %v6511, 16
    %v6514 = vcvt.s32.f32 %v6512
    %v6515 = vcvt.s32.f32 %v6513
    %6516 = vadd.xlane.f32.xlu0 %v6514
    %v6517 = vpop.xlane.xlu0 %6516
    %6518 = vadd.xlane.f32.xlu0 %v6515
    %v6519 = vpop.xlane.xlu0 %6518
    %v6520 = vcvt.f32.s32 %v6517
    %v6521 = vcvt.f32.s32 %v6519
    %v6522 = vshll.u32 %v6521, 16
    %v6523 = vadd.s32 %v6522, %v6520
    %vm6524 = vcmp.eq.s32.totalorder %v6452, 5
    %v6525 = vsel %vm6524, %v6523, %v6507
    %vm6526 = vcmp.eq.s32.totalorder %v6452, %v6523
    %v6527 = vsel %vm6456, %v6315, %v6305
    %v6528 = vsel %vm6526, %v6527, 0
    %v6529 = vsel %vm6459, %v6528, 0
    %v6530 = vand.u32 %v6529, 65535
    %v6531 = vshrl.u32 %v6529, 16
    %v6532 = vcvt.s32.f32 %v6530
    %v6533 = vcvt.s32.f32 %v6531
    %6534 = vadd.xlane.f32.xlu0 %v6532
    %v6535 = vpop.xlane.xlu0 %6534
    %6536 = vadd.xlane.f32.xlu0 %v6533
    %v6537 = vpop.xlane.xlu0 %6536
    %v6538 = vcvt.f32.s32 %v6535
    %v6539 = vcvt.f32.s32 %v6537
    %v6540 = vshll.u32 %v6539, 16
    %v6541 = vadd.s32 %v6540, %v6538
    %vm6542 = vcmp.eq.s32.totalorder %v6452, 4
    %v6543 = vsel %vm6542, %v6541, %v6525
    %vm6544 = vcmp.eq.s32.totalorder %v6452, %v6541
    %v6545 = vsel %vm6456, %v6255, %v6245
    %v6546 = vsel %vm6544, %v6545, 0
    %v6547 = vsel %vm6459, %v6546, 0
    %v6548 = vand.u32 %v6547, 65535
    %v6549 = vshrl.u32 %v6547, 16
    %v6550 = vcvt.s32.f32 %v6548
    %v6551 = vcvt.s32.f32 %v6549
    %6552 = vadd.xlane.f32.xlu0 %v6550
    %v6553 = vpop.xlane.xlu0 %6552
    %6554 = vadd.xlane.f32.xlu0 %v6551
    %v6555 = vpop.xlane.xlu0 %6554
    %v6556 = vcvt.f32.s32 %v6553
    %v6557 = vcvt.f32.s32 %v6555
    %v6558 = vshll.u32 %v6557, 16
    %v6559 = vadd.s32 %v6558, %v6556
    %vm6560 = vcmp.eq.s32.totalorder %v6452, 3
    %v6561 = vsel %vm6560, %v6559, %v6543
    %vm6562 = vcmp.eq.s32.totalorder %v6452, %v6559
    %v6563 = vsel %vm6456, %v6195, %v6185
    %v6564 = vsel %vm6562, %v6563, 0
    %v6565 = vsel %vm6459, %v6564, 0
    %v6566 = vand.u32 %v6565, 65535
    %v6567 = vshrl.u32 %v6565, 16
    %v6568 = vcvt.s32.f32 %v6566
    %v6569 = vcvt.s32.f32 %v6567
    %6570 = vadd.xlane.f32.xlu0 %v6568
    %v6571 = vpop.xlane.xlu0 %6570
    %6572 = vadd.xlane.f32.xlu0 %v6569
    %v6573 = vpop.xlane.xlu0 %6572
    %v6574 = vcvt.f32.s32 %v6571
    %v6575 = vcvt.f32.s32 %v6573
    %v6576 = vshll.u32 %v6575, 16
    %v6577 = vadd.s32 %v6576, %v6574
    %vm6578 = vcmp.eq.s32.totalorder %v6452, 2
    %v6579 = vsel %vm6578, %v6577, %v6561
    %vm6580 = vcmp.eq.s32.totalorder %v6452, %v6577
    %v6581 = vsel %vm6456, %v6135, %v6125
    %v6582 = vsel %vm6580, %v6581, 0
    %v6583 = vsel %vm6459, %v6582, 0
    %v6584 = vand.u32 %v6583, 65535
    %v6585 = vshrl.u32 %v6583, 16
    %v6586 = vcvt.s32.f32 %v6584
    %v6587 = vcvt.s32.f32 %v6585
    %6588 = vadd.xlane.f32.xlu0 %v6586
    %v6589 = vpop.xlane.xlu0 %6588
    %6590 = vadd.xlane.f32.xlu0 %v6587
    %v6591 = vpop.xlane.xlu0 %6590
    %v6592 = vcvt.f32.s32 %v6589
    %v6593 = vcvt.f32.s32 %v6591
    %v6594 = vshll.u32 %v6593, 16
    %v6595 = vadd.s32 %v6594, %v6592
    %vm6596 = vcmp.eq.s32.totalorder %v6452, 1
    %v6597 = vsel %vm6596, %v6595, %v6579
    %vm6598 = vcmp.eq.s32.totalorder %v6452, %v6595
    %v6599 = vsel %vm6456, %v6074, %v6064
    %v6600 = vsel %vm6598, %v6599, 0
    %v6601 = vsel %vm6459, %v6600, 0
    %v6602 = vand.u32 %v6601, 65535
    %v6603 = vshrl.u32 %v6601, 16
    %v6604 = vcvt.s32.f32 %v6602
    %v6605 = vcvt.s32.f32 %v6603
    %6606 = vadd.xlane.f32.xlu0 %v6604
    %v6607 = vpop.xlane.xlu0 %6606
    %6608 = vadd.xlane.f32.xlu0 %v6605
    %v6609 = vpop.xlane.xlu0 %6608
    %v6610 = vcvt.f32.s32 %v6607
    %v6611 = vcvt.f32.s32 %v6609
    %v6612 = vshll.u32 %v6611, 16
    %v6613 = vadd.s32 %v6612, %v6610
    %vm6614 = vcmp.eq.s32.totalorder %v6452, 0
    %v6615 = vsel %vm6614, %v6613, %v6597
    %vm6616 = vcmask 58368
    %6617 = vst.msk [vmem:[#allocation6] sm:$0x3] %vm6616, %v6615
    // Predicated region
    $region54: #{bilstm_crf_decode.1} parent=1 // pred_check
      _
    $region55: #{bilstm_crf_decode.1} parent=1 // pred_check_branch
      %6619 = sbr.rel (0) target = $region57
    $region56: #{bilstm_crf_decode.1} parent=1 // pred_region
      %s6621 = ssub.s32 32, 32
      %6622 = vsyncadd [#allocation7], %s6621
      %s6624 = sshll.u32 [#allocation6], 4
      %s6625 = int_to_ptr.vmem [resolvable:$true] %s6624
      %6627 = dma.vmem_to_hbm [thread:$0]  %s6625, 32, %s13, [#allocation7]
    $region57: #{bilstm_crf_decode.1} parent=1 // pred_fallthru
      _
    // Predicated region
    $region58: #{bilstm_crf_decode.1} parent=1 // pred_check
      _
    $region59: #{bilstm_crf_decode.1} parent=1 // pred_check_branch
      %6629 = sbr.rel (0) target = $region61
    $region60: #{bilstm_crf_decode.1} parent=1 // pred_region
      %6630 = dma.done [#allocation7], 32
    $region61: #{bilstm_crf_decode.1} parent=1 // pred_fallthru
      _
    %6631 = vsyncpa [#allocation7], 1

</llo_original>
